<compile_context>
chip_gen: v7x
topology: tpu7x:2x2x1
jax: 0.10.0
libtpu: 0.0.40
codegen_flags: <defaults>
</compile_context>

<pallas_src>
import functools

import jax
import jax.numpy as jnp
from jax.experimental import pallas as pl
from jax.experimental.pallas import tpu as pltpu

EPS_BN = 1e-5
EPS_WS = 1e-5
LANE = 128                               # channel dims padded to the TPU lane width
VMEM_LIMIT_BYTES = 48 * 1024 * 1024      # headroom under v7x's 64 MiB physical VMEM
MXU_DTYPE = jnp.bfloat16                 # MXU operand dtype
ACT_DTYPE = jnp.bfloat16                 # inter-layer activation storage dtype


def _round_up(x, m):
    return ((x + m - 1) // m) * m


def _pick_tile_m(m, cap=512):
    """Largest row tile <= cap that divides m exactly."""
    for t in (1024, 512, 256, 128, 64, 32, 16, 8):
        if t <= cap and m % t == 0:
            return t
    # TODO(synk): cdiv grid + masked tail for M values with no small divisor.
    return m


# ----------------------------- Pallas kernels -----------------------------


def _conv1x1_bn_kernel(*refs, relu_in, apply_affine):
    """One (tm x Np) stripe of  y = act(x*scale+shift) @ w  plus BN partial statistics.

    Grid = (M-tiles, K-tiles); K innermost ("arbitrary") with an f32 VMEM accumulator.
    The whole output width Np is one lane-dense column tile, so the LHS tile is loaded
    and pre-processed exactly once.  On the last K step the accumulator is stored as
    bf16 and per-channel sum / sum-of-squares (f32) for this layer's BN are emitted.
    """
    if apply_affine:
        x_ref, scale_ref, shift_ref, w_ref, y_ref, stats_ref, acc_ref = refs
    else:
        x_ref, w_ref, y_ref, stats_ref, acc_ref = refs
        scale_ref = shift_ref = None

    k = pl.program_id(1)

    @pl.when(k == 0)
    def _init():
        acc_ref[...] = jnp.zeros_like(acc_ref)

    if apply_affine:
        a = x_ref[...].astype(jnp.float32) * scale_ref[...] + shift_ref[...]
        if relu_in:
            a = jnp.maximum(a, 0.0)
        a = a.astype(w_ref.dtype)
    else:
        a = x_ref[...].astype(w_ref.dtype)
    acc_ref[...] += jnp.dot(a, w_ref[...], preferred_element_type=jnp.float32)

    @pl.when(k == pl.num_programs(1) - 1)
    def _finalize():
        acc = acc_ref[...]
        y_ref[...] = acc.astype(y_ref.dtype)
        stats_ref[0, 0:1, :] = jnp.sum(acc, axis=0, keepdims=True)
        stats_ref[0, 1:2, :] = jnp.sum(acc * acc, axis=0, keepdims=True)


def conv1x1_bn_stats(x2d, w, *, scale_in=None, shift_in=None, relu_in=False, tm_cap=512):
    """Fused 1x1 conv: y = act(x*scale+shift) @ w, with per-channel sum/sumsq outputs.

    x2d: (M, Kp) bf16 (lane-padded).  w: (Kp, Np) bf16 (weight-standardized + padded).
    scale_in/shift_in: optional (1, Kp) f32 folded BN affine of the previous layer.
    Returns y (M, Np) bf16 and stats (M//tm, 2, Np) f32 (row 0 = sum, row 1 = sumsq).
    """
    M, Kp = x2d.shape
    Kp2, Np = w.shape
    assert Kp == Kp2 and Np % LANE == 0 and Kp % LANE == 0
    tk = 256 if Kp % 256 == 0 else LANE        # 256-wide operands fill the v6e/v7x MXU
    tm = _pick_tile_m(M, tm_cap)
    grid = (M // tm, Kp // tk)
    apply_affine = scale_in is not None

    x_spec = pl.BlockSpec((tm, tk), lambda i, k: (i, k))
    vec_spec = pl.BlockSpec((1, tk), lambda i, k: (0, k))
    w_spec = pl.BlockSpec((tk, Np), lambda i, k: (k, 0))
    if apply_affine:
        in_specs = [x_spec, vec_spec, vec_spec, w_spec]
        args = (x2d, scale_in, shift_in, w)
    else:
        in_specs = [x_spec, w_spec]
        args = (x2d, w)

    y, stats = pl.pallas_call(
        functools.partial(_conv1x1_bn_kernel, relu_in=relu_in, apply_affine=apply_affine),
        out_shape=(jax.ShapeDtypeStruct((M, Np), ACT_DTYPE),
                   jax.ShapeDtypeStruct((grid[0], 2, Np), jnp.float32)),
        grid_spec=pltpu.PrefetchScalarGridSpec(
            num_scalar_prefetch=0,
            grid=grid,
            in_specs=in_specs,
            out_specs=[
                pl.BlockSpec((tm, Np), lambda i, k: (i, 0)),
                pl.BlockSpec((1, 2, Np), lambda i, k: (i, 0, 0)),
            ],
            scratch_shapes=[pltpu.VMEM((tm, Np), jnp.float32)]),
        compiler_params=pltpu.CompilerParams(
            dimension_semantics=("parallel", "arbitrary"),
            vmem_limit_bytes=VMEM_LIMIT_BYTES),
    )(*args)
    return y, stats


def _conv3x3_bn_kernel(x_ref, scale_ref, shift_ref, w_ref, y_ref, stats_ref, xs_ref,
                       *, relu_in, Ho, Wo, stride):
    """3x3 conv for one image: 9 taps accumulated in a local value (no HBM im2col).

    x_ref: (1, H, W, Cin_p) unpadded bf16 image.  Under @pl.when(j == 0) (j = channel
    tile, innermost grid axis) the previous layer's BN affine (+ReLU) is applied once
    and written into a spatially padded VMEM scratch whose zero ring provides the conv
    padding — no iota masks, no HBM pad pass, and the pre-op is not repeated per
    output-channel tile.
    """
    j = pl.program_id(1)
    _, h, w_sp, cin = x_ref.shape

    @pl.when(j == 0)
    def _prep():
        a = (x_ref[0].astype(jnp.float32) * scale_ref[...].reshape(1, 1, cin)
             + shift_ref[...].reshape(1, 1, cin))
        if relu_in:
            a = jnp.maximum(a, 0.0)
        xs_ref[...] = jnp.zeros_like(xs_ref)              # zero pad ring (once per image)
        xs_ref[1:h + 1, 1:w_sp + 1, :] = a                # interior write, f32 scratch

    xs = xs_ref[...]                                      # (H+2, W+2, Cin_p) f32
    acc = None
    for dy in range(3):
        for dx in range(3):
            patch = jax.lax.slice(
                xs, (dy, dx, 0),
                (dy + (Ho - 1) * stride + 1, dx + (Wo - 1) * stride + 1, cin),
                (stride, stride, 1))
            patch = patch.reshape(Ho * Wo, cin).astype(w_ref.dtype)
            d = jnp.dot(patch, w_ref[dy, dx], preferred_element_type=jnp.float32)
            acc = d if acc is None else acc + d           # local accumulation, 1 store

    y_ref[...] = acc.astype(y_ref.dtype)
    stats_ref[0, 0:1, :] = jnp.sum(acc, axis=0, keepdims=True)
    stats_ref[0, 1:2, :] = jnp.sum(acc * acc, axis=0, keepdims=True)


def conv3x3_bn_stats(x, scale_in, shift_in, w, *, relu_in, stride):
    """Fused 3x3 conv (stride, pad=1) with the previous BN+ReLU folded into the input
    and this layer's BN partial stats emitted.

    x: (N, H, W, Cin_p) bf16 (unpadded; padding lives in a VMEM scratch).
    w: (3, 3, Cin_p, Np) bf16.  Returns y (N*Ho*Wo, Np) bf16 and stats (N, 2, Np) f32.
    """
    n, h, w_sp, cin_p = x.shape
    _, _, cin_p2, Np = w.shape
    ho = (h + 2 - 3) // stride + 1
    wo = (w_sp + 2 - 3) // stride + 1
    tn = 256 if Np % 256 == 0 else LANE
    assert cin_p == cin_p2 and Np % tn == 0 and (ho * wo) % 8 == 0
    grid = (n, Np // tn)
    # TODO(synk): Cin is a single in-kernel reduction and the image is one whole block;
    # very large feature maps / channel counts would tile K and output-row stripes
    # (halo via index_map) to stay under v7x's 64 MiB VMEM.

    y, stats = pl.pallas_call(
        functools.partial(_conv3x3_bn_kernel, relu_in=relu_in, Ho=ho, Wo=wo,
                          stride=stride),
        out_shape=(jax.ShapeDtypeStruct((n * ho * wo, Np), ACT_DTYPE),
                   jax.ShapeDtypeStruct((n, 2, Np), jnp.float32)),
        grid_spec=pltpu.PrefetchScalarGridSpec(
            num_scalar_prefetch=0,
            grid=grid,
            in_specs=[
                pl.BlockSpec((1, h, w_sp, cin_p), lambda i, j: (i, 0, 0, 0)),
                pl.BlockSpec((1, cin_p), lambda i, j: (0, 0)),
                pl.BlockSpec((1, cin_p), lambda i, j: (0, 0)),
                pl.BlockSpec((3, 3, cin_p, tn), lambda i, j: (0, 0, 0, j)),
            ],
            out_specs=[
                pl.BlockSpec((ho * wo, tn), lambda i, j: (i, j)),
                pl.BlockSpec((1, 2, tn), lambda i, j: (i, 0, j)),
            ],
            scratch_shapes=[pltpu.VMEM((h + 2, w_sp + 2, cin_p), jnp.float32)]),
        compiler_params=pltpu.CompilerParams(
            dimension_semantics=("parallel", "arbitrary"),
            vmem_limit_bytes=VMEM_LIMIT_BYTES),
    )(x, scale_in, shift_in, w)
    return y, stats


def _bn_add_relu_kernel(y_ref, s_ref, b_ref, r_ref, sr_ref, br_ref, o_ref):
    main = y_ref[...].astype(jnp.float32) * s_ref[...] + b_ref[...]
    res = r_ref[...].astype(jnp.float32) * sr_ref[...] + br_ref[...]
    o_ref[...] = jnp.maximum(main + res, 0.0)


def bn_add_relu(y, scale, shift, r, scale_r, shift_r, *, tm_cap=512):
    """Fused BN3 + shortcut-BN + residual add + ReLU, lane-dense over the full width."""
    M, Np = y.shape
    tm = _pick_tile_m(M, tm_cap)
    grid = (M // tm,)
    vec = lambda v: v.reshape(1, Np).astype(jnp.float32)
    row_spec = lambda: pl.BlockSpec((tm, Np), lambda i: (i, 0))
    vec_spec = lambda: pl.BlockSpec((1, Np), lambda i: (0, 0))
    return pl.pallas_call(
        _bn_add_relu_kernel,
        out_shape=jax.ShapeDtypeStruct((M, Np), jnp.float32),
        grid_spec=pltpu.PrefetchScalarGridSpec(
            num_scalar_prefetch=0,
            grid=grid,
            in_specs=[row_spec(), vec_spec(), vec_spec(),
                      row_spec(), vec_spec(), vec_spec()],
            out_specs=row_spec()),
        compiler_params=pltpu.CompilerParams(
            dimension_semantics=("parallel",),
            vmem_limit_bytes=VMEM_LIMIT_BYTES),
    )(y, vec(scale), vec(shift), r, vec(scale_r), vec(shift_r))


# ------------------- plain-JAX glue (tiny tensors / layout prep) -------------------


def weight_standardize(w):
    """PyTorch WS: subtract per-filter mean, divide by unbiased std(+1e-5)."""
    w = w.astype(jnp.float32)
    mean = w.mean(axis=(1, 2, 3), keepdims=True)
    wc = w - mean
    fan = w.shape[1] * w.shape[2] * w.shape[3]
    denom = max(fan - 1, 1)
    std = jnp.sqrt(jnp.sum(wc * wc, axis=(1, 2, 3), keepdims=True) / denom) + EPS_WS
    return wc / std


def _prep_w_1x1(w, kp, np_):
    ws = weight_standardize(w)[:, :, 0, 0].T                      # (Cin, Cout)
    ws = jnp.pad(ws, ((0, kp - ws.shape[0]), (0, np_ - ws.shape[1])))
    return ws.astype(MXU_DTYPE)


def _prep_w_3x3(w, kp, np_):
    ws = jnp.transpose(weight_standardize(w), (2, 3, 1, 0))       # (3, 3, Cin, Cout)
    ws = jnp.pad(ws, ((0, 0), (0, 0), (0, kp - ws.shape[2]), (0, np_ - ws.shape[3])))
    return ws.astype(MXU_DTYPE)


def _pad_lanes(a, target):
    return jnp.pad(a, ((0, 0), (0, target - a.shape[1])))


def _pad_vec(v, target):
    return jnp.pad(v.astype(jnp.float32), (0, target - v.shape[0]))


def _bn_affine(stats, m_rows, gamma_p, beta_p):
    """Reduce in-kernel partial sums into the folded BN affine (scale, shift)."""
    s = stats[:, 0, :].sum(axis=0)
    ss = stats[:, 1, :].sum(axis=0)
    mean = s / m_rows
    var = jnp.maximum(ss / m_rows - mean * mean, 0.0)   # biased var (training-mode BN)
    scale = gamma_p * jax.lax.rsqrt(var + EPS_BN)
    shift = beta_p - mean * scale
    return scale, shift


# ----------------------------- ResBottleneck forward -----------------------------


def res_bottleneck_forward(x_nchw, params, stride=1):
    f32 = jnp.float32
    x = jnp.transpose(x_nchw, (0, 2, 3, 1)).astype(f32)        # NHWC
    n, h, w_, cin = x.shape
    planes = params["w1"].shape[0]
    cout = params["w3"].shape[0]

    cin_p = _round_up(cin, LANE)
    cmid_p = _round_up(planes, LANE)
    cout_p = _round_up(cout, LANE)

    # weights: standardize + pad + bf16 (plain JAX; tiny tensors)
    w1 = _prep_w_1x1(params["w1"], cin_p, cmid_p)
    w2 = _prep_w_3x3(params["w2"], cmid_p, cmid_p)
    w3 = _prep_w_1x1(params["w3"], cmid_p, cout_p)
    g1, b1 = _pad_vec(params["g1"], cmid_p), _pad_vec(params["b1"], cmid_p)
    g2, b2 = _pad_vec(params["g2"], cmid_p), _pad_vec(params["b2"], cmid_p)
    g3, b3 = _pad_vec(params["g3"], cout_p), _pad_vec(params["b3"], cout_p)

    # ---- conv1 (1x1) + BN1 partial stats ----
    x2d = _pad_lanes(x.reshape(n * h * w_, cin), cin_p).astype(ACT_DTYPE)
    y1, st1 = conv1x1_bn_stats(x2d, w1, relu_in=False)
    scale1, shift1 = _bn_affine(st1, n * h * w_, g1, b1)

    # ---- conv2 (3x3, stride, pad=1) with BN1+ReLU fused in, + BN2 partial stats ----
    ho = (h + 2 - 3) // stride + 1
    wo = (w_ + 2 - 3) // stride + 1
    y2, st2 = conv3x3_bn_stats(y1.reshape(n, h, w_, cmid_p),
                               scale1.reshape(1, -1), shift1.reshape(1, -1),
                               w2, relu_in=True, stride=stride)
    scale2, shift2 = _bn_affine(st2, n * ho * wo, g2, b2)

    # ---- conv3 (1x1) with BN2+ReLU fused in, + BN3 partial stats ----
    y3, st3 = conv1x1_bn_stats(y2, w3, scale_in=scale2.reshape(1, -1),
                               shift_in=shift2.reshape(1, -1), relu_in=True)
    scale3, shift3 = _bn_affine(st3, n * ho * wo, g3, b3)

    # ---- shortcut ----
    if "ws" in params:
        ws = _prep_w_1x1(params["ws"], cin_p, cout_p)
        gs, bs = _pad_vec(params["gs"], cout_p), _pad_vec(params["bs"], cout_p)
        xs = x if stride == 1 else x[:, ::stride, ::stride, :]
        xs2d = _pad_lanes(xs.reshape(n * ho * wo, cin), cin_p).astype(ACT_DTYPE)
        ysc, sts = conv1x1_bn_stats(xs2d, ws, relu_in=False)
        scale_s, shift_s = _bn_affine(sts, n * ho * wo, gs, bs)
    else:
        assert stride == 1 and cin == cout, "identity shortcut needs stride=1, Cin==Cout"
        ysc = x2d
        scale_s = jnp.ones((cout_p,), f32)
        shift_s = jnp.zeros((cout_p,), f32)

    # ---- BN3 + shortcut-BN + residual add + ReLU (one fused kernel) ----
    out2d = bn_add_relu(y3, scale3, shift3, ysc, scale_s, shift_s)
    # TODO(synk): the channel slice/reshape/NCHW transpose below are extra HBM passes;
    # an NHWC interface would fuse them away.
    out = out2d[:, :cout].reshape(n, ho, wo, cout)
    return jnp.transpose(out, (0, 3, 1, 2))                    # back to NCHW


# --------------------------- pure-JAX references (verification) ---------------------------


def _ref_bn(y, gamma, beta):
    mean = y.mean(axis=(0, 2, 3), keepdims=True)
    var = ((y - mean) ** 2).mean(axis=(0, 2, 3), keepdims=True)
    return ((y - mean) * jax.lax.rsqrt(var + EPS_BN) * gamma.reshape(1, -1, 1, 1)
            + beta.reshape(1, -1, 1, 1))


def _ref_bn_q(y, gamma, beta):
    # Mirrors the kernel: BN statistics from the f32 conv output, affine applied (in f32)
    # to the bf16-stored activation.
    mean = y.mean(axis=(0, 2, 3), keepdims=True)
    var = ((y - mean) ** 2).mean(axis=(0, 2, 3), keepdims=True)
    scale = gamma.reshape(1, -1, 1, 1) * jax.lax.rsqrt(var + EPS_BN)
    shift = beta.reshape(1, -1, 1, 1) - mean * scale
    yq = y.astype(ACT_DTYPE).astype(jnp.float32)
    return yq * scale + shift


def _ref_conv_f32(x, w, stride, padding):
    return jax.lax.conv_general_dilated(
        x, weight_standardize(w), (stride, stride),
        [(padding, padding), (padding, padding)],
        dimension_numbers=("NCHW", "OIHW", "NCHW"))


def _ref_conv_bf16(x, w, stride, padding):
    # Mirrors the kernel's MXU quantization: bf16 operands, f32 accumulation.
    return jax.lax.conv_general_dilated(
        x.astype(jnp.bfloat16), weight_standardize(w).astype(jnp.bfloat16),
        (stride, stride), [(padding, padding), (padding, padding)],
        dimension_numbers=("NCHW", "OIHW", "NCHW"),
        preferred_element_type=jnp.float32)


def _ref_forward(x, params, stride=1, conv=_ref_conv_f32, bn=_ref_bn):
    out = jax.nn.relu(bn(conv(x, params["w1"], 1, 0), params["g1"], params["b1"]))
    out = jax.nn.relu(bn(conv(out, params["w2"], stride, 1), params["g2"], params["b2"]))
    out = bn(conv(out, params["w3"], 1, 0), params["g3"], params["b3"])
    if "ws" in params:
        sc = bn(conv(x, params["ws"], stride, 0), params["gs"], params["bs"])
    else:
        sc = x
    return jax.nn.relu(out + sc)


# ----------------------------- main -----------------------------

if __name__ == "__main__":
    key = jax.random.PRNGKey(0)
    N, in_planes, planes, H, W, stride = 2, 4, 4, 16, 16, 1
    expansion = 4
    out_planes = expansion * planes

    ks = jax.random.split(key, 13)
    params = {
        "w1": 0.1 * jax.random.normal(ks[0], (planes, in_planes, 1, 1), jnp.float32),
        "g1": 1.0 + 0.1 * jax.random.normal(ks[1], (planes,), jnp.float32),
        "b1": 0.1 * jax.random.normal(ks[2], (planes,), jnp.float32),
        "w2": 0.1 * jax.random.normal(ks[3], (planes, planes, 3, 3), jnp.float32),
        "g2": 1.0 + 0.1 * jax.random.normal(ks[4], (planes,), jnp.float32),
        "b2": 0.1 * jax.random.normal(ks[5], (planes,), jnp.float32),
        "w3": 0.1 * jax.random.normal(ks[6], (out_planes, planes, 1, 1), jnp.float32),
        "g3": 1.0 + 0.1 * jax.random.normal(ks[7], (out_planes,), jnp.float32),
        "b3": 0.1 * jax.random.normal(ks[8], (out_planes,), jnp.float32),
        # shortcut path (present because in_planes != expansion * planes)
        "ws": 0.1 * jax.random.normal(ks[9], (out_planes, in_planes, 1, 1), jnp.float32),
        "gs": 1.0 + 0.1 * jax.random.normal(ks[10], (out_planes,), jnp.float32),
        "bs": 0.1 * jax.random.normal(ks[11], (out_planes,), jnp.float32),
    }
    x = jax.random.normal(ks[12], (N, in_planes, H, W), jnp.float32)

    fwd = jax.jit(functools.partial(res_bottleneck_forward, stride=stride))
    out = jax.block_until_ready(fwd(x, params))
    assert out.shape == (N, out_planes, H, W), out.shape

    # Strict check vs a reference that quantizes conv operands AND stored activations to
    # bf16 exactly like the kernel path (isolates implementation bugs from the intended
    # quantization).
    ref_q = _ref_forward(x, params, stride=stride, conv=_ref_conv_bf16, bn=_ref_bn_q)
    err_q = float(jnp.max(jnp.abs(out - ref_q)))
    assert err_q < 3e-2, f"mismatch vs bf16-matched reference: {err_q}"

    # Loose check vs the exact f32 semantics of the PyTorch module (differences are the
    # intended bf16 MXU-operand / activation-storage quantization).
    ref_f = _ref_forward(x, params, stride=stride, conv=_ref_conv_f32, bn=_ref_bn)
    err_f = float(jnp.max(jnp.abs(out - ref_f)))
    assert err_f < 2.5e-1, f"mismatch vs f32 reference: {err_f}"

    print("KERNEL_OK")
</pallas_src>

<mosaic_0001>
module attributes {stable_mosaic.version = 11 : i64} {
  func.func @_conv1x1_bn_kernel(%arg0: i32, %arg1: i32, %arg2: memref<512x128xbf16, #tpu.memory_space<vmem>>, %arg3: memref<128x128xbf16, #tpu.memory_space<vmem>>, %arg4: memref<512x128xbf16, #tpu.memory_space<vmem>>, %arg5: memref<1x2x128xf32, #tpu.memory_space<vmem>>, %arg6: memref<512x128xf32, #tpu.memory_space<vmem>>) attributes {dimension_semantics = [#tpu.dimension_semantics<parallel>, #tpu.dimension_semantics<arbitrary>], iteration_bounds = array<i64: 1, 1>, scalar_prefetch = 0 : i64, scratch_operands = 1 : i64, tpu.core_type = #tpu.core_type<tc>, window_params = [{transform_indices = @transform_0, window_bounds = array<i64: 512, 128>}, {transform_indices = @transform_1, window_bounds = array<i64: 128, 128>}, {transform_indices = @transform_2, window_bounds = array<i64: 512, 128>}, {transform_indices = @transform_3, window_bounds = array<i64: 1, 2, 128>}]} {
    %c0_i32 = arith.constant 0 : i32
    %0 = arith.cmpi eq, %arg1, %c0_i32 : i32
    %1 = arith.extui %0 : i1 to i32
    %c0_i32_0 = arith.constant 0 : i32
    %2 = arith.cmpi ne, %1, %c0_i32_0 : i32
    scf.if %2 {
      %cst_10 = arith.constant 0.000000e+00 : f32
      %12 = vector.broadcast %cst_10 : f32 to vector<512x128xf32>
      %c0_11 = arith.constant 0 : index
      %c0_12 = arith.constant 0 : index
      %13 = vector.load %arg6[%c0_11, %c0_12] : memref<512x128xf32, #tpu.memory_space<vmem>>, vector<512x128xf32>
      tpu.vector_store %arg6[%c0_11, %c0_12], %12 {strides = array<i32>} : memref<512x128xf32, #tpu.memory_space<vmem>>, vector<512x128xf32>,
    } else {
    }
    %c0 = arith.constant 0 : index
    %c0_1 = arith.constant 0 : index
    %3 = vector.load %arg2[%c0, %c0_1] : memref<512x128xbf16, #tpu.memory_space<vmem>>, vector<512x128xbf16>
    %c0_2 = arith.constant 0 : index
    %c0_3 = arith.constant 0 : index
    %4 = vector.load %arg6[%c0_2, %c0_3] : memref<512x128xf32, #tpu.memory_space<vmem>>, vector<512x128xf32>
    %c0_4 = arith.constant 0 : index
    %c0_5 = arith.constant 0 : index
    %5 = vector.load %arg3[%c0_4, %c0_5] : memref<128x128xbf16, #tpu.memory_space<vmem>>, vector<128x128xbf16>
    %cst = arith.constant dense<0.000000e+00> : vector<512x128xf32>
    %6 = tpu.matmul %3, %5, %cst {dimension_numbers = #tpu.dot_dimension_numbers<[1], [0], [0], [1], [0, 0, 1, 1], [], []>} : vector<512x128xbf16>, vector<128x128xbf16>, vector<512x128xf32> -> vector<512x128xf32>
    %7 = arith.addf %4, %6 : vector<512x128xf32>
    %c0_6 = arith.constant 0 : index
    %c0_7 = arith.constant 0 : index
    %8 = vector.load %arg6[%c0_6, %c0_7] : memref<512x128xf32, #tpu.memory_space<vmem>>, vector<512x128xf32>
    tpu.vector_store %arg6[%c0_6, %c0_7], %7 {strides = array<i32>} : memref<512x128xf32, #tpu.memory_space<vmem>>, vector<512x128xf32>,
    %c0_i32_8 = arith.constant 0 : i32
    %9 = arith.cmpi eq, %arg1, %c0_i32_8 : i32
    %10 = arith.extui %9 : i1 to i32
    %c0_i32_9 = arith.constant 0 : i32
    %11 = arith.cmpi ne, %10, %c0_i32_9 : i32
    scf.if %11 {
      %c0_10 = arith.constant 0 : index
      %c0_11 = arith.constant 0 : index
      %12 = vector.load %arg6[%c0_10, %c0_11] : memref<512x128xf32, #tpu.memory_space<vmem>>, vector<512x128xf32>
      %13 = arith.truncf %12 : vector<512x128xf32> to vector<512x128xbf16>
      %c0_12 = arith.constant 0 : index
      %c0_13 = arith.constant 0 : index
      %14 = vector.load %arg4[%c0_12, %c0_13] : memref<512x128xbf16, #tpu.memory_space<vmem>>, vector<512x128xbf16>
      tpu.vector_store %arg4[%c0_12, %c0_13], %13 {strides = array<i32>} : memref<512x128xbf16, #tpu.memory_space<vmem>>, vector<512x128xbf16>,
      %cst_14 = arith.constant dense<0.000000e+00> : vector<128xf32>
      %15 = vector.multi_reduction <add>, %12, %cst_14 [0] : vector<512x128xf32> to vector<128xf32>
      %16 = vector.shape_cast %15 : vector<128xf32> to vector<1x128xf32>
      %c0_15 = arith.constant 0 : index
      %c0_16 = arith.constant 0 : index
      %c0_17 = arith.constant 0 : index
      %17 = vector.load %arg5[%c0_15, %c0_16, %c0_17] : memref<1x2x128xf32, #tpu.memory_space<vmem>>, vector<1x1x128xf32>
      %18 = vector.shape_cast %17 : vector<1x1x128xf32> to vector<1x128xf32>
      %19 = vector.shape_cast %16 : vector<1x128xf32> to vector<1x1x128xf32>
      tpu.vector_store %arg5[%c0_15, %c0_16, %c0_17], %19 {strides = array<i32>} : memref<1x2x128xf32, #tpu.memory_space<vmem>>, vector<1x1x128xf32>,
      %20 = arith.mulf %12, %12 : vector<512x128xf32>
      %cst_18 = arith.constant dense<0.000000e+00> : vector<128xf32>
      %21 = vector.multi_reduction <add>, %20, %cst_18 [0] : vector<512x128xf32> to vector<128xf32>
      %22 = vector.shape_cast %21 : vector<128xf32> to vector<1x128xf32>
      %c0_19 = arith.constant 0 : index
      %c1 = arith.constant 1 : index
      %c0_20 = arith.constant 0 : index
      %23 = vector.load %arg5[%c0_19, %c1, %c0_20] : memref<1x2x128xf32, #tpu.memory_space<vmem>>, vector<1x1x128xf32>
      %24 = vector.shape_cast %23 : vector<1x1x128xf32> to vector<1x128xf32>
      %25 = vector.shape_cast %22 : vector<1x128xf32> to vector<1x1x128xf32>
      tpu.vector_store %arg5[%c0_19, %c1, %c0_20], %25 {strides = array<i32>} : memref<1x2x128xf32, #tpu.memory_space<vmem>>, vector<1x1x128xf32>,
    } else {
    }
    return
  }
  func.func @transform_0(%arg0: i32, %arg1: i32) -> (i32, i32) {
    %c0_i32 = arith.constant 0 : i32
    return %arg0, %arg1 : i32, i32
  }
  func.func @transform_1(%arg0: i32, %arg1: i32) -> (i32, i32) {
    %c0_i32 = arith.constant 0 : i32
    %c0_i32_0 = arith.constant 0 : i32
    return %arg1, %c0_i32 : i32, i32
  }
  func.func @transform_2(%arg0: i32, %arg1: i32) -> (i32, i32) {
    %c0_i32 = arith.constant 0 : i32
    %c0_i32_0 = arith.constant 0 : i32
    return %arg0, %c0_i32 : i32, i32
  }
  func.func @transform_3(%arg0: i32, %arg1: i32) -> (i32, i32, i32) {
    %c0_i32 = arith.constant 0 : i32
    %c0_i32_0 = arith.constant 0 : i32
    %c0_i32_1 = arith.constant 0 : i32
    return %arg0, %c0_i32, %c0_i32_0 : i32, i32, i32
  }
}

module attributes {stable_mosaic.version = 11 : i64} {
  func.func @_conv3x3_bn_kernel(%arg0: i32, %arg1: i32, %arg2: memref<1x16x16x128xbf16, #tpu.memory_space<vmem>>, %arg3: memref<1x128xf32, #tpu.memory_space<vmem>>, %arg4: memref<1x128xf32, #tpu.memory_space<vmem>>, %arg5: memref<3x3x128x128xbf16, #tpu.memory_space<vmem>>, %arg6: memref<256x128xbf16, #tpu.memory_space<vmem>>, %arg7: memref<1x2x128xf32, #tpu.memory_space<vmem>>, %arg8: memref<18x18x128xf32, #tpu.memory_space<vmem>>) attributes {dimension_semantics = [#tpu.dimension_semantics<parallel>, #tpu.dimension_semantics<arbitrary>], iteration_bounds = array<i64: 2, 1>, scalar_prefetch = 0 : i64, scratch_operands = 1 : i64, tpu.core_type = #tpu.core_type<tc>, window_params = [{transform_indices = @transform_0, window_bounds = array<i64: 1, 16, 16, 128>}, {pipeline_mode = #tpu.pipeline_mode<synchronous>, transform_indices = @transform_1, window_bounds = array<i64: 1, 128>}, {pipeline_mode = #tpu.pipeline_mode<synchronous>, transform_indices = @transform_2, window_bounds = array<i64: 1, 128>}, {transform_indices = @transform_3, window_bounds = array<i64: 3, 3, 128, 128>}, {transform_indices = @transform_4, window_bounds = array<i64: 256, 128>}, {transform_indices = @transform_5, window_bounds = array<i64: 1, 2, 128>}]} {
    %c0_i32 = arith.constant 0 : i32
    %0 = arith.cmpi eq, %arg1, %c0_i32 : i32
    %1 = arith.extui %0 : i1 to i32
    %c0_i32_0 = arith.constant 0 : i32
    %2 = arith.cmpi ne, %1, %c0_i32_0 : i32
    scf.if %2 {
      %c0_55 = arith.constant 0 : index
      %c0_56 = arith.constant 0 : index
      %c0_57 = arith.constant 0 : index
      %c0_58 = arith.constant 0 : index
      %79 = vector.load %arg2[%c0_55, %c0_56, %c0_57, %c0_58] : memref<1x16x16x128xbf16, #tpu.memory_space<vmem>>, vector<1x16x16x128xbf16>
      %80 = vector.shape_cast %79 : vector<1x16x16x128xbf16> to vector<16x16x128xbf16>
      %81 = arith.extf %80 : vector<16x16x128xbf16> to vector<16x16x128xf32>
      %c0_59 = arith.constant 0 : index
      %c0_60 = arith.constant 0 : index
      %82 = vector.load %arg3[%c0_59, %c0_60] : memref<1x128xf32, #tpu.memory_space<vmem>>, vector<1x128xf32>
      %83 = vector.shape_cast %82 : vector<1x128xf32> to vector<1x1x128xf32>
      %84 = vector.broadcast %83 : vector<1x1x128xf32> to vector<16x16x128xf32>
      %85 = arith.mulf %81, %84 : vector<16x16x128xf32>
      %c0_61 = arith.constant 0 : index
      %c0_62 = arith.constant 0 : index
      %86 = vector.load %arg4[%c0_61, %c0_62] : memref<1x128xf32, #tpu.memory_space<vmem>>, vector<1x128xf32>
      %87 = vector.shape_cast %86 : vector<1x128xf32> to vector<1x1x128xf32>
      %88 = vector.broadcast %87 : vector<1x1x128xf32> to vector<16x16x128xf32>
      %89 = arith.addf %85, %88 : vector<16x16x128xf32>
      %cst_63 = arith.constant 0.000000e+00 : f32
      %90 = vector.broadcast %cst_63 : f32 to vector<16x16x128xf32>
      %91 = arith.maximumf %89, %90 : vector<16x16x128xf32>
      %cst_64 = arith.constant 0.000000e+00 : f32
      %92 = vector.broadcast %cst_64 : f32 to vector<18x18x128xf32>
      %c0_65 = arith.constant 0 : index
      %c0_66 = arith.constant 0 : index
      %c0_67 = arith.constant 0 : index
      %93 = vector.load %arg8[%c0_65, %c0_66, %c0_67] : memref<18x18x128xf32, #tpu.memory_space<vmem>>, vector<18x18x128xf32>
      tpu.vector_store %arg8[%c0_65, %c0_66, %c0_67], %92 {strides = array<i32>} : memref<18x18x128xf32, #tpu.memory_space<vmem>>, vector<18x18x128xf32>,
      %c1_68 = arith.constant 1 : index
      %c1_69 = arith.constant 1 : index
      %c0_70 = arith.constant 0 : index
      %94 = vector.load %arg8[%c1_68, %c1_69, %c0_70] : memref<18x18x128xf32, #tpu.memory_space<vmem>>, vector<16x16x128xf32>
      tpu.vector_store %arg8[%c1_68, %c1_69, %c0_70], %91 {strides = array<i32>} : memref<18x18x128xf32, #tpu.memory_space<vmem>>, vector<16x16x128xf32>,
    } else {
    }
    %c0 = arith.constant 0 : index
    %c0_1 = arith.constant 0 : index
    %c0_2 = arith.constant 0 : index
    %3 = vector.load %arg8[%c0, %c0_1, %c0_2] : memref<18x18x128xf32, #tpu.memory_space<vmem>>, vector<18x18x128xf32>
    %4 = vector.extract_strided_slice %3 {offsets = [0, 0, 0], sizes = [16, 16, 128], strides = [1, 1, 1]} : vector<18x18x128xf32> to vector<16x16x128xf32>
    %5 = vector.shape_cast %4 : vector<16x16x128xf32> to vector<256x128xf32>
    %6 = arith.truncf %5 : vector<256x128xf32> to vector<256x128xbf16>
    %c0_3 = arith.constant 0 : index
    %c0_4 = arith.constant 0 : index
    %c0_5 = arith.constant 0 : index
    %c0_6 = arith.constant 0 : index
    %7 = vector.load %arg5[%c0_3, %c0_4, %c0_5, %c0_6] : memref<3x3x128x128xbf16, #tpu.memory_space<vmem>>, vector<1x1x128x128xbf16>
    %8 = vector.shape_cast %7 : vector<1x1x128x128xbf16> to vector<128x128xbf16>
    %cst = arith.constant dense<0.000000e+00> : vector<256x128xf32>
    %9 = tpu.matmul %6, %8, %cst {dimension_numbers = #tpu.dot_dimension_numbers<[1], [0], [0], [1], [0, 0, 1, 1], [], []>} : vector<256x128xbf16>, vector<128x128xbf16>, vector<256x128xf32> -> vector<256x128xf32>
    %10 = vector.extract_strided_slice %3 {offsets = [0, 1, 0], sizes = [16, 16, 128], strides = [1, 1, 1]} : vector<18x18x128xf32> to vector<16x16x128xf32>
    %11 = vector.shape_cast %10 : vector<16x16x128xf32> to vector<256x128xf32>
    %12 = arith.truncf %11 : vector<256x128xf32> to vector<256x128xbf16>
    %c0_7 = arith.constant 0 : index
    %c1 = arith.constant 1 : index
    %c0_8 = arith.constant 0 : index
    %c0_9 = arith.constant 0 : index
    %13 = vector.load %arg5[%c0_7, %c1, %c0_8, %c0_9] : memref<3x3x128x128xbf16, #tpu.memory_space<vmem>>, vector<1x1x128x128xbf16>
    %14 = vector.shape_cast %13 : vector<1x1x128x128xbf16> to vector<128x128xbf16>
    %cst_10 = arith.constant dense<0.000000e+00> : vector<256x128xf32>
    %15 = tpu.matmul %12, %14, %cst_10 {dimension_numbers = #tpu.dot_dimension_numbers<[1], [0], [0], [1], [0, 0, 1, 1], [], []>} : vector<256x128xbf16>, vector<128x128xbf16>, vector<256x128xf32> -> vector<256x128xf32>
    %16 = arith.addf %9, %15 : vector<256x128xf32>
    %17 = vector.extract_strided_slice %3 {offsets = [0, 2, 0], sizes = [16, 16, 128], strides = [1, 1, 1]} : vector<18x18x128xf32> to vector<16x16x128xf32>
    %18 = vector.shape_cast %17 : vector<16x16x128xf32> to vector<256x128xf32>
    %19 = arith.truncf %18 : vector<256x128xf32> to vector<256x128xbf16>
    %c0_11 = arith.constant 0 : index
    %c2 = arith.constant 2 : index
    %c0_12 = arith.constant 0 : index
    %c0_13 = arith.constant 0 : index
    %20 = vector.load %arg5[%c0_11, %c2, %c0_12, %c0_13] : memref<3x3x128x128xbf16, #tpu.memory_space<vmem>>, vector<1x1x128x128xbf16>
    %21 = vector.shape_cast %20 : vector<1x1x128x128xbf16> to vector<128x128xbf16>
    %cst_14 = arith.constant dense<0.000000e+00> : vector<256x128xf32>
    %22 = tpu.matmul %19, %21, %cst_14 {dimension_numbers = #tpu.dot_dimension_numbers<[1], [0], [0], [1], [0, 0, 1, 1], [], []>} : vector<256x128xbf16>, vector<128x128xbf16>, vector<256x128xf32> -> vector<256x128xf32>
    %23 = arith.addf %16, %22 : vector<256x128xf32>
    %24 = vector.extract_strided_slice %3 {offsets = [1, 0, 0], sizes = [16, 16, 128], strides = [1, 1, 1]} : vector<18x18x128xf32> to vector<16x16x128xf32>
    %25 = vector.shape_cast %24 : vector<16x16x128xf32> to vector<256x128xf32>
    %26 = arith.truncf %25 : vector<256x128xf32> to vector<256x128xbf16>
    %c1_15 = arith.constant 1 : index
    %c0_16 = arith.constant 0 : index
    %c0_17 = arith.constant 0 : index
    %c0_18 = arith.constant 0 : index
    %27 = vector.load %arg5[%c1_15, %c0_16, %c0_17, %c0_18] : memref<3x3x128x128xbf16, #tpu.memory_space<vmem>>, vector<1x1x128x128xbf16>
    %28 = vector.shape_cast %27 : vector<1x1x128x128xbf16> to vector<128x128xbf16>
    %cst_19 = arith.constant dense<0.000000e+00> : vector<256x128xf32>
    %29 = tpu.matmul %26, %28, %cst_19 {dimension_numbers = #tpu.dot_dimension_numbers<[1], [0], [0], [1], [0, 0, 1, 1], [], []>} : vector<256x128xbf16>, vector<128x128xbf16>, vector<256x128xf32> -> vector<256x128xf32>
    %30 = arith.addf %23, %29 : vector<256x128xf32>
    %31 = vector.extract_strided_slice %3 {offsets = [1, 1, 0], sizes = [16, 16, 128], strides = [1, 1, 1]} : vector<18x18x128xf32> to vector<16x16x128xf32>
    %32 = vector.shape_cast %31 : vector<16x16x128xf32> to vector<256x128xf32>
    %33 = arith.truncf %32 : vector<256x128xf32> to vector<256x128xbf16>
    %c1_20 = arith.constant 1 : index
    %c1_21 = arith.constant 1 : index
    %c0_22 = arith.constant 0 : index
    %c0_23 = arith.constant 0 : index
    %34 = vector.load %arg5[%c1_20, %c1_21, %c0_22, %c0_23] : memref<3x3x128x128xbf16, #tpu.memory_space<vmem>>, vector<1x1x128x128xbf16>
    %35 = vector.shape_cast %34 : vector<1x1x128x128xbf16> to vector<128x128xbf16>
    %cst_24 = arith.constant dense<0.000000e+00> : vector<256x128xf32>
    %36 = tpu.matmul %33, %35, %cst_24 {dimension_numbers = #tpu.dot_dimension_numbers<[1], [0], [0], [1], [0, 0, 1, 1], [], []>} : vector<256x128xbf16>, vector<128x128xbf16>, vector<256x128xf32> -> vector<256x128xf32>
    %37 = arith.addf %30, %36 : vector<256x128xf32>
    %38 = vector.extract_strided_slice %3 {offsets = [1, 2, 0], sizes = [16, 16, 128], strides = [1, 1, 1]} : vector<18x18x128xf32> to vector<16x16x128xf32>
    %39 = vector.shape_cast %38 : vector<16x16x128xf32> to vector<256x128xf32>
    %40 = arith.truncf %39 : vector<256x128xf32> to vector<256x128xbf16>
    %c1_25 = arith.constant 1 : index
    %c2_26 = arith.constant 2 : index
    %c0_27 = arith.constant 0 : index
    %c0_28 = arith.constant 0 : index
    %41 = vector.load %arg5[%c1_25, %c2_26, %c0_27, %c0_28] : memref<3x3x128x128xbf16, #tpu.memory_space<vmem>>, vector<1x1x128x128xbf16>
    %42 = vector.shape_cast %41 : vector<1x1x128x128xbf16> to vector<128x128xbf16>
    %cst_29 = arith.constant dense<0.000000e+00> : vector<256x128xf32>
    %43 = tpu.matmul %40, %42, %cst_29 {dimension_numbers = #tpu.dot_dimension_numbers<[1], [0], [0], [1], [0, 0, 1, 1], [], []>} : vector<256x128xbf16>, vector<128x128xbf16>, vector<256x128xf32> -> vector<256x128xf32>
    %44 = arith.addf %37, %43 : vector<256x128xf32>
    %45 = vector.extract_strided_slice %3 {offsets = [2, 0, 0], sizes = [16, 16, 128], strides = [1, 1, 1]} : vector<18x18x128xf32> to vector<16x16x128xf32>
    %46 = vector.shape_cast %45 : vector<16x16x128xf32> to vector<256x128xf32>
    %47 = arith.truncf %46 : vector<256x128xf32> to vector<256x128xbf16>
    %c2_30 = arith.constant 2 : index
    %c0_31 = arith.constant 0 : index
    %c0_32 = arith.constant 0 : index
    %c0_33 = arith.constant 0 : index
    %48 = vector.load %arg5[%c2_30, %c0_31, %c0_32, %c0_33] : memref<3x3x128x128xbf16, #tpu.memory_space<vmem>>, vector<1x1x128x128xbf16>
    %49 = vector.shape_cast %48 : vector<1x1x128x128xbf16> to vector<128x128xbf16>
    %cst_34 = arith.constant dense<0.000000e+00> : vector<256x128xf32>
    %50 = tpu.matmul %47, %49, %cst_34 {dimension_numbers = #tpu.dot_dimension_numbers<[1], [0], [0], [1], [0, 0, 1, 1], [], []>} : vector<256x128xbf16>, vector<128x128xbf16>, vector<256x128xf32> -> vector<256x128xf32>
    %51 = arith.addf %44, %50 : vector<256x128xf32>
    %52 = vector.extract_strided_slice %3 {offsets = [2, 1, 0], sizes = [16, 16, 128], strides = [1, 1, 1]} : vector<18x18x128xf32> to vector<16x16x128xf32>
    %53 = vector.shape_cast %52 : vector<16x16x128xf32> to vector<256x128xf32>
    %54 = arith.truncf %53 : vector<256x128xf32> to vector<256x128xbf16>
    %c2_35 = arith.constant 2 : index
    %c1_36 = arith.constant 1 : index
    %c0_37 = arith.constant 0 : index
    %c0_38 = arith.constant 0 : index
    %55 = vector.load %arg5[%c2_35, %c1_36, %c0_37, %c0_38] : memref<3x3x128x128xbf16, #tpu.memory_space<vmem>>, vector<1x1x128x128xbf16>
    %56 = vector.shape_cast %55 : vector<1x1x128x128xbf16> to vector<128x128xbf16>
    %cst_39 = arith.constant dense<0.000000e+00> : vector<256x128xf32>
    %57 = tpu.matmul %54, %56, %cst_39 {dimension_numbers = #tpu.dot_dimension_numbers<[1], [0], [0], [1], [0, 0, 1, 1], [], []>} : vector<256x128xbf16>, vector<128x128xbf16>, vector<256x128xf32> -> vector<256x128xf32>
    %58 = arith.addf %51, %57 : vector<256x128xf32>
    %59 = vector.extract_strided_slice %3 {offsets = [2, 2, 0], sizes = [16, 16, 128], strides = [1, 1, 1]} : vector<18x18x128xf32> to vector<16x16x128xf32>
    %60 = vector.shape_cast %59 : vector<16x16x128xf32> to vector<256x128xf32>
    %61 = arith.truncf %60 : vector<256x128xf32> to vector<256x128xbf16>
    %c2_40 = arith.constant 2 : index
    %c2_41 = arith.constant 2 : index
    %c0_42 = arith.constant 0 : index
    %c0_43 = arith.constant 0 : index
    %62 = vector.load %arg5[%c2_40, %c2_41, %c0_42, %c0_43] : memref<3x3x128x128xbf16, #tpu.memory_space<vmem>>, vector<1x1x128x128xbf16>
    %63 = vector.shape_cast %62 : vector<1x1x128x128xbf16> to vector<128x128xbf16>
    %cst_44 = arith.constant dense<0.000000e+00> : vector<256x128xf32>
    %64 = tpu.matmul %61, %63, %cst_44 {dimension_numbers = #tpu.dot_dimension_numbers<[1], [0], [0], [1], [0, 0, 1, 1], [], []>} : vector<256x128xbf16>, vector<128x128xbf16>, vector<256x128xf32> -> vector<256x128xf32>
    %65 = arith.addf %58, %64 : vector<256x128xf32>
    %66 = arith.truncf %65 : vector<256x128xf32> to vector<256x128xbf16>
    %c0_45 = arith.constant 0 : index
    %c0_46 = arith.constant 0 : index
    %67 = vector.load %arg6[%c0_45, %c0_46] : memref<256x128xbf16, #tpu.memory_space<vmem>>, vector<256x128xbf16>
    tpu.vector_store %arg6[%c0_45, %c0_46], %66 {strides = array<i32>} : memref<256x128xbf16, #tpu.memory_space<vmem>>, vector<256x128xbf16>,
    %cst_47 = arith.constant dense<0.000000e+00> : vector<128xf32>
    %68 = vector.multi_reduction <add>, %65, %cst_47 [0] : vector<256x128xf32> to vector<128xf32>
    %69 = vector.shape_cast %68 : vector<128xf32> to vector<1x128xf32>
    %c0_48 = arith.constant 0 : index
    %c0_49 = arith.constant 0 : index
    %c0_50 = arith.constant 0 : index
    %70 = vector.load %arg7[%c0_48, %c0_49, %c0_50] : memref<1x2x128xf32, #tpu.memory_space<vmem>>, vector<1x1x128xf32>
    %71 = vector.shape_cast %70 : vector<1x1x128xf32> to vector<1x128xf32>
    %72 = vector.shape_cast %69 : vector<1x128xf32> to vector<1x1x128xf32>
    tpu.vector_store %arg7[%c0_48, %c0_49, %c0_50], %72 {strides = array<i32>} : memref<1x2x128xf32, #tpu.memory_space<vmem>>, vector<1x1x128xf32>,
    %73 = arith.mulf %65, %65 : vector<256x128xf32>
    %cst_51 = arith.constant dense<0.000000e+00> : vector<128xf32>
    %74 = vector.multi_reduction <add>, %73, %cst_51 [0] : vector<256x128xf32> to vector<128xf32>
    %75 = vector.shape_cast %74 : vector<128xf32> to vector<1x128xf32>
    %c0_52 = arith.constant 0 : index
    %c1_53 = arith.constant 1 : index
    %c0_54 = arith.constant 0 : index
    %76 = vector.load %arg7[%c0_52, %c1_53, %c0_54] : memref<1x2x128xf32, #tpu.memory_space<vmem>>, vector<1x1x128xf32>
    %77 = vector.shape_cast %76 : vector<1x1x128xf32> to vector<1x128xf32>
    %78 = vector.shape_cast %75 : vector<1x128xf32> to vector<1x1x128xf32>
    tpu.vector_store %arg7[%c0_52, %c1_53, %c0_54], %78 {strides = array<i32>} : memref<1x2x128xf32, #tpu.memory_space<vmem>>, vector<1x1x128xf32>,
    return
  }
  func.func @transform_0(%arg0: i32, %arg1: i32) -> (i32, i32, i32, i32) {
    %c0_i32 = arith.constant 0 : i32
    %c0_i32_0 = arith.constant 0 : i32
    %c0_i32_1 = arith.constant 0 : i32
    %c0_i32_2 = arith.constant 0 : i32
    return %arg0, %c0_i32, %c0_i32_0, %c0_i32_1 : i32, i32, i32, i32
  }
  func.func @transform_1(%arg0: i32, %arg1: i32) -> (i32, i32) {
    %c0_i32 = arith.constant 0 : i32
    %c0_i32_0 = arith.constant 0 : i32
    %c0_i32_1 = arith.constant 0 : i32
    return %c0_i32, %c0_i32_0 : i32, i32
  }
  func.func @transform_2(%arg0: i32, %arg1: i32) -> (i32, i32) {
    %c0_i32 = arith.constant 0 : i32
    %c0_i32_0 = arith.constant 0 : i32
    %c0_i32_1 = arith.constant 0 : i32
    return %c0_i32, %c0_i32_0 : i32, i32
  }
  func.func @transform_3(%arg0: i32, %arg1: i32) -> (i32, i32, i32, i32) {
    %c0_i32 = arith.constant 0 : i32
    %c0_i32_0 = arith.constant 0 : i32
    %c0_i32_1 = arith.constant 0 : i32
    %c0_i32_2 = arith.constant 0 : i32
    return %c0_i32, %c0_i32_0, %c0_i32_1, %arg1 : i32, i32, i32, i32
  }
  func.func @transform_4(%arg0: i32, %arg1: i32) -> (i32, i32) {
    %c0_i32 = arith.constant 0 : i32
    return %arg0, %arg1 : i32, i32
  }
  func.func @transform_5(%arg0: i32, %arg1: i32) -> (i32, i32, i32) {
    %c0_i32 = arith.constant 0 : i32
    %c0_i32_0 = arith.constant 0 : i32
    return %arg0, %c0_i32, %arg1 : i32, i32, i32
  }
}

module attributes {stable_mosaic.version = 11 : i64} {
  func.func @_conv1x1_bn_kernel(%arg0: i32, %arg1: i32, %arg2: memref<512x128xbf16, #tpu.memory_space<vmem>>, %arg3: memref<1x128xf32, #tpu.memory_space<vmem>>, %arg4: memref<1x128xf32, #tpu.memory_space<vmem>>, %arg5: memref<128x128xbf16, #tpu.memory_space<vmem>>, %arg6: memref<512x128xbf16, #tpu.memory_space<vmem>>, %arg7: memref<1x2x128xf32, #tpu.memory_space<vmem>>, %arg8: memref<512x128xf32, #tpu.memory_space<vmem>>) attributes {dimension_semantics = [#tpu.dimension_semantics<parallel>, #tpu.dimension_semantics<arbitrary>], iteration_bounds = array<i64: 1, 1>, scalar_prefetch = 0 : i64, scratch_operands = 1 : i64, tpu.core_type = #tpu.core_type<tc>, window_params = [{transform_indices = @transform_0, window_bounds = array<i64: 512, 128>}, {transform_indices = @transform_1, window_bounds = array<i64: 1, 128>}, {transform_indices = @transform_2, window_bounds = array<i64: 1, 128>}, {transform_indices = @transform_3, window_bounds = array<i64: 128, 128>}, {transform_indices = @transform_4, window_bounds = array<i64: 512, 128>}, {transform_indices = @transform_5, window_bounds = array<i64: 1, 2, 128>}]} {
    %c0_i32 = arith.constant 0 : i32
    %0 = arith.cmpi eq, %arg1, %c0_i32 : i32
    %1 = arith.extui %0 : i1 to i32
    %c0_i32_0 = arith.constant 0 : i32
    %2 = arith.cmpi ne, %1, %c0_i32_0 : i32
    scf.if %2 {
      %cst_15 = arith.constant 0.000000e+00 : f32
      %22 = vector.broadcast %cst_15 : f32 to vector<512x128xf32>
      %c0_16 = arith.constant 0 : index
      %c0_17 = arith.constant 0 : index
      %23 = vector.load %arg8[%c0_16, %c0_17] : memref<512x128xf32, #tpu.memory_space<vmem>>, vector<512x128xf32>
      tpu.vector_store %arg8[%c0_16, %c0_17], %22 {strides = array<i32>} : memref<512x128xf32, #tpu.memory_space<vmem>>, vector<512x128xf32>,
    } else {
    }
    %c0 = arith.constant 0 : index
    %c0_1 = arith.constant 0 : index
    %3 = vector.load %arg2[%c0, %c0_1] : memref<512x128xbf16, #tpu.memory_space<vmem>>, vector<512x128xbf16>
    %4 = arith.extf %3 : vector<512x128xbf16> to vector<512x128xf32>
    %c0_2 = arith.constant 0 : index
    %c0_3 = arith.constant 0 : index
    %5 = vector.load %arg3[%c0_2, %c0_3] : memref<1x128xf32, #tpu.memory_space<vmem>>, vector<1x128xf32>
    %6 = vector.broadcast %5 : vector<1x128xf32> to vector<512x128xf32>
    %7 = arith.mulf %4, %6 : vector<512x128xf32>
    %c0_4 = arith.constant 0 : index
    %c0_5 = arith.constant 0 : index
    %8 = vector.load %arg4[%c0_4, %c0_5] : memref<1x128xf32, #tpu.memory_space<vmem>>, vector<1x128xf32>
    %9 = vector.broadcast %8 : vector<1x128xf32> to vector<512x128xf32>
    %10 = arith.addf %7, %9 : vector<512x128xf32>
    %cst = arith.constant 0.000000e+00 : f32
    %11 = vector.broadcast %cst : f32 to vector<512x128xf32>
    %12 = arith.maximumf %10, %11 : vector<512x128xf32>
    %13 = arith.truncf %12 : vector<512x128xf32> to vector<512x128xbf16>
    %c0_6 = arith.constant 0 : index
    %c0_7 = arith.constant 0 : index
    %14 = vector.load %arg8[%c0_6, %c0_7] : memref<512x128xf32, #tpu.memory_space<vmem>>, vector<512x128xf32>
    %c0_8 = arith.constant 0 : index
    %c0_9 = arith.constant 0 : index
    %15 = vector.load %arg5[%c0_8, %c0_9] : memref<128x128xbf16, #tpu.memory_space<vmem>>, vector<128x128xbf16>
    %cst_10 = arith.constant dense<0.000000e+00> : vector<512x128xf32>
    %16 = tpu.matmul %13, %15, %cst_10 {dimension_numbers = #tpu.dot_dimension_numbers<[1], [0], [0], [1], [0, 0, 1, 1], [], []>} : vector<512x128xbf16>, vector<128x128xbf16>, vector<512x128xf32> -> vector<512x128xf32>
    %17 = arith.addf %14, %16 : vector<512x128xf32>
    %c0_11 = arith.constant 0 : index
    %c0_12 = arith.constant 0 : index
    %18 = vector.load %arg8[%c0_11, %c0_12] : memref<512x128xf32, #tpu.memory_space<vmem>>, vector<512x128xf32>
    tpu.vector_store %arg8[%c0_11, %c0_12], %17 {strides = array<i32>} : memref<512x128xf32, #tpu.memory_space<vmem>>, vector<512x128xf32>,
    %c0_i32_13 = arith.constant 0 : i32
    %19 = arith.cmpi eq, %arg1, %c0_i32_13 : i32
    %20 = arith.extui %19 : i1 to i32
    %c0_i32_14 = arith.constant 0 : i32
    %21 = arith.cmpi ne, %20, %c0_i32_14 : i32
    scf.if %21 {
      %c0_15 = arith.constant 0 : index
      %c0_16 = arith.constant 0 : index
      %22 = vector.load %arg8[%c0_15, %c0_16] : memref<512x128xf32, #tpu.memory_space<vmem>>, vector<512x128xf32>
      %23 = arith.truncf %22 : vector<512x128xf32> to vector<512x128xbf16>
      %c0_17 = arith.constant 0 : index
      %c0_18 = arith.constant 0 : index
      %24 = vector.load %arg6[%c0_17, %c0_18] : memref<512x128xbf16, #tpu.memory_space<vmem>>, vector<512x128xbf16>
      tpu.vector_store %arg6[%c0_17, %c0_18], %23 {strides = array<i32>} : memref<512x128xbf16, #tpu.memory_space<vmem>>, vector<512x128xbf16>,
      %cst_19 = arith.constant dense<0.000000e+00> : vector<128xf32>
      %25 = vector.multi_reduction <add>, %22, %cst_19 [0] : vector<512x128xf32> to vector<128xf32>
      %26 = vector.shape_cast %25 : vector<128xf32> to vector<1x128xf32>
      %c0_20 = arith.constant 0 : index
      %c0_21 = arith.constant 0 : index
      %c0_22 = arith.constant 0 : index
      %27 = vector.load %arg7[%c0_20, %c0_21, %c0_22] : memref<1x2x128xf32, #tpu.memory_space<vmem>>, vector<1x1x128xf32>
      %28 = vector.shape_cast %27 : vector<1x1x128xf32> to vector<1x128xf32>
      %29 = vector.shape_cast %26 : vector<1x128xf32> to vector<1x1x128xf32>
      tpu.vector_store %arg7[%c0_20, %c0_21, %c0_22], %29 {strides = array<i32>} : memref<1x2x128xf32, #tpu.memory_space<vmem>>, vector<1x1x128xf32>,
      %30 = arith.mulf %22, %22 : vector<512x128xf32>
      %cst_23 = arith.constant dense<0.000000e+00> : vector<128xf32>
      %31 = vector.multi_reduction <add>, %30, %cst_23 [0] : vector<512x128xf32> to vector<128xf32>
      %32 = vector.shape_cast %31 : vector<128xf32> to vector<1x128xf32>
      %c0_24 = arith.constant 0 : index
      %c1 = arith.constant 1 : index
      %c0_25 = arith.constant 0 : index
      %33 = vector.load %arg7[%c0_24, %c1, %c0_25] : memref<1x2x128xf32, #tpu.memory_space<vmem>>, vector<1x1x128xf32>
      %34 = vector.shape_cast %33 : vector<1x1x128xf32> to vector<1x128xf32>
      %35 = vector.shape_cast %32 : vector<1x128xf32> to vector<1x1x128xf32>
      tpu.vector_store %arg7[%c0_24, %c1, %c0_25], %35 {strides = array<i32>} : memref<1x2x128xf32, #tpu.memory_space<vmem>>, vector<1x1x128xf32>,
    } else {
    }
    return
  }
  func.func @transform_0(%arg0: i32, %arg1: i32) -> (i32, i32) {
    %c0_i32 = arith.constant 0 : i32
    return %arg0, %arg1 : i32, i32
  }
  func.func @transform_1(%arg0: i32, %arg1: i32) -> (i32, i32) {
    %c0_i32 = arith.constant 0 : i32
    %c0_i32_0 = arith.constant 0 : i32
    return %c0_i32, %arg1 : i32, i32
  }
  func.func @transform_2(%arg0: i32, %arg1: i32) -> (i32, i32) {
    %c0_i32 = arith.constant 0 : i32
    %c0_i32_0 = arith.constant 0 : i32
    return %c0_i32, %arg1 : i32, i32
  }
  func.func @transform_3(%arg0: i32, %arg1: i32) -> (i32, i32) {
    %c0_i32 = arith.constant 0 : i32
    %c0_i32_0 = arith.constant 0 : i32
    return %arg1, %c0_i32 : i32, i32
  }
  func.func @transform_4(%arg0: i32, %arg1: i32) -> (i32, i32) {
    %c0_i32 = arith.constant 0 : i32
    %c0_i32_0 = arith.constant 0 : i32
    return %arg0, %c0_i32 : i32, i32
  }
  func.func @transform_5(%arg0: i32, %arg1: i32) -> (i32, i32, i32) {
    %c0_i32 = arith.constant 0 : i32
    %c0_i32_0 = arith.constant 0 : i32
    %c0_i32_1 = arith.constant 0 : i32
    return %arg0, %c0_i32, %c0_i32_0 : i32, i32, i32
  }
}

module attributes {stable_mosaic.version = 11 : i64} {
  func.func @_bn_add_relu_kernel(%arg0: i32, %arg1: memref<512x128xbf16, #tpu.memory_space<vmem>>, %arg2: memref<1x128xf32, #tpu.memory_space<vmem>>, %arg3: memref<1x128xf32, #tpu.memory_space<vmem>>, %arg4: memref<512x128xbf16, #tpu.memory_space<vmem>>, %arg5: memref<1x128xf32, #tpu.memory_space<vmem>>, %arg6: memref<1x128xf32, #tpu.memory_space<vmem>>, %arg7: memref<512x128xf32, #tpu.memory_space<vmem>>) attributes {dimension_semantics = [#tpu.dimension_semantics<parallel>], iteration_bounds = array<i64: 1>, scalar_prefetch = 0 : i64, scratch_operands = 0 : i64, tpu.core_type = #tpu.core_type<tc>, window_params = [{transform_indices = @transform_0, window_bounds = array<i64: 512, 128>}, {pipeline_mode = #tpu.pipeline_mode<synchronous>, transform_indices = @transform_1, window_bounds = array<i64: 1, 128>}, {pipeline_mode = #tpu.pipeline_mode<synchronous>, transform_indices = @transform_2, window_bounds = array<i64: 1, 128>}, {transform_indices = @transform_3, window_bounds = array<i64: 512, 128>}, {pipeline_mode = #tpu.pipeline_mode<synchronous>, transform_indices = @transform_4, window_bounds = array<i64: 1, 128>}, {pipeline_mode = #tpu.pipeline_mode<synchronous>, transform_indices = @transform_5, window_bounds = array<i64: 1, 128>}, {transform_indices = @transform_6, window_bounds = array<i64: 512, 128>}]} {
    %c0 = arith.constant 0 : index
    %c0_0 = arith.constant 0 : index
    %0 = vector.load %arg1[%c0, %c0_0] : memref<512x128xbf16, #tpu.memory_space<vmem>>, vector<512x128xbf16>
    %1 = arith.extf %0 : vector<512x128xbf16> to vector<512x128xf32>
    %c0_1 = arith.constant 0 : index
    %c0_2 = arith.constant 0 : index
    %2 = vector.load %arg2[%c0_1, %c0_2] : memref<1x128xf32, #tpu.memory_space<vmem>>, vector<1x128xf32>
    %3 = vector.broadcast %2 : vector<1x128xf32> to vector<512x128xf32>
    %4 = arith.mulf %1, %3 : vector<512x128xf32>
    %c0_3 = arith.constant 0 : index
    %c0_4 = arith.constant 0 : index
    %5 = vector.load %arg3[%c0_3, %c0_4] : memref<1x128xf32, #tpu.memory_space<vmem>>, vector<1x128xf32>
    %6 = vector.broadcast %5 : vector<1x128xf32> to vector<512x128xf32>
    %7 = arith.addf %4, %6 : vector<512x128xf32>
    %c0_5 = arith.constant 0 : index
    %c0_6 = arith.constant 0 : index
    %8 = vector.load %arg4[%c0_5, %c0_6] : memref<512x128xbf16, #tpu.memory_space<vmem>>, vector<512x128xbf16>
    %9 = arith.extf %8 : vector<512x128xbf16> to vector<512x128xf32>
    %c0_7 = arith.constant 0 : index
    %c0_8 = arith.constant 0 : index
    %10 = vector.load %arg5[%c0_7, %c0_8] : memref<1x128xf32, #tpu.memory_space<vmem>>, vector<1x128xf32>
    %11 = vector.broadcast %10 : vector<1x128xf32> to vector<512x128xf32>
    %12 = arith.mulf %9, %11 : vector<512x128xf32>
    %c0_9 = arith.constant 0 : index
    %c0_10 = arith.constant 0 : index
    %13 = vector.load %arg6[%c0_9, %c0_10] : memref<1x128xf32, #tpu.memory_space<vmem>>, vector<1x128xf32>
    %14 = vector.broadcast %13 : vector<1x128xf32> to vector<512x128xf32>
    %15 = arith.addf %12, %14 : vector<512x128xf32>
    %16 = arith.addf %7, %15 : vector<512x128xf32>
    %cst = arith.constant 0.000000e+00 : f32
    %17 = vector.broadcast %cst : f32 to vector<512x128xf32>
    %18 = arith.maximumf %16, %17 : vector<512x128xf32>
    %c0_11 = arith.constant 0 : index
    %c0_12 = arith.constant 0 : index
    %19 = vector.load %arg7[%c0_11, %c0_12] : memref<512x128xf32, #tpu.memory_space<vmem>>, vector<512x128xf32>
    tpu.vector_store %arg7[%c0_11, %c0_12], %18 {strides = array<i32>} : memref<512x128xf32, #tpu.memory_space<vmem>>, vector<512x128xf32>,
    return
  }
  func.func @transform_0(%arg0: i32) -> (i32, i32) {
    %c0_i32 = arith.constant 0 : i32
    %c0_i32_0 = arith.constant 0 : i32
    return %arg0, %c0_i32 : i32, i32
  }
  func.func @transform_1(%arg0: i32) -> (i32, i32) {
    %c0_i32 = arith.constant 0 : i32
    %c0_i32_0 = arith.constant 0 : i32
    %c0_i32_1 = arith.constant 0 : i32
    return %c0_i32, %c0_i32_0 : i32, i32
  }
  func.func @transform_2(%arg0: i32) -> (i32, i32) {
    %c0_i32 = arith.constant 0 : i32
    %c0_i32_0 = arith.constant 0 : i32
    %c0_i32_1 = arith.constant 0 : i32
    return %c0_i32, %c0_i32_0 : i32, i32
  }
  func.func @transform_3(%arg0: i32) -> (i32, i32) {
    %c0_i32 = arith.constant 0 : i32
    %c0_i32_0 = arith.constant 0 : i32
    return %arg0, %c0_i32 : i32, i32
  }
  func.func @transform_4(%arg0: i32) -> (i32, i32) {
    %c0_i32 = arith.constant 0 : i32
    %c0_i32_0 = arith.constant 0 : i32
    %c0_i32_1 = arith.constant 0 : i32
    return %c0_i32, %c0_i32_0 : i32, i32
  }
  func.func @transform_5(%arg0: i32) -> (i32, i32) {
    %c0_i32 = arith.constant 0 : i32
    %c0_i32_0 = arith.constant 0 : i32
    %c0_i32_1 = arith.constant 0 : i32
    return %c0_i32, %c0_i32_0 : i32, i32
  }
  func.func @transform_6(%arg0: i32) -> (i32, i32) {
    %c0_i32 = arith.constant 0 : i32
    %c0_i32_0 = arith.constant 0 : i32
    return %arg0, %c0_i32 : i32, i32
  }
}

</mosaic_0001>

<llo_original>
// kernel: res_bottleneck_forward.5
$region0: #{res_bottleneck_forward.5}
  #allocation0 [shape = 'u32[]', space=smem, size = 0x4, offset = 0x4, fixed_abs, tag = 'smem constant byte address 0x4 - core index']
  #allocation1 [shape = 'u32[144,128]{1,0:T(1,128)}', space=vmem, size = 0x12000, scoped, tag = 'internal scratch']
  #allocation2 [shape = 'f32[512,128]{1,0:T(8,128)}', space=vmem, size = 0x40000, scoped, tag = 'scratch operand']
  %s0 = inlined_call_operand.vmem [shape: bf16[512,128], index: 0, kind: input, shape index: {}]
  %s1 = inlined_call_operand.vmem [shape: bf16[128,128], index: 1, kind: input, shape index: {}]
  %s2 = inlined_call_operand.vmem [shape: bf16[512,128], index: 2, kind: output, shape index: {0}]
  %s3 = inlined_call_operand.vmem [shape: f32[1,2,128], index: 3, kind: output, shape index: {1}]
  %4 = xla_tuple %s2, %s3
  %s5 = sld [smem:[#allocation0]]
  $region34: #{res_bottleneck_forward.5} parent=0
    _
  %s7 = ssub.s32 1, %s5
  %s8 = scalar_select 0, %s7, %s5
  // Predicated region
  $region2: #{res_bottleneck_forward.5} parent=0 // pred_check
    _
  $region3: #{res_bottleneck_forward.5} parent=0 // pred_check_branch
    %10 = sbr.rel (0) target = $region5
  $region4: #{res_bottleneck_forward.5} parent=0 // pred_region
    _
  $region5: #{res_bottleneck_forward.5} parent=0 // pred_fallthru
    _
  // Predicated region
  $region6: #{res_bottleneck_forward.5} parent=0 // pred_check
    _
  $region7: #{res_bottleneck_forward.5} parent=0 // pred_check_branch
    %12 = sbr.rel (0) target = $region9
  $region8: #{res_bottleneck_forward.5} parent=0 // pred_region
    _
  $region9: #{res_bottleneck_forward.5} parent=0 // pred_fallthru
    _
  %p14 = scmp.eq.s32.totalorder 0, 0
  // Predicated region
  $region10: #{res_bottleneck_forward.5} parent=0 // pred_check
    %p15 = pneg %p14
  $region11: #{res_bottleneck_forward.5} parent=0 // pred_check_branch
    %17 = sbr.rel (%p15) target = $region13
  $region12: #{res_bottleneck_forward.5} parent=0 // pred_region
    %18 = vst [vmem:[#allocation2] sm:$0xff] 0.0
    %19 = vst [vmem:[#allocation2 + $0x8] sm:$0xff] 0.0
    %20 = vst [vmem:[#allocation2 + $0x10] sm:$0xff] 0.0
    %21 = vst [vmem:[#allocation2 + $0x18] sm:$0xff] 0.0
    %22 = vst [vmem:[#allocation2 + $0x20] sm:$0xff] 0.0
    %23 = vst [vmem:[#allocation2 + $0x28] sm:$0xff] 0.0
    %24 = vst [vmem:[#allocation2 + $0x30] sm:$0xff] 0.0
    %25 = vst [vmem:[#allocation2 + $0x38] sm:$0xff] 0.0
    %26 = vst [vmem:[#allocation2 + $0x40] sm:$0xff] 0.0
    %27 = vst [vmem:[#allocation2 + $0x48] sm:$0xff] 0.0
    %28 = vst [vmem:[#allocation2 + $0x50] sm:$0xff] 0.0
    %29 = vst [vmem:[#allocation2 + $0x58] sm:$0xff] 0.0
    %30 = vst [vmem:[#allocation2 + $0x60] sm:$0xff] 0.0
    %31 = vst [vmem:[#allocation2 + $0x68] sm:$0xff] 0.0
    %32 = vst [vmem:[#allocation2 + $0x70] sm:$0xff] 0.0
    %33 = vst [vmem:[#allocation2 + $0x78] sm:$0xff] 0.0
    %34 = vst [vmem:[#allocation2 + $0x80] sm:$0xff] 0.0
    %35 = vst [vmem:[#allocation2 + $0x88] sm:$0xff] 0.0
    %36 = vst [vmem:[#allocation2 + $0x90] sm:$0xff] 0.0
    %37 = vst [vmem:[#allocation2 + $0x98] sm:$0xff] 0.0
    %38 = vst [vmem:[#allocation2 + $0xa0] sm:$0xff] 0.0
    %39 = vst [vmem:[#allocation2 + $0xa8] sm:$0xff] 0.0
    %40 = vst [vmem:[#allocation2 + $0xb0] sm:$0xff] 0.0
    %41 = vst [vmem:[#allocation2 + $0xb8] sm:$0xff] 0.0
    %42 = vst [vmem:[#allocation2 + $0xc0] sm:$0xff] 0.0
    %43 = vst [vmem:[#allocation2 + $0xc8] sm:$0xff] 0.0
    %44 = vst [vmem:[#allocation2 + $0xd0] sm:$0xff] 0.0
    %45 = vst [vmem:[#allocation2 + $0xd8] sm:$0xff] 0.0
    %46 = vst [vmem:[#allocation2 + $0xe0] sm:$0xff] 0.0
    %47 = vst [vmem:[#allocation2 + $0xe8] sm:$0xff] 0.0
    %48 = vst [vmem:[#allocation2 + $0xf0] sm:$0xff] 0.0
    %49 = vst [vmem:[#allocation2 + $0xf8] sm:$0xff] 0.0
    %50 = vst [vmem:[#allocation2 + $0x100] sm:$0xff] 0.0
    %51 = vst [vmem:[#allocation2 + $0x108] sm:$0xff] 0.0
    %52 = vst [vmem:[#allocation2 + $0x110] sm:$0xff] 0.0
    %53 = vst [vmem:[#allocation2 + $0x118] sm:$0xff] 0.0
    %54 = vst [vmem:[#allocation2 + $0x120] sm:$0xff] 0.0
    %55 = vst [vmem:[#allocation2 + $0x128] sm:$0xff] 0.0
    %56 = vst [vmem:[#allocation2 + $0x130] sm:$0xff] 0.0
    %57 = vst [vmem:[#allocation2 + $0x138] sm:$0xff] 0.0
    %58 = vst [vmem:[#allocation2 + $0x140] sm:$0xff] 0.0
    %59 = vst [vmem:[#allocation2 + $0x148] sm:$0xff] 0.0
    %60 = vst [vmem:[#allocation2 + $0x150] sm:$0xff] 0.0
    %61 = vst [vmem:[#allocation2 + $0x158] sm:$0xff] 0.0
    %62 = vst [vmem:[#allocation2 + $0x160] sm:$0xff] 0.0
    %63 = vst [vmem:[#allocation2 + $0x168] sm:$0xff] 0.0
    %64 = vst [vmem:[#allocation2 + $0x170] sm:$0xff] 0.0
    %65 = vst [vmem:[#allocation2 + $0x178] sm:$0xff] 0.0
    %66 = vst [vmem:[#allocation2 + $0x180] sm:$0xff] 0.0
    %67 = vst [vmem:[#allocation2 + $0x188] sm:$0xff] 0.0
    %68 = vst [vmem:[#allocation2 + $0x190] sm:$0xff] 0.0
    %69 = vst [vmem:[#allocation2 + $0x198] sm:$0xff] 0.0
    %70 = vst [vmem:[#allocation2 + $0x1a0] sm:$0xff] 0.0
    %71 = vst [vmem:[#allocation2 + $0x1a8] sm:$0xff] 0.0
    %72 = vst [vmem:[#allocation2 + $0x1b0] sm:$0xff] 0.0
    %73 = vst [vmem:[#allocation2 + $0x1b8] sm:$0xff] 0.0
    %74 = vst [vmem:[#allocation2 + $0x1c0] sm:$0xff] 0.0
    %75 = vst [vmem:[#allocation2 + $0x1c8] sm:$0xff] 0.0
    %76 = vst [vmem:[#allocation2 + $0x1d0] sm:$0xff] 0.0
    %77 = vst [vmem:[#allocation2 + $0x1d8] sm:$0xff] 0.0
    %78 = vst [vmem:[#allocation2 + $0x1e0] sm:$0xff] 0.0
    %79 = vst [vmem:[#allocation2 + $0x1e8] sm:$0xff] 0.0
    %80 = vst [vmem:[#allocation2 + $0x1f0] sm:$0xff] 0.0
    %81 = vst [vmem:[#allocation2 + $0x1f8] sm:$0xff] 0.0
  $region13: #{res_bottleneck_forward.5} parent=0 // pred_fallthru
    _
  %v82 = vld [vmem:[%s0] sm:$0xf]
  %v83 = vld [vmem:[%s0 + $0x4] sm:$0xf]
  %v84 = vld [vmem:[%s0 + $0x8] sm:$0xf]
  %v85 = vld [vmem:[%s0 + $0xc] sm:$0xf]
  %v86 = vld [vmem:[%s0 + $0x10] sm:$0xf]
  %v87 = vld [vmem:[%s0 + $0x14] sm:$0xf]
  %v88 = vld [vmem:[%s0 + $0x18] sm:$0xf]
  %v89 = vld [vmem:[%s0 + $0x1c] sm:$0xf]
  %v90 = vld [vmem:[%s0 + $0x20] sm:$0xf]
  %v91 = vld [vmem:[%s0 + $0x24] sm:$0xf]
  %v92 = vld [vmem:[%s0 + $0x28] sm:$0xf]
  %v93 = vld [vmem:[%s0 + $0x2c] sm:$0xf]
  %v94 = vld [vmem:[%s0 + $0x30] sm:$0xf]
  %v95 = vld [vmem:[%s0 + $0x34] sm:$0xf]
  %v96 = vld [vmem:[%s0 + $0x38] sm:$0xf]
  %v97 = vld [vmem:[%s0 + $0x3c] sm:$0xf]
  %v98 = vld [vmem:[%s0 + $0x40] sm:$0xf]
  %v99 = vld [vmem:[%s0 + $0x44] sm:$0xf]
  %v100 = vld [vmem:[%s0 + $0x48] sm:$0xf]
  %v101 = vld [vmem:[%s0 + $0x4c] sm:$0xf]
  %v102 = vld [vmem:[%s0 + $0x50] sm:$0xf]
  %v103 = vld [vmem:[%s0 + $0x54] sm:$0xf]
  %v104 = vld [vmem:[%s0 + $0x58] sm:$0xf]
  %v105 = vld [vmem:[%s0 + $0x5c] sm:$0xf]
  %v106 = vld [vmem:[%s0 + $0x60] sm:$0xf]
  %v107 = vld [vmem:[%s0 + $0x64] sm:$0xf]
  %v108 = vld [vmem:[%s0 + $0x68] sm:$0xf]
  %v109 = vld [vmem:[%s0 + $0x6c] sm:$0xf]
  %v110 = vld [vmem:[%s0 + $0x70] sm:$0xf]
  %v111 = vld [vmem:[%s0 + $0x74] sm:$0xf]
  %v112 = vld [vmem:[%s0 + $0x78] sm:$0xf]
  %v113 = vld [vmem:[%s0 + $0x7c] sm:$0xf]
  %v114 = vld [vmem:[%s0 + $0x80] sm:$0xf]
  %v115 = vld [vmem:[%s0 + $0x84] sm:$0xf]
  %v116 = vld [vmem:[%s0 + $0x88] sm:$0xf]
  %v117 = vld [vmem:[%s0 + $0x8c] sm:$0xf]
  %v118 = vld [vmem:[%s0 + $0x90] sm:$0xf]
  %v119 = vld [vmem:[%s0 + $0x94] sm:$0xf]
  %v120 = vld [vmem:[%s0 + $0x98] sm:$0xf]
  %v121 = vld [vmem:[%s0 + $0x9c] sm:$0xf]
  %v122 = vld [vmem:[%s0 + $0xa0] sm:$0xf]
  %v123 = vld [vmem:[%s0 + $0xa4] sm:$0xf]
  %v124 = vld [vmem:[%s0 + $0xa8] sm:$0xf]
  %v125 = vld [vmem:[%s0 + $0xac] sm:$0xf]
  %v126 = vld [vmem:[%s0 + $0xb0] sm:$0xf]
  %v127 = vld [vmem:[%s0 + $0xb4] sm:$0xf]
  %v128 = vld [vmem:[%s0 + $0xb8] sm:$0xf]
  %v129 = vld [vmem:[%s0 + $0xbc] sm:$0xf]
  %v130 = vld [vmem:[%s0 + $0xc0] sm:$0xf]
  %v131 = vld [vmem:[%s0 + $0xc4] sm:$0xf]
  %v132 = vld [vmem:[%s0 + $0xc8] sm:$0xf]
  %v133 = vld [vmem:[%s0 + $0xcc] sm:$0xf]
  %v134 = vld [vmem:[%s0 + $0xd0] sm:$0xf]
  %v135 = vld [vmem:[%s0 + $0xd4] sm:$0xf]
  %v136 = vld [vmem:[%s0 + $0xd8] sm:$0xf]
  %v137 = vld [vmem:[%s0 + $0xdc] sm:$0xf]
  %v138 = vld [vmem:[%s0 + $0xe0] sm:$0xf]
  %v139 = vld [vmem:[%s0 + $0xe4] sm:$0xf]
  %v140 = vld [vmem:[%s0 + $0xe8] sm:$0xf]
  %v141 = vld [vmem:[%s0 + $0xec] sm:$0xf]
  %v142 = vld [vmem:[%s0 + $0xf0] sm:$0xf]
  %v143 = vld [vmem:[%s0 + $0xf4] sm:$0xf]
  %v144 = vld [vmem:[%s0 + $0xf8] sm:$0xf]
  %v145 = vld [vmem:[%s0 + $0xfc] sm:$0xf]
  %v146 = vld [vmem:[#allocation2] sm:$0xff]
  %v147 = vld [vmem:[#allocation2 + $0x8] sm:$0xff]
  %v148 = vld [vmem:[#allocation2 + $0x10] sm:$0xff]
  %v149 = vld [vmem:[#allocation2 + $0x18] sm:$0xff]
  %v150 = vld [vmem:[#allocation2 + $0x20] sm:$0xff]
  %v151 = vld [vmem:[#allocation2 + $0x28] sm:$0xff]
  %v152 = vld [vmem:[#allocation2 + $0x30] sm:$0xff]
  %v153 = vld [vmem:[#allocation2 + $0x38] sm:$0xff]
  %v154 = vld [vmem:[#allocation2 + $0x40] sm:$0xff]
  %v155 = vld [vmem:[#allocation2 + $0x48] sm:$0xff]
  %v156 = vld [vmem:[#allocation2 + $0x50] sm:$0xff]
  %v157 = vld [vmem:[#allocation2 + $0x58] sm:$0xff]
  %v158 = vld [vmem:[#allocation2 + $0x60] sm:$0xff]
  %v159 = vld [vmem:[#allocation2 + $0x68] sm:$0xff]
  %v160 = vld [vmem:[#allocation2 + $0x70] sm:$0xff]
  %v161 = vld [vmem:[#allocation2 + $0x78] sm:$0xff]
  %v162 = vld [vmem:[#allocation2 + $0x80] sm:$0xff]
  %v163 = vld [vmem:[#allocation2 + $0x88] sm:$0xff]
  %v164 = vld [vmem:[#allocation2 + $0x90] sm:$0xff]
  %v165 = vld [vmem:[#allocation2 + $0x98] sm:$0xff]
  %v166 = vld [vmem:[#allocation2 + $0xa0] sm:$0xff]
  %v167 = vld [vmem:[#allocation2 + $0xa8] sm:$0xff]
  %v168 = vld [vmem:[#allocation2 + $0xb0] sm:$0xff]
  %v169 = vld [vmem:[#allocation2 + $0xb8] sm:$0xff]
  %v170 = vld [vmem:[#allocation2 + $0xc0] sm:$0xff]
  %v171 = vld [vmem:[#allocation2 + $0xc8] sm:$0xff]
  %v172 = vld [vmem:[#allocation2 + $0xd0] sm:$0xff]
  %v173 = vld [vmem:[#allocation2 + $0xd8] sm:$0xff]
  %v174 = vld [vmem:[#allocation2 + $0xe0] sm:$0xff]
  %v175 = vld [vmem:[#allocation2 + $0xe8] sm:$0xff]
  %v176 = vld [vmem:[#allocation2 + $0xf0] sm:$0xff]
  %v177 = vld [vmem:[#allocation2 + $0xf8] sm:$0xff]
  %v178 = vld [vmem:[#allocation2 + $0x100] sm:$0xff]
  %v179 = vld [vmem:[#allocation2 + $0x108] sm:$0xff]
  %v180 = vld [vmem:[#allocation2 + $0x110] sm:$0xff]
  %v181 = vld [vmem:[#allocation2 + $0x118] sm:$0xff]
  %v182 = vld [vmem:[#allocation2 + $0x120] sm:$0xff]
  %v183 = vld [vmem:[#allocation2 + $0x128] sm:$0xff]
  %v184 = vld [vmem:[#allocation2 + $0x130] sm:$0xff]
  %v185 = vld [vmem:[#allocation2 + $0x138] sm:$0xff]
  %v186 = vld [vmem:[#allocation2 + $0x140] sm:$0xff]
  %v187 = vld [vmem:[#allocation2 + $0x148] sm:$0xff]
  %v188 = vld [vmem:[#allocation2 + $0x150] sm:$0xff]
  %v189 = vld [vmem:[#allocation2 + $0x158] sm:$0xff]
  %v190 = vld [vmem:[#allocation2 + $0x160] sm:$0xff]
  %v191 = vld [vmem:[#allocation2 + $0x168] sm:$0xff]
  %v192 = vld [vmem:[#allocation2 + $0x170] sm:$0xff]
  %v193 = vld [vmem:[#allocation2 + $0x178] sm:$0xff]
  %v194 = vld [vmem:[#allocation2 + $0x180] sm:$0xff]
  %v195 = vld [vmem:[#allocation2 + $0x188] sm:$0xff]
  %v196 = vld [vmem:[#allocation2 + $0x190] sm:$0xff]
  %v197 = vld [vmem:[#allocation2 + $0x198] sm:$0xff]
  %v198 = vld [vmem:[#allocation2 + $0x1a0] sm:$0xff]
  %v199 = vld [vmem:[#allocation2 + $0x1a8] sm:$0xff]
  %v200 = vld [vmem:[#allocation2 + $0x1b0] sm:$0xff]
  %v201 = vld [vmem:[#allocation2 + $0x1b8] sm:$0xff]
  %v202 = vld [vmem:[#allocation2 + $0x1c0] sm:$0xff]
  %v203 = vld [vmem:[#allocation2 + $0x1c8] sm:$0xff]
  %v204 = vld [vmem:[#allocation2 + $0x1d0] sm:$0xff]
  %v205 = vld [vmem:[#allocation2 + $0x1d8] sm:$0xff]
  %v206 = vld [vmem:[#allocation2 + $0x1e0] sm:$0xff]
  %v207 = vld [vmem:[#allocation2 + $0x1e8] sm:$0xff]
  %v208 = vld [vmem:[#allocation2 + $0x1f0] sm:$0xff]
  %v209 = vld [vmem:[#allocation2 + $0x1f8] sm:$0xff]
  %v210 = vld [vmem:[%s1] sm:$0xf]
  %v211 = vld [vmem:[%s1 + $0x4] sm:$0xf]
  %v212 = vld [vmem:[%s1 + $0x8] sm:$0xf]
  %v213 = vld [vmem:[%s1 + $0xc] sm:$0xf]
  %v214 = vld [vmem:[%s1 + $0x10] sm:$0xf]
  %v215 = vld [vmem:[%s1 + $0x14] sm:$0xf]
  %v216 = vld [vmem:[%s1 + $0x18] sm:$0xf]
  %v217 = vld [vmem:[%s1 + $0x1c] sm:$0xf]
  %v218 = vld [vmem:[%s1 + $0x20] sm:$0xf]
  %v219 = vld [vmem:[%s1 + $0x24] sm:$0xf]
  %v220 = vld [vmem:[%s1 + $0x28] sm:$0xf]
  %v221 = vld [vmem:[%s1 + $0x2c] sm:$0xf]
  %v222 = vld [vmem:[%s1 + $0x30] sm:$0xf]
  %v223 = vld [vmem:[%s1 + $0x34] sm:$0xf]
  %v224 = vld [vmem:[%s1 + $0x38] sm:$0xf]
  %v225 = vld [vmem:[%s1 + $0x3c] sm:$0xf]
  %v290 = vunpack.c.l.b16 %v82
  %v291 = vunpack.c.l.b16 %v83
  %v292 = vunpack.c.l.b16 %v84
  %v293 = vunpack.c.l.b16 %v85
  %v294 = vunpack.c.l.b16 %v86
  %v295 = vunpack.c.l.b16 %v87
  %v296 = vunpack.c.l.b16 %v88
  %v297 = vunpack.c.l.b16 %v89
  %v298 = vunpack.c.l.b16 %v90
  %v299 = vunpack.c.l.b16 %v91
  %v300 = vunpack.c.l.b16 %v92
  %v301 = vunpack.c.l.b16 %v93
  %v302 = vunpack.c.l.b16 %v94
  %v303 = vunpack.c.l.b16 %v95
  %v304 = vunpack.c.l.b16 %v96
  %v305 = vunpack.c.l.b16 %v97
  %v306 = vunpack.c.l.b16 %v98
  %v307 = vunpack.c.l.b16 %v99
  %v308 = vunpack.c.l.b16 %v100
  %v309 = vunpack.c.l.b16 %v101
  %v310 = vunpack.c.l.b16 %v102
  %v311 = vunpack.c.l.b16 %v103
  %v312 = vunpack.c.l.b16 %v104
  %v313 = vunpack.c.l.b16 %v105
  %v314 = vunpack.c.l.b16 %v106
  %v315 = vunpack.c.l.b16 %v107
  %v316 = vunpack.c.l.b16 %v108
  %v317 = vunpack.c.l.b16 %v109
  %v318 = vunpack.c.l.b16 %v110
  %v319 = vunpack.c.l.b16 %v111
  %v320 = vunpack.c.l.b16 %v112
  %v321 = vunpack.c.l.b16 %v113
  %v322 = vunpack.c.l.b16 %v114
  %v323 = vunpack.c.l.b16 %v115
  %v324 = vunpack.c.l.b16 %v116
  %v325 = vunpack.c.l.b16 %v117
  %v326 = vunpack.c.l.b16 %v118
  %v327 = vunpack.c.l.b16 %v119
  %v328 = vunpack.c.l.b16 %v120
  %v329 = vunpack.c.l.b16 %v121
  %v330 = vunpack.c.l.b16 %v122
  %v331 = vunpack.c.l.b16 %v123
  %v332 = vunpack.c.l.b16 %v124
  %v333 = vunpack.c.l.b16 %v125
  %v334 = vunpack.c.l.b16 %v126
  %v335 = vunpack.c.l.b16 %v127
  %v336 = vunpack.c.l.b16 %v128
  %v337 = vunpack.c.l.b16 %v129
  %v338 = vunpack.c.l.b16 %v130
  %v339 = vunpack.c.l.b16 %v131
  %v340 = vunpack.c.l.b16 %v132
  %v341 = vunpack.c.l.b16 %v133
  %v342 = vunpack.c.l.b16 %v134
  %v343 = vunpack.c.l.b16 %v135
  %v344 = vunpack.c.l.b16 %v136
  %v345 = vunpack.c.l.b16 %v137
  %v346 = vunpack.c.l.b16 %v138
  %v347 = vunpack.c.l.b16 %v139
  %v348 = vunpack.c.l.b16 %v140
  %v349 = vunpack.c.l.b16 %v141
  %v350 = vunpack.c.l.b16 %v142
  %v351 = vunpack.c.l.b16 %v143
  %v352 = vunpack.c.l.b16 %v144
  %v353 = vunpack.c.l.b16 %v145
  %v354 = vpack.c.b16 %v291, %v290
  %v355 = vpack.c.b16 %v293, %v292
  %v356 = vpack.c.b16 %v295, %v294
  %v357 = vpack.c.b16 %v297, %v296
  %v358 = vpack.c.b16 %v299, %v298
  %v359 = vpack.c.b16 %v301, %v300
  %v360 = vpack.c.b16 %v303, %v302
  %v361 = vpack.c.b16 %v305, %v304
  %v362 = vpack.c.b16 %v307, %v306
  %v363 = vpack.c.b16 %v309, %v308
  %v364 = vpack.c.b16 %v311, %v310
  %v365 = vpack.c.b16 %v313, %v312
  %v366 = vpack.c.b16 %v315, %v314
  %v367 = vpack.c.b16 %v317, %v316
  %v368 = vpack.c.b16 %v319, %v318
  %v369 = vpack.c.b16 %v321, %v320
  %v370 = vpack.c.b16 %v323, %v322
  %v371 = vpack.c.b16 %v325, %v324
  %v372 = vpack.c.b16 %v327, %v326
  %v373 = vpack.c.b16 %v329, %v328
  %v374 = vpack.c.b16 %v331, %v330
  %v375 = vpack.c.b16 %v333, %v332
  %v376 = vpack.c.b16 %v335, %v334
  %v377 = vpack.c.b16 %v337, %v336
  %v378 = vpack.c.b16 %v339, %v338
  %v379 = vpack.c.b16 %v341, %v340
  %v380 = vpack.c.b16 %v343, %v342
  %v381 = vpack.c.b16 %v345, %v344
  %v382 = vpack.c.b16 %v347, %v346
  %v383 = vpack.c.b16 %v349, %v348
  %v384 = vpack.c.b16 %v351, %v350
  %v385 = vpack.c.b16 %v353, %v352
  %v434 = vunpack.c.l.b16 %v210
  %v435 = vunpack.c.l.b16 %v211
  %v436 = vunpack.c.l.b16 %v212
  %v437 = vunpack.c.l.b16 %v213
  %v438 = vunpack.c.l.b16 %v214
  %v439 = vunpack.c.l.b16 %v215
  %v440 = vunpack.c.l.b16 %v216
  %v441 = vunpack.c.l.b16 %v217
  %v442 = vunpack.c.l.b16 %v218
  %v443 = vunpack.c.l.b16 %v219
  %v444 = vunpack.c.l.b16 %v220
  %v445 = vunpack.c.l.b16 %v221
  %v446 = vunpack.c.l.b16 %v222
  %v447 = vunpack.c.l.b16 %v223
  %v448 = vunpack.c.l.b16 %v224
  %v449 = vunpack.c.l.b16 %v225
  %v450 = vpack.c.b16 %v435, %v434
  %v451 = vpack.c.b16 %v437, %v436
  %v452 = vpack.c.b16 %v439, %v438
  %v453 = vpack.c.b16 %v441, %v440
  %v454 = vpack.c.b16 %v443, %v442
  %v455 = vpack.c.b16 %v445, %v444
  %v456 = vpack.c.b16 %v447, %v446
  %v457 = vpack.c.b16 %v449, %v448
  %466 = vmatprep.subr.bf16.mxu0 0
  %467 = vmatpush1.bf16.msra.mxu0 %v450
  %468 = vmatprep.subr.bf16.mxu0 0
  %469 = vmatpush1.bf16.msra.mxu0 %v451
  %470 = vmatprep.subr.bf16.mxu0 0
  %471 = vmatpush1.bf16.msra.mxu0 %v452
  %472 = vmatprep.subr.bf16.mxu0 0
  %473 = vmatpush1.bf16.msra.mxu0 %v453
  %474 = vmatprep.subr.bf16.mxu0 0
  %475 = vmatpush1.bf16.msra.mxu0 %v454
  %476 = vmatprep.subr.bf16.mxu0 0
  %477 = vmatpush1.bf16.msra.mxu0 %v455
  %478 = vmatprep.subr.bf16.mxu0 0
  %479 = vmatpush1.bf16.msra.mxu0 %v456
  %480 = vmatprep.subr.bf16.mxu0 0
  %481 = vmatpush1.bf16.msra.mxu0 %v457
  %482 = vmatprep.subr.bf16.mxu0 0
  %483 = vmatpush1.bf16.msra.mxu0 0
  %484 = vmatprep.subr.bf16.mxu0 0
  %485 = vmatpush1.bf16.msra.mxu0 0
  %486 = vmatprep.subr.bf16.mxu0 0
  %487 = vmatpush1.bf16.msra.mxu0 0
  %488 = vmatprep.subr.bf16.mxu0 0
  %489 = vmatpush1.bf16.msra.mxu0 0
  %490 = vmatprep.subr.bf16.mxu0 0
  %491 = vmatpush1.bf16.msra.mxu0 0
  %492 = vmatprep.subr.bf16.mxu0 0
  %493 = vmatpush1.bf16.msra.mxu0 0
  %494 = vmatprep.subr.bf16.mxu0 0
  %495 = vmatpush1.bf16.msra.mxu0 0
  %496 = vmatprep.subr.bf16.mxu0 0
  %497 = vmatpush1.bf16.msra.mxu0 0
  %498 = vmatprep.mubr.bf16.mxu0 0
  %499 = vmatmul.mubr.bf16.gmra.mrb[0].mxu0 %v354
  %v500 = vpop.f32.mrb[0].mxu0
  %v501 = vadd.f32 0.0, %v500
  %v502 = vpop.f32.mrb[0].mxu0
  %v503 = vpop.f32.mrb[0].mxu0
  %v504 = vadd.f32 0.0, %v503
  %v505 = vpop.f32.mrb[0].mxu0
  %506 = vmatprep.mubr.bf16.mxu0 0
  %507 = vmatmul.mubr.bf16.gmra.mrb[0].mxu0 %v355
  %v508 = vpop.f32.mrb[0].mxu0
  %v509 = vadd.f32 0.0, %v508
  %v510 = vpop.f32.mrb[0].mxu0
  %v511 = vpop.f32.mrb[0].mxu0
  %v512 = vadd.f32 0.0, %v511
  %v513 = vpop.f32.mrb[0].mxu0
  %514 = vmatprep.mubr.bf16.mxu0 0
  %515 = vmatmul.mubr.bf16.gmra.mrb[0].mxu0 %v356
  %v516 = vpop.f32.mrb[0].mxu0
  %v517 = vadd.f32 0.0, %v516
  %v518 = vpop.f32.mrb[0].mxu0
  %v519 = vpop.f32.mrb[0].mxu0
  %v520 = vadd.f32 0.0, %v519
  %v521 = vpop.f32.mrb[0].mxu0
  %522 = vmatprep.mubr.bf16.mxu0 0
  %523 = vmatmul.mubr.bf16.gmra.mrb[0].mxu0 %v357
  %v524 = vpop.f32.mrb[0].mxu0
  %v525 = vadd.f32 0.0, %v524
  %v526 = vpop.f32.mrb[0].mxu0
  %v527 = vpop.f32.mrb[0].mxu0
  %v528 = vadd.f32 0.0, %v527
  %v529 = vpop.f32.mrb[0].mxu0
  %530 = vmatprep.mubr.bf16.mxu0 0
  %531 = vmatmul.mubr.bf16.gmra.mrb[0].mxu0 %v358
  %v532 = vpop.f32.mrb[0].mxu0
  %v533 = vadd.f32 0.0, %v532
  %v534 = vpop.f32.mrb[0].mxu0
  %v535 = vpop.f32.mrb[0].mxu0
  %v536 = vadd.f32 0.0, %v535
  %v537 = vpop.f32.mrb[0].mxu0
  %538 = vmatprep.mubr.bf16.mxu0 0
  %539 = vmatmul.mubr.bf16.gmra.mrb[0].mxu0 %v359
  %v540 = vpop.f32.mrb[0].mxu0
  %v541 = vadd.f32 0.0, %v540
  %v542 = vpop.f32.mrb[0].mxu0
  %v543 = vpop.f32.mrb[0].mxu0
  %v544 = vadd.f32 0.0, %v543
  %v545 = vpop.f32.mrb[0].mxu0
  %546 = vmatprep.mubr.bf16.mxu0 0
  %547 = vmatmul.mubr.bf16.gmra.mrb[0].mxu0 %v360
  %v548 = vpop.f32.mrb[0].mxu0
  %v549 = vadd.f32 0.0, %v548
  %v550 = vpop.f32.mrb[0].mxu0
  %v551 = vpop.f32.mrb[0].mxu0
  %v552 = vadd.f32 0.0, %v551
  %v553 = vpop.f32.mrb[0].mxu0
  %554 = vmatprep.mubr.bf16.mxu0 0
  %555 = vmatmul.mubr.bf16.gmra.mrb[0].mxu0 %v361
  %v556 = vpop.f32.mrb[0].mxu0
  %v557 = vadd.f32 0.0, %v556
  %v558 = vpop.f32.mrb[0].mxu0
  %v559 = vpop.f32.mrb[0].mxu0
  %v560 = vadd.f32 0.0, %v559
  %v561 = vpop.f32.mrb[0].mxu0
  %562 = vmatprep.mubr.bf16.mxu0 0
  %563 = vmatmul.mubr.bf16.gmra.mrb[0].mxu0 %v362
  %v564 = vpop.f32.mrb[0].mxu0
  %v565 = vadd.f32 0.0, %v564
  %v566 = vpop.f32.mrb[0].mxu0
  %v567 = vpop.f32.mrb[0].mxu0
  %v568 = vadd.f32 0.0, %v567
  %v569 = vpop.f32.mrb[0].mxu0
  %570 = vmatprep.mubr.bf16.mxu0 0
  %571 = vmatmul.mubr.bf16.gmra.mrb[0].mxu0 %v363
  %v572 = vpop.f32.mrb[0].mxu0
  %v573 = vadd.f32 0.0, %v572
  %v574 = vpop.f32.mrb[0].mxu0
  %v575 = vpop.f32.mrb[0].mxu0
  %v576 = vadd.f32 0.0, %v575
  %v577 = vpop.f32.mrb[0].mxu0
  %578 = vmatprep.mubr.bf16.mxu0 0
  %579 = vmatmul.mubr.bf16.gmra.mrb[0].mxu0 %v364
  %v580 = vpop.f32.mrb[0].mxu0
  %v581 = vadd.f32 0.0, %v580
  %v582 = vpop.f32.mrb[0].mxu0
  %v583 = vpop.f32.mrb[0].mxu0
  %v584 = vadd.f32 0.0, %v583
  %v585 = vpop.f32.mrb[0].mxu0
  %586 = vmatprep.mubr.bf16.mxu0 0
  %587 = vmatmul.mubr.bf16.gmra.mrb[0].mxu0 %v365
  %v588 = vpop.f32.mrb[0].mxu0
  %v589 = vadd.f32 0.0, %v588
  %v590 = vpop.f32.mrb[0].mxu0
  %v591 = vpop.f32.mrb[0].mxu0
  %v592 = vadd.f32 0.0, %v591
  %v593 = vpop.f32.mrb[0].mxu0
  %594 = vmatprep.mubr.bf16.mxu0 0
  %595 = vmatmul.mubr.bf16.gmra.mrb[0].mxu0 %v366
  %v596 = vpop.f32.mrb[0].mxu0
  %v597 = vadd.f32 0.0, %v596
  %v598 = vpop.f32.mrb[0].mxu0
  %v599 = vpop.f32.mrb[0].mxu0
  %v600 = vadd.f32 0.0, %v599
  %v601 = vpop.f32.mrb[0].mxu0
  %602 = vmatprep.mubr.bf16.mxu0 0
  %603 = vmatmul.mubr.bf16.gmra.mrb[0].mxu0 %v367
  %v604 = vpop.f32.mrb[0].mxu0
  %v605 = vadd.f32 0.0, %v604
  %v606 = vpop.f32.mrb[0].mxu0
  %v607 = vpop.f32.mrb[0].mxu0
  %v608 = vadd.f32 0.0, %v607
  %v609 = vpop.f32.mrb[0].mxu0
  %610 = vmatprep.mubr.bf16.mxu0 0
  %611 = vmatmul.mubr.bf16.gmra.mrb[0].mxu0 %v368
  %v612 = vpop.f32.mrb[0].mxu0
  %v613 = vadd.f32 0.0, %v612
  %v614 = vpop.f32.mrb[0].mxu0
  %v615 = vpop.f32.mrb[0].mxu0
  %v616 = vadd.f32 0.0, %v615
  %v617 = vpop.f32.mrb[0].mxu0
  %618 = vmatprep.mubr.bf16.mxu0 0
  %619 = vmatmul.mubr.bf16.gmra.mrb[0].mxu0 %v369
  %v620 = vpop.f32.mrb[0].mxu0
  %v621 = vadd.f32 0.0, %v620
  %v622 = vpop.f32.mrb[0].mxu0
  %v623 = vpop.f32.mrb[0].mxu0
  %v624 = vadd.f32 0.0, %v623
  %v625 = vpop.f32.mrb[0].mxu0
  %626 = vmatprep.mubr.bf16.mxu0 0
  %627 = vmatmul.mubr.bf16.gmra.mrb[0].mxu0 %v370
  %v628 = vpop.f32.mrb[0].mxu0
  %v629 = vadd.f32 0.0, %v628
  %v630 = vpop.f32.mrb[0].mxu0
  %v631 = vpop.f32.mrb[0].mxu0
  %v632 = vadd.f32 0.0, %v631
  %v633 = vpop.f32.mrb[0].mxu0
  %634 = vmatprep.mubr.bf16.mxu0 0
  %635 = vmatmul.mubr.bf16.gmra.mrb[0].mxu0 %v371
  %v636 = vpop.f32.mrb[0].mxu0
  %v637 = vadd.f32 0.0, %v636
  %v638 = vpop.f32.mrb[0].mxu0
  %v639 = vpop.f32.mrb[0].mxu0
  %v640 = vadd.f32 0.0, %v639
  %v641 = vpop.f32.mrb[0].mxu0
  %642 = vmatprep.mubr.bf16.mxu0 0
  %643 = vmatmul.mubr.bf16.gmra.mrb[0].mxu0 %v372
  %v644 = vpop.f32.mrb[0].mxu0
  %v645 = vadd.f32 0.0, %v644
  %v646 = vpop.f32.mrb[0].mxu0
  %v647 = vpop.f32.mrb[0].mxu0
  %v648 = vadd.f32 0.0, %v647
  %v649 = vpop.f32.mrb[0].mxu0
  %650 = vmatprep.mubr.bf16.mxu0 0
  %651 = vmatmul.mubr.bf16.gmra.mrb[0].mxu0 %v373
  %v652 = vpop.f32.mrb[0].mxu0
  %v653 = vadd.f32 0.0, %v652
  %v654 = vpop.f32.mrb[0].mxu0
  %v655 = vpop.f32.mrb[0].mxu0
  %v656 = vadd.f32 0.0, %v655
  %v657 = vpop.f32.mrb[0].mxu0
  %658 = vmatprep.mubr.bf16.mxu0 0
  %659 = vmatmul.mubr.bf16.gmra.mrb[0].mxu0 %v374
  %v660 = vpop.f32.mrb[0].mxu0
  %v661 = vadd.f32 0.0, %v660
  %v662 = vpop.f32.mrb[0].mxu0
  %v663 = vpop.f32.mrb[0].mxu0
  %v664 = vadd.f32 0.0, %v663
  %v665 = vpop.f32.mrb[0].mxu0
  %666 = vmatprep.mubr.bf16.mxu0 0
  %667 = vmatmul.mubr.bf16.gmra.mrb[0].mxu0 %v375
  %v668 = vpop.f32.mrb[0].mxu0
  %v669 = vadd.f32 0.0, %v668
  %v670 = vpop.f32.mrb[0].mxu0
  %v671 = vpop.f32.mrb[0].mxu0
  %v672 = vadd.f32 0.0, %v671
  %v673 = vpop.f32.mrb[0].mxu0
  %674 = vmatprep.mubr.bf16.mxu0 0
  %675 = vmatmul.mubr.bf16.gmra.mrb[0].mxu0 %v376
  %v676 = vpop.f32.mrb[0].mxu0
  %v677 = vadd.f32 0.0, %v676
  %v678 = vpop.f32.mrb[0].mxu0
  %v679 = vpop.f32.mrb[0].mxu0
  %v680 = vadd.f32 0.0, %v679
  %v681 = vpop.f32.mrb[0].mxu0
  %682 = vmatprep.mubr.bf16.mxu0 0
  %683 = vmatmul.mubr.bf16.gmra.mrb[0].mxu0 %v377
  %v684 = vpop.f32.mrb[0].mxu0
  %v685 = vadd.f32 0.0, %v684
  %v686 = vpop.f32.mrb[0].mxu0
  %v687 = vpop.f32.mrb[0].mxu0
  %v688 = vadd.f32 0.0, %v687
  %v689 = vpop.f32.mrb[0].mxu0
  %690 = vmatprep.mubr.bf16.mxu0 0
  %691 = vmatmul.mubr.bf16.gmra.mrb[0].mxu0 %v378
  %v692 = vpop.f32.mrb[0].mxu0
  %v693 = vadd.f32 0.0, %v692
  %v694 = vpop.f32.mrb[0].mxu0
  %v695 = vpop.f32.mrb[0].mxu0
  %v696 = vadd.f32 0.0, %v695
  %v697 = vpop.f32.mrb[0].mxu0
  %698 = vmatprep.mubr.bf16.mxu0 0
  %699 = vmatmul.mubr.bf16.gmra.mrb[0].mxu0 %v379
  %v700 = vpop.f32.mrb[0].mxu0
  %v701 = vadd.f32 0.0, %v700
  %v702 = vpop.f32.mrb[0].mxu0
  %v703 = vpop.f32.mrb[0].mxu0
  %v704 = vadd.f32 0.0, %v703
  %v705 = vpop.f32.mrb[0].mxu0
  %706 = vmatprep.mubr.bf16.mxu0 0
  %707 = vmatmul.mubr.bf16.gmra.mrb[0].mxu0 %v380
  %v708 = vpop.f32.mrb[0].mxu0
  %v709 = vadd.f32 0.0, %v708
  %v710 = vpop.f32.mrb[0].mxu0
  %v711 = vpop.f32.mrb[0].mxu0
  %v712 = vadd.f32 0.0, %v711
  %v713 = vpop.f32.mrb[0].mxu0
  %714 = vmatprep.mubr.bf16.mxu0 0
  %715 = vmatmul.mubr.bf16.gmra.mrb[0].mxu0 %v381
  %v716 = vpop.f32.mrb[0].mxu0
  %v717 = vadd.f32 0.0, %v716
  %v718 = vpop.f32.mrb[0].mxu0
  %v719 = vpop.f32.mrb[0].mxu0
  %v720 = vadd.f32 0.0, %v719
  %v721 = vpop.f32.mrb[0].mxu0
  %722 = vmatprep.mubr.bf16.mxu0 0
  %723 = vmatmul.mubr.bf16.gmra.mrb[0].mxu0 %v382
  %v724 = vpop.f32.mrb[0].mxu0
  %v725 = vadd.f32 0.0, %v724
  %v726 = vpop.f32.mrb[0].mxu0
  %v727 = vpop.f32.mrb[0].mxu0
  %v728 = vadd.f32 0.0, %v727
  %v729 = vpop.f32.mrb[0].mxu0
  %730 = vmatprep.mubr.bf16.mxu0 0
  %731 = vmatmul.mubr.bf16.gmra.mrb[0].mxu0 %v383
  %v732 = vpop.f32.mrb[0].mxu0
  %v733 = vadd.f32 0.0, %v732
  %v734 = vpop.f32.mrb[0].mxu0
  %v735 = vpop.f32.mrb[0].mxu0
  %v736 = vadd.f32 0.0, %v735
  %v737 = vpop.f32.mrb[0].mxu0
  %738 = vmatprep.mubr.bf16.mxu0 0
  %739 = vmatmul.mubr.bf16.gmra.mrb[0].mxu0 %v384
  %v740 = vpop.f32.mrb[0].mxu0
  %v741 = vadd.f32 0.0, %v740
  %v742 = vpop.f32.mrb[0].mxu0
  %v743 = vpop.f32.mrb[0].mxu0
  %v744 = vadd.f32 0.0, %v743
  %v745 = vpop.f32.mrb[0].mxu0
  %746 = vmatprep.mubr.bf16.mxu0 0
  %747 = vmatmul.mubr.bf16.gmra.mrb[0].mxu0 %v385
  %v748 = vpop.f32.mrb[0].mxu0
  %v749 = vadd.f32 0.0, %v748
  %v750 = vpop.f32.mrb[0].mxu0
  %v751 = vpop.f32.mrb[0].mxu0
  %v752 = vadd.f32 0.0, %v751
  %v753 = vpop.f32.mrb[0].mxu0
  %754 = vdwg.mxu0
  %v755 = vadd.f32 %v146, %v501
  %v756 = vadd.f32 %v147, %v504
  %v757 = vadd.f32 %v148, %v509
  %v758 = vadd.f32 %v149, %v512
  %v759 = vadd.f32 %v150, %v517
  %v760 = vadd.f32 %v151, %v520
  %v761 = vadd.f32 %v152, %v525
  %v762 = vadd.f32 %v153, %v528
  %v763 = vadd.f32 %v154, %v533
  %v764 = vadd.f32 %v155, %v536
  %v765 = vadd.f32 %v156, %v541
  %v766 = vadd.f32 %v157, %v544
  %v767 = vadd.f32 %v158, %v549
  %v768 = vadd.f32 %v159, %v552
  %v769 = vadd.f32 %v160, %v557
  %v770 = vadd.f32 %v161, %v560
  %v771 = vadd.f32 %v162, %v565
  %v772 = vadd.f32 %v163, %v568
  %v773 = vadd.f32 %v164, %v573
  %v774 = vadd.f32 %v165, %v576
  %v775 = vadd.f32 %v166, %v581
  %v776 = vadd.f32 %v167, %v584
  %v777 = vadd.f32 %v168, %v589
  %v778 = vadd.f32 %v169, %v592
  %v779 = vadd.f32 %v170, %v597
  %v780 = vadd.f32 %v171, %v600
  %v781 = vadd.f32 %v172, %v605
  %v782 = vadd.f32 %v173, %v608
  %v783 = vadd.f32 %v174, %v613
  %v784 = vadd.f32 %v175, %v616
  %v785 = vadd.f32 %v176, %v621
  %v786 = vadd.f32 %v177, %v624
  %v787 = vadd.f32 %v178, %v629
  %v788 = vadd.f32 %v179, %v632
  %v789 = vadd.f32 %v180, %v637
  %v790 = vadd.f32 %v181, %v640
  %v791 = vadd.f32 %v182, %v645
  %v792 = vadd.f32 %v183, %v648
  %v793 = vadd.f32 %v184, %v653
  %v794 = vadd.f32 %v185, %v656
  %v795 = vadd.f32 %v186, %v661
  %v796 = vadd.f32 %v187, %v664
  %v797 = vadd.f32 %v188, %v669
  %v798 = vadd.f32 %v189, %v672
  %v799 = vadd.f32 %v190, %v677
  %v800 = vadd.f32 %v191, %v680
  %v801 = vadd.f32 %v192, %v685
  %v802 = vadd.f32 %v193, %v688
  %v803 = vadd.f32 %v194, %v693
  %v804 = vadd.f32 %v195, %v696
  %v805 = vadd.f32 %v196, %v701
  %v806 = vadd.f32 %v197, %v704
  %v807 = vadd.f32 %v198, %v709
  %v808 = vadd.f32 %v199, %v712
  %v809 = vadd.f32 %v200, %v717
  %v810 = vadd.f32 %v201, %v720
  %v811 = vadd.f32 %v202, %v725
  %v812 = vadd.f32 %v203, %v728
  %v813 = vadd.f32 %v204, %v733
  %v814 = vadd.f32 %v205, %v736
  %v815 = vadd.f32 %v206, %v741
  %v816 = vadd.f32 %v207, %v744
  %v817 = vadd.f32 %v208, %v749
  %v818 = vadd.f32 %v209, %v752
  %819 = vst [vmem:[#allocation2] sm:$0xff] %v755
  %820 = vst [vmem:[#allocation2 + $0x8] sm:$0xff] %v756
  %821 = vst [vmem:[#allocation2 + $0x10] sm:$0xff] %v757
  %822 = vst [vmem:[#allocation2 + $0x18] sm:$0xff] %v758
  %823 = vst [vmem:[#allocation2 + $0x20] sm:$0xff] %v759
  %824 = vst [vmem:[#allocation2 + $0x28] sm:$0xff] %v760
  %825 = vst [vmem:[#allocation2 + $0x30] sm:$0xff] %v761
  %826 = vst [vmem:[#allocation2 + $0x38] sm:$0xff] %v762
  %827 = vst [vmem:[#allocation2 + $0x40] sm:$0xff] %v763
  %828 = vst [vmem:[#allocation2 + $0x48] sm:$0xff] %v764
  %829 = vst [vmem:[#allocation2 + $0x50] sm:$0xff] %v765
  %830 = vst [vmem:[#allocation2 + $0x58] sm:$0xff] %v766
  %831 = vst [vmem:[#allocation2 + $0x60] sm:$0xff] %v767
  %832 = vst [vmem:[#allocation2 + $0x68] sm:$0xff] %v768
  %833 = vst [vmem:[#allocation2 + $0x70] sm:$0xff] %v769
  %834 = vst [vmem:[#allocation2 + $0x78] sm:$0xff] %v770
  %835 = vst [vmem:[#allocation2 + $0x80] sm:$0xff] %v771
  %836 = vst [vmem:[#allocation2 + $0x88] sm:$0xff] %v772
  %837 = vst [vmem:[#allocation2 + $0x90] sm:$0xff] %v773
  %838 = vst [vmem:[#allocation2 + $0x98] sm:$0xff] %v774
  %839 = vst [vmem:[#allocation2 + $0xa0] sm:$0xff] %v775
  %840 = vst [vmem:[#allocation2 + $0xa8] sm:$0xff] %v776
  %841 = vst [vmem:[#allocation2 + $0xb0] sm:$0xff] %v777
  %842 = vst [vmem:[#allocation2 + $0xb8] sm:$0xff] %v778
  %843 = vst [vmem:[#allocation2 + $0xc0] sm:$0xff] %v779
  %844 = vst [vmem:[#allocation2 + $0xc8] sm:$0xff] %v780
  %845 = vst [vmem:[#allocation2 + $0xd0] sm:$0xff] %v781
  %846 = vst [vmem:[#allocation2 + $0xd8] sm:$0xff] %v782
  %847 = vst [vmem:[#allocation2 + $0xe0] sm:$0xff] %v783
  %848 = vst [vmem:[#allocation2 + $0xe8] sm:$0xff] %v784
  %849 = vst [vmem:[#allocation2 + $0xf0] sm:$0xff] %v785
  %850 = vst [vmem:[#allocation2 + $0xf8] sm:$0xff] %v786
  %851 = vst [vmem:[#allocation2 + $0x100] sm:$0xff] %v787
  %852 = vst [vmem:[#allocation2 + $0x108] sm:$0xff] %v788
  %853 = vst [vmem:[#allocation2 + $0x110] sm:$0xff] %v789
  %854 = vst [vmem:[#allocation2 + $0x118] sm:$0xff] %v790
  %855 = vst [vmem:[#allocation2 + $0x120] sm:$0xff] %v791
  %856 = vst [vmem:[#allocation2 + $0x128] sm:$0xff] %v792
  %857 = vst [vmem:[#allocation2 + $0x130] sm:$0xff] %v793
  %858 = vst [vmem:[#allocation2 + $0x138] sm:$0xff] %v794
  %859 = vst [vmem:[#allocation2 + $0x140] sm:$0xff] %v795
  %860 = vst [vmem:[#allocation2 + $0x148] sm:$0xff] %v796
  %861 = vst [vmem:[#allocation2 + $0x150] sm:$0xff] %v797
  %862 = vst [vmem:[#allocation2 + $0x158] sm:$0xff] %v798
  %863 = vst [vmem:[#allocation2 + $0x160] sm:$0xff] %v799
  %864 = vst [vmem:[#allocation2 + $0x168] sm:$0xff] %v800
  %865 = vst [vmem:[#allocation2 + $0x170] sm:$0xff] %v801
  %866 = vst [vmem:[#allocation2 + $0x178] sm:$0xff] %v802
  %867 = vst [vmem:[#allocation2 + $0x180] sm:$0xff] %v803
  %868 = vst [vmem:[#allocation2 + $0x188] sm:$0xff] %v804
  %869 = vst [vmem:[#allocation2 + $0x190] sm:$0xff] %v805
  %870 = vst [vmem:[#allocation2 + $0x198] sm:$0xff] %v806
  %871 = vst [vmem:[#allocation2 + $0x1a0] sm:$0xff] %v807
  %872 = vst [vmem:[#allocation2 + $0x1a8] sm:$0xff] %v808
  %873 = vst [vmem:[#allocation2 + $0x1b0] sm:$0xff] %v809
  %874 = vst [vmem:[#allocation2 + $0x1b8] sm:$0xff] %v810
  %875 = vst [vmem:[#allocation2 + $0x1c0] sm:$0xff] %v811
  %876 = vst [vmem:[#allocation2 + $0x1c8] sm:$0xff] %v812
  %877 = vst [vmem:[#allocation2 + $0x1d0] sm:$0xff] %v813
  %878 = vst [vmem:[#allocation2 + $0x1d8] sm:$0xff] %v814
  %879 = vst [vmem:[#allocation2 + $0x1e0] sm:$0xff] %v815
  %880 = vst [vmem:[#allocation2 + $0x1e8] sm:$0xff] %v816
  %881 = vst [vmem:[#allocation2 + $0x1f0] sm:$0xff] %v817
  %882 = vst [vmem:[#allocation2 + $0x1f8] sm:$0xff] %v818
  // Predicated region
  $region14: #{res_bottleneck_forward.5} parent=0 // pred_check
    %p883 = pneg %p14
  $region15: #{res_bottleneck_forward.5} parent=0 // pred_check_branch
    %885 = sbr.rel (%p883) target = $region17
  $region16: #{res_bottleneck_forward.5} parent=0 // pred_region
    %v886 = vld [vmem:[#allocation2] sm:$0xff]
    %v887 = vld [vmem:[#allocation2 + $0x8] sm:$0xff]
    %v888 = vld [vmem:[#allocation2 + $0x10] sm:$0xff]
    %v889 = vld [vmem:[#allocation2 + $0x18] sm:$0xff]
    %v890 = vld [vmem:[#allocation2 + $0x20] sm:$0xff]
    %v891 = vld [vmem:[#allocation2 + $0x28] sm:$0xff]
    %v892 = vld [vmem:[#allocation2 + $0x30] sm:$0xff]
    %v893 = vld [vmem:[#allocation2 + $0x38] sm:$0xff]
    %v894 = vld [vmem:[#allocation2 + $0x40] sm:$0xff]
    %v895 = vld [vmem:[#allocation2 + $0x48] sm:$0xff]
    %v896 = vld [vmem:[#allocation2 + $0x50] sm:$0xff]
    %v897 = vld [vmem:[#allocation2 + $0x58] sm:$0xff]
    %v898 = vld [vmem:[#allocation2 + $0x60] sm:$0xff]
    %v899 = vld [vmem:[#allocation2 + $0x68] sm:$0xff]
    %v900 = vld [vmem:[#allocation2 + $0x70] sm:$0xff]
    %v901 = vld [vmem:[#allocation2 + $0x78] sm:$0xff]
    %v902 = vld [vmem:[#allocation2 + $0x80] sm:$0xff]
    %v903 = vld [vmem:[#allocation2 + $0x88] sm:$0xff]
    %v904 = vld [vmem:[#allocation2 + $0x90] sm:$0xff]
    %v905 = vld [vmem:[#allocation2 + $0x98] sm:$0xff]
    %v906 = vld [vmem:[#allocation2 + $0xa0] sm:$0xff]
    %v907 = vld [vmem:[#allocation2 + $0xa8] sm:$0xff]
    %v908 = vld [vmem:[#allocation2 + $0xb0] sm:$0xff]
    %v909 = vld [vmem:[#allocation2 + $0xb8] sm:$0xff]
    %v910 = vld [vmem:[#allocation2 + $0xc0] sm:$0xff]
    %v911 = vld [vmem:[#allocation2 + $0xc8] sm:$0xff]
    %v912 = vld [vmem:[#allocation2 + $0xd0] sm:$0xff]
    %v913 = vld [vmem:[#allocation2 + $0xd8] sm:$0xff]
    %v914 = vld [vmem:[#allocation2 + $0xe0] sm:$0xff]
    %v915 = vld [vmem:[#allocation2 + $0xe8] sm:$0xff]
    %v916 = vld [vmem:[#allocation2 + $0xf0] sm:$0xff]
    %v917 = vld [vmem:[#allocation2 + $0xf8] sm:$0xff]
    %v918 = vld [vmem:[#allocation2 + $0x100] sm:$0xff]
    %v919 = vld [vmem:[#allocation2 + $0x108] sm:$0xff]
    %v920 = vld [vmem:[#allocation2 + $0x110] sm:$0xff]
    %v921 = vld [vmem:[#allocation2 + $0x118] sm:$0xff]
    %v922 = vld [vmem:[#allocation2 + $0x120] sm:$0xff]
    %v923 = vld [vmem:[#allocation2 + $0x128] sm:$0xff]
    %v924 = vld [vmem:[#allocation2 + $0x130] sm:$0xff]
    %v925 = vld [vmem:[#allocation2 + $0x138] sm:$0xff]
    %v926 = vld [vmem:[#allocation2 + $0x140] sm:$0xff]
    %v927 = vld [vmem:[#allocation2 + $0x148] sm:$0xff]
    %v928 = vld [vmem:[#allocation2 + $0x150] sm:$0xff]
    %v929 = vld [vmem:[#allocation2 + $0x158] sm:$0xff]
    %v930 = vld [vmem:[#allocation2 + $0x160] sm:$0xff]
    %v931 = vld [vmem:[#allocation2 + $0x168] sm:$0xff]
    %v932 = vld [vmem:[#allocation2 + $0x170] sm:$0xff]
    %v933 = vld [vmem:[#allocation2 + $0x178] sm:$0xff]
    %v934 = vld [vmem:[#allocation2 + $0x180] sm:$0xff]
    %v935 = vld [vmem:[#allocation2 + $0x188] sm:$0xff]
    %v936 = vld [vmem:[#allocation2 + $0x190] sm:$0xff]
    %v937 = vld [vmem:[#allocation2 + $0x198] sm:$0xff]
    %v938 = vld [vmem:[#allocation2 + $0x1a0] sm:$0xff]
    %v939 = vld [vmem:[#allocation2 + $0x1a8] sm:$0xff]
    %v940 = vld [vmem:[#allocation2 + $0x1b0] sm:$0xff]
    %v941 = vld [vmem:[#allocation2 + $0x1b8] sm:$0xff]
    %v942 = vld [vmem:[#allocation2 + $0x1c0] sm:$0xff]
    %v943 = vld [vmem:[#allocation2 + $0x1c8] sm:$0xff]
    %v944 = vld [vmem:[#allocation2 + $0x1d0] sm:$0xff]
    %v945 = vld [vmem:[#allocation2 + $0x1d8] sm:$0xff]
    %v946 = vld [vmem:[#allocation2 + $0x1e0] sm:$0xff]
    %v947 = vld [vmem:[#allocation2 + $0x1e8] sm:$0xff]
    %v948 = vld [vmem:[#allocation2 + $0x1f0] sm:$0xff]
    %v949 = vld [vmem:[#allocation2 + $0x1f8] sm:$0xff]
    %v950 = vpack.c.bf16 %v887, %v886
    %v951 = vpack.c.bf16 %v889, %v888
    %v952 = vpack.c.bf16 %v891, %v890
    %v953 = vpack.c.bf16 %v893, %v892
    %v954 = vpack.c.bf16 %v895, %v894
    %v955 = vpack.c.bf16 %v897, %v896
    %v956 = vpack.c.bf16 %v899, %v898
    %v957 = vpack.c.bf16 %v901, %v900
    %v958 = vpack.c.bf16 %v903, %v902
    %v959 = vpack.c.bf16 %v905, %v904
    %v960 = vpack.c.bf16 %v907, %v906
    %v961 = vpack.c.bf16 %v909, %v908
    %v962 = vpack.c.bf16 %v911, %v910
    %v963 = vpack.c.bf16 %v913, %v912
    %v964 = vpack.c.bf16 %v915, %v914
    %v965 = vpack.c.bf16 %v917, %v916
    %v966 = vpack.c.bf16 %v919, %v918
    %v967 = vpack.c.bf16 %v921, %v920
    %v968 = vpack.c.bf16 %v923, %v922
    %v969 = vpack.c.bf16 %v925, %v924
    %v970 = vpack.c.bf16 %v927, %v926
    %v971 = vpack.c.bf16 %v929, %v928
    %v972 = vpack.c.bf16 %v931, %v930
    %v973 = vpack.c.bf16 %v933, %v932
    %v974 = vpack.c.bf16 %v935, %v934
    %v975 = vpack.c.bf16 %v937, %v936
    %v976 = vpack.c.bf16 %v939, %v938
    %v977 = vpack.c.bf16 %v941, %v940
    %v978 = vpack.c.bf16 %v943, %v942
    %v979 = vpack.c.bf16 %v945, %v944
    %v980 = vpack.c.bf16 %v947, %v946
    %v981 = vpack.c.bf16 %v949, %v948
    %v1014 = vunpack.c.l.b16 %v950
    %v1015 = vunpack.c.h.b16 %v950
    %v1016 = vunpack.c.l.b16 %v951
    %v1017 = vunpack.c.h.b16 %v951
    %v1018 = vunpack.c.l.b16 %v952
    %v1019 = vunpack.c.h.b16 %v952
    %v1020 = vunpack.c.l.b16 %v953
    %v1021 = vunpack.c.h.b16 %v953
    %v1022 = vunpack.c.l.b16 %v954
    %v1023 = vunpack.c.h.b16 %v954
    %v1024 = vunpack.c.l.b16 %v955
    %v1025 = vunpack.c.h.b16 %v955
    %v1026 = vunpack.c.l.b16 %v956
    %v1027 = vunpack.c.h.b16 %v956
    %v1028 = vunpack.c.l.b16 %v957
    %v1029 = vunpack.c.h.b16 %v957
    %v1030 = vunpack.c.l.b16 %v958
    %v1031 = vunpack.c.h.b16 %v958
    %v1032 = vunpack.c.l.b16 %v959
    %v1033 = vunpack.c.h.b16 %v959
    %v1034 = vunpack.c.l.b16 %v960
    %v1035 = vunpack.c.h.b16 %v960
    %v1036 = vunpack.c.l.b16 %v961
    %v1037 = vunpack.c.h.b16 %v961
    %v1038 = vunpack.c.l.b16 %v962
    %v1039 = vunpack.c.h.b16 %v962
    %v1040 = vunpack.c.l.b16 %v963
    %v1041 = vunpack.c.h.b16 %v963
    %v1042 = vunpack.c.l.b16 %v964
    %v1043 = vunpack.c.h.b16 %v964
    %v1044 = vunpack.c.l.b16 %v965
    %v1045 = vunpack.c.h.b16 %v965
    %v1046 = vunpack.c.l.b16 %v966
    %v1047 = vunpack.c.h.b16 %v966
    %v1048 = vunpack.c.l.b16 %v967
    %v1049 = vunpack.c.h.b16 %v967
    %v1050 = vunpack.c.l.b16 %v968
    %v1051 = vunpack.c.h.b16 %v968
    %v1052 = vunpack.c.l.b16 %v969
    %v1053 = vunpack.c.h.b16 %v969
    %v1054 = vunpack.c.l.b16 %v970
    %v1055 = vunpack.c.h.b16 %v970
    %v1056 = vunpack.c.l.b16 %v971
    %v1057 = vunpack.c.h.b16 %v971
    %v1058 = vunpack.c.l.b16 %v972
    %v1059 = vunpack.c.h.b16 %v972
    %v1060 = vunpack.c.l.b16 %v973
    %v1061 = vunpack.c.h.b16 %v973
    %v1062 = vunpack.c.l.b16 %v974
    %v1063 = vunpack.c.h.b16 %v974
    %v1064 = vunpack.c.l.b16 %v975
    %v1065 = vunpack.c.h.b16 %v975
    %v1066 = vunpack.c.l.b16 %v976
    %v1067 = vunpack.c.h.b16 %v976
    %v1068 = vunpack.c.l.b16 %v977
    %v1069 = vunpack.c.h.b16 %v977
    %v1070 = vunpack.c.l.b16 %v978
    %v1071 = vunpack.c.h.b16 %v978
    %v1072 = vunpack.c.l.b16 %v979
    %v1073 = vunpack.c.h.b16 %v979
    %v1074 = vunpack.c.l.b16 %v980
    %v1075 = vunpack.c.h.b16 %v980
    %v1076 = vunpack.c.l.b16 %v981
    %v1077 = vunpack.c.h.b16 %v981
    %v1078 = vpack.c.b16 %v1014, %v1014
    %v1079 = vpack.c.b16 %v1015, %v1015
    %v1080 = vpack.c.b16 %v1016, %v1016
    %v1081 = vpack.c.b16 %v1017, %v1017
    %v1082 = vpack.c.b16 %v1018, %v1018
    %v1083 = vpack.c.b16 %v1019, %v1019
    %v1084 = vpack.c.b16 %v1020, %v1020
    %v1085 = vpack.c.b16 %v1021, %v1021
    %v1086 = vpack.c.b16 %v1022, %v1022
    %v1087 = vpack.c.b16 %v1023, %v1023
    %v1088 = vpack.c.b16 %v1024, %v1024
    %v1089 = vpack.c.b16 %v1025, %v1025
    %v1090 = vpack.c.b16 %v1026, %v1026
    %v1091 = vpack.c.b16 %v1027, %v1027
    %v1092 = vpack.c.b16 %v1028, %v1028
    %v1093 = vpack.c.b16 %v1029, %v1029
    %v1094 = vpack.c.b16 %v1030, %v1030
    %v1095 = vpack.c.b16 %v1031, %v1031
    %v1096 = vpack.c.b16 %v1032, %v1032
    %v1097 = vpack.c.b16 %v1033, %v1033
    %v1098 = vpack.c.b16 %v1034, %v1034
    %v1099 = vpack.c.b16 %v1035, %v1035
    %v1100 = vpack.c.b16 %v1036, %v1036
    %v1101 = vpack.c.b16 %v1037, %v1037
    %v1102 = vpack.c.b16 %v1038, %v1038
    %v1103 = vpack.c.b16 %v1039, %v1039
    %v1104 = vpack.c.b16 %v1040, %v1040
    %v1105 = vpack.c.b16 %v1041, %v1041
    %v1106 = vpack.c.b16 %v1042, %v1042
    %v1107 = vpack.c.b16 %v1043, %v1043
    %v1108 = vpack.c.b16 %v1044, %v1044
    %v1109 = vpack.c.b16 %v1045, %v1045
    %v1110 = vpack.c.b16 %v1046, %v1046
    %v1111 = vpack.c.b16 %v1047, %v1047
    %v1112 = vpack.c.b16 %v1048, %v1048
    %v1113 = vpack.c.b16 %v1049, %v1049
    %v1114 = vpack.c.b16 %v1050, %v1050
    %v1115 = vpack.c.b16 %v1051, %v1051
    %v1116 = vpack.c.b16 %v1052, %v1052
    %v1117 = vpack.c.b16 %v1053, %v1053
    %v1118 = vpack.c.b16 %v1054, %v1054
    %v1119 = vpack.c.b16 %v1055, %v1055
    %v1120 = vpack.c.b16 %v1056, %v1056
    %v1121 = vpack.c.b16 %v1057, %v1057
    %v1122 = vpack.c.b16 %v1058, %v1058
    %v1123 = vpack.c.b16 %v1059, %v1059
    %v1124 = vpack.c.b16 %v1060, %v1060
    %v1125 = vpack.c.b16 %v1061, %v1061
    %v1126 = vpack.c.b16 %v1062, %v1062
    %v1127 = vpack.c.b16 %v1063, %v1063
    %v1128 = vpack.c.b16 %v1064, %v1064
    %v1129 = vpack.c.b16 %v1065, %v1065
    %v1130 = vpack.c.b16 %v1066, %v1066
    %v1131 = vpack.c.b16 %v1067, %v1067
    %v1132 = vpack.c.b16 %v1068, %v1068
    %v1133 = vpack.c.b16 %v1069, %v1069
    %v1134 = vpack.c.b16 %v1070, %v1070
    %v1135 = vpack.c.b16 %v1071, %v1071
    %v1136 = vpack.c.b16 %v1072, %v1072
    %v1137 = vpack.c.b16 %v1073, %v1073
    %v1138 = vpack.c.b16 %v1074, %v1074
    %v1139 = vpack.c.b16 %v1075, %v1075
    %v1140 = vpack.c.b16 %v1076, %v1076
    %v1141 = vpack.c.b16 %v1077, %v1077
    %1206 = vst [vmem:[%s2] sm:$0xf] %v1078
    %1207 = vst [vmem:[%s2 + $0x4] sm:$0xf] %v1079
    %1208 = vst [vmem:[%s2 + $0x8] sm:$0xf] %v1080
    %1209 = vst [vmem:[%s2 + $0xc] sm:$0xf] %v1081
    %1210 = vst [vmem:[%s2 + $0x10] sm:$0xf] %v1082
    %1211 = vst [vmem:[%s2 + $0x14] sm:$0xf] %v1083
    %1212 = vst [vmem:[%s2 + $0x18] sm:$0xf] %v1084
    %1213 = vst [vmem:[%s2 + $0x1c] sm:$0xf] %v1085
    %1214 = vst [vmem:[%s2 + $0x20] sm:$0xf] %v1086
    %1215 = vst [vmem:[%s2 + $0x24] sm:$0xf] %v1087
    %1216 = vst [vmem:[%s2 + $0x28] sm:$0xf] %v1088
    %1217 = vst [vmem:[%s2 + $0x2c] sm:$0xf] %v1089
    %1218 = vst [vmem:[%s2 + $0x30] sm:$0xf] %v1090
    %1219 = vst [vmem:[%s2 + $0x34] sm:$0xf] %v1091
    %1220 = vst [vmem:[%s2 + $0x38] sm:$0xf] %v1092
    %1221 = vst [vmem:[%s2 + $0x3c] sm:$0xf] %v1093
    %1222 = vst [vmem:[%s2 + $0x40] sm:$0xf] %v1094
    %1223 = vst [vmem:[%s2 + $0x44] sm:$0xf] %v1095
    %1224 = vst [vmem:[%s2 + $0x48] sm:$0xf] %v1096
    %1225 = vst [vmem:[%s2 + $0x4c] sm:$0xf] %v1097
    %1226 = vst [vmem:[%s2 + $0x50] sm:$0xf] %v1098
    %1227 = vst [vmem:[%s2 + $0x54] sm:$0xf] %v1099
    %1228 = vst [vmem:[%s2 + $0x58] sm:$0xf] %v1100
    %1229 = vst [vmem:[%s2 + $0x5c] sm:$0xf] %v1101
    %1230 = vst [vmem:[%s2 + $0x60] sm:$0xf] %v1102
    %1231 = vst [vmem:[%s2 + $0x64] sm:$0xf] %v1103
    %1232 = vst [vmem:[%s2 + $0x68] sm:$0xf] %v1104
    %1233 = vst [vmem:[%s2 + $0x6c] sm:$0xf] %v1105
    %1234 = vst [vmem:[%s2 + $0x70] sm:$0xf] %v1106
    %1235 = vst [vmem:[%s2 + $0x74] sm:$0xf] %v1107
    %1236 = vst [vmem:[%s2 + $0x78] sm:$0xf] %v1108
    %1237 = vst [vmem:[%s2 + $0x7c] sm:$0xf] %v1109
    %1238 = vst [vmem:[%s2 + $0x80] sm:$0xf] %v1110
    %1239 = vst [vmem:[%s2 + $0x84] sm:$0xf] %v1111
    %1240 = vst [vmem:[%s2 + $0x88] sm:$0xf] %v1112
    %1241 = vst [vmem:[%s2 + $0x8c] sm:$0xf] %v1113
    %1242 = vst [vmem:[%s2 + $0x90] sm:$0xf] %v1114
    %1243 = vst [vmem:[%s2 + $0x94] sm:$0xf] %v1115
    %1244 = vst [vmem:[%s2 + $0x98] sm:$0xf] %v1116
    %1245 = vst [vmem:[%s2 + $0x9c] sm:$0xf] %v1117
    %1246 = vst [vmem:[%s2 + $0xa0] sm:$0xf] %v1118
    %1247 = vst [vmem:[%s2 + $0xa4] sm:$0xf] %v1119
    %1248 = vst [vmem:[%s2 + $0xa8] sm:$0xf] %v1120
    %1249 = vst [vmem:[%s2 + $0xac] sm:$0xf] %v1121
    %1250 = vst [vmem:[%s2 + $0xb0] sm:$0xf] %v1122
    %1251 = vst [vmem:[%s2 + $0xb4] sm:$0xf] %v1123
    %1252 = vst [vmem:[%s2 + $0xb8] sm:$0xf] %v1124
    %1253 = vst [vmem:[%s2 + $0xbc] sm:$0xf] %v1125
    %1254 = vst [vmem:[%s2 + $0xc0] sm:$0xf] %v1126
    %1255 = vst [vmem:[%s2 + $0xc4] sm:$0xf] %v1127
    %1256 = vst [vmem:[%s2 + $0xc8] sm:$0xf] %v1128
    %1257 = vst [vmem:[%s2 + $0xcc] sm:$0xf] %v1129
    %1258 = vst [vmem:[%s2 + $0xd0] sm:$0xf] %v1130
    %1259 = vst [vmem:[%s2 + $0xd4] sm:$0xf] %v1131
    %1260 = vst [vmem:[%s2 + $0xd8] sm:$0xf] %v1132
    %1261 = vst [vmem:[%s2 + $0xdc] sm:$0xf] %v1133
    %1262 = vst [vmem:[%s2 + $0xe0] sm:$0xf] %v1134
    %1263 = vst [vmem:[%s2 + $0xe4] sm:$0xf] %v1135
    %1264 = vst [vmem:[%s2 + $0xe8] sm:$0xf] %v1136
    %1265 = vst [vmem:[%s2 + $0xec] sm:$0xf] %v1137
    %1266 = vst [vmem:[%s2 + $0xf0] sm:$0xf] %v1138
    %1267 = vst [vmem:[%s2 + $0xf4] sm:$0xf] %v1139
    %1268 = vst [vmem:[%s2 + $0xf8] sm:$0xf] %v1140
    %1269 = vst [vmem:[%s2 + $0xfc] sm:$0xf] %v1141
    %v1270 = vadd.f32 %v886, %v887
    %v1271 = vadd.f32 %v1270, %v888
    %v1272 = vadd.f32 %v1271, %v889
    %v1273 = vadd.f32 %v1272, %v890
    %v1274 = vadd.f32 %v1273, %v891
    %v1275 = vadd.f32 %v1274, %v892
    %v1276 = vadd.f32 %v1275, %v893
    %v1277 = vadd.f32 %v1276, %v894
    %v1278 = vadd.f32 %v1277, %v895
    %v1279 = vadd.f32 %v1278, %v896
    %v1280 = vadd.f32 %v1279, %v897
    %v1281 = vadd.f32 %v1280, %v898
    %v1282 = vadd.f32 %v1281, %v899
    %v1283 = vadd.f32 %v1282, %v900
    %v1284 = vadd.f32 %v1283, %v901
    %v1285 = vadd.f32 %v1284, %v902
    %v1286 = vadd.f32 %v1285, %v903
    %v1287 = vadd.f32 %v1286, %v904
    %v1288 = vadd.f32 %v1287, %v905
    %v1289 = vadd.f32 %v1288, %v906
    %v1290 = vadd.f32 %v1289, %v907
    %v1291 = vadd.f32 %v1290, %v908
    %v1292 = vadd.f32 %v1291, %v909
    %v1293 = vadd.f32 %v1292, %v910
    %v1294 = vadd.f32 %v1293, %v911
    %v1295 = vadd.f32 %v1294, %v912
    %v1296 = vadd.f32 %v1295, %v913
    %v1297 = vadd.f32 %v1296, %v914
    %v1298 = vadd.f32 %v1297, %v915
    %v1299 = vadd.f32 %v1298, %v916
    %v1300 = vadd.f32 %v1299, %v917
    %v1301 = vadd.f32 %v1300, %v918
    %v1302 = vadd.f32 %v1301, %v919
    %v1303 = vadd.f32 %v1302, %v920
    %v1304 = vadd.f32 %v1303, %v921
    %v1305 = vadd.f32 %v1304, %v922
    %v1306 = vadd.f32 %v1305, %v923
    %v1307 = vadd.f32 %v1306, %v924
    %v1308 = vadd.f32 %v1307, %v925
    %v1309 = vadd.f32 %v1308, %v926
    %v1310 = vadd.f32 %v1309, %v927
    %v1311 = vadd.f32 %v1310, %v928
    %v1312 = vadd.f32 %v1311, %v929
    %v1313 = vadd.f32 %v1312, %v930
    %v1314 = vadd.f32 %v1313, %v931
    %v1315 = vadd.f32 %v1314, %v932
    %v1316 = vadd.f32 %v1315, %v933
    %v1317 = vadd.f32 %v1316, %v934
    %v1318 = vadd.f32 %v1317, %v935
    %v1319 = vadd.f32 %v1318, %v936
    %v1320 = vadd.f32 %v1319, %v937
    %v1321 = vadd.f32 %v1320, %v938
    %v1322 = vadd.f32 %v1321, %v939
    %v1323 = vadd.f32 %v1322, %v940
    %v1324 = vadd.f32 %v1323, %v941
    %v1325 = vadd.f32 %v1324, %v942
    %v1326 = vadd.f32 %v1325, %v943
    %v1327 = vadd.f32 %v1326, %v944
    %v1328 = vadd.f32 %v1327, %v945
    %v1329 = vadd.f32 %v1328, %v946
    %v1330 = vadd.f32 %v1329, %v947
    %v1331 = vadd.f32 %v1330, %v948
    %v1332 = vadd.f32 %v1331, %v949
    %v1333 = vrot.slane %v1332, 4
    %v1334 = vadd.f32 %v1332, %v1333
    %v1335 = vrot.slane %v1334, 2
    %v1336 = vadd.f32 %v1334, %v1335
    %v1337 = vrot.slane %v1336, 1
    %v1338 = vadd.f32 %v1336, %v1337
    %1339 = vst [vmem:[%s3] sm:$0x1] %v1338
    %v1340 = vmul.f32 %v886, %v886
    %v1341 = vmul.f32 %v887, %v887
    %v1342 = vmul.f32 %v888, %v888
    %v1343 = vmul.f32 %v889, %v889
    %v1344 = vmul.f32 %v890, %v890
    %v1345 = vmul.f32 %v891, %v891
    %v1346 = vmul.f32 %v892, %v892
    %v1347 = vmul.f32 %v893, %v893
    %v1348 = vmul.f32 %v894, %v894
    %v1349 = vmul.f32 %v895, %v895
    %v1350 = vmul.f32 %v896, %v896
    %v1351 = vmul.f32 %v897, %v897
    %v1352 = vmul.f32 %v898, %v898
    %v1353 = vmul.f32 %v899, %v899
    %v1354 = vmul.f32 %v900, %v900
    %v1355 = vmul.f32 %v901, %v901
    %v1356 = vmul.f32 %v902, %v902
    %v1357 = vmul.f32 %v903, %v903
    %v1358 = vmul.f32 %v904, %v904
    %v1359 = vmul.f32 %v905, %v905
    %v1360 = vmul.f32 %v906, %v906
    %v1361 = vmul.f32 %v907, %v907
    %v1362 = vmul.f32 %v908, %v908
    %v1363 = vmul.f32 %v909, %v909
    %v1364 = vmul.f32 %v910, %v910
    %v1365 = vmul.f32 %v911, %v911
    %v1366 = vmul.f32 %v912, %v912
    %v1367 = vmul.f32 %v913, %v913
    %v1368 = vmul.f32 %v914, %v914
    %v1369 = vmul.f32 %v915, %v915
    %v1370 = vmul.f32 %v916, %v916
    %v1371 = vmul.f32 %v917, %v917
    %v1372 = vmul.f32 %v918, %v918
    %v1373 = vmul.f32 %v919, %v919
    %v1374 = vmul.f32 %v920, %v920
    %v1375 = vmul.f32 %v921, %v921
    %v1376 = vmul.f32 %v922, %v922
    %v1377 = vmul.f32 %v923, %v923
    %v1378 = vmul.f32 %v924, %v924
    %v1379 = vmul.f32 %v925, %v925
    %v1380 = vmul.f32 %v926, %v926
    %v1381 = vmul.f32 %v927, %v927
    %v1382 = vmul.f32 %v928, %v928
    %v1383 = vmul.f32 %v929, %v929
    %v1384 = vmul.f32 %v930, %v930
    %v1385 = vmul.f32 %v931, %v931
    %v1386 = vmul.f32 %v932, %v932
    %v1387 = vmul.f32 %v933, %v933
    %v1388 = vmul.f32 %v934, %v934
    %v1389 = vmul.f32 %v935, %v935
    %v1390 = vmul.f32 %v936, %v936
    %v1391 = vmul.f32 %v937, %v937
    %v1392 = vmul.f32 %v938, %v938
    %v1393 = vmul.f32 %v939, %v939
    %v1394 = vmul.f32 %v940, %v940
    %v1395 = vmul.f32 %v941, %v941
    %v1396 = vmul.f32 %v942, %v942
    %v1397 = vmul.f32 %v943, %v943
    %v1398 = vmul.f32 %v944, %v944
    %v1399 = vmul.f32 %v945, %v945
    %v1400 = vmul.f32 %v946, %v946
    %v1401 = vmul.f32 %v947, %v947
    %v1402 = vmul.f32 %v948, %v948
    %v1403 = vmul.f32 %v949, %v949
    %v1404 = vadd.f32 %v1340, %v1341
    %v1405 = vadd.f32 %v1404, %v1342
    %v1406 = vadd.f32 %v1405, %v1343
    %v1407 = vadd.f32 %v1406, %v1344
    %v1408 = vadd.f32 %v1407, %v1345
    %v1409 = vadd.f32 %v1408, %v1346
    %v1410 = vadd.f32 %v1409, %v1347
    %v1411 = vadd.f32 %v1410, %v1348
    %v1412 = vadd.f32 %v1411, %v1349
    %v1413 = vadd.f32 %v1412, %v1350
    %v1414 = vadd.f32 %v1413, %v1351
    %v1415 = vadd.f32 %v1414, %v1352
    %v1416 = vadd.f32 %v1415, %v1353
    %v1417 = vadd.f32 %v1416, %v1354
    %v1418 = vadd.f32 %v1417, %v1355
    %v1419 = vadd.f32 %v1418, %v1356
    %v1420 = vadd.f32 %v1419, %v1357
    %v1421 = vadd.f32 %v1420, %v1358
    %v1422 = vadd.f32 %v1421, %v1359
    %v1423 = vadd.f32 %v1422, %v1360
    %v1424 = vadd.f32 %v1423, %v1361
    %v1425 = vadd.f32 %v1424, %v1362
    %v1426 = vadd.f32 %v1425, %v1363
    %v1427 = vadd.f32 %v1426, %v1364
    %v1428 = vadd.f32 %v1427, %v1365
    %v1429 = vadd.f32 %v1428, %v1366
    %v1430 = vadd.f32 %v1429, %v1367
    %v1431 = vadd.f32 %v1430, %v1368
    %v1432 = vadd.f32 %v1431, %v1369
    %v1433 = vadd.f32 %v1432, %v1370
    %v1434 = vadd.f32 %v1433, %v1371
    %v1435 = vadd.f32 %v1434, %v1372
    %v1436 = vadd.f32 %v1435, %v1373
    %v1437 = vadd.f32 %v1436, %v1374
    %v1438 = vadd.f32 %v1437, %v1375
    %v1439 = vadd.f32 %v1438, %v1376
    %v1440 = vadd.f32 %v1439, %v1377
    %v1441 = vadd.f32 %v1440, %v1378
    %v1442 = vadd.f32 %v1441, %v1379
    %v1443 = vadd.f32 %v1442, %v1380
    %v1444 = vadd.f32 %v1443, %v1381
    %v1445 = vadd.f32 %v1444, %v1382
    %v1446 = vadd.f32 %v1445, %v1383
    %v1447 = vadd.f32 %v1446, %v1384
    %v1448 = vadd.f32 %v1447, %v1385
    %v1449 = vadd.f32 %v1448, %v1386
    %v1450 = vadd.f32 %v1449, %v1387
    %v1451 = vadd.f32 %v1450, %v1388
    %v1452 = vadd.f32 %v1451, %v1389
    %v1453 = vadd.f32 %v1452, %v1390
    %v1454 = vadd.f32 %v1453, %v1391
    %v1455 = vadd.f32 %v1454, %v1392
    %v1456 = vadd.f32 %v1455, %v1393
    %v1457 = vadd.f32 %v1456, %v1394
    %v1458 = vadd.f32 %v1457, %v1395
    %v1459 = vadd.f32 %v1458, %v1396
    %v1460 = vadd.f32 %v1459, %v1397
    %v1461 = vadd.f32 %v1460, %v1398
    %v1462 = vadd.f32 %v1461, %v1399
    %v1463 = vadd.f32 %v1462, %v1400
    %v1464 = vadd.f32 %v1463, %v1401
    %v1465 = vadd.f32 %v1464, %v1402
    %v1466 = vadd.f32 %v1465, %v1403
    %v1467 = vrot.slane %v1466, 4
    %v1468 = vadd.f32 %v1466, %v1467
    %v1469 = vrot.slane %v1468, 2
    %v1470 = vadd.f32 %v1468, %v1469
    %v1471 = vrot.slane %v1470, 1
    %v1472 = vadd.f32 %v1470, %v1471
    %1473 = vst [vmem:[%s3 + $0x1] sm:$0x1] %v1472
  $region17: #{res_bottleneck_forward.5} parent=0 // pred_fallthru
    _
  // Predicated region
  $region18: #{res_bottleneck_forward.5} parent=0 // pred_check
    _
  $region19: #{res_bottleneck_forward.5} parent=0 // pred_check_branch
    %1475 = sbr.rel (0) target = $region21
  $region20: #{res_bottleneck_forward.5} parent=0 // pred_region
    _
  $region21: #{res_bottleneck_forward.5} parent=0 // pred_fallthru
    _
  // Predicated region
  $region22: #{res_bottleneck_forward.5} parent=0 // pred_check
    _
  $region23: #{res_bottleneck_forward.5} parent=0 // pred_check_branch
    %1477 = sbr.rel (0) target = $region25
  $region24: #{res_bottleneck_forward.5} parent=0 // pred_region
    _
  $region25: #{res_bottleneck_forward.5} parent=0 // pred_fallthru
    _
  // Predicated region
  $region26: #{res_bottleneck_forward.5} parent=0 // pred_check
    _
  $region27: #{res_bottleneck_forward.5} parent=0 // pred_check_branch
    %1479 = sbr.rel (0) target = $region29
  $region28: #{res_bottleneck_forward.5} parent=0 // pred_region
    _
  $region29: #{res_bottleneck_forward.5} parent=0 // pred_fallthru
    _
  // Predicated region
  $region30: #{res_bottleneck_forward.5} parent=0 // pred_check
    _
  $region31: #{res_bottleneck_forward.5} parent=0 // pred_check_branch
    %1481 = sbr.rel (0) target = $region33
  $region32: #{res_bottleneck_forward.5} parent=0 // pred_region
    _
  $region33: #{res_bottleneck_forward.5} parent=0 // pred_fallthru
    _

// kernel: res_bottleneck_forward.9
$region0: #{res_bottleneck_forward.9}
  #allocation0 [shape = 'u32[]', space=smem, size = 0x4, offset = 0x4, fixed_abs, tag = 'smem constant byte address 0x4 - core index']
  #allocation1 [shape = 'u32[144,128]{1,0:T(1,128)}', space=vmem, size = 0x12000, scoped, tag = 'internal scratch']
  %s0 = inlined_call_operand.vmem [shape: bf16[512,128], index: 0, kind: input, shape index: {}]
  %s1 = inlined_call_operand.vmem [shape: f32[1,128], index: 1, kind: input, shape index: {}]
  %s2 = inlined_call_operand.vmem [shape: f32[1,128], index: 2, kind: input, shape index: {}]
  %s3 = inlined_call_operand.vmem [shape: bf16[512,128], index: 3, kind: input, shape index: {}]
  %s4 = inlined_call_operand.vmem [shape: f32[1,128], index: 4, kind: input, shape index: {}]
  %s5 = inlined_call_operand.vmem [shape: f32[1,128], index: 5, kind: input, shape index: {}]
  %s6 = inlined_call_operand.vmem [shape: f32[512,128], index: 6, kind: output, shape index: {}]
  %s7 = sld [smem:[#allocation0]]
  $region34: #{res_bottleneck_forward.9} parent=0
    _
  %s9 = ssub.s32 1, %s7
  %s10 = scalar_select 0, %s9, %s7
  // Predicated region
  $region2: #{res_bottleneck_forward.9} parent=0 // pred_check
    _
  $region3: #{res_bottleneck_forward.9} parent=0 // pred_check_branch
    %12 = sbr.rel (0) target = $region5
  $region4: #{res_bottleneck_forward.9} parent=0 // pred_region
    _
  $region5: #{res_bottleneck_forward.9} parent=0 // pred_fallthru
    _
  // Predicated region
  $region6: #{res_bottleneck_forward.9} parent=0 // pred_check
    _
  $region7: #{res_bottleneck_forward.9} parent=0 // pred_check_branch
    %14 = sbr.rel (0) target = $region9
  $region8: #{res_bottleneck_forward.9} parent=0 // pred_region
    _
  $region9: #{res_bottleneck_forward.9} parent=0 // pred_fallthru
    _
  // Predicated region
  $region10: #{res_bottleneck_forward.9} parent=0 // pred_check
    _
  $region11: #{res_bottleneck_forward.9} parent=0 // pred_check_branch
    %16 = sbr.rel (0) target = $region13
  $region12: #{res_bottleneck_forward.9} parent=0 // pred_region
    _
  $region13: #{res_bottleneck_forward.9} parent=0 // pred_fallthru
    _
  // Predicated region
  $region14: #{res_bottleneck_forward.9} parent=0 // pred_check
    _
  $region15: #{res_bottleneck_forward.9} parent=0 // pred_check_branch
    %18 = sbr.rel (0) target = $region17
  $region16: #{res_bottleneck_forward.9} parent=0 // pred_region
    _
  $region17: #{res_bottleneck_forward.9} parent=0 // pred_fallthru
    _
  // Predicated region
  $region18: #{res_bottleneck_forward.9} parent=0 // pred_check
    _
  $region19: #{res_bottleneck_forward.9} parent=0 // pred_check_branch
    %20 = sbr.rel (0) target = $region21
  $region20: #{res_bottleneck_forward.9} parent=0 // pred_region
    _
  $region21: #{res_bottleneck_forward.9} parent=0 // pred_fallthru
    _
  // Predicated region
  $region22: #{res_bottleneck_forward.9} parent=0 // pred_check
    _
  $region23: #{res_bottleneck_forward.9} parent=0 // pred_check_branch
    %22 = sbr.rel (0) target = $region25
  $region24: #{res_bottleneck_forward.9} parent=0 // pred_region
    _
  $region25: #{res_bottleneck_forward.9} parent=0 // pred_fallthru
    _
  %v23 = vld [vmem:[%s0] sm:$0xf]
  %v24 = vld [vmem:[%s0 + $0x4] sm:$0xf]
  %v25 = vld [vmem:[%s0 + $0x8] sm:$0xf]
  %v26 = vld [vmem:[%s0 + $0xc] sm:$0xf]
  %v27 = vld [vmem:[%s0 + $0x10] sm:$0xf]
  %v28 = vld [vmem:[%s0 + $0x14] sm:$0xf]
  %v29 = vld [vmem:[%s0 + $0x18] sm:$0xf]
  %v30 = vld [vmem:[%s0 + $0x1c] sm:$0xf]
  %v31 = vld [vmem:[%s0 + $0x20] sm:$0xf]
  %v32 = vld [vmem:[%s0 + $0x24] sm:$0xf]
  %v33 = vld [vmem:[%s0 + $0x28] sm:$0xf]
  %v34 = vld [vmem:[%s0 + $0x2c] sm:$0xf]
  %v35 = vld [vmem:[%s0 + $0x30] sm:$0xf]
  %v36 = vld [vmem:[%s0 + $0x34] sm:$0xf]
  %v37 = vld [vmem:[%s0 + $0x38] sm:$0xf]
  %v38 = vld [vmem:[%s0 + $0x3c] sm:$0xf]
  %v39 = vld [vmem:[%s0 + $0x40] sm:$0xf]
  %v40 = vld [vmem:[%s0 + $0x44] sm:$0xf]
  %v41 = vld [vmem:[%s0 + $0x48] sm:$0xf]
  %v42 = vld [vmem:[%s0 + $0x4c] sm:$0xf]
  %v43 = vld [vmem:[%s0 + $0x50] sm:$0xf]
  %v44 = vld [vmem:[%s0 + $0x54] sm:$0xf]
  %v45 = vld [vmem:[%s0 + $0x58] sm:$0xf]
  %v46 = vld [vmem:[%s0 + $0x5c] sm:$0xf]
  %v47 = vld [vmem:[%s0 + $0x60] sm:$0xf]
  %v48 = vld [vmem:[%s0 + $0x64] sm:$0xf]
  %v49 = vld [vmem:[%s0 + $0x68] sm:$0xf]
  %v50 = vld [vmem:[%s0 + $0x6c] sm:$0xf]
  %v51 = vld [vmem:[%s0 + $0x70] sm:$0xf]
  %v52 = vld [vmem:[%s0 + $0x74] sm:$0xf]
  %v53 = vld [vmem:[%s0 + $0x78] sm:$0xf]
  %v54 = vld [vmem:[%s0 + $0x7c] sm:$0xf]
  %v55 = vld [vmem:[%s0 + $0x80] sm:$0xf]
  %v56 = vld [vmem:[%s0 + $0x84] sm:$0xf]
  %v57 = vld [vmem:[%s0 + $0x88] sm:$0xf]
  %v58 = vld [vmem:[%s0 + $0x8c] sm:$0xf]
  %v59 = vld [vmem:[%s0 + $0x90] sm:$0xf]
  %v60 = vld [vmem:[%s0 + $0x94] sm:$0xf]
  %v61 = vld [vmem:[%s0 + $0x98] sm:$0xf]
  %v62 = vld [vmem:[%s0 + $0x9c] sm:$0xf]
  %v63 = vld [vmem:[%s0 + $0xa0] sm:$0xf]
  %v64 = vld [vmem:[%s0 + $0xa4] sm:$0xf]
  %v65 = vld [vmem:[%s0 + $0xa8] sm:$0xf]
  %v66 = vld [vmem:[%s0 + $0xac] sm:$0xf]
  %v67 = vld [vmem:[%s0 + $0xb0] sm:$0xf]
  %v68 = vld [vmem:[%s0 + $0xb4] sm:$0xf]
  %v69 = vld [vmem:[%s0 + $0xb8] sm:$0xf]
  %v70 = vld [vmem:[%s0 + $0xbc] sm:$0xf]
  %v71 = vld [vmem:[%s0 + $0xc0] sm:$0xf]
  %v72 = vld [vmem:[%s0 + $0xc4] sm:$0xf]
  %v73 = vld [vmem:[%s0 + $0xc8] sm:$0xf]
  %v74 = vld [vmem:[%s0 + $0xcc] sm:$0xf]
  %v75 = vld [vmem:[%s0 + $0xd0] sm:$0xf]
  %v76 = vld [vmem:[%s0 + $0xd4] sm:$0xf]
  %v77 = vld [vmem:[%s0 + $0xd8] sm:$0xf]
  %v78 = vld [vmem:[%s0 + $0xdc] sm:$0xf]
  %v79 = vld [vmem:[%s0 + $0xe0] sm:$0xf]
  %v80 = vld [vmem:[%s0 + $0xe4] sm:$0xf]
  %v81 = vld [vmem:[%s0 + $0xe8] sm:$0xf]
  %v82 = vld [vmem:[%s0 + $0xec] sm:$0xf]
  %v83 = vld [vmem:[%s0 + $0xf0] sm:$0xf]
  %v84 = vld [vmem:[%s0 + $0xf4] sm:$0xf]
  %v85 = vld [vmem:[%s0 + $0xf8] sm:$0xf]
  %v86 = vld [vmem:[%s0 + $0xfc] sm:$0xf]
  %v87 = vunpack.c.l.bf16 %v23
  %v88 = vunpack.c.l.bf16 %v24
  %v89 = vunpack.c.l.bf16 %v25
  %v90 = vunpack.c.l.bf16 %v26
  %v91 = vunpack.c.l.bf16 %v27
  %v92 = vunpack.c.l.bf16 %v28
  %v93 = vunpack.c.l.bf16 %v29
  %v94 = vunpack.c.l.bf16 %v30
  %v95 = vunpack.c.l.bf16 %v31
  %v96 = vunpack.c.l.bf16 %v32
  %v97 = vunpack.c.l.bf16 %v33
  %v98 = vunpack.c.l.bf16 %v34
  %v99 = vunpack.c.l.bf16 %v35
  %v100 = vunpack.c.l.bf16 %v36
  %v101 = vunpack.c.l.bf16 %v37
  %v102 = vunpack.c.l.bf16 %v38
  %v103 = vunpack.c.l.bf16 %v39
  %v104 = vunpack.c.l.bf16 %v40
  %v105 = vunpack.c.l.bf16 %v41
  %v106 = vunpack.c.l.bf16 %v42
  %v107 = vunpack.c.l.bf16 %v43
  %v108 = vunpack.c.l.bf16 %v44
  %v109 = vunpack.c.l.bf16 %v45
  %v110 = vunpack.c.l.bf16 %v46
  %v111 = vunpack.c.l.bf16 %v47
  %v112 = vunpack.c.l.bf16 %v48
  %v113 = vunpack.c.l.bf16 %v49
  %v114 = vunpack.c.l.bf16 %v50
  %v115 = vunpack.c.l.bf16 %v51
  %v116 = vunpack.c.l.bf16 %v52
  %v117 = vunpack.c.l.bf16 %v53
  %v118 = vunpack.c.l.bf16 %v54
  %v119 = vunpack.c.l.bf16 %v55
  %v120 = vunpack.c.l.bf16 %v56
  %v121 = vunpack.c.l.bf16 %v57
  %v122 = vunpack.c.l.bf16 %v58
  %v123 = vunpack.c.l.bf16 %v59
  %v124 = vunpack.c.l.bf16 %v60
  %v125 = vunpack.c.l.bf16 %v61
  %v126 = vunpack.c.l.bf16 %v62
  %v127 = vunpack.c.l.bf16 %v63
  %v128 = vunpack.c.l.bf16 %v64
  %v129 = vunpack.c.l.bf16 %v65
  %v130 = vunpack.c.l.bf16 %v66
  %v131 = vunpack.c.l.bf16 %v67
  %v132 = vunpack.c.l.bf16 %v68
  %v133 = vunpack.c.l.bf16 %v69
  %v134 = vunpack.c.l.bf16 %v70
  %v135 = vunpack.c.l.bf16 %v71
  %v136 = vunpack.c.l.bf16 %v72
  %v137 = vunpack.c.l.bf16 %v73
  %v138 = vunpack.c.l.bf16 %v74
  %v139 = vunpack.c.l.bf16 %v75
  %v140 = vunpack.c.l.bf16 %v76
  %v141 = vunpack.c.l.bf16 %v77
  %v142 = vunpack.c.l.bf16 %v78
  %v143 = vunpack.c.l.bf16 %v79
  %v144 = vunpack.c.l.bf16 %v80
  %v145 = vunpack.c.l.bf16 %v81
  %v146 = vunpack.c.l.bf16 %v82
  %v147 = vunpack.c.l.bf16 %v83
  %v148 = vunpack.c.l.bf16 %v84
  %v149 = vunpack.c.l.bf16 %v85
  %v150 = vunpack.c.l.bf16 %v86
  %v151 = vld [vmem:[%s1] sm:$0x1]
  %v153 = vlaneseq
  %v154 = vshrl.u32 %v153, 7
  %v155 = vsub.s32 0, %v154
  %v156 = vrot.slane %v151, %v155
  %v158 = vmul.f32 %v87, %v156
  %v159 = vmul.f32 %v88, %v156
  %v160 = vmul.f32 %v89, %v156
  %v161 = vmul.f32 %v90, %v156
  %v162 = vmul.f32 %v91, %v156
  %v163 = vmul.f32 %v92, %v156
  %v164 = vmul.f32 %v93, %v156
  %v165 = vmul.f32 %v94, %v156
  %v166 = vmul.f32 %v95, %v156
  %v167 = vmul.f32 %v96, %v156
  %v168 = vmul.f32 %v97, %v156
  %v169 = vmul.f32 %v98, %v156
  %v170 = vmul.f32 %v99, %v156
  %v171 = vmul.f32 %v100, %v156
  %v172 = vmul.f32 %v101, %v156
  %v173 = vmul.f32 %v102, %v156
  %v174 = vmul.f32 %v103, %v156
  %v175 = vmul.f32 %v104, %v156
  %v176 = vmul.f32 %v105, %v156
  %v177 = vmul.f32 %v106, %v156
  %v178 = vmul.f32 %v107, %v156
  %v179 = vmul.f32 %v108, %v156
  %v180 = vmul.f32 %v109, %v156
  %v181 = vmul.f32 %v110, %v156
  %v182 = vmul.f32 %v111, %v156
  %v183 = vmul.f32 %v112, %v156
  %v184 = vmul.f32 %v113, %v156
  %v185 = vmul.f32 %v114, %v156
  %v186 = vmul.f32 %v115, %v156
  %v187 = vmul.f32 %v116, %v156
  %v188 = vmul.f32 %v117, %v156
  %v189 = vmul.f32 %v118, %v156
  %v190 = vmul.f32 %v119, %v156
  %v191 = vmul.f32 %v120, %v156
  %v192 = vmul.f32 %v121, %v156
  %v193 = vmul.f32 %v122, %v156
  %v194 = vmul.f32 %v123, %v156
  %v195 = vmul.f32 %v124, %v156
  %v196 = vmul.f32 %v125, %v156
  %v197 = vmul.f32 %v126, %v156
  %v198 = vmul.f32 %v127, %v156
  %v199 = vmul.f32 %v128, %v156
  %v200 = vmul.f32 %v129, %v156
  %v201 = vmul.f32 %v130, %v156
  %v202 = vmul.f32 %v131, %v156
  %v203 = vmul.f32 %v132, %v156
  %v204 = vmul.f32 %v133, %v156
  %v205 = vmul.f32 %v134, %v156
  %v206 = vmul.f32 %v135, %v156
  %v207 = vmul.f32 %v136, %v156
  %v208 = vmul.f32 %v137, %v156
  %v209 = vmul.f32 %v138, %v156
  %v210 = vmul.f32 %v139, %v156
  %v211 = vmul.f32 %v140, %v156
  %v212 = vmul.f32 %v141, %v156
  %v213 = vmul.f32 %v142, %v156
  %v214 = vmul.f32 %v143, %v156
  %v215 = vmul.f32 %v144, %v156
  %v216 = vmul.f32 %v145, %v156
  %v217 = vmul.f32 %v146, %v156
  %v218 = vmul.f32 %v147, %v156
  %v219 = vmul.f32 %v148, %v156
  %v220 = vmul.f32 %v149, %v156
  %v221 = vmul.f32 %v150, %v156
  %v222 = vld [vmem:[%s2] sm:$0x1]
  %v224 = vlaneseq
  %v225 = vshrl.u32 %v224, 7
  %v226 = vsub.s32 0, %v225
  %v227 = vrot.slane %v222, %v226
  %v229 = vadd.f32 %v158, %v227
  %v230 = vadd.f32 %v159, %v227
  %v231 = vadd.f32 %v160, %v227
  %v232 = vadd.f32 %v161, %v227
  %v233 = vadd.f32 %v162, %v227
  %v234 = vadd.f32 %v163, %v227
  %v235 = vadd.f32 %v164, %v227
  %v236 = vadd.f32 %v165, %v227
  %v237 = vadd.f32 %v166, %v227
  %v238 = vadd.f32 %v167, %v227
  %v239 = vadd.f32 %v168, %v227
  %v240 = vadd.f32 %v169, %v227
  %v241 = vadd.f32 %v170, %v227
  %v242 = vadd.f32 %v171, %v227
  %v243 = vadd.f32 %v172, %v227
  %v244 = vadd.f32 %v173, %v227
  %v245 = vadd.f32 %v174, %v227
  %v246 = vadd.f32 %v175, %v227
  %v247 = vadd.f32 %v176, %v227
  %v248 = vadd.f32 %v177, %v227
  %v249 = vadd.f32 %v178, %v227
  %v250 = vadd.f32 %v179, %v227
  %v251 = vadd.f32 %v180, %v227
  %v252 = vadd.f32 %v181, %v227
  %v253 = vadd.f32 %v182, %v227
  %v254 = vadd.f32 %v183, %v227
  %v255 = vadd.f32 %v184, %v227
  %v256 = vadd.f32 %v185, %v227
  %v257 = vadd.f32 %v186, %v227
  %v258 = vadd.f32 %v187, %v227
  %v259 = vadd.f32 %v188, %v227
  %v260 = vadd.f32 %v189, %v227
  %v261 = vadd.f32 %v190, %v227
  %v262 = vadd.f32 %v191, %v227
  %v263 = vadd.f32 %v192, %v227
  %v264 = vadd.f32 %v193, %v227
  %v265 = vadd.f32 %v194, %v227
  %v266 = vadd.f32 %v195, %v227
  %v267 = vadd.f32 %v196, %v227
  %v268 = vadd.f32 %v197, %v227
  %v269 = vadd.f32 %v198, %v227
  %v270 = vadd.f32 %v199, %v227
  %v271 = vadd.f32 %v200, %v227
  %v272 = vadd.f32 %v201, %v227
  %v273 = vadd.f32 %v202, %v227
  %v274 = vadd.f32 %v203, %v227
  %v275 = vadd.f32 %v204, %v227
  %v276 = vadd.f32 %v205, %v227
  %v277 = vadd.f32 %v206, %v227
  %v278 = vadd.f32 %v207, %v227
  %v279 = vadd.f32 %v208, %v227
  %v280 = vadd.f32 %v209, %v227
  %v281 = vadd.f32 %v210, %v227
  %v282 = vadd.f32 %v211, %v227
  %v283 = vadd.f32 %v212, %v227
  %v284 = vadd.f32 %v213, %v227
  %v285 = vadd.f32 %v214, %v227
  %v286 = vadd.f32 %v215, %v227
  %v287 = vadd.f32 %v216, %v227
  %v288 = vadd.f32 %v217, %v227
  %v289 = vadd.f32 %v218, %v227
  %v290 = vadd.f32 %v219, %v227
  %v291 = vadd.f32 %v220, %v227
  %v292 = vadd.f32 %v221, %v227
  %v293 = vld [vmem:[%s3] sm:$0xf]
  %v294 = vld [vmem:[%s3 + $0x4] sm:$0xf]
  %v295 = vld [vmem:[%s3 + $0x8] sm:$0xf]
  %v296 = vld [vmem:[%s3 + $0xc] sm:$0xf]
  %v297 = vld [vmem:[%s3 + $0x10] sm:$0xf]
  %v298 = vld [vmem:[%s3 + $0x14] sm:$0xf]
  %v299 = vld [vmem:[%s3 + $0x18] sm:$0xf]
  %v300 = vld [vmem:[%s3 + $0x1c] sm:$0xf]
  %v301 = vld [vmem:[%s3 + $0x20] sm:$0xf]
  %v302 = vld [vmem:[%s3 + $0x24] sm:$0xf]
  %v303 = vld [vmem:[%s3 + $0x28] sm:$0xf]
  %v304 = vld [vmem:[%s3 + $0x2c] sm:$0xf]
  %v305 = vld [vmem:[%s3 + $0x30] sm:$0xf]
  %v306 = vld [vmem:[%s3 + $0x34] sm:$0xf]
  %v307 = vld [vmem:[%s3 + $0x38] sm:$0xf]
  %v308 = vld [vmem:[%s3 + $0x3c] sm:$0xf]
  %v309 = vld [vmem:[%s3 + $0x40] sm:$0xf]
  %v310 = vld [vmem:[%s3 + $0x44] sm:$0xf]
  %v311 = vld [vmem:[%s3 + $0x48] sm:$0xf]
  %v312 = vld [vmem:[%s3 + $0x4c] sm:$0xf]
  %v313 = vld [vmem:[%s3 + $0x50] sm:$0xf]
  %v314 = vld [vmem:[%s3 + $0x54] sm:$0xf]
  %v315 = vld [vmem:[%s3 + $0x58] sm:$0xf]
  %v316 = vld [vmem:[%s3 + $0x5c] sm:$0xf]
  %v317 = vld [vmem:[%s3 + $0x60] sm:$0xf]
  %v318 = vld [vmem:[%s3 + $0x64] sm:$0xf]
  %v319 = vld [vmem:[%s3 + $0x68] sm:$0xf]
  %v320 = vld [vmem:[%s3 + $0x6c] sm:$0xf]
  %v321 = vld [vmem:[%s3 + $0x70] sm:$0xf]
  %v322 = vld [vmem:[%s3 + $0x74] sm:$0xf]
  %v323 = vld [vmem:[%s3 + $0x78] sm:$0xf]
  %v324 = vld [vmem:[%s3 + $0x7c] sm:$0xf]
  %v325 = vld [vmem:[%s3 + $0x80] sm:$0xf]
  %v326 = vld [vmem:[%s3 + $0x84] sm:$0xf]
  %v327 = vld [vmem:[%s3 + $0x88] sm:$0xf]
  %v328 = vld [vmem:[%s3 + $0x8c] sm:$0xf]
  %v329 = vld [vmem:[%s3 + $0x90] sm:$0xf]
  %v330 = vld [vmem:[%s3 + $0x94] sm:$0xf]
  %v331 = vld [vmem:[%s3 + $0x98] sm:$0xf]
  %v332 = vld [vmem:[%s3 + $0x9c] sm:$0xf]
  %v333 = vld [vmem:[%s3 + $0xa0] sm:$0xf]
  %v334 = vld [vmem:[%s3 + $0xa4] sm:$0xf]
  %v335 = vld [vmem:[%s3 + $0xa8] sm:$0xf]
  %v336 = vld [vmem:[%s3 + $0xac] sm:$0xf]
  %v337 = vld [vmem:[%s3 + $0xb0] sm:$0xf]
  %v338 = vld [vmem:[%s3 + $0xb4] sm:$0xf]
  %v339 = vld [vmem:[%s3 + $0xb8] sm:$0xf]
  %v340 = vld [vmem:[%s3 + $0xbc] sm:$0xf]
  %v341 = vld [vmem:[%s3 + $0xc0] sm:$0xf]
  %v342 = vld [vmem:[%s3 + $0xc4] sm:$0xf]
  %v343 = vld [vmem:[%s3 + $0xc8] sm:$0xf]
  %v344 = vld [vmem:[%s3 + $0xcc] sm:$0xf]
  %v345 = vld [vmem:[%s3 + $0xd0] sm:$0xf]
  %v346 = vld [vmem:[%s3 + $0xd4] sm:$0xf]
  %v347 = vld [vmem:[%s3 + $0xd8] sm:$0xf]
  %v348 = vld [vmem:[%s3 + $0xdc] sm:$0xf]
  %v349 = vld [vmem:[%s3 + $0xe0] sm:$0xf]
  %v350 = vld [vmem:[%s3 + $0xe4] sm:$0xf]
  %v351 = vld [vmem:[%s3 + $0xe8] sm:$0xf]
  %v352 = vld [vmem:[%s3 + $0xec] sm:$0xf]
  %v353 = vld [vmem:[%s3 + $0xf0] sm:$0xf]
  %v354 = vld [vmem:[%s3 + $0xf4] sm:$0xf]
  %v355 = vld [vmem:[%s3 + $0xf8] sm:$0xf]
  %v356 = vld [vmem:[%s3 + $0xfc] sm:$0xf]
  %v357 = vunpack.c.l.bf16 %v293
  %v358 = vunpack.c.l.bf16 %v294
  %v359 = vunpack.c.l.bf16 %v295
  %v360 = vunpack.c.l.bf16 %v296
  %v361 = vunpack.c.l.bf16 %v297
  %v362 = vunpack.c.l.bf16 %v298
  %v363 = vunpack.c.l.bf16 %v299
  %v364 = vunpack.c.l.bf16 %v300
  %v365 = vunpack.c.l.bf16 %v301
  %v366 = vunpack.c.l.bf16 %v302
  %v367 = vunpack.c.l.bf16 %v303
  %v368 = vunpack.c.l.bf16 %v304
  %v369 = vunpack.c.l.bf16 %v305
  %v370 = vunpack.c.l.bf16 %v306
  %v371 = vunpack.c.l.bf16 %v307
  %v372 = vunpack.c.l.bf16 %v308
  %v373 = vunpack.c.l.bf16 %v309
  %v374 = vunpack.c.l.bf16 %v310
  %v375 = vunpack.c.l.bf16 %v311
  %v376 = vunpack.c.l.bf16 %v312
  %v377 = vunpack.c.l.bf16 %v313
  %v378 = vunpack.c.l.bf16 %v314
  %v379 = vunpack.c.l.bf16 %v315
  %v380 = vunpack.c.l.bf16 %v316
  %v381 = vunpack.c.l.bf16 %v317
  %v382 = vunpack.c.l.bf16 %v318
  %v383 = vunpack.c.l.bf16 %v319
  %v384 = vunpack.c.l.bf16 %v320
  %v385 = vunpack.c.l.bf16 %v321
  %v386 = vunpack.c.l.bf16 %v322
  %v387 = vunpack.c.l.bf16 %v323
  %v388 = vunpack.c.l.bf16 %v324
  %v389 = vunpack.c.l.bf16 %v325
  %v390 = vunpack.c.l.bf16 %v326
  %v391 = vunpack.c.l.bf16 %v327
  %v392 = vunpack.c.l.bf16 %v328
  %v393 = vunpack.c.l.bf16 %v329
  %v394 = vunpack.c.l.bf16 %v330
  %v395 = vunpack.c.l.bf16 %v331
  %v396 = vunpack.c.l.bf16 %v332
  %v397 = vunpack.c.l.bf16 %v333
  %v398 = vunpack.c.l.bf16 %v334
  %v399 = vunpack.c.l.bf16 %v335
  %v400 = vunpack.c.l.bf16 %v336
  %v401 = vunpack.c.l.bf16 %v337
  %v402 = vunpack.c.l.bf16 %v338
  %v403 = vunpack.c.l.bf16 %v339
  %v404 = vunpack.c.l.bf16 %v340
  %v405 = vunpack.c.l.bf16 %v341
  %v406 = vunpack.c.l.bf16 %v342
  %v407 = vunpack.c.l.bf16 %v343
  %v408 = vunpack.c.l.bf16 %v344
  %v409 = vunpack.c.l.bf16 %v345
  %v410 = vunpack.c.l.bf16 %v346
  %v411 = vunpack.c.l.bf16 %v347
  %v412 = vunpack.c.l.bf16 %v348
  %v413 = vunpack.c.l.bf16 %v349
  %v414 = vunpack.c.l.bf16 %v350
  %v415 = vunpack.c.l.bf16 %v351
  %v416 = vunpack.c.l.bf16 %v352
  %v417 = vunpack.c.l.bf16 %v353
  %v418 = vunpack.c.l.bf16 %v354
  %v419 = vunpack.c.l.bf16 %v355
  %v420 = vunpack.c.l.bf16 %v356
  %v421 = vld [vmem:[%s4] sm:$0x1]
  %v423 = vlaneseq
  %v424 = vshrl.u32 %v423, 7
  %v425 = vsub.s32 0, %v424
  %v426 = vrot.slane %v421, %v425
  %v428 = vmul.f32 %v357, %v426
  %v429 = vmul.f32 %v358, %v426
  %v430 = vmul.f32 %v359, %v426
  %v431 = vmul.f32 %v360, %v426
  %v432 = vmul.f32 %v361, %v426
  %v433 = vmul.f32 %v362, %v426
  %v434 = vmul.f32 %v363, %v426
  %v435 = vmul.f32 %v364, %v426
  %v436 = vmul.f32 %v365, %v426
  %v437 = vmul.f32 %v366, %v426
  %v438 = vmul.f32 %v367, %v426
  %v439 = vmul.f32 %v368, %v426
  %v440 = vmul.f32 %v369, %v426
  %v441 = vmul.f32 %v370, %v426
  %v442 = vmul.f32 %v371, %v426
  %v443 = vmul.f32 %v372, %v426
  %v444 = vmul.f32 %v373, %v426
  %v445 = vmul.f32 %v374, %v426
  %v446 = vmul.f32 %v375, %v426
  %v447 = vmul.f32 %v376, %v426
  %v448 = vmul.f32 %v377, %v426
  %v449 = vmul.f32 %v378, %v426
  %v450 = vmul.f32 %v379, %v426
  %v451 = vmul.f32 %v380, %v426
  %v452 = vmul.f32 %v381, %v426
  %v453 = vmul.f32 %v382, %v426
  %v454 = vmul.f32 %v383, %v426
  %v455 = vmul.f32 %v384, %v426
  %v456 = vmul.f32 %v385, %v426
  %v457 = vmul.f32 %v386, %v426
  %v458 = vmul.f32 %v387, %v426
  %v459 = vmul.f32 %v388, %v426
  %v460 = vmul.f32 %v389, %v426
  %v461 = vmul.f32 %v390, %v426
  %v462 = vmul.f32 %v391, %v426
  %v463 = vmul.f32 %v392, %v426
  %v464 = vmul.f32 %v393, %v426
  %v465 = vmul.f32 %v394, %v426
  %v466 = vmul.f32 %v395, %v426
  %v467 = vmul.f32 %v396, %v426
  %v468 = vmul.f32 %v397, %v426
  %v469 = vmul.f32 %v398, %v426
  %v470 = vmul.f32 %v399, %v426
  %v471 = vmul.f32 %v400, %v426
  %v472 = vmul.f32 %v401, %v426
  %v473 = vmul.f32 %v402, %v426
  %v474 = vmul.f32 %v403, %v426
  %v475 = vmul.f32 %v404, %v426
  %v476 = vmul.f32 %v405, %v426
  %v477 = vmul.f32 %v406, %v426
  %v478 = vmul.f32 %v407, %v426
  %v479 = vmul.f32 %v408, %v426
  %v480 = vmul.f32 %v409, %v426
  %v481 = vmul.f32 %v410, %v426
  %v482 = vmul.f32 %v411, %v426
  %v483 = vmul.f32 %v412, %v426
  %v484 = vmul.f32 %v413, %v426
  %v485 = vmul.f32 %v414, %v426
  %v486 = vmul.f32 %v415, %v426
  %v487 = vmul.f32 %v416, %v426
  %v488 = vmul.f32 %v417, %v426
  %v489 = vmul.f32 %v418, %v426
  %v490 = vmul.f32 %v419, %v426
  %v491 = vmul.f32 %v420, %v426
  %v492 = vld [vmem:[%s5] sm:$0x1]
  %v494 = vlaneseq
  %v495 = vshrl.u32 %v494, 7
  %v496 = vsub.s32 0, %v495
  %v497 = vrot.slane %v492, %v496
  %v499 = vadd.f32 %v428, %v497
  %v500 = vadd.f32 %v429, %v497
  %v501 = vadd.f32 %v430, %v497
  %v502 = vadd.f32 %v431, %v497
  %v503 = vadd.f32 %v432, %v497
  %v504 = vadd.f32 %v433, %v497
  %v505 = vadd.f32 %v434, %v497
  %v506 = vadd.f32 %v435, %v497
  %v507 = vadd.f32 %v436, %v497
  %v508 = vadd.f32 %v437, %v497
  %v509 = vadd.f32 %v438, %v497
  %v510 = vadd.f32 %v439, %v497
  %v511 = vadd.f32 %v440, %v497
  %v512 = vadd.f32 %v441, %v497
  %v513 = vadd.f32 %v442, %v497
  %v514 = vadd.f32 %v443, %v497
  %v515 = vadd.f32 %v444, %v497
  %v516 = vadd.f32 %v445, %v497
  %v517 = vadd.f32 %v446, %v497
  %v518 = vadd.f32 %v447, %v497
  %v519 = vadd.f32 %v448, %v497
  %v520 = vadd.f32 %v449, %v497
  %v521 = vadd.f32 %v450, %v497
  %v522 = vadd.f32 %v451, %v497
  %v523 = vadd.f32 %v452, %v497
  %v524 = vadd.f32 %v453, %v497
  %v525 = vadd.f32 %v454, %v497
  %v526 = vadd.f32 %v455, %v497
  %v527 = vadd.f32 %v456, %v497
  %v528 = vadd.f32 %v457, %v497
  %v529 = vadd.f32 %v458, %v497
  %v530 = vadd.f32 %v459, %v497
  %v531 = vadd.f32 %v460, %v497
  %v532 = vadd.f32 %v461, %v497
  %v533 = vadd.f32 %v462, %v497
  %v534 = vadd.f32 %v463, %v497
  %v535 = vadd.f32 %v464, %v497
  %v536 = vadd.f32 %v465, %v497
  %v537 = vadd.f32 %v466, %v497
  %v538 = vadd.f32 %v467, %v497
  %v539 = vadd.f32 %v468, %v497
  %v540 = vadd.f32 %v469, %v497
  %v541 = vadd.f32 %v470, %v497
  %v542 = vadd.f32 %v471, %v497
  %v543 = vadd.f32 %v472, %v497
  %v544 = vadd.f32 %v473, %v497
  %v545 = vadd.f32 %v474, %v497
  %v546 = vadd.f32 %v475, %v497
  %v547 = vadd.f32 %v476, %v497
  %v548 = vadd.f32 %v477, %v497
  %v549 = vadd.f32 %v478, %v497
  %v550 = vadd.f32 %v479, %v497
  %v551 = vadd.f32 %v480, %v497
  %v552 = vadd.f32 %v481, %v497
  %v553 = vadd.f32 %v482, %v497
  %v554 = vadd.f32 %v483, %v497
  %v555 = vadd.f32 %v484, %v497
  %v556 = vadd.f32 %v485, %v497
  %v557 = vadd.f32 %v486, %v497
  %v558 = vadd.f32 %v487, %v497
  %v559 = vadd.f32 %v488, %v497
  %v560 = vadd.f32 %v489, %v497
  %v561 = vadd.f32 %v490, %v497
  %v562 = vadd.f32 %v491, %v497
  %v563 = vadd.f32 %v229, %v499
  %v564 = vadd.f32 %v230, %v500
  %v565 = vadd.f32 %v231, %v501
  %v566 = vadd.f32 %v232, %v502
  %v567 = vadd.f32 %v233, %v503
  %v568 = vadd.f32 %v234, %v504
  %v569 = vadd.f32 %v235, %v505
  %v570 = vadd.f32 %v236, %v506
  %v571 = vadd.f32 %v237, %v507
  %v572 = vadd.f32 %v238, %v508
  %v573 = vadd.f32 %v239, %v509
  %v574 = vadd.f32 %v240, %v510
  %v575 = vadd.f32 %v241, %v511
  %v576 = vadd.f32 %v242, %v512
  %v577 = vadd.f32 %v243, %v513
  %v578 = vadd.f32 %v244, %v514
  %v579 = vadd.f32 %v245, %v515
  %v580 = vadd.f32 %v246, %v516
  %v581 = vadd.f32 %v247, %v517
  %v582 = vadd.f32 %v248, %v518
  %v583 = vadd.f32 %v249, %v519
  %v584 = vadd.f32 %v250, %v520
  %v585 = vadd.f32 %v251, %v521
  %v586 = vadd.f32 %v252, %v522
  %v587 = vadd.f32 %v253, %v523
  %v588 = vadd.f32 %v254, %v524
  %v589 = vadd.f32 %v255, %v525
  %v590 = vadd.f32 %v256, %v526
  %v591 = vadd.f32 %v257, %v527
  %v592 = vadd.f32 %v258, %v528
  %v593 = vadd.f32 %v259, %v529
  %v594 = vadd.f32 %v260, %v530
  %v595 = vadd.f32 %v261, %v531
  %v596 = vadd.f32 %v262, %v532
  %v597 = vadd.f32 %v263, %v533
  %v598 = vadd.f32 %v264, %v534
  %v599 = vadd.f32 %v265, %v535
  %v600 = vadd.f32 %v266, %v536
  %v601 = vadd.f32 %v267, %v537
  %v602 = vadd.f32 %v268, %v538
  %v603 = vadd.f32 %v269, %v539
  %v604 = vadd.f32 %v270, %v540
  %v605 = vadd.f32 %v271, %v541
  %v606 = vadd.f32 %v272, %v542
  %v607 = vadd.f32 %v273, %v543
  %v608 = vadd.f32 %v274, %v544
  %v609 = vadd.f32 %v275, %v545
  %v610 = vadd.f32 %v276, %v546
  %v611 = vadd.f32 %v277, %v547
  %v612 = vadd.f32 %v278, %v548
  %v613 = vadd.f32 %v279, %v549
  %v614 = vadd.f32 %v280, %v550
  %v615 = vadd.f32 %v281, %v551
  %v616 = vadd.f32 %v282, %v552
  %v617 = vadd.f32 %v283, %v553
  %v618 = vadd.f32 %v284, %v554
  %v619 = vadd.f32 %v285, %v555
  %v620 = vadd.f32 %v286, %v556
  %v621 = vadd.f32 %v287, %v557
  %v622 = vadd.f32 %v288, %v558
  %v623 = vadd.f32 %v289, %v559
  %v624 = vadd.f32 %v290, %v560
  %v625 = vadd.f32 %v291, %v561
  %v626 = vadd.f32 %v292, %v562
  %v627 = vmax.f32 %v563, 0.0
  %v628 = vmax.f32 %v564, 0.0
  %v629 = vmax.f32 %v565, 0.0
  %v630 = vmax.f32 %v566, 0.0
  %v631 = vmax.f32 %v567, 0.0
  %v632 = vmax.f32 %v568, 0.0
  %v633 = vmax.f32 %v569, 0.0
  %v634 = vmax.f32 %v570, 0.0
  %v635 = vmax.f32 %v571, 0.0
  %v636 = vmax.f32 %v572, 0.0
  %v637 = vmax.f32 %v573, 0.0
  %v638 = vmax.f32 %v574, 0.0
  %v639 = vmax.f32 %v575, 0.0
  %v640 = vmax.f32 %v576, 0.0
  %v641 = vmax.f32 %v577, 0.0
  %v642 = vmax.f32 %v578, 0.0
  %v643 = vmax.f32 %v579, 0.0
  %v644 = vmax.f32 %v580, 0.0
  %v645 = vmax.f32 %v581, 0.0
  %v646 = vmax.f32 %v582, 0.0
  %v647 = vmax.f32 %v583, 0.0
  %v648 = vmax.f32 %v584, 0.0
  %v649 = vmax.f32 %v585, 0.0
  %v650 = vmax.f32 %v586, 0.0
  %v651 = vmax.f32 %v587, 0.0
  %v652 = vmax.f32 %v588, 0.0
  %v653 = vmax.f32 %v589, 0.0
  %v654 = vmax.f32 %v590, 0.0
  %v655 = vmax.f32 %v591, 0.0
  %v656 = vmax.f32 %v592, 0.0
  %v657 = vmax.f32 %v593, 0.0
  %v658 = vmax.f32 %v594, 0.0
  %v659 = vmax.f32 %v595, 0.0
  %v660 = vmax.f32 %v596, 0.0
  %v661 = vmax.f32 %v597, 0.0
  %v662 = vmax.f32 %v598, 0.0
  %v663 = vmax.f32 %v599, 0.0
  %v664 = vmax.f32 %v600, 0.0
  %v665 = vmax.f32 %v601, 0.0
  %v666 = vmax.f32 %v602, 0.0
  %v667 = vmax.f32 %v603, 0.0
  %v668 = vmax.f32 %v604, 0.0
  %v669 = vmax.f32 %v605, 0.0
  %v670 = vmax.f32 %v606, 0.0
  %v671 = vmax.f32 %v607, 0.0
  %v672 = vmax.f32 %v608, 0.0
  %v673 = vmax.f32 %v609, 0.0
  %v674 = vmax.f32 %v610, 0.0
  %v675 = vmax.f32 %v611, 0.0
  %v676 = vmax.f32 %v612, 0.0
  %v677 = vmax.f32 %v613, 0.0
  %v678 = vmax.f32 %v614, 0.0
  %v679 = vmax.f32 %v615, 0.0
  %v680 = vmax.f32 %v616, 0.0
  %v681 = vmax.f32 %v617, 0.0
  %v682 = vmax.f32 %v618, 0.0
  %v683 = vmax.f32 %v619, 0.0
  %v684 = vmax.f32 %v620, 0.0
  %v685 = vmax.f32 %v621, 0.0
  %v686 = vmax.f32 %v622, 0.0
  %v687 = vmax.f32 %v623, 0.0
  %v688 = vmax.f32 %v624, 0.0
  %v689 = vmax.f32 %v625, 0.0
  %v690 = vmax.f32 %v626, 0.0
  %691 = vst [vmem:[%s6] sm:$0xff] %v627
  %692 = vst [vmem:[%s6 + $0x8] sm:$0xff] %v628
  %693 = vst [vmem:[%s6 + $0x10] sm:$0xff] %v629
  %694 = vst [vmem:[%s6 + $0x18] sm:$0xff] %v630
  %695 = vst [vmem:[%s6 + $0x20] sm:$0xff] %v631
  %696 = vst [vmem:[%s6 + $0x28] sm:$0xff] %v632
  %697 = vst [vmem:[%s6 + $0x30] sm:$0xff] %v633
  %698 = vst [vmem:[%s6 + $0x38] sm:$0xff] %v634
  %699 = vst [vmem:[%s6 + $0x40] sm:$0xff] %v635
  %700 = vst [vmem:[%s6 + $0x48] sm:$0xff] %v636
  %701 = vst [vmem:[%s6 + $0x50] sm:$0xff] %v637
  %702 = vst [vmem:[%s6 + $0x58] sm:$0xff] %v638
  %703 = vst [vmem:[%s6 + $0x60] sm:$0xff] %v639
  %704 = vst [vmem:[%s6 + $0x68] sm:$0xff] %v640
  %705 = vst [vmem:[%s6 + $0x70] sm:$0xff] %v641
  %706 = vst [vmem:[%s6 + $0x78] sm:$0xff] %v642
  %707 = vst [vmem:[%s6 + $0x80] sm:$0xff] %v643
  %708 = vst [vmem:[%s6 + $0x88] sm:$0xff] %v644
  %709 = vst [vmem:[%s6 + $0x90] sm:$0xff] %v645
  %710 = vst [vmem:[%s6 + $0x98] sm:$0xff] %v646
  %711 = vst [vmem:[%s6 + $0xa0] sm:$0xff] %v647
  %712 = vst [vmem:[%s6 + $0xa8] sm:$0xff] %v648
  %713 = vst [vmem:[%s6 + $0xb0] sm:$0xff] %v649
  %714 = vst [vmem:[%s6 + $0xb8] sm:$0xff] %v650
  %715 = vst [vmem:[%s6 + $0xc0] sm:$0xff] %v651
  %716 = vst [vmem:[%s6 + $0xc8] sm:$0xff] %v652
  %717 = vst [vmem:[%s6 + $0xd0] sm:$0xff] %v653
  %718 = vst [vmem:[%s6 + $0xd8] sm:$0xff] %v654
  %719 = vst [vmem:[%s6 + $0xe0] sm:$0xff] %v655
  %720 = vst [vmem:[%s6 + $0xe8] sm:$0xff] %v656
  %721 = vst [vmem:[%s6 + $0xf0] sm:$0xff] %v657
  %722 = vst [vmem:[%s6 + $0xf8] sm:$0xff] %v658
  %723 = vst [vmem:[%s6 + $0x100] sm:$0xff] %v659
  %724 = vst [vmem:[%s6 + $0x108] sm:$0xff] %v660
  %725 = vst [vmem:[%s6 + $0x110] sm:$0xff] %v661
  %726 = vst [vmem:[%s6 + $0x118] sm:$0xff] %v662
  %727 = vst [vmem:[%s6 + $0x120] sm:$0xff] %v663
  %728 = vst [vmem:[%s6 + $0x128] sm:$0xff] %v664
  %729 = vst [vmem:[%s6 + $0x130] sm:$0xff] %v665
  %730 = vst [vmem:[%s6 + $0x138] sm:$0xff] %v666
  %731 = vst [vmem:[%s6 + $0x140] sm:$0xff] %v667
  %732 = vst [vmem:[%s6 + $0x148] sm:$0xff] %v668
  %733 = vst [vmem:[%s6 + $0x150] sm:$0xff] %v669
  %734 = vst [vmem:[%s6 + $0x158] sm:$0xff] %v670
  %735 = vst [vmem:[%s6 + $0x160] sm:$0xff] %v671
  %736 = vst [vmem:[%s6 + $0x168] sm:$0xff] %v672
  %737 = vst [vmem:[%s6 + $0x170] sm:$0xff] %v673
  %738 = vst [vmem:[%s6 + $0x178] sm:$0xff] %v674
  %739 = vst [vmem:[%s6 + $0x180] sm:$0xff] %v675
  %740 = vst [vmem:[%s6 + $0x188] sm:$0xff] %v676
  %741 = vst [vmem:[%s6 + $0x190] sm:$0xff] %v677
  %742 = vst [vmem:[%s6 + $0x198] sm:$0xff] %v678
  %743 = vst [vmem:[%s6 + $0x1a0] sm:$0xff] %v679
  %744 = vst [vmem:[%s6 + $0x1a8] sm:$0xff] %v680
  %745 = vst [vmem:[%s6 + $0x1b0] sm:$0xff] %v681
  %746 = vst [vmem:[%s6 + $0x1b8] sm:$0xff] %v682
  %747 = vst [vmem:[%s6 + $0x1c0] sm:$0xff] %v683
  %748 = vst [vmem:[%s6 + $0x1c8] sm:$0xff] %v684
  %749 = vst [vmem:[%s6 + $0x1d0] sm:$0xff] %v685
  %750 = vst [vmem:[%s6 + $0x1d8] sm:$0xff] %v686
  %751 = vst [vmem:[%s6 + $0x1e0] sm:$0xff] %v687
  %752 = vst [vmem:[%s6 + $0x1e8] sm:$0xff] %v688
  %753 = vst [vmem:[%s6 + $0x1f0] sm:$0xff] %v689
  %754 = vst [vmem:[%s6 + $0x1f8] sm:$0xff] %v690
  // Predicated region
  $region26: #{res_bottleneck_forward.9} parent=0 // pred_check
    _
  $region27: #{res_bottleneck_forward.9} parent=0 // pred_check_branch
    %756 = sbr.rel (0) target = $region29
  $region28: #{res_bottleneck_forward.9} parent=0 // pred_region
    _
  $region29: #{res_bottleneck_forward.9} parent=0 // pred_fallthru
    _
  // Predicated region
  $region30: #{res_bottleneck_forward.9} parent=0 // pred_check
    _
  $region31: #{res_bottleneck_forward.9} parent=0 // pred_check_branch
    %758 = sbr.rel (0) target = $region33
  $region32: #{res_bottleneck_forward.9} parent=0 // pred_region
    _
  $region33: #{res_bottleneck_forward.9} parent=0 // pred_fallthru
    _

// kernel: res_bottleneck_forward.7
$region0: #{res_bottleneck_forward.7}
  #allocation0 [shape = 'u32[]', space=smem, size = 0x4, offset = 0x4, fixed_abs, tag = 'smem constant byte address 0x4 - core index']
  #allocation1 [shape = 'u32[144,128]{1,0:T(1,128)}', space=vmem, size = 0x12000, scoped, tag = 'internal scratch']
  #allocation2 [shape = 'f32[512,128]{1,0:T(8,128)}', space=vmem, size = 0x40000, scoped, tag = 'scratch operand']
  %s0 = inlined_call_operand.vmem [shape: bf16[512,128], index: 0, kind: input, shape index: {}]
  %s1 = inlined_call_operand.vmem [shape: f32[1,128], index: 1, kind: input, shape index: {}]
  %s2 = inlined_call_operand.vmem [shape: f32[1,128], index: 2, kind: input, shape index: {}]
  %s3 = inlined_call_operand.vmem [shape: bf16[128,128], index: 3, kind: input, shape index: {}]
  %s4 = inlined_call_operand.vmem [shape: bf16[512,128], index: 4, kind: output, shape index: {0}]
  %s5 = inlined_call_operand.vmem [shape: f32[1,2,128], index: 5, kind: output, shape index: {1}]
  %6 = xla_tuple %s4, %s5
  %s7 = sld [smem:[#allocation0]]
  $region42: #{res_bottleneck_forward.7} parent=0
    _
  %s9 = ssub.s32 1, %s7
  %s10 = scalar_select 0, %s9, %s7
  // Predicated region
  $region2: #{res_bottleneck_forward.7} parent=0 // pred_check
    _
  $region3: #{res_bottleneck_forward.7} parent=0 // pred_check_branch
    %12 = sbr.rel (0) target = $region5
  $region4: #{res_bottleneck_forward.7} parent=0 // pred_region
    _
  $region5: #{res_bottleneck_forward.7} parent=0 // pred_fallthru
    _
  // Predicated region
  $region6: #{res_bottleneck_forward.7} parent=0 // pred_check
    _
  $region7: #{res_bottleneck_forward.7} parent=0 // pred_check_branch
    %14 = sbr.rel (0) target = $region9
  $region8: #{res_bottleneck_forward.7} parent=0 // pred_region
    _
  $region9: #{res_bottleneck_forward.7} parent=0 // pred_fallthru
    _
  // Predicated region
  $region10: #{res_bottleneck_forward.7} parent=0 // pred_check
    _
  $region11: #{res_bottleneck_forward.7} parent=0 // pred_check_branch
    %16 = sbr.rel (0) target = $region13
  $region12: #{res_bottleneck_forward.7} parent=0 // pred_region
    _
  $region13: #{res_bottleneck_forward.7} parent=0 // pred_fallthru
    _
  // Predicated region
  $region14: #{res_bottleneck_forward.7} parent=0 // pred_check
    _
  $region15: #{res_bottleneck_forward.7} parent=0 // pred_check_branch
    %18 = sbr.rel (0) target = $region17
  $region16: #{res_bottleneck_forward.7} parent=0 // pred_region
    _
  $region17: #{res_bottleneck_forward.7} parent=0 // pred_fallthru
    _
  %p20 = scmp.eq.s32.totalorder 0, 0
  // Predicated region
  $region18: #{res_bottleneck_forward.7} parent=0 // pred_check
    %p21 = pneg %p20
  $region19: #{res_bottleneck_forward.7} parent=0 // pred_check_branch
    %23 = sbr.rel (%p21) target = $region21
  $region20: #{res_bottleneck_forward.7} parent=0 // pred_region
    %24 = vst [vmem:[#allocation2] sm:$0xff] 0.0
    %25 = vst [vmem:[#allocation2 + $0x8] sm:$0xff] 0.0
    %26 = vst [vmem:[#allocation2 + $0x10] sm:$0xff] 0.0
    %27 = vst [vmem:[#allocation2 + $0x18] sm:$0xff] 0.0
    %28 = vst [vmem:[#allocation2 + $0x20] sm:$0xff] 0.0
    %29 = vst [vmem:[#allocation2 + $0x28] sm:$0xff] 0.0
    %30 = vst [vmem:[#allocation2 + $0x30] sm:$0xff] 0.0
    %31 = vst [vmem:[#allocation2 + $0x38] sm:$0xff] 0.0
    %32 = vst [vmem:[#allocation2 + $0x40] sm:$0xff] 0.0
    %33 = vst [vmem:[#allocation2 + $0x48] sm:$0xff] 0.0
    %34 = vst [vmem:[#allocation2 + $0x50] sm:$0xff] 0.0
    %35 = vst [vmem:[#allocation2 + $0x58] sm:$0xff] 0.0
    %36 = vst [vmem:[#allocation2 + $0x60] sm:$0xff] 0.0
    %37 = vst [vmem:[#allocation2 + $0x68] sm:$0xff] 0.0
    %38 = vst [vmem:[#allocation2 + $0x70] sm:$0xff] 0.0
    %39 = vst [vmem:[#allocation2 + $0x78] sm:$0xff] 0.0
    %40 = vst [vmem:[#allocation2 + $0x80] sm:$0xff] 0.0
    %41 = vst [vmem:[#allocation2 + $0x88] sm:$0xff] 0.0
    %42 = vst [vmem:[#allocation2 + $0x90] sm:$0xff] 0.0
    %43 = vst [vmem:[#allocation2 + $0x98] sm:$0xff] 0.0
    %44 = vst [vmem:[#allocation2 + $0xa0] sm:$0xff] 0.0
    %45 = vst [vmem:[#allocation2 + $0xa8] sm:$0xff] 0.0
    %46 = vst [vmem:[#allocation2 + $0xb0] sm:$0xff] 0.0
    %47 = vst [vmem:[#allocation2 + $0xb8] sm:$0xff] 0.0
    %48 = vst [vmem:[#allocation2 + $0xc0] sm:$0xff] 0.0
    %49 = vst [vmem:[#allocation2 + $0xc8] sm:$0xff] 0.0
    %50 = vst [vmem:[#allocation2 + $0xd0] sm:$0xff] 0.0
    %51 = vst [vmem:[#allocation2 + $0xd8] sm:$0xff] 0.0
    %52 = vst [vmem:[#allocation2 + $0xe0] sm:$0xff] 0.0
    %53 = vst [vmem:[#allocation2 + $0xe8] sm:$0xff] 0.0
    %54 = vst [vmem:[#allocation2 + $0xf0] sm:$0xff] 0.0
    %55 = vst [vmem:[#allocation2 + $0xf8] sm:$0xff] 0.0
    %56 = vst [vmem:[#allocation2 + $0x100] sm:$0xff] 0.0
    %57 = vst [vmem:[#allocation2 + $0x108] sm:$0xff] 0.0
    %58 = vst [vmem:[#allocation2 + $0x110] sm:$0xff] 0.0
    %59 = vst [vmem:[#allocation2 + $0x118] sm:$0xff] 0.0
    %60 = vst [vmem:[#allocation2 + $0x120] sm:$0xff] 0.0
    %61 = vst [vmem:[#allocation2 + $0x128] sm:$0xff] 0.0
    %62 = vst [vmem:[#allocation2 + $0x130] sm:$0xff] 0.0
    %63 = vst [vmem:[#allocation2 + $0x138] sm:$0xff] 0.0
    %64 = vst [vmem:[#allocation2 + $0x140] sm:$0xff] 0.0
    %65 = vst [vmem:[#allocation2 + $0x148] sm:$0xff] 0.0
    %66 = vst [vmem:[#allocation2 + $0x150] sm:$0xff] 0.0
    %67 = vst [vmem:[#allocation2 + $0x158] sm:$0xff] 0.0
    %68 = vst [vmem:[#allocation2 + $0x160] sm:$0xff] 0.0
    %69 = vst [vmem:[#allocation2 + $0x168] sm:$0xff] 0.0
    %70 = vst [vmem:[#allocation2 + $0x170] sm:$0xff] 0.0
    %71 = vst [vmem:[#allocation2 + $0x178] sm:$0xff] 0.0
    %72 = vst [vmem:[#allocation2 + $0x180] sm:$0xff] 0.0
    %73 = vst [vmem:[#allocation2 + $0x188] sm:$0xff] 0.0
    %74 = vst [vmem:[#allocation2 + $0x190] sm:$0xff] 0.0
    %75 = vst [vmem:[#allocation2 + $0x198] sm:$0xff] 0.0
    %76 = vst [vmem:[#allocation2 + $0x1a0] sm:$0xff] 0.0
    %77 = vst [vmem:[#allocation2 + $0x1a8] sm:$0xff] 0.0
    %78 = vst [vmem:[#allocation2 + $0x1b0] sm:$0xff] 0.0
    %79 = vst [vmem:[#allocation2 + $0x1b8] sm:$0xff] 0.0
    %80 = vst [vmem:[#allocation2 + $0x1c0] sm:$0xff] 0.0
    %81 = vst [vmem:[#allocation2 + $0x1c8] sm:$0xff] 0.0
    %82 = vst [vmem:[#allocation2 + $0x1d0] sm:$0xff] 0.0
    %83 = vst [vmem:[#allocation2 + $0x1d8] sm:$0xff] 0.0
    %84 = vst [vmem:[#allocation2 + $0x1e0] sm:$0xff] 0.0
    %85 = vst [vmem:[#allocation2 + $0x1e8] sm:$0xff] 0.0
    %86 = vst [vmem:[#allocation2 + $0x1f0] sm:$0xff] 0.0
    %87 = vst [vmem:[#allocation2 + $0x1f8] sm:$0xff] 0.0
  $region21: #{res_bottleneck_forward.7} parent=0 // pred_fallthru
    _
  %v88 = vld [vmem:[%s0] sm:$0xf]
  %v89 = vld [vmem:[%s0 + $0x4] sm:$0xf]
  %v90 = vld [vmem:[%s0 + $0x8] sm:$0xf]
  %v91 = vld [vmem:[%s0 + $0xc] sm:$0xf]
  %v92 = vld [vmem:[%s0 + $0x10] sm:$0xf]
  %v93 = vld [vmem:[%s0 + $0x14] sm:$0xf]
  %v94 = vld [vmem:[%s0 + $0x18] sm:$0xf]
  %v95 = vld [vmem:[%s0 + $0x1c] sm:$0xf]
  %v96 = vld [vmem:[%s0 + $0x20] sm:$0xf]
  %v97 = vld [vmem:[%s0 + $0x24] sm:$0xf]
  %v98 = vld [vmem:[%s0 + $0x28] sm:$0xf]
  %v99 = vld [vmem:[%s0 + $0x2c] sm:$0xf]
  %v100 = vld [vmem:[%s0 + $0x30] sm:$0xf]
  %v101 = vld [vmem:[%s0 + $0x34] sm:$0xf]
  %v102 = vld [vmem:[%s0 + $0x38] sm:$0xf]
  %v103 = vld [vmem:[%s0 + $0x3c] sm:$0xf]
  %v104 = vld [vmem:[%s0 + $0x40] sm:$0xf]
  %v105 = vld [vmem:[%s0 + $0x44] sm:$0xf]
  %v106 = vld [vmem:[%s0 + $0x48] sm:$0xf]
  %v107 = vld [vmem:[%s0 + $0x4c] sm:$0xf]
  %v108 = vld [vmem:[%s0 + $0x50] sm:$0xf]
  %v109 = vld [vmem:[%s0 + $0x54] sm:$0xf]
  %v110 = vld [vmem:[%s0 + $0x58] sm:$0xf]
  %v111 = vld [vmem:[%s0 + $0x5c] sm:$0xf]
  %v112 = vld [vmem:[%s0 + $0x60] sm:$0xf]
  %v113 = vld [vmem:[%s0 + $0x64] sm:$0xf]
  %v114 = vld [vmem:[%s0 + $0x68] sm:$0xf]
  %v115 = vld [vmem:[%s0 + $0x6c] sm:$0xf]
  %v116 = vld [vmem:[%s0 + $0x70] sm:$0xf]
  %v117 = vld [vmem:[%s0 + $0x74] sm:$0xf]
  %v118 = vld [vmem:[%s0 + $0x78] sm:$0xf]
  %v119 = vld [vmem:[%s0 + $0x7c] sm:$0xf]
  %v120 = vld [vmem:[%s0 + $0x80] sm:$0xf]
  %v121 = vld [vmem:[%s0 + $0x84] sm:$0xf]
  %v122 = vld [vmem:[%s0 + $0x88] sm:$0xf]
  %v123 = vld [vmem:[%s0 + $0x8c] sm:$0xf]
  %v124 = vld [vmem:[%s0 + $0x90] sm:$0xf]
  %v125 = vld [vmem:[%s0 + $0x94] sm:$0xf]
  %v126 = vld [vmem:[%s0 + $0x98] sm:$0xf]
  %v127 = vld [vmem:[%s0 + $0x9c] sm:$0xf]
  %v128 = vld [vmem:[%s0 + $0xa0] sm:$0xf]
  %v129 = vld [vmem:[%s0 + $0xa4] sm:$0xf]
  %v130 = vld [vmem:[%s0 + $0xa8] sm:$0xf]
  %v131 = vld [vmem:[%s0 + $0xac] sm:$0xf]
  %v132 = vld [vmem:[%s0 + $0xb0] sm:$0xf]
  %v133 = vld [vmem:[%s0 + $0xb4] sm:$0xf]
  %v134 = vld [vmem:[%s0 + $0xb8] sm:$0xf]
  %v135 = vld [vmem:[%s0 + $0xbc] sm:$0xf]
  %v136 = vld [vmem:[%s0 + $0xc0] sm:$0xf]
  %v137 = vld [vmem:[%s0 + $0xc4] sm:$0xf]
  %v138 = vld [vmem:[%s0 + $0xc8] sm:$0xf]
  %v139 = vld [vmem:[%s0 + $0xcc] sm:$0xf]
  %v140 = vld [vmem:[%s0 + $0xd0] sm:$0xf]
  %v141 = vld [vmem:[%s0 + $0xd4] sm:$0xf]
  %v142 = vld [vmem:[%s0 + $0xd8] sm:$0xf]
  %v143 = vld [vmem:[%s0 + $0xdc] sm:$0xf]
  %v144 = vld [vmem:[%s0 + $0xe0] sm:$0xf]
  %v145 = vld [vmem:[%s0 + $0xe4] sm:$0xf]
  %v146 = vld [vmem:[%s0 + $0xe8] sm:$0xf]
  %v147 = vld [vmem:[%s0 + $0xec] sm:$0xf]
  %v148 = vld [vmem:[%s0 + $0xf0] sm:$0xf]
  %v149 = vld [vmem:[%s0 + $0xf4] sm:$0xf]
  %v150 = vld [vmem:[%s0 + $0xf8] sm:$0xf]
  %v151 = vld [vmem:[%s0 + $0xfc] sm:$0xf]
  %v152 = vunpack.c.l.bf16 %v88
  %v153 = vunpack.c.l.bf16 %v89
  %v154 = vunpack.c.l.bf16 %v90
  %v155 = vunpack.c.l.bf16 %v91
  %v156 = vunpack.c.l.bf16 %v92
  %v157 = vunpack.c.l.bf16 %v93
  %v158 = vunpack.c.l.bf16 %v94
  %v159 = vunpack.c.l.bf16 %v95
  %v160 = vunpack.c.l.bf16 %v96
  %v161 = vunpack.c.l.bf16 %v97
  %v162 = vunpack.c.l.bf16 %v98
  %v163 = vunpack.c.l.bf16 %v99
  %v164 = vunpack.c.l.bf16 %v100
  %v165 = vunpack.c.l.bf16 %v101
  %v166 = vunpack.c.l.bf16 %v102
  %v167 = vunpack.c.l.bf16 %v103
  %v168 = vunpack.c.l.bf16 %v104
  %v169 = vunpack.c.l.bf16 %v105
  %v170 = vunpack.c.l.bf16 %v106
  %v171 = vunpack.c.l.bf16 %v107
  %v172 = vunpack.c.l.bf16 %v108
  %v173 = vunpack.c.l.bf16 %v109
  %v174 = vunpack.c.l.bf16 %v110
  %v175 = vunpack.c.l.bf16 %v111
  %v176 = vunpack.c.l.bf16 %v112
  %v177 = vunpack.c.l.bf16 %v113
  %v178 = vunpack.c.l.bf16 %v114
  %v179 = vunpack.c.l.bf16 %v115
  %v180 = vunpack.c.l.bf16 %v116
  %v181 = vunpack.c.l.bf16 %v117
  %v182 = vunpack.c.l.bf16 %v118
  %v183 = vunpack.c.l.bf16 %v119
  %v184 = vunpack.c.l.bf16 %v120
  %v185 = vunpack.c.l.bf16 %v121
  %v186 = vunpack.c.l.bf16 %v122
  %v187 = vunpack.c.l.bf16 %v123
  %v188 = vunpack.c.l.bf16 %v124
  %v189 = vunpack.c.l.bf16 %v125
  %v190 = vunpack.c.l.bf16 %v126
  %v191 = vunpack.c.l.bf16 %v127
  %v192 = vunpack.c.l.bf16 %v128
  %v193 = vunpack.c.l.bf16 %v129
  %v194 = vunpack.c.l.bf16 %v130
  %v195 = vunpack.c.l.bf16 %v131
  %v196 = vunpack.c.l.bf16 %v132
  %v197 = vunpack.c.l.bf16 %v133
  %v198 = vunpack.c.l.bf16 %v134
  %v199 = vunpack.c.l.bf16 %v135
  %v200 = vunpack.c.l.bf16 %v136
  %v201 = vunpack.c.l.bf16 %v137
  %v202 = vunpack.c.l.bf16 %v138
  %v203 = vunpack.c.l.bf16 %v139
  %v204 = vunpack.c.l.bf16 %v140
  %v205 = vunpack.c.l.bf16 %v141
  %v206 = vunpack.c.l.bf16 %v142
  %v207 = vunpack.c.l.bf16 %v143
  %v208 = vunpack.c.l.bf16 %v144
  %v209 = vunpack.c.l.bf16 %v145
  %v210 = vunpack.c.l.bf16 %v146
  %v211 = vunpack.c.l.bf16 %v147
  %v212 = vunpack.c.l.bf16 %v148
  %v213 = vunpack.c.l.bf16 %v149
  %v214 = vunpack.c.l.bf16 %v150
  %v215 = vunpack.c.l.bf16 %v151
  %v216 = vld [vmem:[%s1] sm:$0x1]
  %v218 = vlaneseq
  %v219 = vshrl.u32 %v218, 7
  %v220 = vsub.s32 0, %v219
  %v221 = vrot.slane %v216, %v220
  %v223 = vmul.f32 %v152, %v221
  %v224 = vmul.f32 %v153, %v221
  %v225 = vmul.f32 %v154, %v221
  %v226 = vmul.f32 %v155, %v221
  %v227 = vmul.f32 %v156, %v221
  %v228 = vmul.f32 %v157, %v221
  %v229 = vmul.f32 %v158, %v221
  %v230 = vmul.f32 %v159, %v221
  %v231 = vmul.f32 %v160, %v221
  %v232 = vmul.f32 %v161, %v221
  %v233 = vmul.f32 %v162, %v221
  %v234 = vmul.f32 %v163, %v221
  %v235 = vmul.f32 %v164, %v221
  %v236 = vmul.f32 %v165, %v221
  %v237 = vmul.f32 %v166, %v221
  %v238 = vmul.f32 %v167, %v221
  %v239 = vmul.f32 %v168, %v221
  %v240 = vmul.f32 %v169, %v221
  %v241 = vmul.f32 %v170, %v221
  %v242 = vmul.f32 %v171, %v221
  %v243 = vmul.f32 %v172, %v221
  %v244 = vmul.f32 %v173, %v221
  %v245 = vmul.f32 %v174, %v221
  %v246 = vmul.f32 %v175, %v221
  %v247 = vmul.f32 %v176, %v221
  %v248 = vmul.f32 %v177, %v221
  %v249 = vmul.f32 %v178, %v221
  %v250 = vmul.f32 %v179, %v221
  %v251 = vmul.f32 %v180, %v221
  %v252 = vmul.f32 %v181, %v221
  %v253 = vmul.f32 %v182, %v221
  %v254 = vmul.f32 %v183, %v221
  %v255 = vmul.f32 %v184, %v221
  %v256 = vmul.f32 %v185, %v221
  %v257 = vmul.f32 %v186, %v221
  %v258 = vmul.f32 %v187, %v221
  %v259 = vmul.f32 %v188, %v221
  %v260 = vmul.f32 %v189, %v221
  %v261 = vmul.f32 %v190, %v221
  %v262 = vmul.f32 %v191, %v221
  %v263 = vmul.f32 %v192, %v221
  %v264 = vmul.f32 %v193, %v221
  %v265 = vmul.f32 %v194, %v221
  %v266 = vmul.f32 %v195, %v221
  %v267 = vmul.f32 %v196, %v221
  %v268 = vmul.f32 %v197, %v221
  %v269 = vmul.f32 %v198, %v221
  %v270 = vmul.f32 %v199, %v221
  %v271 = vmul.f32 %v200, %v221
  %v272 = vmul.f32 %v201, %v221
  %v273 = vmul.f32 %v202, %v221
  %v274 = vmul.f32 %v203, %v221
  %v275 = vmul.f32 %v204, %v221
  %v276 = vmul.f32 %v205, %v221
  %v277 = vmul.f32 %v206, %v221
  %v278 = vmul.f32 %v207, %v221
  %v279 = vmul.f32 %v208, %v221
  %v280 = vmul.f32 %v209, %v221
  %v281 = vmul.f32 %v210, %v221
  %v282 = vmul.f32 %v211, %v221
  %v283 = vmul.f32 %v212, %v221
  %v284 = vmul.f32 %v213, %v221
  %v285 = vmul.f32 %v214, %v221
  %v286 = vmul.f32 %v215, %v221
  %v287 = vld [vmem:[%s2] sm:$0x1]
  %v289 = vlaneseq
  %v290 = vshrl.u32 %v289, 7
  %v291 = vsub.s32 0, %v290
  %v292 = vrot.slane %v287, %v291
  %v294 = vadd.f32 %v223, %v292
  %v295 = vadd.f32 %v224, %v292
  %v296 = vadd.f32 %v225, %v292
  %v297 = vadd.f32 %v226, %v292
  %v298 = vadd.f32 %v227, %v292
  %v299 = vadd.f32 %v228, %v292
  %v300 = vadd.f32 %v229, %v292
  %v301 = vadd.f32 %v230, %v292
  %v302 = vadd.f32 %v231, %v292
  %v303 = vadd.f32 %v232, %v292
  %v304 = vadd.f32 %v233, %v292
  %v305 = vadd.f32 %v234, %v292
  %v306 = vadd.f32 %v235, %v292
  %v307 = vadd.f32 %v236, %v292
  %v308 = vadd.f32 %v237, %v292
  %v309 = vadd.f32 %v238, %v292
  %v310 = vadd.f32 %v239, %v292
  %v311 = vadd.f32 %v240, %v292
  %v312 = vadd.f32 %v241, %v292
  %v313 = vadd.f32 %v242, %v292
  %v314 = vadd.f32 %v243, %v292
  %v315 = vadd.f32 %v244, %v292
  %v316 = vadd.f32 %v245, %v292
  %v317 = vadd.f32 %v246, %v292
  %v318 = vadd.f32 %v247, %v292
  %v319 = vadd.f32 %v248, %v292
  %v320 = vadd.f32 %v249, %v292
  %v321 = vadd.f32 %v250, %v292
  %v322 = vadd.f32 %v251, %v292
  %v323 = vadd.f32 %v252, %v292
  %v324 = vadd.f32 %v253, %v292
  %v325 = vadd.f32 %v254, %v292
  %v326 = vadd.f32 %v255, %v292
  %v327 = vadd.f32 %v256, %v292
  %v328 = vadd.f32 %v257, %v292
  %v329 = vadd.f32 %v258, %v292
  %v330 = vadd.f32 %v259, %v292
  %v331 = vadd.f32 %v260, %v292
  %v332 = vadd.f32 %v261, %v292
  %v333 = vadd.f32 %v262, %v292
  %v334 = vadd.f32 %v263, %v292
  %v335 = vadd.f32 %v264, %v292
  %v336 = vadd.f32 %v265, %v292
  %v337 = vadd.f32 %v266, %v292
  %v338 = vadd.f32 %v267, %v292
  %v339 = vadd.f32 %v268, %v292
  %v340 = vadd.f32 %v269, %v292
  %v341 = vadd.f32 %v270, %v292
  %v342 = vadd.f32 %v271, %v292
  %v343 = vadd.f32 %v272, %v292
  %v344 = vadd.f32 %v273, %v292
  %v345 = vadd.f32 %v274, %v292
  %v346 = vadd.f32 %v275, %v292
  %v347 = vadd.f32 %v276, %v292
  %v348 = vadd.f32 %v277, %v292
  %v349 = vadd.f32 %v278, %v292
  %v350 = vadd.f32 %v279, %v292
  %v351 = vadd.f32 %v280, %v292
  %v352 = vadd.f32 %v281, %v292
  %v353 = vadd.f32 %v282, %v292
  %v354 = vadd.f32 %v283, %v292
  %v355 = vadd.f32 %v284, %v292
  %v356 = vadd.f32 %v285, %v292
  %v357 = vadd.f32 %v286, %v292
  %v358 = vmax.f32 %v294, 0.0
  %v359 = vmax.f32 %v295, 0.0
  %v360 = vmax.f32 %v296, 0.0
  %v361 = vmax.f32 %v297, 0.0
  %v362 = vmax.f32 %v298, 0.0
  %v363 = vmax.f32 %v299, 0.0
  %v364 = vmax.f32 %v300, 0.0
  %v365 = vmax.f32 %v301, 0.0
  %v366 = vmax.f32 %v302, 0.0
  %v367 = vmax.f32 %v303, 0.0
  %v368 = vmax.f32 %v304, 0.0
  %v369 = vmax.f32 %v305, 0.0
  %v370 = vmax.f32 %v306, 0.0
  %v371 = vmax.f32 %v307, 0.0
  %v372 = vmax.f32 %v308, 0.0
  %v373 = vmax.f32 %v309, 0.0
  %v374 = vmax.f32 %v310, 0.0
  %v375 = vmax.f32 %v311, 0.0
  %v376 = vmax.f32 %v312, 0.0
  %v377 = vmax.f32 %v313, 0.0
  %v378 = vmax.f32 %v314, 0.0
  %v379 = vmax.f32 %v315, 0.0
  %v380 = vmax.f32 %v316, 0.0
  %v381 = vmax.f32 %v317, 0.0
  %v382 = vmax.f32 %v318, 0.0
  %v383 = vmax.f32 %v319, 0.0
  %v384 = vmax.f32 %v320, 0.0
  %v385 = vmax.f32 %v321, 0.0
  %v386 = vmax.f32 %v322, 0.0
  %v387 = vmax.f32 %v323, 0.0
  %v388 = vmax.f32 %v324, 0.0
  %v389 = vmax.f32 %v325, 0.0
  %v390 = vmax.f32 %v326, 0.0
  %v391 = vmax.f32 %v327, 0.0
  %v392 = vmax.f32 %v328, 0.0
  %v393 = vmax.f32 %v329, 0.0
  %v394 = vmax.f32 %v330, 0.0
  %v395 = vmax.f32 %v331, 0.0
  %v396 = vmax.f32 %v332, 0.0
  %v397 = vmax.f32 %v333, 0.0
  %v398 = vmax.f32 %v334, 0.0
  %v399 = vmax.f32 %v335, 0.0
  %v400 = vmax.f32 %v336, 0.0
  %v401 = vmax.f32 %v337, 0.0
  %v402 = vmax.f32 %v338, 0.0
  %v403 = vmax.f32 %v339, 0.0
  %v404 = vmax.f32 %v340, 0.0
  %v405 = vmax.f32 %v341, 0.0
  %v406 = vmax.f32 %v342, 0.0
  %v407 = vmax.f32 %v343, 0.0
  %v408 = vmax.f32 %v344, 0.0
  %v409 = vmax.f32 %v345, 0.0
  %v410 = vmax.f32 %v346, 0.0
  %v411 = vmax.f32 %v347, 0.0
  %v412 = vmax.f32 %v348, 0.0
  %v413 = vmax.f32 %v349, 0.0
  %v414 = vmax.f32 %v350, 0.0
  %v415 = vmax.f32 %v351, 0.0
  %v416 = vmax.f32 %v352, 0.0
  %v417 = vmax.f32 %v353, 0.0
  %v418 = vmax.f32 %v354, 0.0
  %v419 = vmax.f32 %v355, 0.0
  %v420 = vmax.f32 %v356, 0.0
  %v421 = vmax.f32 %v357, 0.0
  %v422 = vpack.c.bf16 %v359, %v358
  %v423 = vpack.c.bf16 %v361, %v360
  %v424 = vpack.c.bf16 %v363, %v362
  %v425 = vpack.c.bf16 %v365, %v364
  %v426 = vpack.c.bf16 %v367, %v366
  %v427 = vpack.c.bf16 %v369, %v368
  %v428 = vpack.c.bf16 %v371, %v370
  %v429 = vpack.c.bf16 %v373, %v372
  %v430 = vpack.c.bf16 %v375, %v374
  %v431 = vpack.c.bf16 %v377, %v376
  %v432 = vpack.c.bf16 %v379, %v378
  %v433 = vpack.c.bf16 %v381, %v380
  %v434 = vpack.c.bf16 %v383, %v382
  %v435 = vpack.c.bf16 %v385, %v384
  %v436 = vpack.c.bf16 %v387, %v386
  %v437 = vpack.c.bf16 %v389, %v388
  %v438 = vpack.c.bf16 %v391, %v390
  %v439 = vpack.c.bf16 %v393, %v392
  %v440 = vpack.c.bf16 %v395, %v394
  %v441 = vpack.c.bf16 %v397, %v396
  %v442 = vpack.c.bf16 %v399, %v398
  %v443 = vpack.c.bf16 %v401, %v400
  %v444 = vpack.c.bf16 %v403, %v402
  %v445 = vpack.c.bf16 %v405, %v404
  %v446 = vpack.c.bf16 %v407, %v406
  %v447 = vpack.c.bf16 %v409, %v408
  %v448 = vpack.c.bf16 %v411, %v410
  %v449 = vpack.c.bf16 %v413, %v412
  %v450 = vpack.c.bf16 %v415, %v414
  %v451 = vpack.c.bf16 %v417, %v416
  %v452 = vpack.c.bf16 %v419, %v418
  %v453 = vpack.c.bf16 %v421, %v420
  %v454 = vld [vmem:[#allocation2] sm:$0xff]
  %v455 = vld [vmem:[#allocation2 + $0x8] sm:$0xff]
  %v456 = vld [vmem:[#allocation2 + $0x10] sm:$0xff]
  %v457 = vld [vmem:[#allocation2 + $0x18] sm:$0xff]
  %v458 = vld [vmem:[#allocation2 + $0x20] sm:$0xff]
  %v459 = vld [vmem:[#allocation2 + $0x28] sm:$0xff]
  %v460 = vld [vmem:[#allocation2 + $0x30] sm:$0xff]
  %v461 = vld [vmem:[#allocation2 + $0x38] sm:$0xff]
  %v462 = vld [vmem:[#allocation2 + $0x40] sm:$0xff]
  %v463 = vld [vmem:[#allocation2 + $0x48] sm:$0xff]
  %v464 = vld [vmem:[#allocation2 + $0x50] sm:$0xff]
  %v465 = vld [vmem:[#allocation2 + $0x58] sm:$0xff]
  %v466 = vld [vmem:[#allocation2 + $0x60] sm:$0xff]
  %v467 = vld [vmem:[#allocation2 + $0x68] sm:$0xff]
  %v468 = vld [vmem:[#allocation2 + $0x70] sm:$0xff]
  %v469 = vld [vmem:[#allocation2 + $0x78] sm:$0xff]
  %v470 = vld [vmem:[#allocation2 + $0x80] sm:$0xff]
  %v471 = vld [vmem:[#allocation2 + $0x88] sm:$0xff]
  %v472 = vld [vmem:[#allocation2 + $0x90] sm:$0xff]
  %v473 = vld [vmem:[#allocation2 + $0x98] sm:$0xff]
  %v474 = vld [vmem:[#allocation2 + $0xa0] sm:$0xff]
  %v475 = vld [vmem:[#allocation2 + $0xa8] sm:$0xff]
  %v476 = vld [vmem:[#allocation2 + $0xb0] sm:$0xff]
  %v477 = vld [vmem:[#allocation2 + $0xb8] sm:$0xff]
  %v478 = vld [vmem:[#allocation2 + $0xc0] sm:$0xff]
  %v479 = vld [vmem:[#allocation2 + $0xc8] sm:$0xff]
  %v480 = vld [vmem:[#allocation2 + $0xd0] sm:$0xff]
  %v481 = vld [vmem:[#allocation2 + $0xd8] sm:$0xff]
  %v482 = vld [vmem:[#allocation2 + $0xe0] sm:$0xff]
  %v483 = vld [vmem:[#allocation2 + $0xe8] sm:$0xff]
  %v484 = vld [vmem:[#allocation2 + $0xf0] sm:$0xff]
  %v485 = vld [vmem:[#allocation2 + $0xf8] sm:$0xff]
  %v486 = vld [vmem:[#allocation2 + $0x100] sm:$0xff]
  %v487 = vld [vmem:[#allocation2 + $0x108] sm:$0xff]
  %v488 = vld [vmem:[#allocation2 + $0x110] sm:$0xff]
  %v489 = vld [vmem:[#allocation2 + $0x118] sm:$0xff]
  %v490 = vld [vmem:[#allocation2 + $0x120] sm:$0xff]
  %v491 = vld [vmem:[#allocation2 + $0x128] sm:$0xff]
  %v492 = vld [vmem:[#allocation2 + $0x130] sm:$0xff]
  %v493 = vld [vmem:[#allocation2 + $0x138] sm:$0xff]
  %v494 = vld [vmem:[#allocation2 + $0x140] sm:$0xff]
  %v495 = vld [vmem:[#allocation2 + $0x148] sm:$0xff]
  %v496 = vld [vmem:[#allocation2 + $0x150] sm:$0xff]
  %v497 = vld [vmem:[#allocation2 + $0x158] sm:$0xff]
  %v498 = vld [vmem:[#allocation2 + $0x160] sm:$0xff]
  %v499 = vld [vmem:[#allocation2 + $0x168] sm:$0xff]
  %v500 = vld [vmem:[#allocation2 + $0x170] sm:$0xff]
  %v501 = vld [vmem:[#allocation2 + $0x178] sm:$0xff]
  %v502 = vld [vmem:[#allocation2 + $0x180] sm:$0xff]
  %v503 = vld [vmem:[#allocation2 + $0x188] sm:$0xff]
  %v504 = vld [vmem:[#allocation2 + $0x190] sm:$0xff]
  %v505 = vld [vmem:[#allocation2 + $0x198] sm:$0xff]
  %v506 = vld [vmem:[#allocation2 + $0x1a0] sm:$0xff]
  %v507 = vld [vmem:[#allocation2 + $0x1a8] sm:$0xff]
  %v508 = vld [vmem:[#allocation2 + $0x1b0] sm:$0xff]
  %v509 = vld [vmem:[#allocation2 + $0x1b8] sm:$0xff]
  %v510 = vld [vmem:[#allocation2 + $0x1c0] sm:$0xff]
  %v511 = vld [vmem:[#allocation2 + $0x1c8] sm:$0xff]
  %v512 = vld [vmem:[#allocation2 + $0x1d0] sm:$0xff]
  %v513 = vld [vmem:[#allocation2 + $0x1d8] sm:$0xff]
  %v514 = vld [vmem:[#allocation2 + $0x1e0] sm:$0xff]
  %v515 = vld [vmem:[#allocation2 + $0x1e8] sm:$0xff]
  %v516 = vld [vmem:[#allocation2 + $0x1f0] sm:$0xff]
  %v517 = vld [vmem:[#allocation2 + $0x1f8] sm:$0xff]
  %v518 = vld [vmem:[%s3] sm:$0xf]
  %v519 = vld [vmem:[%s3 + $0x4] sm:$0xf]
  %v520 = vld [vmem:[%s3 + $0x8] sm:$0xf]
  %v521 = vld [vmem:[%s3 + $0xc] sm:$0xf]
  %v522 = vld [vmem:[%s3 + $0x10] sm:$0xf]
  %v523 = vld [vmem:[%s3 + $0x14] sm:$0xf]
  %v524 = vld [vmem:[%s3 + $0x18] sm:$0xf]
  %v525 = vld [vmem:[%s3 + $0x1c] sm:$0xf]
  %v526 = vld [vmem:[%s3 + $0x20] sm:$0xf]
  %v527 = vld [vmem:[%s3 + $0x24] sm:$0xf]
  %v528 = vld [vmem:[%s3 + $0x28] sm:$0xf]
  %v529 = vld [vmem:[%s3 + $0x2c] sm:$0xf]
  %v530 = vld [vmem:[%s3 + $0x30] sm:$0xf]
  %v531 = vld [vmem:[%s3 + $0x34] sm:$0xf]
  %v532 = vld [vmem:[%s3 + $0x38] sm:$0xf]
  %v533 = vld [vmem:[%s3 + $0x3c] sm:$0xf]
  %v550 = vunpack.c.l.b16 %v518
  %v551 = vunpack.c.l.b16 %v519
  %v552 = vunpack.c.l.b16 %v520
  %v553 = vunpack.c.l.b16 %v521
  %v554 = vunpack.c.l.b16 %v522
  %v555 = vunpack.c.l.b16 %v523
  %v556 = vunpack.c.l.b16 %v524
  %v557 = vunpack.c.l.b16 %v525
  %v558 = vunpack.c.l.b16 %v526
  %v559 = vunpack.c.l.b16 %v527
  %v560 = vunpack.c.l.b16 %v528
  %v561 = vunpack.c.l.b16 %v529
  %v562 = vunpack.c.l.b16 %v530
  %v563 = vunpack.c.l.b16 %v531
  %v564 = vunpack.c.l.b16 %v532
  %v565 = vunpack.c.l.b16 %v533
  %v566 = vpack.c.b16 %v551, %v550
  %v567 = vpack.c.b16 %v553, %v552
  %v568 = vpack.c.b16 %v555, %v554
  %v569 = vpack.c.b16 %v557, %v556
  %v570 = vpack.c.b16 %v559, %v558
  %v571 = vpack.c.b16 %v561, %v560
  %v572 = vpack.c.b16 %v563, %v562
  %v573 = vpack.c.b16 %v565, %v564
  %582 = vmatprep.subr.bf16.mxu0 0
  %583 = vmatpush1.bf16.msra.mxu0 %v566
  %584 = vmatprep.subr.bf16.mxu0 0
  %585 = vmatpush1.bf16.msra.mxu0 %v567
  %586 = vmatprep.subr.bf16.mxu0 0
  %587 = vmatpush1.bf16.msra.mxu0 %v568
  %588 = vmatprep.subr.bf16.mxu0 0
  %589 = vmatpush1.bf16.msra.mxu0 %v569
  %590 = vmatprep.subr.bf16.mxu0 0
  %591 = vmatpush1.bf16.msra.mxu0 %v570
  %592 = vmatprep.subr.bf16.mxu0 0
  %593 = vmatpush1.bf16.msra.mxu0 %v571
  %594 = vmatprep.subr.bf16.mxu0 0
  %595 = vmatpush1.bf16.msra.mxu0 %v572
  %596 = vmatprep.subr.bf16.mxu0 0
  %597 = vmatpush1.bf16.msra.mxu0 %v573
  %598 = vmatprep.subr.bf16.mxu0 0
  %599 = vmatpush1.bf16.msra.mxu0 0
  %600 = vmatprep.subr.bf16.mxu0 0
  %601 = vmatpush1.bf16.msra.mxu0 0
  %602 = vmatprep.subr.bf16.mxu0 0
  %603 = vmatpush1.bf16.msra.mxu0 0
  %604 = vmatprep.subr.bf16.mxu0 0
  %605 = vmatpush1.bf16.msra.mxu0 0
  %606 = vmatprep.subr.bf16.mxu0 0
  %607 = vmatpush1.bf16.msra.mxu0 0
  %608 = vmatprep.subr.bf16.mxu0 0
  %609 = vmatpush1.bf16.msra.mxu0 0
  %610 = vmatprep.subr.bf16.mxu0 0
  %611 = vmatpush1.bf16.msra.mxu0 0
  %612 = vmatprep.subr.bf16.mxu0 0
  %613 = vmatpush1.bf16.msra.mxu0 0
  %614 = vmatprep.mubr.bf16.mxu0 0
  %615 = vmatmul.mubr.bf16.gmra.mrb[0].mxu0 %v422
  %v616 = vpop.f32.mrb[0].mxu0
  %v617 = vadd.f32 0.0, %v616
  %v618 = vpop.f32.mrb[0].mxu0
  %v619 = vpop.f32.mrb[0].mxu0
  %v620 = vadd.f32 0.0, %v619
  %v621 = vpop.f32.mrb[0].mxu0
  %622 = vmatprep.mubr.bf16.mxu0 0
  %623 = vmatmul.mubr.bf16.gmra.mrb[0].mxu0 %v423
  %v624 = vpop.f32.mrb[0].mxu0
  %v625 = vadd.f32 0.0, %v624
  %v626 = vpop.f32.mrb[0].mxu0
  %v627 = vpop.f32.mrb[0].mxu0
  %v628 = vadd.f32 0.0, %v627
  %v629 = vpop.f32.mrb[0].mxu0
  %630 = vmatprep.mubr.bf16.mxu0 0
  %631 = vmatmul.mubr.bf16.gmra.mrb[0].mxu0 %v424
  %v632 = vpop.f32.mrb[0].mxu0
  %v633 = vadd.f32 0.0, %v632
  %v634 = vpop.f32.mrb[0].mxu0
  %v635 = vpop.f32.mrb[0].mxu0
  %v636 = vadd.f32 0.0, %v635
  %v637 = vpop.f32.mrb[0].mxu0
  %638 = vmatprep.mubr.bf16.mxu0 0
  %639 = vmatmul.mubr.bf16.gmra.mrb[0].mxu0 %v425
  %v640 = vpop.f32.mrb[0].mxu0
  %v641 = vadd.f32 0.0, %v640
  %v642 = vpop.f32.mrb[0].mxu0
  %v643 = vpop.f32.mrb[0].mxu0
  %v644 = vadd.f32 0.0, %v643
  %v645 = vpop.f32.mrb[0].mxu0
  %646 = vmatprep.mubr.bf16.mxu0 0
  %647 = vmatmul.mubr.bf16.gmra.mrb[0].mxu0 %v426
  %v648 = vpop.f32.mrb[0].mxu0
  %v649 = vadd.f32 0.0, %v648
  %v650 = vpop.f32.mrb[0].mxu0
  %v651 = vpop.f32.mrb[0].mxu0
  %v652 = vadd.f32 0.0, %v651
  %v653 = vpop.f32.mrb[0].mxu0
  %654 = vmatprep.mubr.bf16.mxu0 0
  %655 = vmatmul.mubr.bf16.gmra.mrb[0].mxu0 %v427
  %v656 = vpop.f32.mrb[0].mxu0
  %v657 = vadd.f32 0.0, %v656
  %v658 = vpop.f32.mrb[0].mxu0
  %v659 = vpop.f32.mrb[0].mxu0
  %v660 = vadd.f32 0.0, %v659
  %v661 = vpop.f32.mrb[0].mxu0
  %662 = vmatprep.mubr.bf16.mxu0 0
  %663 = vmatmul.mubr.bf16.gmra.mrb[0].mxu0 %v428
  %v664 = vpop.f32.mrb[0].mxu0
  %v665 = vadd.f32 0.0, %v664
  %v666 = vpop.f32.mrb[0].mxu0
  %v667 = vpop.f32.mrb[0].mxu0
  %v668 = vadd.f32 0.0, %v667
  %v669 = vpop.f32.mrb[0].mxu0
  %670 = vmatprep.mubr.bf16.mxu0 0
  %671 = vmatmul.mubr.bf16.gmra.mrb[0].mxu0 %v429
  %v672 = vpop.f32.mrb[0].mxu0
  %v673 = vadd.f32 0.0, %v672
  %v674 = vpop.f32.mrb[0].mxu0
  %v675 = vpop.f32.mrb[0].mxu0
  %v676 = vadd.f32 0.0, %v675
  %v677 = vpop.f32.mrb[0].mxu0
  %678 = vmatprep.mubr.bf16.mxu0 0
  %679 = vmatmul.mubr.bf16.gmra.mrb[0].mxu0 %v430
  %v680 = vpop.f32.mrb[0].mxu0
  %v681 = vadd.f32 0.0, %v680
  %v682 = vpop.f32.mrb[0].mxu0
  %v683 = vpop.f32.mrb[0].mxu0
  %v684 = vadd.f32 0.0, %v683
  %v685 = vpop.f32.mrb[0].mxu0
  %686 = vmatprep.mubr.bf16.mxu0 0
  %687 = vmatmul.mubr.bf16.gmra.mrb[0].mxu0 %v431
  %v688 = vpop.f32.mrb[0].mxu0
  %v689 = vadd.f32 0.0, %v688
  %v690 = vpop.f32.mrb[0].mxu0
  %v691 = vpop.f32.mrb[0].mxu0
  %v692 = vadd.f32 0.0, %v691
  %v693 = vpop.f32.mrb[0].mxu0
  %694 = vmatprep.mubr.bf16.mxu0 0
  %695 = vmatmul.mubr.bf16.gmra.mrb[0].mxu0 %v432
  %v696 = vpop.f32.mrb[0].mxu0
  %v697 = vadd.f32 0.0, %v696
  %v698 = vpop.f32.mrb[0].mxu0
  %v699 = vpop.f32.mrb[0].mxu0
  %v700 = vadd.f32 0.0, %v699
  %v701 = vpop.f32.mrb[0].mxu0
  %702 = vmatprep.mubr.bf16.mxu0 0
  %703 = vmatmul.mubr.bf16.gmra.mrb[0].mxu0 %v433
  %v704 = vpop.f32.mrb[0].mxu0
  %v705 = vadd.f32 0.0, %v704
  %v706 = vpop.f32.mrb[0].mxu0
  %v707 = vpop.f32.mrb[0].mxu0
  %v708 = vadd.f32 0.0, %v707
  %v709 = vpop.f32.mrb[0].mxu0
  %710 = vmatprep.mubr.bf16.mxu0 0
  %711 = vmatmul.mubr.bf16.gmra.mrb[0].mxu0 %v434
  %v712 = vpop.f32.mrb[0].mxu0
  %v713 = vadd.f32 0.0, %v712
  %v714 = vpop.f32.mrb[0].mxu0
  %v715 = vpop.f32.mrb[0].mxu0
  %v716 = vadd.f32 0.0, %v715
  %v717 = vpop.f32.mrb[0].mxu0
  %718 = vmatprep.mubr.bf16.mxu0 0
  %719 = vmatmul.mubr.bf16.gmra.mrb[0].mxu0 %v435
  %v720 = vpop.f32.mrb[0].mxu0
  %v721 = vadd.f32 0.0, %v720
  %v722 = vpop.f32.mrb[0].mxu0
  %v723 = vpop.f32.mrb[0].mxu0
  %v724 = vadd.f32 0.0, %v723
  %v725 = vpop.f32.mrb[0].mxu0
  %726 = vmatprep.mubr.bf16.mxu0 0
  %727 = vmatmul.mubr.bf16.gmra.mrb[0].mxu0 %v436
  %v728 = vpop.f32.mrb[0].mxu0
  %v729 = vadd.f32 0.0, %v728
  %v730 = vpop.f32.mrb[0].mxu0
  %v731 = vpop.f32.mrb[0].mxu0
  %v732 = vadd.f32 0.0, %v731
  %v733 = vpop.f32.mrb[0].mxu0
  %734 = vmatprep.mubr.bf16.mxu0 0
  %735 = vmatmul.mubr.bf16.gmra.mrb[0].mxu0 %v437
  %v736 = vpop.f32.mrb[0].mxu0
  %v737 = vadd.f32 0.0, %v736
  %v738 = vpop.f32.mrb[0].mxu0
  %v739 = vpop.f32.mrb[0].mxu0
  %v740 = vadd.f32 0.0, %v739
  %v741 = vpop.f32.mrb[0].mxu0
  %742 = vmatprep.mubr.bf16.mxu0 0
  %743 = vmatmul.mubr.bf16.gmra.mrb[0].mxu0 %v438
  %v744 = vpop.f32.mrb[0].mxu0
  %v745 = vadd.f32 0.0, %v744
  %v746 = vpop.f32.mrb[0].mxu0
  %v747 = vpop.f32.mrb[0].mxu0
  %v748 = vadd.f32 0.0, %v747
  %v749 = vpop.f32.mrb[0].mxu0
  %750 = vmatprep.mubr.bf16.mxu0 0
  %751 = vmatmul.mubr.bf16.gmra.mrb[0].mxu0 %v439
  %v752 = vpop.f32.mrb[0].mxu0
  %v753 = vadd.f32 0.0, %v752
  %v754 = vpop.f32.mrb[0].mxu0
  %v755 = vpop.f32.mrb[0].mxu0
  %v756 = vadd.f32 0.0, %v755
  %v757 = vpop.f32.mrb[0].mxu0
  %758 = vmatprep.mubr.bf16.mxu0 0
  %759 = vmatmul.mubr.bf16.gmra.mrb[0].mxu0 %v440
  %v760 = vpop.f32.mrb[0].mxu0
  %v761 = vadd.f32 0.0, %v760
  %v762 = vpop.f32.mrb[0].mxu0
  %v763 = vpop.f32.mrb[0].mxu0
  %v764 = vadd.f32 0.0, %v763
  %v765 = vpop.f32.mrb[0].mxu0
  %766 = vmatprep.mubr.bf16.mxu0 0
  %767 = vmatmul.mubr.bf16.gmra.mrb[0].mxu0 %v441
  %v768 = vpop.f32.mrb[0].mxu0
  %v769 = vadd.f32 0.0, %v768
  %v770 = vpop.f32.mrb[0].mxu0
  %v771 = vpop.f32.mrb[0].mxu0
  %v772 = vadd.f32 0.0, %v771
  %v773 = vpop.f32.mrb[0].mxu0
  %774 = vmatprep.mubr.bf16.mxu0 0
  %775 = vmatmul.mubr.bf16.gmra.mrb[0].mxu0 %v442
  %v776 = vpop.f32.mrb[0].mxu0
  %v777 = vadd.f32 0.0, %v776
  %v778 = vpop.f32.mrb[0].mxu0
  %v779 = vpop.f32.mrb[0].mxu0
  %v780 = vadd.f32 0.0, %v779
  %v781 = vpop.f32.mrb[0].mxu0
  %782 = vmatprep.mubr.bf16.mxu0 0
  %783 = vmatmul.mubr.bf16.gmra.mrb[0].mxu0 %v443
  %v784 = vpop.f32.mrb[0].mxu0
  %v785 = vadd.f32 0.0, %v784
  %v786 = vpop.f32.mrb[0].mxu0
  %v787 = vpop.f32.mrb[0].mxu0
  %v788 = vadd.f32 0.0, %v787
  %v789 = vpop.f32.mrb[0].mxu0
  %790 = vmatprep.mubr.bf16.mxu0 0
  %791 = vmatmul.mubr.bf16.gmra.mrb[0].mxu0 %v444
  %v792 = vpop.f32.mrb[0].mxu0
  %v793 = vadd.f32 0.0, %v792
  %v794 = vpop.f32.mrb[0].mxu0
  %v795 = vpop.f32.mrb[0].mxu0
  %v796 = vadd.f32 0.0, %v795
  %v797 = vpop.f32.mrb[0].mxu0
  %798 = vmatprep.mubr.bf16.mxu0 0
  %799 = vmatmul.mubr.bf16.gmra.mrb[0].mxu0 %v445
  %v800 = vpop.f32.mrb[0].mxu0
  %v801 = vadd.f32 0.0, %v800
  %v802 = vpop.f32.mrb[0].mxu0
  %v803 = vpop.f32.mrb[0].mxu0
  %v804 = vadd.f32 0.0, %v803
  %v805 = vpop.f32.mrb[0].mxu0
  %806 = vmatprep.mubr.bf16.mxu0 0
  %807 = vmatmul.mubr.bf16.gmra.mrb[0].mxu0 %v446
  %v808 = vpop.f32.mrb[0].mxu0
  %v809 = vadd.f32 0.0, %v808
  %v810 = vpop.f32.mrb[0].mxu0
  %v811 = vpop.f32.mrb[0].mxu0
  %v812 = vadd.f32 0.0, %v811
  %v813 = vpop.f32.mrb[0].mxu0
  %814 = vmatprep.mubr.bf16.mxu0 0
  %815 = vmatmul.mubr.bf16.gmra.mrb[0].mxu0 %v447
  %v816 = vpop.f32.mrb[0].mxu0
  %v817 = vadd.f32 0.0, %v816
  %v818 = vpop.f32.mrb[0].mxu0
  %v819 = vpop.f32.mrb[0].mxu0
  %v820 = vadd.f32 0.0, %v819
  %v821 = vpop.f32.mrb[0].mxu0
  %822 = vmatprep.mubr.bf16.mxu0 0
  %823 = vmatmul.mubr.bf16.gmra.mrb[0].mxu0 %v448
  %v824 = vpop.f32.mrb[0].mxu0
  %v825 = vadd.f32 0.0, %v824
  %v826 = vpop.f32.mrb[0].mxu0
  %v827 = vpop.f32.mrb[0].mxu0
  %v828 = vadd.f32 0.0, %v827
  %v829 = vpop.f32.mrb[0].mxu0
  %830 = vmatprep.mubr.bf16.mxu0 0
  %831 = vmatmul.mubr.bf16.gmra.mrb[0].mxu0 %v449
  %v832 = vpop.f32.mrb[0].mxu0
  %v833 = vadd.f32 0.0, %v832
  %v834 = vpop.f32.mrb[0].mxu0
  %v835 = vpop.f32.mrb[0].mxu0
  %v836 = vadd.f32 0.0, %v835
  %v837 = vpop.f32.mrb[0].mxu0
  %838 = vmatprep.mubr.bf16.mxu0 0
  %839 = vmatmul.mubr.bf16.gmra.mrb[0].mxu0 %v450
  %v840 = vpop.f32.mrb[0].mxu0
  %v841 = vadd.f32 0.0, %v840
  %v842 = vpop.f32.mrb[0].mxu0
  %v843 = vpop.f32.mrb[0].mxu0
  %v844 = vadd.f32 0.0, %v843
  %v845 = vpop.f32.mrb[0].mxu0
  %846 = vmatprep.mubr.bf16.mxu0 0
  %847 = vmatmul.mubr.bf16.gmra.mrb[0].mxu0 %v451
  %v848 = vpop.f32.mrb[0].mxu0
  %v849 = vadd.f32 0.0, %v848
  %v850 = vpop.f32.mrb[0].mxu0
  %v851 = vpop.f32.mrb[0].mxu0
  %v852 = vadd.f32 0.0, %v851
  %v853 = vpop.f32.mrb[0].mxu0
  %854 = vmatprep.mubr.bf16.mxu0 0
  %855 = vmatmul.mubr.bf16.gmra.mrb[0].mxu0 %v452
  %v856 = vpop.f32.mrb[0].mxu0
  %v857 = vadd.f32 0.0, %v856
  %v858 = vpop.f32.mrb[0].mxu0
  %v859 = vpop.f32.mrb[0].mxu0
  %v860 = vadd.f32 0.0, %v859
  %v861 = vpop.f32.mrb[0].mxu0
  %862 = vmatprep.mubr.bf16.mxu0 0
  %863 = vmatmul.mubr.bf16.gmra.mrb[0].mxu0 %v453
  %v864 = vpop.f32.mrb[0].mxu0
  %v865 = vadd.f32 0.0, %v864
  %v866 = vpop.f32.mrb[0].mxu0
  %v867 = vpop.f32.mrb[0].mxu0
  %v868 = vadd.f32 0.0, %v867
  %v869 = vpop.f32.mrb[0].mxu0
  %870 = vdwg.mxu0
  %v871 = vadd.f32 %v454, %v617
  %v872 = vadd.f32 %v455, %v620
  %v873 = vadd.f32 %v456, %v625
  %v874 = vadd.f32 %v457, %v628
  %v875 = vadd.f32 %v458, %v633
  %v876 = vadd.f32 %v459, %v636
  %v877 = vadd.f32 %v460, %v641
  %v878 = vadd.f32 %v461, %v644
  %v879 = vadd.f32 %v462, %v649
  %v880 = vadd.f32 %v463, %v652
  %v881 = vadd.f32 %v464, %v657
  %v882 = vadd.f32 %v465, %v660
  %v883 = vadd.f32 %v466, %v665
  %v884 = vadd.f32 %v467, %v668
  %v885 = vadd.f32 %v468, %v673
  %v886 = vadd.f32 %v469, %v676
  %v887 = vadd.f32 %v470, %v681
  %v888 = vadd.f32 %v471, %v684
  %v889 = vadd.f32 %v472, %v689
  %v890 = vadd.f32 %v473, %v692
  %v891 = vadd.f32 %v474, %v697
  %v892 = vadd.f32 %v475, %v700
  %v893 = vadd.f32 %v476, %v705
  %v894 = vadd.f32 %v477, %v708
  %v895 = vadd.f32 %v478, %v713
  %v896 = vadd.f32 %v479, %v716
  %v897 = vadd.f32 %v480, %v721
  %v898 = vadd.f32 %v481, %v724
  %v899 = vadd.f32 %v482, %v729
  %v900 = vadd.f32 %v483, %v732
  %v901 = vadd.f32 %v484, %v737
  %v902 = vadd.f32 %v485, %v740
  %v903 = vadd.f32 %v486, %v745
  %v904 = vadd.f32 %v487, %v748
  %v905 = vadd.f32 %v488, %v753
  %v906 = vadd.f32 %v489, %v756
  %v907 = vadd.f32 %v490, %v761
  %v908 = vadd.f32 %v491, %v764
  %v909 = vadd.f32 %v492, %v769
  %v910 = vadd.f32 %v493, %v772
  %v911 = vadd.f32 %v494, %v777
  %v912 = vadd.f32 %v495, %v780
  %v913 = vadd.f32 %v496, %v785
  %v914 = vadd.f32 %v497, %v788
  %v915 = vadd.f32 %v498, %v793
  %v916 = vadd.f32 %v499, %v796
  %v917 = vadd.f32 %v500, %v801
  %v918 = vadd.f32 %v501, %v804
  %v919 = vadd.f32 %v502, %v809
  %v920 = vadd.f32 %v503, %v812
  %v921 = vadd.f32 %v504, %v817
  %v922 = vadd.f32 %v505, %v820
  %v923 = vadd.f32 %v506, %v825
  %v924 = vadd.f32 %v507, %v828
  %v925 = vadd.f32 %v508, %v833
  %v926 = vadd.f32 %v509, %v836
  %v927 = vadd.f32 %v510, %v841
  %v928 = vadd.f32 %v511, %v844
  %v929 = vadd.f32 %v512, %v849
  %v930 = vadd.f32 %v513, %v852
  %v931 = vadd.f32 %v514, %v857
  %v932 = vadd.f32 %v515, %v860
  %v933 = vadd.f32 %v516, %v865
  %v934 = vadd.f32 %v517, %v868
  %935 = vst [vmem:[#allocation2] sm:$0xff] %v871
  %936 = vst [vmem:[#allocation2 + $0x8] sm:$0xff] %v872
  %937 = vst [vmem:[#allocation2 + $0x10] sm:$0xff] %v873
  %938 = vst [vmem:[#allocation2 + $0x18] sm:$0xff] %v874
  %939 = vst [vmem:[#allocation2 + $0x20] sm:$0xff] %v875
  %940 = vst [vmem:[#allocation2 + $0x28] sm:$0xff] %v876
  %941 = vst [vmem:[#allocation2 + $0x30] sm:$0xff] %v877
  %942 = vst [vmem:[#allocation2 + $0x38] sm:$0xff] %v878
  %943 = vst [vmem:[#allocation2 + $0x40] sm:$0xff] %v879
  %944 = vst [vmem:[#allocation2 + $0x48] sm:$0xff] %v880
  %945 = vst [vmem:[#allocation2 + $0x50] sm:$0xff] %v881
  %946 = vst [vmem:[#allocation2 + $0x58] sm:$0xff] %v882
  %947 = vst [vmem:[#allocation2 + $0x60] sm:$0xff] %v883
  %948 = vst [vmem:[#allocation2 + $0x68] sm:$0xff] %v884
  %949 = vst [vmem:[#allocation2 + $0x70] sm:$0xff] %v885
  %950 = vst [vmem:[#allocation2 + $0x78] sm:$0xff] %v886
  %951 = vst [vmem:[#allocation2 + $0x80] sm:$0xff] %v887
  %952 = vst [vmem:[#allocation2 + $0x88] sm:$0xff] %v888
  %953 = vst [vmem:[#allocation2 + $0x90] sm:$0xff] %v889
  %954 = vst [vmem:[#allocation2 + $0x98] sm:$0xff] %v890
  %955 = vst [vmem:[#allocation2 + $0xa0] sm:$0xff] %v891
  %956 = vst [vmem:[#allocation2 + $0xa8] sm:$0xff] %v892
  %957 = vst [vmem:[#allocation2 + $0xb0] sm:$0xff] %v893
  %958 = vst [vmem:[#allocation2 + $0xb8] sm:$0xff] %v894
  %959 = vst [vmem:[#allocation2 + $0xc0] sm:$0xff] %v895
  %960 = vst [vmem:[#allocation2 + $0xc8] sm:$0xff] %v896
  %961 = vst [vmem:[#allocation2 + $0xd0] sm:$0xff] %v897
  %962 = vst [vmem:[#allocation2 + $0xd8] sm:$0xff] %v898
  %963 = vst [vmem:[#allocation2 + $0xe0] sm:$0xff] %v899
  %964 = vst [vmem:[#allocation2 + $0xe8] sm:$0xff] %v900
  %965 = vst [vmem:[#allocation2 + $0xf0] sm:$0xff] %v901
  %966 = vst [vmem:[#allocation2 + $0xf8] sm:$0xff] %v902
  %967 = vst [vmem:[#allocation2 + $0x100] sm:$0xff] %v903
  %968 = vst [vmem:[#allocation2 + $0x108] sm:$0xff] %v904
  %969 = vst [vmem:[#allocation2 + $0x110] sm:$0xff] %v905
  %970 = vst [vmem:[#allocation2 + $0x118] sm:$0xff] %v906
  %971 = vst [vmem:[#allocation2 + $0x120] sm:$0xff] %v907
  %972 = vst [vmem:[#allocation2 + $0x128] sm:$0xff] %v908
  %973 = vst [vmem:[#allocation2 + $0x130] sm:$0xff] %v909
  %974 = vst [vmem:[#allocation2 + $0x138] sm:$0xff] %v910
  %975 = vst [vmem:[#allocation2 + $0x140] sm:$0xff] %v911
  %976 = vst [vmem:[#allocation2 + $0x148] sm:$0xff] %v912
  %977 = vst [vmem:[#allocation2 + $0x150] sm:$0xff] %v913
  %978 = vst [vmem:[#allocation2 + $0x158] sm:$0xff] %v914
  %979 = vst [vmem:[#allocation2 + $0x160] sm:$0xff] %v915
  %980 = vst [vmem:[#allocation2 + $0x168] sm:$0xff] %v916
  %981 = vst [vmem:[#allocation2 + $0x170] sm:$0xff] %v917
  %982 = vst [vmem:[#allocation2 + $0x178] sm:$0xff] %v918
  %983 = vst [vmem:[#allocation2 + $0x180] sm:$0xff] %v919
  %984 = vst [vmem:[#allocation2 + $0x188] sm:$0xff] %v920
  %985 = vst [vmem:[#allocation2 + $0x190] sm:$0xff] %v921
  %986 = vst [vmem:[#allocation2 + $0x198] sm:$0xff] %v922
  %987 = vst [vmem:[#allocation2 + $0x1a0] sm:$0xff] %v923
  %988 = vst [vmem:[#allocation2 + $0x1a8] sm:$0xff] %v924
  %989 = vst [vmem:[#allocation2 + $0x1b0] sm:$0xff] %v925
  %990 = vst [vmem:[#allocation2 + $0x1b8] sm:$0xff] %v926
  %991 = vst [vmem:[#allocation2 + $0x1c0] sm:$0xff] %v927
  %992 = vst [vmem:[#allocation2 + $0x1c8] sm:$0xff] %v928
  %993 = vst [vmem:[#allocation2 + $0x1d0] sm:$0xff] %v929
  %994 = vst [vmem:[#allocation2 + $0x1d8] sm:$0xff] %v930
  %995 = vst [vmem:[#allocation2 + $0x1e0] sm:$0xff] %v931
  %996 = vst [vmem:[#allocation2 + $0x1e8] sm:$0xff] %v932
  %997 = vst [vmem:[#allocation2 + $0x1f0] sm:$0xff] %v933
  %998 = vst [vmem:[#allocation2 + $0x1f8] sm:$0xff] %v934
  // Predicated region
  $region22: #{res_bottleneck_forward.7} parent=0 // pred_check
    %p999 = pneg %p20
  $region23: #{res_bottleneck_forward.7} parent=0 // pred_check_branch
    %1001 = sbr.rel (%p999) target = $region25
  $region24: #{res_bottleneck_forward.7} parent=0 // pred_region
    %v1002 = vld [vmem:[#allocation2] sm:$0xff]
    %v1003 = vld [vmem:[#allocation2 + $0x8] sm:$0xff]
    %v1004 = vld [vmem:[#allocation2 + $0x10] sm:$0xff]
    %v1005 = vld [vmem:[#allocation2 + $0x18] sm:$0xff]
    %v1006 = vld [vmem:[#allocation2 + $0x20] sm:$0xff]
    %v1007 = vld [vmem:[#allocation2 + $0x28] sm:$0xff]
    %v1008 = vld [vmem:[#allocation2 + $0x30] sm:$0xff]
    %v1009 = vld [vmem:[#allocation2 + $0x38] sm:$0xff]
    %v1010 = vld [vmem:[#allocation2 + $0x40] sm:$0xff]
    %v1011 = vld [vmem:[#allocation2 + $0x48] sm:$0xff]
    %v1012 = vld [vmem:[#allocation2 + $0x50] sm:$0xff]
    %v1013 = vld [vmem:[#allocation2 + $0x58] sm:$0xff]
    %v1014 = vld [vmem:[#allocation2 + $0x60] sm:$0xff]
    %v1015 = vld [vmem:[#allocation2 + $0x68] sm:$0xff]
    %v1016 = vld [vmem:[#allocation2 + $0x70] sm:$0xff]
    %v1017 = vld [vmem:[#allocation2 + $0x78] sm:$0xff]
    %v1018 = vld [vmem:[#allocation2 + $0x80] sm:$0xff]
    %v1019 = vld [vmem:[#allocation2 + $0x88] sm:$0xff]
    %v1020 = vld [vmem:[#allocation2 + $0x90] sm:$0xff]
    %v1021 = vld [vmem:[#allocation2 + $0x98] sm:$0xff]
    %v1022 = vld [vmem:[#allocation2 + $0xa0] sm:$0xff]
    %v1023 = vld [vmem:[#allocation2 + $0xa8] sm:$0xff]
    %v1024 = vld [vmem:[#allocation2 + $0xb0] sm:$0xff]
    %v1025 = vld [vmem:[#allocation2 + $0xb8] sm:$0xff]
    %v1026 = vld [vmem:[#allocation2 + $0xc0] sm:$0xff]
    %v1027 = vld [vmem:[#allocation2 + $0xc8] sm:$0xff]
    %v1028 = vld [vmem:[#allocation2 + $0xd0] sm:$0xff]
    %v1029 = vld [vmem:[#allocation2 + $0xd8] sm:$0xff]
    %v1030 = vld [vmem:[#allocation2 + $0xe0] sm:$0xff]
    %v1031 = vld [vmem:[#allocation2 + $0xe8] sm:$0xff]
    %v1032 = vld [vmem:[#allocation2 + $0xf0] sm:$0xff]
    %v1033 = vld [vmem:[#allocation2 + $0xf8] sm:$0xff]
    %v1034 = vld [vmem:[#allocation2 + $0x100] sm:$0xff]
    %v1035 = vld [vmem:[#allocation2 + $0x108] sm:$0xff]
    %v1036 = vld [vmem:[#allocation2 + $0x110] sm:$0xff]
    %v1037 = vld [vmem:[#allocation2 + $0x118] sm:$0xff]
    %v1038 = vld [vmem:[#allocation2 + $0x120] sm:$0xff]
    %v1039 = vld [vmem:[#allocation2 + $0x128] sm:$0xff]
    %v1040 = vld [vmem:[#allocation2 + $0x130] sm:$0xff]
    %v1041 = vld [vmem:[#allocation2 + $0x138] sm:$0xff]
    %v1042 = vld [vmem:[#allocation2 + $0x140] sm:$0xff]
    %v1043 = vld [vmem:[#allocation2 + $0x148] sm:$0xff]
    %v1044 = vld [vmem:[#allocation2 + $0x150] sm:$0xff]
    %v1045 = vld [vmem:[#allocation2 + $0x158] sm:$0xff]
    %v1046 = vld [vmem:[#allocation2 + $0x160] sm:$0xff]
    %v1047 = vld [vmem:[#allocation2 + $0x168] sm:$0xff]
    %v1048 = vld [vmem:[#allocation2 + $0x170] sm:$0xff]
    %v1049 = vld [vmem:[#allocation2 + $0x178] sm:$0xff]
    %v1050 = vld [vmem:[#allocation2 + $0x180] sm:$0xff]
    %v1051 = vld [vmem:[#allocation2 + $0x188] sm:$0xff]
    %v1052 = vld [vmem:[#allocation2 + $0x190] sm:$0xff]
    %v1053 = vld [vmem:[#allocation2 + $0x198] sm:$0xff]
    %v1054 = vld [vmem:[#allocation2 + $0x1a0] sm:$0xff]
    %v1055 = vld [vmem:[#allocation2 + $0x1a8] sm:$0xff]
    %v1056 = vld [vmem:[#allocation2 + $0x1b0] sm:$0xff]
    %v1057 = vld [vmem:[#allocation2 + $0x1b8] sm:$0xff]
    %v1058 = vld [vmem:[#allocation2 + $0x1c0] sm:$0xff]
    %v1059 = vld [vmem:[#allocation2 + $0x1c8] sm:$0xff]
    %v1060 = vld [vmem:[#allocation2 + $0x1d0] sm:$0xff]
    %v1061 = vld [vmem:[#allocation2 + $0x1d8] sm:$0xff]
    %v1062 = vld [vmem:[#allocation2 + $0x1e0] sm:$0xff]
    %v1063 = vld [vmem:[#allocation2 + $0x1e8] sm:$0xff]
    %v1064 = vld [vmem:[#allocation2 + $0x1f0] sm:$0xff]
    %v1065 = vld [vmem:[#allocation2 + $0x1f8] sm:$0xff]
    %v1066 = vpack.c.bf16 %v1003, %v1002
    %v1067 = vpack.c.bf16 %v1005, %v1004
    %v1068 = vpack.c.bf16 %v1007, %v1006
    %v1069 = vpack.c.bf16 %v1009, %v1008
    %v1070 = vpack.c.bf16 %v1011, %v1010
    %v1071 = vpack.c.bf16 %v1013, %v1012
    %v1072 = vpack.c.bf16 %v1015, %v1014
    %v1073 = vpack.c.bf16 %v1017, %v1016
    %v1074 = vpack.c.bf16 %v1019, %v1018
    %v1075 = vpack.c.bf16 %v1021, %v1020
    %v1076 = vpack.c.bf16 %v1023, %v1022
    %v1077 = vpack.c.bf16 %v1025, %v1024
    %v1078 = vpack.c.bf16 %v1027, %v1026
    %v1079 = vpack.c.bf16 %v1029, %v1028
    %v1080 = vpack.c.bf16 %v1031, %v1030
    %v1081 = vpack.c.bf16 %v1033, %v1032
    %v1082 = vpack.c.bf16 %v1035, %v1034
    %v1083 = vpack.c.bf16 %v1037, %v1036
    %v1084 = vpack.c.bf16 %v1039, %v1038
    %v1085 = vpack.c.bf16 %v1041, %v1040
    %v1086 = vpack.c.bf16 %v1043, %v1042
    %v1087 = vpack.c.bf16 %v1045, %v1044
    %v1088 = vpack.c.bf16 %v1047, %v1046
    %v1089 = vpack.c.bf16 %v1049, %v1048
    %v1090 = vpack.c.bf16 %v1051, %v1050
    %v1091 = vpack.c.bf16 %v1053, %v1052
    %v1092 = vpack.c.bf16 %v1055, %v1054
    %v1093 = vpack.c.bf16 %v1057, %v1056
    %v1094 = vpack.c.bf16 %v1059, %v1058
    %v1095 = vpack.c.bf16 %v1061, %v1060
    %v1096 = vpack.c.bf16 %v1063, %v1062
    %v1097 = vpack.c.bf16 %v1065, %v1064
    %v1130 = vunpack.c.l.b16 %v1066
    %v1131 = vunpack.c.h.b16 %v1066
    %v1132 = vunpack.c.l.b16 %v1067
    %v1133 = vunpack.c.h.b16 %v1067
    %v1134 = vunpack.c.l.b16 %v1068
    %v1135 = vunpack.c.h.b16 %v1068
    %v1136 = vunpack.c.l.b16 %v1069
    %v1137 = vunpack.c.h.b16 %v1069
    %v1138 = vunpack.c.l.b16 %v1070
    %v1139 = vunpack.c.h.b16 %v1070
    %v1140 = vunpack.c.l.b16 %v1071
    %v1141 = vunpack.c.h.b16 %v1071
    %v1142 = vunpack.c.l.b16 %v1072
    %v1143 = vunpack.c.h.b16 %v1072
    %v1144 = vunpack.c.l.b16 %v1073
    %v1145 = vunpack.c.h.b16 %v1073
    %v1146 = vunpack.c.l.b16 %v1074
    %v1147 = vunpack.c.h.b16 %v1074
    %v1148 = vunpack.c.l.b16 %v1075
    %v1149 = vunpack.c.h.b16 %v1075
    %v1150 = vunpack.c.l.b16 %v1076
    %v1151 = vunpack.c.h.b16 %v1076
    %v1152 = vunpack.c.l.b16 %v1077
    %v1153 = vunpack.c.h.b16 %v1077
    %v1154 = vunpack.c.l.b16 %v1078
    %v1155 = vunpack.c.h.b16 %v1078
    %v1156 = vunpack.c.l.b16 %v1079
    %v1157 = vunpack.c.h.b16 %v1079
    %v1158 = vunpack.c.l.b16 %v1080
    %v1159 = vunpack.c.h.b16 %v1080
    %v1160 = vunpack.c.l.b16 %v1081
    %v1161 = vunpack.c.h.b16 %v1081
    %v1162 = vunpack.c.l.b16 %v1082
    %v1163 = vunpack.c.h.b16 %v1082
    %v1164 = vunpack.c.l.b16 %v1083
    %v1165 = vunpack.c.h.b16 %v1083
    %v1166 = vunpack.c.l.b16 %v1084
    %v1167 = vunpack.c.h.b16 %v1084
    %v1168 = vunpack.c.l.b16 %v1085
    %v1169 = vunpack.c.h.b16 %v1085
    %v1170 = vunpack.c.l.b16 %v1086
    %v1171 = vunpack.c.h.b16 %v1086
    %v1172 = vunpack.c.l.b16 %v1087
    %v1173 = vunpack.c.h.b16 %v1087
    %v1174 = vunpack.c.l.b16 %v1088
    %v1175 = vunpack.c.h.b16 %v1088
    %v1176 = vunpack.c.l.b16 %v1089
    %v1177 = vunpack.c.h.b16 %v1089
    %v1178 = vunpack.c.l.b16 %v1090
    %v1179 = vunpack.c.h.b16 %v1090
    %v1180 = vunpack.c.l.b16 %v1091
    %v1181 = vunpack.c.h.b16 %v1091
    %v1182 = vunpack.c.l.b16 %v1092
    %v1183 = vunpack.c.h.b16 %v1092
    %v1184 = vunpack.c.l.b16 %v1093
    %v1185 = vunpack.c.h.b16 %v1093
    %v1186 = vunpack.c.l.b16 %v1094
    %v1187 = vunpack.c.h.b16 %v1094
    %v1188 = vunpack.c.l.b16 %v1095
    %v1189 = vunpack.c.h.b16 %v1095
    %v1190 = vunpack.c.l.b16 %v1096
    %v1191 = vunpack.c.h.b16 %v1096
    %v1192 = vunpack.c.l.b16 %v1097
    %v1193 = vunpack.c.h.b16 %v1097
    %v1194 = vpack.c.b16 %v1130, %v1130
    %v1195 = vpack.c.b16 %v1131, %v1131
    %v1196 = vpack.c.b16 %v1132, %v1132
    %v1197 = vpack.c.b16 %v1133, %v1133
    %v1198 = vpack.c.b16 %v1134, %v1134
    %v1199 = vpack.c.b16 %v1135, %v1135
    %v1200 = vpack.c.b16 %v1136, %v1136
    %v1201 = vpack.c.b16 %v1137, %v1137
    %v1202 = vpack.c.b16 %v1138, %v1138
    %v1203 = vpack.c.b16 %v1139, %v1139
    %v1204 = vpack.c.b16 %v1140, %v1140
    %v1205 = vpack.c.b16 %v1141, %v1141
    %v1206 = vpack.c.b16 %v1142, %v1142
    %v1207 = vpack.c.b16 %v1143, %v1143
    %v1208 = vpack.c.b16 %v1144, %v1144
    %v1209 = vpack.c.b16 %v1145, %v1145
    %v1210 = vpack.c.b16 %v1146, %v1146
    %v1211 = vpack.c.b16 %v1147, %v1147
    %v1212 = vpack.c.b16 %v1148, %v1148
    %v1213 = vpack.c.b16 %v1149, %v1149
    %v1214 = vpack.c.b16 %v1150, %v1150
    %v1215 = vpack.c.b16 %v1151, %v1151
    %v1216 = vpack.c.b16 %v1152, %v1152
    %v1217 = vpack.c.b16 %v1153, %v1153
    %v1218 = vpack.c.b16 %v1154, %v1154
    %v1219 = vpack.c.b16 %v1155, %v1155
    %v1220 = vpack.c.b16 %v1156, %v1156
    %v1221 = vpack.c.b16 %v1157, %v1157
    %v1222 = vpack.c.b16 %v1158, %v1158
    %v1223 = vpack.c.b16 %v1159, %v1159
    %v1224 = vpack.c.b16 %v1160, %v1160
    %v1225 = vpack.c.b16 %v1161, %v1161
    %v1226 = vpack.c.b16 %v1162, %v1162
    %v1227 = vpack.c.b16 %v1163, %v1163
    %v1228 = vpack.c.b16 %v1164, %v1164
    %v1229 = vpack.c.b16 %v1165, %v1165
    %v1230 = vpack.c.b16 %v1166, %v1166
    %v1231 = vpack.c.b16 %v1167, %v1167
    %v1232 = vpack.c.b16 %v1168, %v1168
    %v1233 = vpack.c.b16 %v1169, %v1169
    %v1234 = vpack.c.b16 %v1170, %v1170
    %v1235 = vpack.c.b16 %v1171, %v1171
    %v1236 = vpack.c.b16 %v1172, %v1172
    %v1237 = vpack.c.b16 %v1173, %v1173
    %v1238 = vpack.c.b16 %v1174, %v1174
    %v1239 = vpack.c.b16 %v1175, %v1175
    %v1240 = vpack.c.b16 %v1176, %v1176
    %v1241 = vpack.c.b16 %v1177, %v1177
    %v1242 = vpack.c.b16 %v1178, %v1178
    %v1243 = vpack.c.b16 %v1179, %v1179
    %v1244 = vpack.c.b16 %v1180, %v1180
    %v1245 = vpack.c.b16 %v1181, %v1181
    %v1246 = vpack.c.b16 %v1182, %v1182
    %v1247 = vpack.c.b16 %v1183, %v1183
    %v1248 = vpack.c.b16 %v1184, %v1184
    %v1249 = vpack.c.b16 %v1185, %v1185
    %v1250 = vpack.c.b16 %v1186, %v1186
    %v1251 = vpack.c.b16 %v1187, %v1187
    %v1252 = vpack.c.b16 %v1188, %v1188
    %v1253 = vpack.c.b16 %v1189, %v1189
    %v1254 = vpack.c.b16 %v1190, %v1190
    %v1255 = vpack.c.b16 %v1191, %v1191
    %v1256 = vpack.c.b16 %v1192, %v1192
    %v1257 = vpack.c.b16 %v1193, %v1193
    %1322 = vst [vmem:[%s4] sm:$0xf] %v1194
    %1323 = vst [vmem:[%s4 + $0x4] sm:$0xf] %v1195
    %1324 = vst [vmem:[%s4 + $0x8] sm:$0xf] %v1196
    %1325 = vst [vmem:[%s4 + $0xc] sm:$0xf] %v1197
    %1326 = vst [vmem:[%s4 + $0x10] sm:$0xf] %v1198
    %1327 = vst [vmem:[%s4 + $0x14] sm:$0xf] %v1199
    %1328 = vst [vmem:[%s4 + $0x18] sm:$0xf] %v1200
    %1329 = vst [vmem:[%s4 + $0x1c] sm:$0xf] %v1201
    %1330 = vst [vmem:[%s4 + $0x20] sm:$0xf] %v1202
    %1331 = vst [vmem:[%s4 + $0x24] sm:$0xf] %v1203
    %1332 = vst [vmem:[%s4 + $0x28] sm:$0xf] %v1204
    %1333 = vst [vmem:[%s4 + $0x2c] sm:$0xf] %v1205
    %1334 = vst [vmem:[%s4 + $0x30] sm:$0xf] %v1206
    %1335 = vst [vmem:[%s4 + $0x34] sm:$0xf] %v1207
    %1336 = vst [vmem:[%s4 + $0x38] sm:$0xf] %v1208
    %1337 = vst [vmem:[%s4 + $0x3c] sm:$0xf] %v1209
    %1338 = vst [vmem:[%s4 + $0x40] sm:$0xf] %v1210
    %1339 = vst [vmem:[%s4 + $0x44] sm:$0xf] %v1211
    %1340 = vst [vmem:[%s4 + $0x48] sm:$0xf] %v1212
    %1341 = vst [vmem:[%s4 + $0x4c] sm:$0xf] %v1213
    %1342 = vst [vmem:[%s4 + $0x50] sm:$0xf] %v1214
    %1343 = vst [vmem:[%s4 + $0x54] sm:$0xf] %v1215
    %1344 = vst [vmem:[%s4 + $0x58] sm:$0xf] %v1216
    %1345 = vst [vmem:[%s4 + $0x5c] sm:$0xf] %v1217
    %1346 = vst [vmem:[%s4 + $0x60] sm:$0xf] %v1218
    %1347 = vst [vmem:[%s4 + $0x64] sm:$0xf] %v1219
    %1348 = vst [vmem:[%s4 + $0x68] sm:$0xf] %v1220
    %1349 = vst [vmem:[%s4 + $0x6c] sm:$0xf] %v1221
    %1350 = vst [vmem:[%s4 + $0x70] sm:$0xf] %v1222
    %1351 = vst [vmem:[%s4 + $0x74] sm:$0xf] %v1223
    %1352 = vst [vmem:[%s4 + $0x78] sm:$0xf] %v1224
    %1353 = vst [vmem:[%s4 + $0x7c] sm:$0xf] %v1225
    %1354 = vst [vmem:[%s4 + $0x80] sm:$0xf] %v1226
    %1355 = vst [vmem:[%s4 + $0x84] sm:$0xf] %v1227
    %1356 = vst [vmem:[%s4 + $0x88] sm:$0xf] %v1228
    %1357 = vst [vmem:[%s4 + $0x8c] sm:$0xf] %v1229
    %1358 = vst [vmem:[%s4 + $0x90] sm:$0xf] %v1230
    %1359 = vst [vmem:[%s4 + $0x94] sm:$0xf] %v1231
    %1360 = vst [vmem:[%s4 + $0x98] sm:$0xf] %v1232
    %1361 = vst [vmem:[%s4 + $0x9c] sm:$0xf] %v1233
    %1362 = vst [vmem:[%s4 + $0xa0] sm:$0xf] %v1234
    %1363 = vst [vmem:[%s4 + $0xa4] sm:$0xf] %v1235
    %1364 = vst [vmem:[%s4 + $0xa8] sm:$0xf] %v1236
    %1365 = vst [vmem:[%s4 + $0xac] sm:$0xf] %v1237
    %1366 = vst [vmem:[%s4 + $0xb0] sm:$0xf] %v1238
    %1367 = vst [vmem:[%s4 + $0xb4] sm:$0xf] %v1239
    %1368 = vst [vmem:[%s4 + $0xb8] sm:$0xf] %v1240
    %1369 = vst [vmem:[%s4 + $0xbc] sm:$0xf] %v1241
    %1370 = vst [vmem:[%s4 + $0xc0] sm:$0xf] %v1242
    %1371 = vst [vmem:[%s4 + $0xc4] sm:$0xf] %v1243
    %1372 = vst [vmem:[%s4 + $0xc8] sm:$0xf] %v1244
    %1373 = vst [vmem:[%s4 + $0xcc] sm:$0xf] %v1245
    %1374 = vst [vmem:[%s4 + $0xd0] sm:$0xf] %v1246
    %1375 = vst [vmem:[%s4 + $0xd4] sm:$0xf] %v1247
    %1376 = vst [vmem:[%s4 + $0xd8] sm:$0xf] %v1248
    %1377 = vst [vmem:[%s4 + $0xdc] sm:$0xf] %v1249
    %1378 = vst [vmem:[%s4 + $0xe0] sm:$0xf] %v1250
    %1379 = vst [vmem:[%s4 + $0xe4] sm:$0xf] %v1251
    %1380 = vst [vmem:[%s4 + $0xe8] sm:$0xf] %v1252
    %1381 = vst [vmem:[%s4 + $0xec] sm:$0xf] %v1253
    %1382 = vst [vmem:[%s4 + $0xf0] sm:$0xf] %v1254
    %1383 = vst [vmem:[%s4 + $0xf4] sm:$0xf] %v1255
    %1384 = vst [vmem:[%s4 + $0xf8] sm:$0xf] %v1256
    %1385 = vst [vmem:[%s4 + $0xfc] sm:$0xf] %v1257
    %v1386 = vadd.f32 %v1002, %v1003
    %v1387 = vadd.f32 %v1386, %v1004
    %v1388 = vadd.f32 %v1387, %v1005
    %v1389 = vadd.f32 %v1388, %v1006
    %v1390 = vadd.f32 %v1389, %v1007
    %v1391 = vadd.f32 %v1390, %v1008
    %v1392 = vadd.f32 %v1391, %v1009
    %v1393 = vadd.f32 %v1392, %v1010
    %v1394 = vadd.f32 %v1393, %v1011
    %v1395 = vadd.f32 %v1394, %v1012
    %v1396 = vadd.f32 %v1395, %v1013
    %v1397 = vadd.f32 %v1396, %v1014
    %v1398 = vadd.f32 %v1397, %v1015
    %v1399 = vadd.f32 %v1398, %v1016
    %v1400 = vadd.f32 %v1399, %v1017
    %v1401 = vadd.f32 %v1400, %v1018
    %v1402 = vadd.f32 %v1401, %v1019
    %v1403 = vadd.f32 %v1402, %v1020
    %v1404 = vadd.f32 %v1403, %v1021
    %v1405 = vadd.f32 %v1404, %v1022
    %v1406 = vadd.f32 %v1405, %v1023
    %v1407 = vadd.f32 %v1406, %v1024
    %v1408 = vadd.f32 %v1407, %v1025
    %v1409 = vadd.f32 %v1408, %v1026
    %v1410 = vadd.f32 %v1409, %v1027
    %v1411 = vadd.f32 %v1410, %v1028
    %v1412 = vadd.f32 %v1411, %v1029
    %v1413 = vadd.f32 %v1412, %v1030
    %v1414 = vadd.f32 %v1413, %v1031
    %v1415 = vadd.f32 %v1414, %v1032
    %v1416 = vadd.f32 %v1415, %v1033
    %v1417 = vadd.f32 %v1416, %v1034
    %v1418 = vadd.f32 %v1417, %v1035
    %v1419 = vadd.f32 %v1418, %v1036
    %v1420 = vadd.f32 %v1419, %v1037
    %v1421 = vadd.f32 %v1420, %v1038
    %v1422 = vadd.f32 %v1421, %v1039
    %v1423 = vadd.f32 %v1422, %v1040
    %v1424 = vadd.f32 %v1423, %v1041
    %v1425 = vadd.f32 %v1424, %v1042
    %v1426 = vadd.f32 %v1425, %v1043
    %v1427 = vadd.f32 %v1426, %v1044
    %v1428 = vadd.f32 %v1427, %v1045
    %v1429 = vadd.f32 %v1428, %v1046
    %v1430 = vadd.f32 %v1429, %v1047
    %v1431 = vadd.f32 %v1430, %v1048
    %v1432 = vadd.f32 %v1431, %v1049
    %v1433 = vadd.f32 %v1432, %v1050
    %v1434 = vadd.f32 %v1433, %v1051
    %v1435 = vadd.f32 %v1434, %v1052
    %v1436 = vadd.f32 %v1435, %v1053
    %v1437 = vadd.f32 %v1436, %v1054
    %v1438 = vadd.f32 %v1437, %v1055
    %v1439 = vadd.f32 %v1438, %v1056
    %v1440 = vadd.f32 %v1439, %v1057
    %v1441 = vadd.f32 %v1440, %v1058
    %v1442 = vadd.f32 %v1441, %v1059
    %v1443 = vadd.f32 %v1442, %v1060
    %v1444 = vadd.f32 %v1443, %v1061
    %v1445 = vadd.f32 %v1444, %v1062
    %v1446 = vadd.f32 %v1445, %v1063
    %v1447 = vadd.f32 %v1446, %v1064
    %v1448 = vadd.f32 %v1447, %v1065
    %v1449 = vrot.slane %v1448, 4
    %v1450 = vadd.f32 %v1448, %v1449
    %v1451 = vrot.slane %v1450, 2
    %v1452 = vadd.f32 %v1450, %v1451
    %v1453 = vrot.slane %v1452, 1
    %v1454 = vadd.f32 %v1452, %v1453
    %1455 = vst [vmem:[%s5] sm:$0x1] %v1454
    %v1456 = vmul.f32 %v1002, %v1002
    %v1457 = vmul.f32 %v1003, %v1003
    %v1458 = vmul.f32 %v1004, %v1004
    %v1459 = vmul.f32 %v1005, %v1005
    %v1460 = vmul.f32 %v1006, %v1006
    %v1461 = vmul.f32 %v1007, %v1007
    %v1462 = vmul.f32 %v1008, %v1008
    %v1463 = vmul.f32 %v1009, %v1009
    %v1464 = vmul.f32 %v1010, %v1010
    %v1465 = vmul.f32 %v1011, %v1011
    %v1466 = vmul.f32 %v1012, %v1012
    %v1467 = vmul.f32 %v1013, %v1013
    %v1468 = vmul.f32 %v1014, %v1014
    %v1469 = vmul.f32 %v1015, %v1015
    %v1470 = vmul.f32 %v1016, %v1016
    %v1471 = vmul.f32 %v1017, %v1017
    %v1472 = vmul.f32 %v1018, %v1018
    %v1473 = vmul.f32 %v1019, %v1019
    %v1474 = vmul.f32 %v1020, %v1020
    %v1475 = vmul.f32 %v1021, %v1021
    %v1476 = vmul.f32 %v1022, %v1022
    %v1477 = vmul.f32 %v1023, %v1023
    %v1478 = vmul.f32 %v1024, %v1024
    %v1479 = vmul.f32 %v1025, %v1025
    %v1480 = vmul.f32 %v1026, %v1026
    %v1481 = vmul.f32 %v1027, %v1027
    %v1482 = vmul.f32 %v1028, %v1028
    %v1483 = vmul.f32 %v1029, %v1029
    %v1484 = vmul.f32 %v1030, %v1030
    %v1485 = vmul.f32 %v1031, %v1031
    %v1486 = vmul.f32 %v1032, %v1032
    %v1487 = vmul.f32 %v1033, %v1033
    %v1488 = vmul.f32 %v1034, %v1034
    %v1489 = vmul.f32 %v1035, %v1035
    %v1490 = vmul.f32 %v1036, %v1036
    %v1491 = vmul.f32 %v1037, %v1037
    %v1492 = vmul.f32 %v1038, %v1038
    %v1493 = vmul.f32 %v1039, %v1039
    %v1494 = vmul.f32 %v1040, %v1040
    %v1495 = vmul.f32 %v1041, %v1041
    %v1496 = vmul.f32 %v1042, %v1042
    %v1497 = vmul.f32 %v1043, %v1043
    %v1498 = vmul.f32 %v1044, %v1044
    %v1499 = vmul.f32 %v1045, %v1045
    %v1500 = vmul.f32 %v1046, %v1046
    %v1501 = vmul.f32 %v1047, %v1047
    %v1502 = vmul.f32 %v1048, %v1048
    %v1503 = vmul.f32 %v1049, %v1049
    %v1504 = vmul.f32 %v1050, %v1050
    %v1505 = vmul.f32 %v1051, %v1051
    %v1506 = vmul.f32 %v1052, %v1052
    %v1507 = vmul.f32 %v1053, %v1053
    %v1508 = vmul.f32 %v1054, %v1054
    %v1509 = vmul.f32 %v1055, %v1055
    %v1510 = vmul.f32 %v1056, %v1056
    %v1511 = vmul.f32 %v1057, %v1057
    %v1512 = vmul.f32 %v1058, %v1058
    %v1513 = vmul.f32 %v1059, %v1059
    %v1514 = vmul.f32 %v1060, %v1060
    %v1515 = vmul.f32 %v1061, %v1061
    %v1516 = vmul.f32 %v1062, %v1062
    %v1517 = vmul.f32 %v1063, %v1063
    %v1518 = vmul.f32 %v1064, %v1064
    %v1519 = vmul.f32 %v1065, %v1065
    %v1520 = vadd.f32 %v1456, %v1457
    %v1521 = vadd.f32 %v1520, %v1458
    %v1522 = vadd.f32 %v1521, %v1459
    %v1523 = vadd.f32 %v1522, %v1460
    %v1524 = vadd.f32 %v1523, %v1461
    %v1525 = vadd.f32 %v1524, %v1462
    %v1526 = vadd.f32 %v1525, %v1463
    %v1527 = vadd.f32 %v1526, %v1464
    %v1528 = vadd.f32 %v1527, %v1465
    %v1529 = vadd.f32 %v1528, %v1466
    %v1530 = vadd.f32 %v1529, %v1467
    %v1531 = vadd.f32 %v1530, %v1468
    %v1532 = vadd.f32 %v1531, %v1469
    %v1533 = vadd.f32 %v1532, %v1470
    %v1534 = vadd.f32 %v1533, %v1471
    %v1535 = vadd.f32 %v1534, %v1472
    %v1536 = vadd.f32 %v1535, %v1473
    %v1537 = vadd.f32 %v1536, %v1474
    %v1538 = vadd.f32 %v1537, %v1475
    %v1539 = vadd.f32 %v1538, %v1476
    %v1540 = vadd.f32 %v1539, %v1477
    %v1541 = vadd.f32 %v1540, %v1478
    %v1542 = vadd.f32 %v1541, %v1479
    %v1543 = vadd.f32 %v1542, %v1480
    %v1544 = vadd.f32 %v1543, %v1481
    %v1545 = vadd.f32 %v1544, %v1482
    %v1546 = vadd.f32 %v1545, %v1483
    %v1547 = vadd.f32 %v1546, %v1484
    %v1548 = vadd.f32 %v1547, %v1485
    %v1549 = vadd.f32 %v1548, %v1486
    %v1550 = vadd.f32 %v1549, %v1487
    %v1551 = vadd.f32 %v1550, %v1488
    %v1552 = vadd.f32 %v1551, %v1489
    %v1553 = vadd.f32 %v1552, %v1490
    %v1554 = vadd.f32 %v1553, %v1491
    %v1555 = vadd.f32 %v1554, %v1492
    %v1556 = vadd.f32 %v1555, %v1493
    %v1557 = vadd.f32 %v1556, %v1494
    %v1558 = vadd.f32 %v1557, %v1495
    %v1559 = vadd.f32 %v1558, %v1496
    %v1560 = vadd.f32 %v1559, %v1497
    %v1561 = vadd.f32 %v1560, %v1498
    %v1562 = vadd.f32 %v1561, %v1499
    %v1563 = vadd.f32 %v1562, %v1500
    %v1564 = vadd.f32 %v1563, %v1501
    %v1565 = vadd.f32 %v1564, %v1502
    %v1566 = vadd.f32 %v1565, %v1503
    %v1567 = vadd.f32 %v1566, %v1504
    %v1568 = vadd.f32 %v1567, %v1505
    %v1569 = vadd.f32 %v1568, %v1506
    %v1570 = vadd.f32 %v1569, %v1507
    %v1571 = vadd.f32 %v1570, %v1508
    %v1572 = vadd.f32 %v1571, %v1509
    %v1573 = vadd.f32 %v1572, %v1510
    %v1574 = vadd.f32 %v1573, %v1511
    %v1575 = vadd.f32 %v1574, %v1512
    %v1576 = vadd.f32 %v1575, %v1513
    %v1577 = vadd.f32 %v1576, %v1514
    %v1578 = vadd.f32 %v1577, %v1515
    %v1579 = vadd.f32 %v1578, %v1516
    %v1580 = vadd.f32 %v1579, %v1517
    %v1581 = vadd.f32 %v1580, %v1518
    %v1582 = vadd.f32 %v1581, %v1519
    %v1583 = vrot.slane %v1582, 4
    %v1584 = vadd.f32 %v1582, %v1583
    %v1585 = vrot.slane %v1584, 2
    %v1586 = vadd.f32 %v1584, %v1585
    %v1587 = vrot.slane %v1586, 1
    %v1588 = vadd.f32 %v1586, %v1587
    %1589 = vst [vmem:[%s5 + $0x1] sm:$0x1] %v1588
  $region25: #{res_bottleneck_forward.7} parent=0 // pred_fallthru
    _
  // Predicated region
  $region26: #{res_bottleneck_forward.7} parent=0 // pred_check
    _
  $region27: #{res_bottleneck_forward.7} parent=0 // pred_check_branch
    %1591 = sbr.rel (0) target = $region29
  $region28: #{res_bottleneck_forward.7} parent=0 // pred_region
    _
  $region29: #{res_bottleneck_forward.7} parent=0 // pred_fallthru
    _
  // Predicated region
  $region30: #{res_bottleneck_forward.7} parent=0 // pred_check
    _
  $region31: #{res_bottleneck_forward.7} parent=0 // pred_check_branch
    %1593 = sbr.rel (0) target = $region33
  $region32: #{res_bottleneck_forward.7} parent=0 // pred_region
    _
  $region33: #{res_bottleneck_forward.7} parent=0 // pred_fallthru
    _
  // Predicated region
  $region34: #{res_bottleneck_forward.7} parent=0 // pred_check
    _
  $region35: #{res_bottleneck_forward.7} parent=0 // pred_check_branch
    %1595 = sbr.rel (0) target = $region37
  $region36: #{res_bottleneck_forward.7} parent=0 // pred_region
    _
  $region37: #{res_bottleneck_forward.7} parent=0 // pred_fallthru
    _
  // Predicated region
  $region38: #{res_bottleneck_forward.7} parent=0 // pred_check
    _
  $region39: #{res_bottleneck_forward.7} parent=0 // pred_check_branch
    %1597 = sbr.rel (0) target = $region41
  $region40: #{res_bottleneck_forward.7} parent=0 // pred_region
    _
  $region41: #{res_bottleneck_forward.7} parent=0 // pred_fallthru
    _

// kernel: res_bottleneck_forward.6
$region0: #{res_bottleneck_forward.6}
  #allocation0 [shape = 'u32[]', space=smem, size = 0x4, offset = 0x4, fixed_abs, tag = 'smem constant byte address 0x4 - core index']
  #allocation1 [shape = 'u32[144,128]{1,0:T(1,128)}', space=vmem, size = 0x12000, scoped, tag = 'internal scratch']
  #allocation2 [shape = 'f32[18,18,128]{2,1,0:T(8,128)}', space=vmem, size = 0x36000, scoped, tag = 'scratch operand']
  %s0 = inlined_call_operand.vmem [shape: bf16[2,16,16,128], index: 0, kind: input, shape index: {}]
  %s1 = inlined_call_operand.vmem [shape: f32[1,128], index: 1, kind: input, shape index: {}]
  %s2 = inlined_call_operand.vmem [shape: f32[1,128], index: 2, kind: input, shape index: {}]
  %s3 = inlined_call_operand.vmem [shape: bf16[3,3,128,128], index: 3, kind: input, shape index: {}]
  %s4 = inlined_call_operand.vmem [shape: bf16[512,128], index: 4, kind: output, shape index: {0}]
  %s5 = inlined_call_operand.vmem [shape: f32[2,2,128], index: 5, kind: output, shape index: {1}]
  %6 = xla_tuple %s4, %s5
  %s7 = sld [smem:[#allocation0]]
  $region61: #{res_bottleneck_forward.6} parent=0
    _
  %s9 = ssub.s32 1, %s7
  %s10 = scalar_select 0, %s9, %s7
  loop: start=0, step=1, limit=4
  $region2: #{res_bottleneck_forward.6} parent=0 // loop_pre_header
    _
  $region3: #{res_bottleneck_forward.6} parent=0 // loop_header
    %s12 = sphi 0, %s16
    %p13 = scmp.ge.s32.totalorder %s12, 4
    %s19 = sphi 0, %s31
    %s20 = sphi 0, %s27
    %s21 = sphi 0, %s19
    %s22 = sphi 0, %s20
    %s23 = sphi 0, %s21
    %s24 = sphi 0, %s22
    %s34 = sphi 0, %s36
    %s37 = sphi 0, %s34
    %s38 = sphi 0, %s37
    %s54 = sphi 0, %s38
    %s58 = sphi 0, %s58
    %s60 = sphi 0, %s58
    %s61 = sphi 0, %s60
    %s75 = sphi 0, %s61
    %s79 = sphi 0, %s79
    %s81 = sphi 0, %s79
    %s82 = sphi 0, %s81
    %s96 = sphi 0, %s82
    %s102 = sphi 0, %s104
    %s105 = sphi 0, %s102
    %s106 = sphi 0, %s105
    %s122 = sphi 0, %s106
    %s130 = sphi 0, %s132
    %s133 = sphi 0, %s130
    %s134 = sphi 0, %s133
    %s150 = sphi 0, %s134
    %s158 = sphi 0, %s160
    %s161 = sphi 0, %s158
    %s162 = sphi 0, %s161
    %s178 = sphi 0, %s162
  $region4: #{res_bottleneck_forward.6} parent=0 // loop_header_branch
    %15 = sbr.rel (%p13) target = $region8
  $region5: #{res_bottleneck_forward.6} parent=0 // loop_body
    %s17 = ssub.s32 %s12, 1
    %s18 = ssub.s32 %s12, 2
    %s25 = sadd.s32 1, %s20
    %p26 = scmp.ge.s32.totalorder %s25, 1
    %s27 = scalar_select %p26, 0, %s25
    %s28 = sadd.s32 1, %s19
    %s29 = scalar_select %p26, %s28, %s19
    %p30 = scmp.ge.s32.totalorder %s29, 2
    %s31 = scalar_select %p30, 0, %s29
    %s32 = ssub.s32 %s19, %s31
    %p33 = scmp.eq.s32.totalorder %s32, 0
    %s35 = sadd.s32 %s34, 1
    %s36 = scalar_select %p33, %s34, %s35
    %p39 = pneg %p33
    %p40 = scmp.eq.s32.totalorder %s12, 1
    %p41 = por %p39, %p40
    %p42 = scmp.ne.s32.totalorder %s34, %s37
    %p43 = scmp.eq.s32.totalorder %s12, 0
    %p44 = por %p42, %p43
    %p45 = scmp.ne.s32.totalorder %s34, %s37
    %p46 = scmp.eq.s32.totalorder %s17, 1
    %p47 = por %p45, %p46
    %p48 = scmp.ne.s32.totalorder %s37, %s38
    %p49 = scmp.eq.s32.totalorder %s17, 0
    %p50 = por %p48, %p49
    %p51 = scmp.ne.s32.totalorder %s37, %s38
    %p52 = scmp.eq.s32.totalorder %s18, 1
    %p53 = por %p51, %p52
    %p55 = scmp.ne.s32.totalorder %s38, %s54
    %p56 = scmp.eq.s32.totalorder %s18, 0
    %p57 = por %p55, %p56
    %s59 = sadd.s32 %s58, 1
    %p62 = scmp.eq.s32.totalorder %s12, 1
    %p63 = scmp.ne.s32.totalorder %s58, %s60
    %p64 = scmp.eq.s32.totalorder %s12, 0
    %p65 = por %p63, %p64
    %p66 = scmp.ne.s32.totalorder %s58, %s60
    %p67 = scmp.eq.s32.totalorder %s17, 1
    %p68 = por %p66, %p67
    %p69 = scmp.ne.s32.totalorder %s60, %s61
    %p70 = scmp.eq.s32.totalorder %s17, 0
    %p71 = por %p69, %p70
    %p72 = scmp.ne.s32.totalorder %s60, %s61
    %p73 = scmp.eq.s32.totalorder %s18, 1
    %p74 = por %p72, %p73
    %p76 = scmp.ne.s32.totalorder %s61, %s75
    %p77 = scmp.eq.s32.totalorder %s18, 0
    %p78 = por %p76, %p77
    %s80 = sadd.s32 %s79, 1
    %p83 = scmp.eq.s32.totalorder %s12, 1
    %p84 = scmp.ne.s32.totalorder %s79, %s81
    %p85 = scmp.eq.s32.totalorder %s12, 0
    %p86 = por %p84, %p85
    %p87 = scmp.ne.s32.totalorder %s79, %s81
    %p88 = scmp.eq.s32.totalorder %s17, 1
    %p89 = por %p87, %p88
    %p90 = scmp.ne.s32.totalorder %s81, %s82
    %p91 = scmp.eq.s32.totalorder %s17, 0
    %p92 = por %p90, %p91
    %p93 = scmp.ne.s32.totalorder %s81, %s82
    %p94 = scmp.eq.s32.totalorder %s18, 1
    %p95 = por %p93, %p94
    %p97 = scmp.ne.s32.totalorder %s82, %s96
    %p98 = scmp.eq.s32.totalorder %s18, 0
    %p99 = por %p97, %p98
    %s100 = ssub.s32 %s20, %s27
    %p101 = scmp.eq.s32.totalorder %s100, 0
    %s103 = sadd.s32 %s102, 1
    %s104 = scalar_select %p101, %s102, %s103
    %p107 = pneg %p101
    %p108 = scmp.eq.s32.totalorder %s12, 1
    %p109 = por %p107, %p108
    %p110 = scmp.ne.s32.totalorder %s102, %s105
    %p111 = scmp.eq.s32.totalorder %s12, 0
    %p112 = por %p110, %p111
    %p113 = scmp.ne.s32.totalorder %s102, %s105
    %p114 = scmp.eq.s32.totalorder %s17, 1
    %p115 = por %p113, %p114
    %p116 = scmp.ne.s32.totalorder %s105, %s106
    %p117 = scmp.eq.s32.totalorder %s17, 0
    %p118 = por %p116, %p117
    %p119 = scmp.ne.s32.totalorder %s105, %s106
    %p120 = scmp.eq.s32.totalorder %s18, 1
    %p121 = por %p119, %p120
    %p123 = scmp.ne.s32.totalorder %s106, %s122
    %p124 = scmp.eq.s32.totalorder %s18, 0
    %p125 = por %p123, %p124
    %s126 = ssub.s32 %s19, %s31
    %s127 = ssub.s32 %s20, %s27
    %s128 = sor.u32 %s126, %s127
    %p129 = scmp.eq.s32.totalorder %s128, 0
    %s131 = sadd.s32 %s130, 1
    %s132 = scalar_select %p129, %s130, %s131
    %p135 = pneg %p129
    %p136 = scmp.eq.s32.totalorder %s12, 1
    %p137 = por %p135, %p136
    %p138 = scmp.ne.s32.totalorder %s130, %s133
    %p139 = scmp.eq.s32.totalorder %s12, 0
    %p140 = por %p138, %p139
    %p141 = scmp.ne.s32.totalorder %s130, %s133
    %p142 = scmp.eq.s32.totalorder %s17, 1
    %p143 = por %p141, %p142
    %p144 = scmp.ne.s32.totalorder %s133, %s134
    %p145 = scmp.eq.s32.totalorder %s17, 0
    %p146 = por %p144, %p145
    %p147 = scmp.ne.s32.totalorder %s133, %s134
    %p148 = scmp.eq.s32.totalorder %s18, 1
    %p149 = por %p147, %p148
    %p151 = scmp.ne.s32.totalorder %s134, %s150
    %p152 = scmp.eq.s32.totalorder %s18, 0
    %p153 = por %p151, %p152
    %s154 = ssub.s32 %s19, %s31
    %s155 = ssub.s32 %s20, %s27
    %s156 = sor.u32 %s154, %s155
    %p157 = scmp.eq.s32.totalorder %s156, 0
    %s159 = sadd.s32 %s158, 1
    %s160 = scalar_select %p157, %s158, %s159
    %p163 = pneg %p157
    %p164 = scmp.eq.s32.totalorder %s12, 1
    %p165 = por %p163, %p164
    %p166 = scmp.ne.s32.totalorder %s158, %s161
    %p167 = scmp.eq.s32.totalorder %s12, 0
    %p168 = por %p166, %p167
    %p169 = scmp.ne.s32.totalorder %s158, %s161
    %p170 = scmp.eq.s32.totalorder %s17, 1
    %p171 = por %p169, %p170
    %p172 = scmp.ne.s32.totalorder %s161, %s162
    %p173 = scmp.eq.s32.totalorder %s17, 0
    %p174 = por %p172, %p173
    %p175 = scmp.ne.s32.totalorder %s161, %s162
    %p176 = scmp.eq.s32.totalorder %s18, 1
    %p177 = por %p175, %p176
    %p179 = scmp.ne.s32.totalorder %s162, %s178
    %p180 = scmp.eq.s32.totalorder %s18, 0
    %p181 = por %p179, %p180
    %p182 = scmp.le.s32.totalorder 1, %s12
    %p183 = scmp.lt.s32.totalorder %s12, 3
    %p184 = pnand %p182, %p183
    %p185 = pneg %p184
    // Predicated region
    $region9: #{res_bottleneck_forward.6} parent=5 // pred_check
      _
    $region10: #{res_bottleneck_forward.6} parent=5 // pred_check_branch
      %187 = sbr.rel (%p184) target = $region12
    $region11: #{res_bottleneck_forward.6} parent=5 // pred_region
      %s188 = ssub.s32 %s12, 1
      // Predicated region
      $region13: #{res_bottleneck_forward.6} parent=11 // pred_check
        %p189 = pneg %p71
      $region14: #{res_bottleneck_forward.6} parent=11 // pred_check_branch
        %191 = sbr.rel (%p189) target = $region16
      $region15: #{res_bottleneck_forward.6} parent=11 // pred_region
        _
      $region16: #{res_bottleneck_forward.6} parent=11 // pred_fallthru
        _
      // Predicated region
      $region17: #{res_bottleneck_forward.6} parent=11 // pred_check
        %p192 = pneg %p92
      $region18: #{res_bottleneck_forward.6} parent=11 // pred_check_branch
        %194 = sbr.rel (%p192) target = $region20
      $region19: #{res_bottleneck_forward.6} parent=11 // pred_region
        _
      $region20: #{res_bottleneck_forward.6} parent=11 // pred_fallthru
        _
      // Predicated region
      $region21: #{res_bottleneck_forward.6} parent=11 // pred_check
        %p195 = pneg %p118
      $region22: #{res_bottleneck_forward.6} parent=11 // pred_check_branch
        %197 = sbr.rel (%p195) target = $region24
      $region23: #{res_bottleneck_forward.6} parent=11 // pred_region
        %p198 = scmp.lt.s32.totalorder %s22, 0
        %s199 = scalar_select %p198, %s22, 0
        %s200 = smul.addr %s199, 4
        %s201 = scalar_lea.vmem %s3, %s200
      $region24: #{res_bottleneck_forward.6} parent=11 // pred_fallthru
        _
    $region12: #{res_bottleneck_forward.6} parent=5 // pred_fallthru
      _
    %p202 = scmp.lt.s32.totalorder %s12, 2
    // Predicated region
    $region25: #{res_bottleneck_forward.6} parent=5 // pred_check
      %p203 = pneg %p202
    $region26: #{res_bottleneck_forward.6} parent=5 // pred_check_branch
      %205 = sbr.rel (%p203) target = $region28
    $region27: #{res_bottleneck_forward.6} parent=5 // pred_region
      // Predicated region
      $region29: #{res_bottleneck_forward.6} parent=27 // pred_check
        %p206 = pneg %p44
      $region30: #{res_bottleneck_forward.6} parent=27 // pred_check_branch
        %208 = sbr.rel (%p206) target = $region32
      $region31: #{res_bottleneck_forward.6} parent=27 // pred_region
        %p209 = scmp.lt.s32.totalorder %s19, 1
        %s210 = scalar_select %p209, %s19, 1
        %s211 = smul.addr %s210, 32
        %s212 = smul.addr %s211, 4
        %s213 = scalar_lea.vmem %s0, %s212
      $region32: #{res_bottleneck_forward.6} parent=27 // pred_fallthru
        _
    $region28: #{res_bottleneck_forward.6} parent=5 // pred_fallthru
      _
    %p214 = scmp.le.s32.totalorder 1, %s12
    %p215 = scmp.lt.s32.totalorder %s12, 3
    %p216 = pnand %p214, %p215
    %p217 = pneg %p216
    // Predicated region
    $region33: #{res_bottleneck_forward.6} parent=5 // pred_check
      _
    $region34: #{res_bottleneck_forward.6} parent=5 // pred_check_branch
      %219 = sbr.rel (%p216) target = $region36
    $region35: #{res_bottleneck_forward.6} parent=5 // pred_region
      %s220 = ssub.s32 %s12, 1
      %p221 = scmp.lt.s32.totalorder %s21, 1
      %s222 = scalar_select %p221, %s21, 1
      %s223 = smul.addr %s222, 32
      %s224 = smul.addr %s223, 4
      %s225 = scalar_lea.vmem %s0, %s224
      %p226 = pneg %p50
      %p227 = pneg %p47
      %p228 = pneg %p71
      %p229 = pneg %p68
      %p230 = pneg %p92
      %p231 = pneg %p89
      %p232 = scmp.lt.s32.totalorder %s22, 0
      %s233 = scalar_select %p232, %s22, 0
      %s234 = smul.addr %s233, 4
      %s235 = scalar_lea.vmem %s3, %s234
      %p236 = pneg %p118
      %p237 = pneg %p115
      %p238 = pneg %p146
      %p239 = pneg %p143
      %s240 = smul.u32 32, %s21
      %p241 = scmp.lt.s32.totalorder %s240, 63
      %s242 = scalar_select %p241, %s240, 63
      %p243 = scmp.lt.s32.totalorder %s22, 0
      %s244 = scalar_select %p243, %s22, 0
      %s245 = sadd.s32 %s244, %s242
      %s246 = smul.addr %s245, 4
      %s247 = scalar_lea.vmem %s4, %s246
      %p248 = pneg %p174
      %p249 = pneg %p171
      %p250 = scmp.lt.s32.totalorder %s21, 1
      %s251 = scalar_select %p250, %s21, 1
      %p252 = scmp.lt.s32.totalorder %s22, 0
      %s253 = scalar_select %p252, %s22, 0
      %s254 = sadd.s32 %s253, %s251
      %s255 = smul.addr %s254, 2
      %s256 = scalar_lea.vmem %s5, %s255
      %p257 = scmp.lt.s32.totalorder %s21, 1
      %s258 = scalar_select %p257, %s21, 1
      %s259 = smul.addr %s258, 32
      %s260 = smul.addr %s259, 4
      %s261 = scalar_lea.vmem %s0, %s260
      %p262 = scmp.lt.s32.totalorder %s22, 0
      %s263 = scalar_select %p262, %s22, 0
      %s264 = smul.addr %s263, 4
      %s265 = scalar_lea.vmem %s3, %s264
      %s266 = smul.u32 32, %s21
      %p267 = scmp.lt.s32.totalorder %s266, 63
      %s268 = scalar_select %p267, %s266, 63
      %p269 = scmp.lt.s32.totalorder %s22, 0
      %s270 = scalar_select %p269, %s22, 0
      %s271 = sadd.s32 %s270, %s268
      %s272 = smul.addr %s271, 4
      %s273 = scalar_lea.vmem %s4, %s272
      %s274 = smul.u32 32, %s21
      %p275 = scmp.lt.s32.totalorder %s21, 1
      %s276 = scalar_select %p275, %s21, 1
      %p277 = scmp.lt.s32.totalorder %s22, 0
      %s278 = scalar_select %p277, %s22, 0
      %s279 = sadd.s32 %s278, %s276
      %s280 = smul.addr %s279, 2
      %s281 = scalar_lea.vmem %s5, %s280
      %p283 = scmp.eq.s32.totalorder %s22, 0
      // Predicated region
      $region37: #{res_bottleneck_forward.6} parent=35 // pred_check
        %p284 = pneg %p283
      $region38: #{res_bottleneck_forward.6} parent=35 // pred_check_branch
        %286 = sbr.rel (%p284) target = $region40
      $region39: #{res_bottleneck_forward.6} parent=35 // pred_region
        %v287 = vld [vmem:[%s261] sm:$0xf]
        %v288 = vld [vmem:[%s261 + $0x4] sm:$0xf]
        %v289 = vld [vmem:[%s261 + $0x8] sm:$0xf]
        %v290 = vld [vmem:[%s261 + $0xc] sm:$0xf]
        %v291 = vld [vmem:[%s261 + $0x10] sm:$0xf]
        %v292 = vld [vmem:[%s261 + $0x14] sm:$0xf]
        %v293 = vld [vmem:[%s261 + $0x18] sm:$0xf]
        %v294 = vld [vmem:[%s261 + $0x1c] sm:$0xf]
        %v295 = vld [vmem:[%s261 + $0x20] sm:$0xf]
        %v296 = vld [vmem:[%s261 + $0x24] sm:$0xf]
        %v297 = vld [vmem:[%s261 + $0x28] sm:$0xf]
        %v298 = vld [vmem:[%s261 + $0x2c] sm:$0xf]
        %v299 = vld [vmem:[%s261 + $0x30] sm:$0xf]
        %v300 = vld [vmem:[%s261 + $0x34] sm:$0xf]
        %v301 = vld [vmem:[%s261 + $0x38] sm:$0xf]
        %v302 = vld [vmem:[%s261 + $0x3c] sm:$0xf]
        %v303 = vld [vmem:[%s261 + $0x40] sm:$0xf]
        %v304 = vld [vmem:[%s261 + $0x44] sm:$0xf]
        %v305 = vld [vmem:[%s261 + $0x48] sm:$0xf]
        %v306 = vld [vmem:[%s261 + $0x4c] sm:$0xf]
        %v307 = vld [vmem:[%s261 + $0x50] sm:$0xf]
        %v308 = vld [vmem:[%s261 + $0x54] sm:$0xf]
        %v309 = vld [vmem:[%s261 + $0x58] sm:$0xf]
        %v310 = vld [vmem:[%s261 + $0x5c] sm:$0xf]
        %v311 = vld [vmem:[%s261 + $0x60] sm:$0xf]
        %v312 = vld [vmem:[%s261 + $0x64] sm:$0xf]
        %v313 = vld [vmem:[%s261 + $0x68] sm:$0xf]
        %v314 = vld [vmem:[%s261 + $0x6c] sm:$0xf]
        %v315 = vld [vmem:[%s261 + $0x70] sm:$0xf]
        %v316 = vld [vmem:[%s261 + $0x74] sm:$0xf]
        %v317 = vld [vmem:[%s261 + $0x78] sm:$0xf]
        %v318 = vld [vmem:[%s261 + $0x7c] sm:$0xf]
        %v319 = vunpack.c.l.bf16 %v287
        %v320 = vunpack.c.l.bf16 %v288
        %v321 = vunpack.c.l.bf16 %v289
        %v322 = vunpack.c.l.bf16 %v290
        %v323 = vunpack.c.l.bf16 %v291
        %v324 = vunpack.c.l.bf16 %v292
        %v325 = vunpack.c.l.bf16 %v293
        %v326 = vunpack.c.l.bf16 %v294
        %v327 = vunpack.c.l.bf16 %v295
        %v328 = vunpack.c.l.bf16 %v296
        %v329 = vunpack.c.l.bf16 %v297
        %v330 = vunpack.c.l.bf16 %v298
        %v331 = vunpack.c.l.bf16 %v299
        %v332 = vunpack.c.l.bf16 %v300
        %v333 = vunpack.c.l.bf16 %v301
        %v334 = vunpack.c.l.bf16 %v302
        %v335 = vunpack.c.l.bf16 %v303
        %v336 = vunpack.c.l.bf16 %v304
        %v337 = vunpack.c.l.bf16 %v305
        %v338 = vunpack.c.l.bf16 %v306
        %v339 = vunpack.c.l.bf16 %v307
        %v340 = vunpack.c.l.bf16 %v308
        %v341 = vunpack.c.l.bf16 %v309
        %v342 = vunpack.c.l.bf16 %v310
        %v343 = vunpack.c.l.bf16 %v311
        %v344 = vunpack.c.l.bf16 %v312
        %v345 = vunpack.c.l.bf16 %v313
        %v346 = vunpack.c.l.bf16 %v314
        %v347 = vunpack.c.l.bf16 %v315
        %v348 = vunpack.c.l.bf16 %v316
        %v349 = vunpack.c.l.bf16 %v317
        %v350 = vunpack.c.l.bf16 %v318
        %v351 = vld [vmem:[%s1] sm:$0x1]
        %v353 = vlaneseq
        %v354 = vshrl.u32 %v353, 7
        %v355 = vsub.s32 0, %v354
        %v356 = vrot.slane %v351, %v355
        %v358 = vmul.f32 %v319, %v356
        %v359 = vmul.f32 %v320, %v356
        %v360 = vmul.f32 %v321, %v356
        %v361 = vmul.f32 %v322, %v356
        %v362 = vmul.f32 %v323, %v356
        %v363 = vmul.f32 %v324, %v356
        %v364 = vmul.f32 %v325, %v356
        %v365 = vmul.f32 %v326, %v356
        %v366 = vmul.f32 %v327, %v356
        %v367 = vmul.f32 %v328, %v356
        %v368 = vmul.f32 %v329, %v356
        %v369 = vmul.f32 %v330, %v356
        %v370 = vmul.f32 %v331, %v356
        %v371 = vmul.f32 %v332, %v356
        %v372 = vmul.f32 %v333, %v356
        %v373 = vmul.f32 %v334, %v356
        %v374 = vmul.f32 %v335, %v356
        %v375 = vmul.f32 %v336, %v356
        %v376 = vmul.f32 %v337, %v356
        %v377 = vmul.f32 %v338, %v356
        %v378 = vmul.f32 %v339, %v356
        %v379 = vmul.f32 %v340, %v356
        %v380 = vmul.f32 %v341, %v356
        %v381 = vmul.f32 %v342, %v356
        %v382 = vmul.f32 %v343, %v356
        %v383 = vmul.f32 %v344, %v356
        %v384 = vmul.f32 %v345, %v356
        %v385 = vmul.f32 %v346, %v356
        %v386 = vmul.f32 %v347, %v356
        %v387 = vmul.f32 %v348, %v356
        %v388 = vmul.f32 %v349, %v356
        %v389 = vmul.f32 %v350, %v356
        %v390 = vld [vmem:[%s2] sm:$0x1]
        %v392 = vlaneseq
        %v393 = vshrl.u32 %v392, 7
        %v394 = vsub.s32 0, %v393
        %v395 = vrot.slane %v390, %v394
        %v397 = vadd.f32 %v358, %v395
        %v398 = vadd.f32 %v359, %v395
        %v399 = vadd.f32 %v360, %v395
        %v400 = vadd.f32 %v361, %v395
        %v401 = vadd.f32 %v362, %v395
        %v402 = vadd.f32 %v363, %v395
        %v403 = vadd.f32 %v364, %v395
        %v404 = vadd.f32 %v365, %v395
        %v405 = vadd.f32 %v366, %v395
        %v406 = vadd.f32 %v367, %v395
        %v407 = vadd.f32 %v368, %v395
        %v408 = vadd.f32 %v369, %v395
        %v409 = vadd.f32 %v370, %v395
        %v410 = vadd.f32 %v371, %v395
        %v411 = vadd.f32 %v372, %v395
        %v412 = vadd.f32 %v373, %v395
        %v413 = vadd.f32 %v374, %v395
        %v414 = vadd.f32 %v375, %v395
        %v415 = vadd.f32 %v376, %v395
        %v416 = vadd.f32 %v377, %v395
        %v417 = vadd.f32 %v378, %v395
        %v418 = vadd.f32 %v379, %v395
        %v419 = vadd.f32 %v380, %v395
        %v420 = vadd.f32 %v381, %v395
        %v421 = vadd.f32 %v382, %v395
        %v422 = vadd.f32 %v383, %v395
        %v423 = vadd.f32 %v384, %v395
        %v424 = vadd.f32 %v385, %v395
        %v425 = vadd.f32 %v386, %v395
        %v426 = vadd.f32 %v387, %v395
        %v427 = vadd.f32 %v388, %v395
        %v428 = vadd.f32 %v389, %v395
        %v429 = vmax.f32 %v397, 0.0
        %v430 = vmax.f32 %v398, 0.0
        %v431 = vmax.f32 %v399, 0.0
        %v432 = vmax.f32 %v400, 0.0
        %v433 = vmax.f32 %v401, 0.0
        %v434 = vmax.f32 %v402, 0.0
        %v435 = vmax.f32 %v403, 0.0
        %v436 = vmax.f32 %v404, 0.0
        %v437 = vmax.f32 %v405, 0.0
        %v438 = vmax.f32 %v406, 0.0
        %v439 = vmax.f32 %v407, 0.0
        %v440 = vmax.f32 %v408, 0.0
        %v441 = vmax.f32 %v409, 0.0
        %v442 = vmax.f32 %v410, 0.0
        %v443 = vmax.f32 %v411, 0.0
        %v444 = vmax.f32 %v412, 0.0
        %v445 = vmax.f32 %v413, 0.0
        %v446 = vmax.f32 %v414, 0.0
        %v447 = vmax.f32 %v415, 0.0
        %v448 = vmax.f32 %v416, 0.0
        %v449 = vmax.f32 %v417, 0.0
        %v450 = vmax.f32 %v418, 0.0
        %v451 = vmax.f32 %v419, 0.0
        %v452 = vmax.f32 %v420, 0.0
        %v453 = vmax.f32 %v421, 0.0
        %v454 = vmax.f32 %v422, 0.0
        %v455 = vmax.f32 %v423, 0.0
        %v456 = vmax.f32 %v424, 0.0
        %v457 = vmax.f32 %v425, 0.0
        %v458 = vmax.f32 %v426, 0.0
        %v459 = vmax.f32 %v427, 0.0
        %v460 = vmax.f32 %v428, 0.0
        %461 = vst [vmem:[#allocation2] sm:$0xff] 0.0
        %462 = vst [vmem:[#allocation2 + $0x8] sm:$0xff] 0.0
        %463 = vst [vmem:[#allocation2 + $0x10] sm:$0x3] 0.0
        %464 = vst [vmem:[#allocation2 + $0x18] sm:$0xff] 0.0
        %465 = vst [vmem:[#allocation2 + $0x20] sm:$0xff] 0.0
        %466 = vst [vmem:[#allocation2 + $0x28] sm:$0x3] 0.0
        %467 = vst [vmem:[#allocation2 + $0x30] sm:$0xff] 0.0
        %468 = vst [vmem:[#allocation2 + $0x38] sm:$0xff] 0.0
        %469 = vst [vmem:[#allocation2 + $0x40] sm:$0x3] 0.0
        %470 = vst [vmem:[#allocation2 + $0x48] sm:$0xff] 0.0
        %471 = vst [vmem:[#allocation2 + $0x50] sm:$0xff] 0.0
        %472 = vst [vmem:[#allocation2 + $0x58] sm:$0x3] 0.0
        %473 = vst [vmem:[#allocation2 + $0x60] sm:$0xff] 0.0
        %474 = vst [vmem:[#allocation2 + $0x68] sm:$0xff] 0.0
        %475 = vst [vmem:[#allocation2 + $0x70] sm:$0x3] 0.0
        %476 = vst [vmem:[#allocation2 + $0x78] sm:$0xff] 0.0
        %477 = vst [vmem:[#allocation2 + $0x80] sm:$0xff] 0.0
        %478 = vst [vmem:[#allocation2 + $0x88] sm:$0x3] 0.0
        %479 = vst [vmem:[#allocation2 + $0x90] sm:$0xff] 0.0
        %480 = vst [vmem:[#allocation2 + $0x98] sm:$0xff] 0.0
        %481 = vst [vmem:[#allocation2 + $0xa0] sm:$0x3] 0.0
        %482 = vst [vmem:[#allocation2 + $0xa8] sm:$0xff] 0.0
        %483 = vst [vmem:[#allocation2 + $0xb0] sm:$0xff] 0.0
        %484 = vst [vmem:[#allocation2 + $0xb8] sm:$0x3] 0.0
        %485 = vst [vmem:[#allocation2 + $0xc0] sm:$0xff] 0.0
        %486 = vst [vmem:[#allocation2 + $0xc8] sm:$0xff] 0.0
        %487 = vst [vmem:[#allocation2 + $0xd0] sm:$0x3] 0.0
        %488 = vst [vmem:[#allocation2 + $0xd8] sm:$0xff] 0.0
        %489 = vst [vmem:[#allocation2 + $0xe0] sm:$0xff] 0.0
        %490 = vst [vmem:[#allocation2 + $0xe8] sm:$0x3] 0.0
        %491 = vst [vmem:[#allocation2 + $0xf0] sm:$0xff] 0.0
        %492 = vst [vmem:[#allocation2 + $0xf8] sm:$0xff] 0.0
        %493 = vst [vmem:[#allocation2 + $0x100] sm:$0x3] 0.0
        %494 = vst [vmem:[#allocation2 + $0x108] sm:$0xff] 0.0
        %495 = vst [vmem:[#allocation2 + $0x110] sm:$0xff] 0.0
        %496 = vst [vmem:[#allocation2 + $0x118] sm:$0x3] 0.0
        %497 = vst [vmem:[#allocation2 + $0x120] sm:$0xff] 0.0
        %498 = vst [vmem:[#allocation2 + $0x128] sm:$0xff] 0.0
        %499 = vst [vmem:[#allocation2 + $0x130] sm:$0x3] 0.0
        %500 = vst [vmem:[#allocation2 + $0x138] sm:$0xff] 0.0
        %501 = vst [vmem:[#allocation2 + $0x140] sm:$0xff] 0.0
        %502 = vst [vmem:[#allocation2 + $0x148] sm:$0x3] 0.0
        %503 = vst [vmem:[#allocation2 + $0x150] sm:$0xff] 0.0
        %504 = vst [vmem:[#allocation2 + $0x158] sm:$0xff] 0.0
        %505 = vst [vmem:[#allocation2 + $0x160] sm:$0x3] 0.0
        %506 = vst [vmem:[#allocation2 + $0x168] sm:$0xff] 0.0
        %507 = vst [vmem:[#allocation2 + $0x170] sm:$0xff] 0.0
        %508 = vst [vmem:[#allocation2 + $0x178] sm:$0x3] 0.0
        %509 = vst [vmem:[#allocation2 + $0x180] sm:$0xff] 0.0
        %510 = vst [vmem:[#allocation2 + $0x188] sm:$0xff] 0.0
        %511 = vst [vmem:[#allocation2 + $0x190] sm:$0x3] 0.0
        %512 = vst [vmem:[#allocation2 + $0x198] sm:$0xff] 0.0
        %513 = vst [vmem:[#allocation2 + $0x1a0] sm:$0xff] 0.0
        %514 = vst [vmem:[#allocation2 + $0x1a8] sm:$0x3] 0.0
        %s515 = scalar_lea.vmem [#allocation2], 24
        %516 = vst [vmem:[%s515 + $0x1] sm:$0xff] %v429
        %517 = vst [vmem:[%s515 + $0x9] sm:$0xff] %v430
        %518 = vst [vmem:[%s515 + $0x19] sm:$0xff] %v431
        %519 = vst [vmem:[%s515 + $0x21] sm:$0xff] %v432
        %520 = vst [vmem:[%s515 + $0x31] sm:$0xff] %v433
        %521 = vst [vmem:[%s515 + $0x39] sm:$0xff] %v434
        %522 = vst [vmem:[%s515 + $0x49] sm:$0xff] %v435
        %523 = vst [vmem:[%s515 + $0x51] sm:$0xff] %v436
        %524 = vst [vmem:[%s515 + $0x61] sm:$0xff] %v437
        %525 = vst [vmem:[%s515 + $0x69] sm:$0xff] %v438
        %526 = vst [vmem:[%s515 + $0x79] sm:$0xff] %v439
        %527 = vst [vmem:[%s515 + $0x81] sm:$0xff] %v440
        %528 = vst [vmem:[%s515 + $0x91] sm:$0xff] %v441
        %529 = vst [vmem:[%s515 + $0x99] sm:$0xff] %v442
        %530 = vst [vmem:[%s515 + $0xa9] sm:$0xff] %v443
        %531 = vst [vmem:[%s515 + $0xb1] sm:$0xff] %v444
        %532 = vst [vmem:[%s515 + $0xc1] sm:$0xff] %v445
        %533 = vst [vmem:[%s515 + $0xc9] sm:$0xff] %v446
        %534 = vst [vmem:[%s515 + $0xd9] sm:$0xff] %v447
        %535 = vst [vmem:[%s515 + $0xe1] sm:$0xff] %v448
        %536 = vst [vmem:[%s515 + $0xf1] sm:$0xff] %v449
        %537 = vst [vmem:[%s515 + $0xf9] sm:$0xff] %v450
        %538 = vst [vmem:[%s515 + $0x109] sm:$0xff] %v451
        %539 = vst [vmem:[%s515 + $0x111] sm:$0xff] %v452
        %540 = vst [vmem:[%s515 + $0x121] sm:$0xff] %v453
        %541 = vst [vmem:[%s515 + $0x129] sm:$0xff] %v454
        %542 = vst [vmem:[%s515 + $0x139] sm:$0xff] %v455
        %543 = vst [vmem:[%s515 + $0x141] sm:$0xff] %v456
        %544 = vst [vmem:[%s515 + $0x151] sm:$0xff] %v457
        %545 = vst [vmem:[%s515 + $0x159] sm:$0xff] %v458
        %546 = vst [vmem:[%s515 + $0x169] sm:$0xff] %v459
        %547 = vst [vmem:[%s515 + $0x171] sm:$0xff] %v460
      $region40: #{res_bottleneck_forward.6} parent=35 // pred_fallthru
        _
      %v548 = vld [vmem:[#allocation2] sm:$0xff]
      %v549 = vld [vmem:[#allocation2 + $0x8] sm:$0xff]
      %v550 = vld [vmem:[#allocation2 + $0x10] sm:$0x3]
      %v551 = vld [vmem:[#allocation2 + $0x18] sm:$0xff]
      %v552 = vld [vmem:[#allocation2 + $0x20] sm:$0xff]
      %v553 = vld [vmem:[#allocation2 + $0x28] sm:$0x3]
      %v554 = vld [vmem:[#allocation2 + $0x30] sm:$0xff]
      %v555 = vld [vmem:[#allocation2 + $0x38] sm:$0xff]
      %v556 = vld [vmem:[#allocation2 + $0x40] sm:$0x3]
      %v557 = vld [vmem:[#allocation2 + $0x48] sm:$0xff]
      %v558 = vld [vmem:[#allocation2 + $0x50] sm:$0xff]
      %v559 = vld [vmem:[#allocation2 + $0x58] sm:$0x3]
      %v560 = vld [vmem:[#allocation2 + $0x60] sm:$0xff]
      %v561 = vld [vmem:[#allocation2 + $0x68] sm:$0xff]
      %v562 = vld [vmem:[#allocation2 + $0x70] sm:$0x3]
      %v563 = vld [vmem:[#allocation2 + $0x78] sm:$0xff]
      %v564 = vld [vmem:[#allocation2 + $0x80] sm:$0xff]
      %v565 = vld [vmem:[#allocation2 + $0x88] sm:$0x3]
      %v566 = vld [vmem:[#allocation2 + $0x90] sm:$0xff]
      %v567 = vld [vmem:[#allocation2 + $0x98] sm:$0xff]
      %v568 = vld [vmem:[#allocation2 + $0xa0] sm:$0x3]
      %v569 = vld [vmem:[#allocation2 + $0xa8] sm:$0xff]
      %v570 = vld [vmem:[#allocation2 + $0xb0] sm:$0xff]
      %v571 = vld [vmem:[#allocation2 + $0xb8] sm:$0x3]
      %v572 = vld [vmem:[#allocation2 + $0xc0] sm:$0xff]
      %v573 = vld [vmem:[#allocation2 + $0xc8] sm:$0xff]
      %v574 = vld [vmem:[#allocation2 + $0xd0] sm:$0x3]
      %v575 = vld [vmem:[#allocation2 + $0xd8] sm:$0xff]
      %v576 = vld [vmem:[#allocation2 + $0xe0] sm:$0xff]
      %v577 = vld [vmem:[#allocation2 + $0xe8] sm:$0x3]
      %v578 = vld [vmem:[#allocation2 + $0xf0] sm:$0xff]
      %v579 = vld [vmem:[#allocation2 + $0xf8] sm:$0xff]
      %v580 = vld [vmem:[#allocation2 + $0x100] sm:$0x3]
      %v581 = vld [vmem:[#allocation2 + $0x108] sm:$0xff]
      %v582 = vld [vmem:[#allocation2 + $0x110] sm:$0xff]
      %v583 = vld [vmem:[#allocation2 + $0x118] sm:$0x3]
      %v584 = vld [vmem:[#allocation2 + $0x120] sm:$0xff]
      %v585 = vld [vmem:[#allocation2 + $0x128] sm:$0xff]
      %v586 = vld [vmem:[#allocation2 + $0x130] sm:$0x3]
      %v587 = vld [vmem:[#allocation2 + $0x138] sm:$0xff]
      %v588 = vld [vmem:[#allocation2 + $0x140] sm:$0xff]
      %v589 = vld [vmem:[#allocation2 + $0x148] sm:$0x3]
      %v590 = vld [vmem:[#allocation2 + $0x150] sm:$0xff]
      %v591 = vld [vmem:[#allocation2 + $0x158] sm:$0xff]
      %v592 = vld [vmem:[#allocation2 + $0x160] sm:$0x3]
      %v593 = vld [vmem:[#allocation2 + $0x168] sm:$0xff]
      %v594 = vld [vmem:[#allocation2 + $0x170] sm:$0xff]
      %v595 = vld [vmem:[#allocation2 + $0x178] sm:$0x3]
      %v596 = vld [vmem:[#allocation2 + $0x180] sm:$0xff]
      %v597 = vld [vmem:[#allocation2 + $0x188] sm:$0xff]
      %v598 = vld [vmem:[#allocation2 + $0x190] sm:$0x3]
      %v599 = vld [vmem:[#allocation2 + $0x198] sm:$0xff]
      %v600 = vld [vmem:[#allocation2 + $0x1a0] sm:$0xff]
      %v601 = vld [vmem:[#allocation2 + $0x1a8] sm:$0x3]
      %v602 = vpack.c.bf16 %v549, %v548
      %v603 = vpack.c.bf16 %v552, %v551
      %v604 = vpack.c.bf16 %v555, %v554
      %v605 = vpack.c.bf16 %v558, %v557
      %v606 = vpack.c.bf16 %v561, %v560
      %v607 = vpack.c.bf16 %v564, %v563
      %v608 = vpack.c.bf16 %v567, %v566
      %v609 = vpack.c.bf16 %v570, %v569
      %v610 = vpack.c.bf16 %v573, %v572
      %v611 = vpack.c.bf16 %v576, %v575
      %v612 = vpack.c.bf16 %v579, %v578
      %v613 = vpack.c.bf16 %v582, %v581
      %v614 = vpack.c.bf16 %v585, %v584
      %v615 = vpack.c.bf16 %v588, %v587
      %v616 = vpack.c.bf16 %v591, %v590
      %v617 = vpack.c.bf16 %v594, %v593
      %v618 = vld [vmem:[%s265] sm:$0xf]
      %v619 = vld [vmem:[%s265 + $0x4] sm:$0xf]
      %v620 = vld [vmem:[%s265 + $0x8] sm:$0xf]
      %v621 = vld [vmem:[%s265 + $0xc] sm:$0xf]
      %v622 = vld [vmem:[%s265 + $0x10] sm:$0xf]
      %v623 = vld [vmem:[%s265 + $0x14] sm:$0xf]
      %v624 = vld [vmem:[%s265 + $0x18] sm:$0xf]
      %v625 = vld [vmem:[%s265 + $0x1c] sm:$0xf]
      %v626 = vld [vmem:[%s265 + $0x20] sm:$0xf]
      %v627 = vld [vmem:[%s265 + $0x24] sm:$0xf]
      %v628 = vld [vmem:[%s265 + $0x28] sm:$0xf]
      %v629 = vld [vmem:[%s265 + $0x2c] sm:$0xf]
      %v630 = vld [vmem:[%s265 + $0x30] sm:$0xf]
      %v631 = vld [vmem:[%s265 + $0x34] sm:$0xf]
      %v632 = vld [vmem:[%s265 + $0x38] sm:$0xf]
      %v633 = vld [vmem:[%s265 + $0x3c] sm:$0xf]
      %vm682 = vcmask 1046528
      %v683 = vrot.slane %v548, 1
      %v684 = vrot.slane %v549, 1
      %v685 = vsel %vm682, %v683, %v684
      %v686 = vrot.slane %v550, 1
      %v687 = vsel %vm682, %v684, %v686
      %v688 = vrot.slane %v551, 1
      %v689 = vrot.slane %v552, 1
      %v690 = vsel %vm682, %v688, %v689
      %v691 = vrot.slane %v553, 1
      %v692 = vsel %vm682, %v689, %v691
      %v693 = vrot.slane %v554, 1
      %v694 = vrot.slane %v555, 1
      %v695 = vsel %vm682, %v693, %v694
      %v696 = vrot.slane %v556, 1
      %v697 = vsel %vm682, %v694, %v696
      %v698 = vrot.slane %v557, 1
      %v699 = vrot.slane %v558, 1
      %v700 = vsel %vm682, %v698, %v699
      %v701 = vrot.slane %v559, 1
      %v702 = vsel %vm682, %v699, %v701
      %v703 = vrot.slane %v560, 1
      %v704 = vrot.slane %v561, 1
      %v705 = vsel %vm682, %v703, %v704
      %v706 = vrot.slane %v562, 1
      %v707 = vsel %vm682, %v704, %v706
      %v708 = vrot.slane %v563, 1
      %v709 = vrot.slane %v564, 1
      %v710 = vsel %vm682, %v708, %v709
      %v711 = vrot.slane %v565, 1
      %v712 = vsel %vm682, %v709, %v711
      %v713 = vrot.slane %v566, 1
      %v714 = vrot.slane %v567, 1
      %v715 = vsel %vm682, %v713, %v714
      %v716 = vrot.slane %v568, 1
      %v717 = vsel %vm682, %v714, %v716
      %v718 = vrot.slane %v569, 1
      %v719 = vrot.slane %v570, 1
      %v720 = vsel %vm682, %v718, %v719
      %v721 = vrot.slane %v571, 1
      %v722 = vsel %vm682, %v719, %v721
      %v723 = vrot.slane %v572, 1
      %v724 = vrot.slane %v573, 1
      %v725 = vsel %vm682, %v723, %v724
      %v726 = vrot.slane %v574, 1
      %v727 = vsel %vm682, %v724, %v726
      %v728 = vrot.slane %v575, 1
      %v729 = vrot.slane %v576, 1
      %v730 = vsel %vm682, %v728, %v729
      %v731 = vrot.slane %v577, 1
      %v732 = vsel %vm682, %v729, %v731
      %v733 = vrot.slane %v578, 1
      %v734 = vrot.slane %v579, 1
      %v735 = vsel %vm682, %v733, %v734
      %v736 = vrot.slane %v580, 1
      %v737 = vsel %vm682, %v734, %v736
      %v738 = vrot.slane %v581, 1
      %v739 = vrot.slane %v582, 1
      %v740 = vsel %vm682, %v738, %v739
      %v741 = vrot.slane %v583, 1
      %v742 = vsel %vm682, %v739, %v741
      %v743 = vrot.slane %v584, 1
      %v744 = vrot.slane %v585, 1
      %v745 = vsel %vm682, %v743, %v744
      %v746 = vrot.slane %v586, 1
      %v747 = vsel %vm682, %v744, %v746
      %v748 = vrot.slane %v587, 1
      %v749 = vrot.slane %v588, 1
      %v750 = vsel %vm682, %v748, %v749
      %v751 = vrot.slane %v589, 1
      %v752 = vsel %vm682, %v749, %v751
      %v753 = vrot.slane %v590, 1
      %v754 = vrot.slane %v591, 1
      %v755 = vsel %vm682, %v753, %v754
      %v756 = vrot.slane %v592, 1
      %v757 = vsel %vm682, %v754, %v756
      %v758 = vrot.slane %v593, 1
      %v759 = vrot.slane %v594, 1
      %v760 = vsel %vm682, %v758, %v759
      %v761 = vrot.slane %v595, 1
      %v762 = vsel %vm682, %v759, %v761
      %v795 = vpack.c.bf16 %v687, %v685
      %v796 = vpack.c.bf16 %v692, %v690
      %v797 = vpack.c.bf16 %v697, %v695
      %v798 = vpack.c.bf16 %v702, %v700
      %v799 = vpack.c.bf16 %v707, %v705
      %v800 = vpack.c.bf16 %v712, %v710
      %v801 = vpack.c.bf16 %v717, %v715
      %v802 = vpack.c.bf16 %v722, %v720
      %v803 = vpack.c.bf16 %v727, %v725
      %v804 = vpack.c.bf16 %v732, %v730
      %v805 = vpack.c.bf16 %v737, %v735
      %v806 = vpack.c.bf16 %v742, %v740
      %v807 = vpack.c.bf16 %v747, %v745
      %v808 = vpack.c.bf16 %v752, %v750
      %v809 = vpack.c.bf16 %v757, %v755
      %v810 = vpack.c.bf16 %v762, %v760
      %s811 = scalar_lea.vmem %s265, 64
      %v812 = vld [vmem:[%s811] sm:$0xf]
      %v813 = vld [vmem:[%s811 + $0x4] sm:$0xf]
      %v814 = vld [vmem:[%s811 + $0x8] sm:$0xf]
      %v815 = vld [vmem:[%s811 + $0xc] sm:$0xf]
      %v816 = vld [vmem:[%s811 + $0x10] sm:$0xf]
      %v817 = vld [vmem:[%s811 + $0x14] sm:$0xf]
      %v818 = vld [vmem:[%s811 + $0x18] sm:$0xf]
      %v819 = vld [vmem:[%s811 + $0x1c] sm:$0xf]
      %v820 = vld [vmem:[%s811 + $0x20] sm:$0xf]
      %v821 = vld [vmem:[%s811 + $0x24] sm:$0xf]
      %v822 = vld [vmem:[%s811 + $0x28] sm:$0xf]
      %v823 = vld [vmem:[%s811 + $0x2c] sm:$0xf]
      %v824 = vld [vmem:[%s811 + $0x30] sm:$0xf]
      %v825 = vld [vmem:[%s811 + $0x34] sm:$0xf]
      %v826 = vld [vmem:[%s811 + $0x38] sm:$0xf]
      %v827 = vld [vmem:[%s811 + $0x3c] sm:$0xf]
      %v844 = vunpack.c.l.b16 %v812
      %v845 = vunpack.c.l.b16 %v813
      %v846 = vunpack.c.l.b16 %v814
      %v847 = vunpack.c.l.b16 %v815
      %v848 = vunpack.c.l.b16 %v816
      %v849 = vunpack.c.l.b16 %v817
      %v850 = vunpack.c.l.b16 %v818
      %v851 = vunpack.c.l.b16 %v819
      %v852 = vunpack.c.l.b16 %v820
      %v853 = vunpack.c.l.b16 %v821
      %v854 = vunpack.c.l.b16 %v822
      %v855 = vunpack.c.l.b16 %v823
      %v856 = vunpack.c.l.b16 %v824
      %v857 = vunpack.c.l.b16 %v825
      %v858 = vunpack.c.l.b16 %v826
      %v859 = vunpack.c.l.b16 %v827
      %v860 = vpack.c.b16 %v845, %v844
      %v861 = vpack.c.b16 %v847, %v846
      %v862 = vpack.c.b16 %v849, %v848
      %v863 = vpack.c.b16 %v851, %v850
      %v864 = vpack.c.b16 %v853, %v852
      %v865 = vpack.c.b16 %v855, %v854
      %v866 = vpack.c.b16 %v857, %v856
      %v867 = vpack.c.b16 %v859, %v858
      %876 = vmatprep.subr.bf16.mxu0 0
      %877 = vmatpush1.bf16.msra.mxu0 %v860
      %878 = vmatprep.subr.bf16.mxu0 0
      %879 = vmatpush1.bf16.msra.mxu0 %v861
      %880 = vmatprep.subr.bf16.mxu0 0
      %881 = vmatpush1.bf16.msra.mxu0 %v862
      %882 = vmatprep.subr.bf16.mxu0 0
      %883 = vmatpush1.bf16.msra.mxu0 %v863
      %884 = vmatprep.subr.bf16.mxu0 0
      %885 = vmatpush1.bf16.msra.mxu0 %v864
      %886 = vmatprep.subr.bf16.mxu0 0
      %887 = vmatpush1.bf16.msra.mxu0 %v865
      %888 = vmatprep.subr.bf16.mxu0 0
      %889 = vmatpush1.bf16.msra.mxu0 %v866
      %890 = vmatprep.subr.bf16.mxu0 0
      %891 = vmatpush1.bf16.msra.mxu0 %v867
      %892 = vmatprep.subr.bf16.mxu0 0
      %893 = vmatpush1.bf16.msra.mxu0 0
      %894 = vmatprep.subr.bf16.mxu0 0
      %895 = vmatpush1.bf16.msra.mxu0 0
      %896 = vmatprep.subr.bf16.mxu0 0
      %897 = vmatpush1.bf16.msra.mxu0 0
      %898 = vmatprep.subr.bf16.mxu0 0
      %899 = vmatpush1.bf16.msra.mxu0 0
      %900 = vmatprep.subr.bf16.mxu0 0
      %901 = vmatpush1.bf16.msra.mxu0 0
      %902 = vmatprep.subr.bf16.mxu0 0
      %903 = vmatpush1.bf16.msra.mxu0 0
      %904 = vmatprep.subr.bf16.mxu0 0
      %905 = vmatpush1.bf16.msra.mxu0 0
      %906 = vmatprep.subr.bf16.mxu0 0
      %907 = vmatpush1.bf16.msra.mxu0 0
      %908 = vmatprep.mubr.bf16.mxu0 0
      %909 = vmatmul.mubr.bf16.gmra.mrb[0].mxu0 %v795
      %v910 = vpop.f32.mrb[0].mxu0
      %v911 = vadd.f32 0.0, %v910
      %v912 = vpop.f32.mrb[0].mxu0
      %v913 = vpop.f32.mrb[0].mxu0
      %v914 = vadd.f32 0.0, %v913
      %v915 = vpop.f32.mrb[0].mxu0
      %916 = vmatprep.mubr.bf16.mxu0 0
      %917 = vmatmul.mubr.bf16.gmra.mrb[0].mxu0 %v796
      %v918 = vpop.f32.mrb[0].mxu0
      %v919 = vadd.f32 0.0, %v918
      %v920 = vpop.f32.mrb[0].mxu0
      %v921 = vpop.f32.mrb[0].mxu0
      %v922 = vadd.f32 0.0, %v921
      %v923 = vpop.f32.mrb[0].mxu0
      %924 = vmatprep.mubr.bf16.mxu0 0
      %925 = vmatmul.mubr.bf16.gmra.mrb[0].mxu0 %v797
      %v926 = vpop.f32.mrb[0].mxu0
      %v927 = vadd.f32 0.0, %v926
      %v928 = vpop.f32.mrb[0].mxu0
      %v929 = vpop.f32.mrb[0].mxu0
      %v930 = vadd.f32 0.0, %v929
      %v931 = vpop.f32.mrb[0].mxu0
      %932 = vmatprep.mubr.bf16.mxu0 0
      %933 = vmatmul.mubr.bf16.gmra.mrb[0].mxu0 %v798
      %v934 = vpop.f32.mrb[0].mxu0
      %v935 = vadd.f32 0.0, %v934
      %v936 = vpop.f32.mrb[0].mxu0
      %v937 = vpop.f32.mrb[0].mxu0
      %v938 = vadd.f32 0.0, %v937
      %v939 = vpop.f32.mrb[0].mxu0
      %940 = vmatprep.mubr.bf16.mxu0 0
      %941 = vmatmul.mubr.bf16.gmra.mrb[0].mxu0 %v799
      %v942 = vpop.f32.mrb[0].mxu0
      %v943 = vadd.f32 0.0, %v942
      %v944 = vpop.f32.mrb[0].mxu0
      %v945 = vpop.f32.mrb[0].mxu0
      %v946 = vadd.f32 0.0, %v945
      %v947 = vpop.f32.mrb[0].mxu0
      %948 = vmatprep.mubr.bf16.mxu0 0
      %949 = vmatmul.mubr.bf16.gmra.mrb[0].mxu0 %v800
      %v950 = vpop.f32.mrb[0].mxu0
      %v951 = vadd.f32 0.0, %v950
      %v952 = vpop.f32.mrb[0].mxu0
      %v953 = vpop.f32.mrb[0].mxu0
      %v954 = vadd.f32 0.0, %v953
      %v955 = vpop.f32.mrb[0].mxu0
      %956 = vmatprep.mubr.bf16.mxu0 0
      %957 = vmatmul.mubr.bf16.gmra.mrb[0].mxu0 %v801
      %v958 = vpop.f32.mrb[0].mxu0
      %v959 = vadd.f32 0.0, %v958
      %v960 = vpop.f32.mrb[0].mxu0
      %v961 = vpop.f32.mrb[0].mxu0
      %v962 = vadd.f32 0.0, %v961
      %v963 = vpop.f32.mrb[0].mxu0
      %964 = vmatprep.mubr.bf16.mxu0 0
      %965 = vmatmul.mubr.bf16.gmra.mrb[0].mxu0 %v802
      %v966 = vpop.f32.mrb[0].mxu0
      %v967 = vadd.f32 0.0, %v966
      %v968 = vpop.f32.mrb[0].mxu0
      %v969 = vpop.f32.mrb[0].mxu0
      %v970 = vadd.f32 0.0, %v969
      %v971 = vpop.f32.mrb[0].mxu0
      %972 = vmatprep.mubr.bf16.mxu0 0
      %973 = vmatmul.mubr.bf16.gmra.mrb[0].mxu0 %v803
      %v974 = vpop.f32.mrb[0].mxu0
      %v975 = vadd.f32 0.0, %v974
      %v976 = vpop.f32.mrb[0].mxu0
      %v977 = vpop.f32.mrb[0].mxu0
      %v978 = vadd.f32 0.0, %v977
      %v979 = vpop.f32.mrb[0].mxu0
      %980 = vmatprep.mubr.bf16.mxu0 0
      %981 = vmatmul.mubr.bf16.gmra.mrb[0].mxu0 %v804
      %v982 = vpop.f32.mrb[0].mxu0
      %v983 = vadd.f32 0.0, %v982
      %v984 = vpop.f32.mrb[0].mxu0
      %v985 = vpop.f32.mrb[0].mxu0
      %v986 = vadd.f32 0.0, %v985
      %v987 = vpop.f32.mrb[0].mxu0
      %988 = vmatprep.mubr.bf16.mxu0 0
      %989 = vmatmul.mubr.bf16.gmra.mrb[0].mxu0 %v805
      %v990 = vpop.f32.mrb[0].mxu0
      %v991 = vadd.f32 0.0, %v990
      %v992 = vpop.f32.mrb[0].mxu0
      %v993 = vpop.f32.mrb[0].mxu0
      %v994 = vadd.f32 0.0, %v993
      %v995 = vpop.f32.mrb[0].mxu0
      %996 = vmatprep.mubr.bf16.mxu0 0
      %997 = vmatmul.mubr.bf16.gmra.mrb[0].mxu0 %v806
      %v998 = vpop.f32.mrb[0].mxu0
      %v999 = vadd.f32 0.0, %v998
      %v1000 = vpop.f32.mrb[0].mxu0
      %v1001 = vpop.f32.mrb[0].mxu0
      %v1002 = vadd.f32 0.0, %v1001
      %v1003 = vpop.f32.mrb[0].mxu0
      %1004 = vmatprep.mubr.bf16.mxu0 0
      %1005 = vmatmul.mubr.bf16.gmra.mrb[0].mxu0 %v807
      %v1006 = vpop.f32.mrb[0].mxu0
      %v1007 = vadd.f32 0.0, %v1006
      %v1008 = vpop.f32.mrb[0].mxu0
      %v1009 = vpop.f32.mrb[0].mxu0
      %v1010 = vadd.f32 0.0, %v1009
      %v1011 = vpop.f32.mrb[0].mxu0
      %1012 = vmatprep.mubr.bf16.mxu0 0
      %1013 = vmatmul.mubr.bf16.gmra.mrb[0].mxu0 %v808
      %v1014 = vpop.f32.mrb[0].mxu0
      %v1015 = vadd.f32 0.0, %v1014
      %v1016 = vpop.f32.mrb[0].mxu0
      %v1017 = vpop.f32.mrb[0].mxu0
      %v1018 = vadd.f32 0.0, %v1017
      %v1019 = vpop.f32.mrb[0].mxu0
      %1020 = vmatprep.mubr.bf16.mxu0 0
      %1021 = vmatmul.mubr.bf16.gmra.mrb[0].mxu0 %v809
      %v1022 = vpop.f32.mrb[0].mxu0
      %v1023 = vadd.f32 0.0, %v1022
      %v1024 = vpop.f32.mrb[0].mxu0
      %v1025 = vpop.f32.mrb[0].mxu0
      %v1026 = vadd.f32 0.0, %v1025
      %v1027 = vpop.f32.mrb[0].mxu0
      %1028 = vmatprep.mubr.bf16.mxu0 0
      %1029 = vmatmul.mubr.bf16.gmra.mrb[0].mxu0 %v810
      %v1030 = vpop.f32.mrb[0].mxu0
      %v1031 = vadd.f32 0.0, %v1030
      %v1032 = vpop.f32.mrb[0].mxu0
      %v1033 = vpop.f32.mrb[0].mxu0
      %v1034 = vadd.f32 0.0, %v1033
      %v1035 = vpop.f32.mrb[0].mxu0
      %1036 = vdwg.mxu0
      %v1053 = vunpack.c.l.b16 %v618
      %v1054 = vunpack.c.l.b16 %v619
      %v1055 = vunpack.c.l.b16 %v620
      %v1056 = vunpack.c.l.b16 %v621
      %v1057 = vunpack.c.l.b16 %v622
      %v1058 = vunpack.c.l.b16 %v623
      %v1059 = vunpack.c.l.b16 %v624
      %v1060 = vunpack.c.l.b16 %v625
      %v1061 = vunpack.c.l.b16 %v626
      %v1062 = vunpack.c.l.b16 %v627
      %v1063 = vunpack.c.l.b16 %v628
      %v1064 = vunpack.c.l.b16 %v629
      %v1065 = vunpack.c.l.b16 %v630
      %v1066 = vunpack.c.l.b16 %v631
      %v1067 = vunpack.c.l.b16 %v632
      %v1068 = vunpack.c.l.b16 %v633
      %v1069 = vpack.c.b16 %v1054, %v1053
      %v1070 = vpack.c.b16 %v1056, %v1055
      %v1071 = vpack.c.b16 %v1058, %v1057
      %v1072 = vpack.c.b16 %v1060, %v1059
      %v1073 = vpack.c.b16 %v1062, %v1061
      %v1074 = vpack.c.b16 %v1064, %v1063
      %v1075 = vpack.c.b16 %v1066, %v1065
      %v1076 = vpack.c.b16 %v1068, %v1067
      %1085 = vmatprep.subr.bf16.mxu0 0
      %1086 = vmatpush1.bf16.msra.mxu0 %v1069
      %1087 = vmatprep.subr.bf16.mxu0 0
      %1088 = vmatpush1.bf16.msra.mxu0 %v1070
      %1089 = vmatprep.subr.bf16.mxu0 0
      %1090 = vmatpush1.bf16.msra.mxu0 %v1071
      %1091 = vmatprep.subr.bf16.mxu0 0
      %1092 = vmatpush1.bf16.msra.mxu0 %v1072
      %1093 = vmatprep.subr.bf16.mxu0 0
      %1094 = vmatpush1.bf16.msra.mxu0 %v1073
      %1095 = vmatprep.subr.bf16.mxu0 0
      %1096 = vmatpush1.bf16.msra.mxu0 %v1074
      %1097 = vmatprep.subr.bf16.mxu0 0
      %1098 = vmatpush1.bf16.msra.mxu0 %v1075
      %1099 = vmatprep.subr.bf16.mxu0 0
      %1100 = vmatpush1.bf16.msra.mxu0 %v1076
      %1101 = vmatprep.subr.bf16.mxu0 0
      %1102 = vmatpush1.bf16.msra.mxu0 0
      %1103 = vmatprep.subr.bf16.mxu0 0
      %1104 = vmatpush1.bf16.msra.mxu0 0
      %1105 = vmatprep.subr.bf16.mxu0 0
      %1106 = vmatpush1.bf16.msra.mxu0 0
      %1107 = vmatprep.subr.bf16.mxu0 0
      %1108 = vmatpush1.bf16.msra.mxu0 0
      %1109 = vmatprep.subr.bf16.mxu0 0
      %1110 = vmatpush1.bf16.msra.mxu0 0
      %1111 = vmatprep.subr.bf16.mxu0 0
      %1112 = vmatpush1.bf16.msra.mxu0 0
      %1113 = vmatprep.subr.bf16.mxu0 0
      %1114 = vmatpush1.bf16.msra.mxu0 0
      %1115 = vmatprep.subr.bf16.mxu0 0
      %1116 = vmatpush1.bf16.msra.mxu0 0
      %1117 = vmatprep.mubr.bf16.mxu0 0
      %1118 = vmatmul.mubr.bf16.gmra.mrb[0].mxu0 %v602
      %v1119 = vpop.f32.mrb[0].mxu0
      %v1120 = vadd.f32 %v911, %v1119
      %v1121 = vpop.f32.mrb[0].mxu0
      %v1122 = vpop.f32.mrb[0].mxu0
      %v1123 = vadd.f32 %v914, %v1122
      %v1124 = vpop.f32.mrb[0].mxu0
      %1125 = vmatprep.mubr.bf16.mxu0 0
      %1126 = vmatmul.mubr.bf16.gmra.mrb[0].mxu0 %v603
      %v1127 = vpop.f32.mrb[0].mxu0
      %v1128 = vadd.f32 %v919, %v1127
      %v1129 = vpop.f32.mrb[0].mxu0
      %v1130 = vpop.f32.mrb[0].mxu0
      %v1131 = vadd.f32 %v922, %v1130
      %v1132 = vpop.f32.mrb[0].mxu0
      %1133 = vmatprep.mubr.bf16.mxu0 0
      %1134 = vmatmul.mubr.bf16.gmra.mrb[0].mxu0 %v604
      %v1135 = vpop.f32.mrb[0].mxu0
      %v1136 = vadd.f32 %v927, %v1135
      %v1137 = vpop.f32.mrb[0].mxu0
      %v1138 = vpop.f32.mrb[0].mxu0
      %v1139 = vadd.f32 %v930, %v1138
      %v1140 = vpop.f32.mrb[0].mxu0
      %1141 = vmatprep.mubr.bf16.mxu0 0
      %1142 = vmatmul.mubr.bf16.gmra.mrb[0].mxu0 %v605
      %v1143 = vpop.f32.mrb[0].mxu0
      %v1144 = vadd.f32 %v935, %v1143
      %v1145 = vpop.f32.mrb[0].mxu0
      %v1146 = vpop.f32.mrb[0].mxu0
      %v1147 = vadd.f32 %v938, %v1146
      %v1148 = vpop.f32.mrb[0].mxu0
      %1149 = vmatprep.mubr.bf16.mxu0 0
      %1150 = vmatmul.mubr.bf16.gmra.mrb[0].mxu0 %v606
      %v1151 = vpop.f32.mrb[0].mxu0
      %v1152 = vadd.f32 %v943, %v1151
      %v1153 = vpop.f32.mrb[0].mxu0
      %v1154 = vpop.f32.mrb[0].mxu0
      %v1155 = vadd.f32 %v946, %v1154
      %v1156 = vpop.f32.mrb[0].mxu0
      %1157 = vmatprep.mubr.bf16.mxu0 0
      %1158 = vmatmul.mubr.bf16.gmra.mrb[0].mxu0 %v607
      %v1159 = vpop.f32.mrb[0].mxu0
      %v1160 = vadd.f32 %v951, %v1159
      %v1161 = vpop.f32.mrb[0].mxu0
      %v1162 = vpop.f32.mrb[0].mxu0
      %v1163 = vadd.f32 %v954, %v1162
      %v1164 = vpop.f32.mrb[0].mxu0
      %1165 = vmatprep.mubr.bf16.mxu0 0
      %1166 = vmatmul.mubr.bf16.gmra.mrb[0].mxu0 %v608
      %v1167 = vpop.f32.mrb[0].mxu0
      %v1168 = vadd.f32 %v959, %v1167
      %v1169 = vpop.f32.mrb[0].mxu0
      %v1170 = vpop.f32.mrb[0].mxu0
      %v1171 = vadd.f32 %v962, %v1170
      %v1172 = vpop.f32.mrb[0].mxu0
      %1173 = vmatprep.mubr.bf16.mxu0 0
      %1174 = vmatmul.mubr.bf16.gmra.mrb[0].mxu0 %v609
      %v1175 = vpop.f32.mrb[0].mxu0
      %v1176 = vadd.f32 %v967, %v1175
      %v1177 = vpop.f32.mrb[0].mxu0
      %v1178 = vpop.f32.mrb[0].mxu0
      %v1179 = vadd.f32 %v970, %v1178
      %v1180 = vpop.f32.mrb[0].mxu0
      %1181 = vmatprep.mubr.bf16.mxu0 0
      %1182 = vmatmul.mubr.bf16.gmra.mrb[0].mxu0 %v610
      %v1183 = vpop.f32.mrb[0].mxu0
      %v1184 = vadd.f32 %v975, %v1183
      %v1185 = vpop.f32.mrb[0].mxu0
      %v1186 = vpop.f32.mrb[0].mxu0
      %v1187 = vadd.f32 %v978, %v1186
      %v1188 = vpop.f32.mrb[0].mxu0
      %1189 = vmatprep.mubr.bf16.mxu0 0
      %1190 = vmatmul.mubr.bf16.gmra.mrb[0].mxu0 %v611
      %v1191 = vpop.f32.mrb[0].mxu0
      %v1192 = vadd.f32 %v983, %v1191
      %v1193 = vpop.f32.mrb[0].mxu0
      %v1194 = vpop.f32.mrb[0].mxu0
      %v1195 = vadd.f32 %v986, %v1194
      %v1196 = vpop.f32.mrb[0].mxu0
      %1197 = vmatprep.mubr.bf16.mxu0 0
      %1198 = vmatmul.mubr.bf16.gmra.mrb[0].mxu0 %v612
      %v1199 = vpop.f32.mrb[0].mxu0
      %v1200 = vadd.f32 %v991, %v1199
      %v1201 = vpop.f32.mrb[0].mxu0
      %v1202 = vpop.f32.mrb[0].mxu0
      %v1203 = vadd.f32 %v994, %v1202
      %v1204 = vpop.f32.mrb[0].mxu0
      %1205 = vmatprep.mubr.bf16.mxu0 0
      %1206 = vmatmul.mubr.bf16.gmra.mrb[0].mxu0 %v613
      %v1207 = vpop.f32.mrb[0].mxu0
      %v1208 = vadd.f32 %v999, %v1207
      %v1209 = vpop.f32.mrb[0].mxu0
      %v1210 = vpop.f32.mrb[0].mxu0
      %v1211 = vadd.f32 %v1002, %v1210
      %v1212 = vpop.f32.mrb[0].mxu0
      %1213 = vmatprep.mubr.bf16.mxu0 0
      %1214 = vmatmul.mubr.bf16.gmra.mrb[0].mxu0 %v614
      %v1215 = vpop.f32.mrb[0].mxu0
      %v1216 = vadd.f32 %v1007, %v1215
      %v1217 = vpop.f32.mrb[0].mxu0
      %v1218 = vpop.f32.mrb[0].mxu0
      %v1219 = vadd.f32 %v1010, %v1218
      %v1220 = vpop.f32.mrb[0].mxu0
      %1221 = vmatprep.mubr.bf16.mxu0 0
      %1222 = vmatmul.mubr.bf16.gmra.mrb[0].mxu0 %v615
      %v1223 = vpop.f32.mrb[0].mxu0
      %v1224 = vadd.f32 %v1015, %v1223
      %v1225 = vpop.f32.mrb[0].mxu0
      %v1226 = vpop.f32.mrb[0].mxu0
      %v1227 = vadd.f32 %v1018, %v1226
      %v1228 = vpop.f32.mrb[0].mxu0
      %1229 = vmatprep.mubr.bf16.mxu0 0
      %1230 = vmatmul.mubr.bf16.gmra.mrb[0].mxu0 %v616
      %v1231 = vpop.f32.mrb[0].mxu0
      %v1232 = vadd.f32 %v1023, %v1231
      %v1233 = vpop.f32.mrb[0].mxu0
      %v1234 = vpop.f32.mrb[0].mxu0
      %v1235 = vadd.f32 %v1026, %v1234
      %v1236 = vpop.f32.mrb[0].mxu0
      %1237 = vmatprep.mubr.bf16.mxu0 0
      %1238 = vmatmul.mubr.bf16.gmra.mrb[0].mxu0 %v617
      %v1239 = vpop.f32.mrb[0].mxu0
      %v1240 = vadd.f32 %v1031, %v1239
      %v1241 = vpop.f32.mrb[0].mxu0
      %v1242 = vpop.f32.mrb[0].mxu0
      %v1243 = vadd.f32 %v1034, %v1242
      %v1244 = vpop.f32.mrb[0].mxu0
      %1245 = vdwg.mxu0
      %vm1246 = vcmask 1045504
      %v1247 = vrot.slane %v548, 2
      %v1248 = vrot.slane %v549, 2
      %v1249 = vsel %vm1246, %v1247, %v1248
      %v1250 = vrot.slane %v550, 2
      %v1251 = vsel %vm1246, %v1248, %v1250
      %v1252 = vrot.slane %v551, 2
      %v1253 = vrot.slane %v552, 2
      %v1254 = vsel %vm1246, %v1252, %v1253
      %v1255 = vrot.slane %v553, 2
      %v1256 = vsel %vm1246, %v1253, %v1255
      %v1257 = vrot.slane %v554, 2
      %v1258 = vrot.slane %v555, 2
      %v1259 = vsel %vm1246, %v1257, %v1258
      %v1260 = vrot.slane %v556, 2
      %v1261 = vsel %vm1246, %v1258, %v1260
      %v1262 = vrot.slane %v557, 2
      %v1263 = vrot.slane %v558, 2
      %v1264 = vsel %vm1246, %v1262, %v1263
      %v1265 = vrot.slane %v559, 2
      %v1266 = vsel %vm1246, %v1263, %v1265
      %v1267 = vrot.slane %v560, 2
      %v1268 = vrot.slane %v561, 2
      %v1269 = vsel %vm1246, %v1267, %v1268
      %v1270 = vrot.slane %v562, 2
      %v1271 = vsel %vm1246, %v1268, %v1270
      %v1272 = vrot.slane %v563, 2
      %v1273 = vrot.slane %v564, 2
      %v1274 = vsel %vm1246, %v1272, %v1273
      %v1275 = vrot.slane %v565, 2
      %v1276 = vsel %vm1246, %v1273, %v1275
      %v1277 = vrot.slane %v566, 2
      %v1278 = vrot.slane %v567, 2
      %v1279 = vsel %vm1246, %v1277, %v1278
      %v1280 = vrot.slane %v568, 2
      %v1281 = vsel %vm1246, %v1278, %v1280
      %v1282 = vrot.slane %v569, 2
      %v1283 = vrot.slane %v570, 2
      %v1284 = vsel %vm1246, %v1282, %v1283
      %v1285 = vrot.slane %v571, 2
      %v1286 = vsel %vm1246, %v1283, %v1285
      %v1287 = vrot.slane %v572, 2
      %v1288 = vrot.slane %v573, 2
      %v1289 = vsel %vm1246, %v1287, %v1288
      %v1290 = vrot.slane %v574, 2
      %v1291 = vsel %vm1246, %v1288, %v1290
      %v1292 = vrot.slane %v575, 2
      %v1293 = vrot.slane %v576, 2
      %v1294 = vsel %vm1246, %v1292, %v1293
      %v1295 = vrot.slane %v577, 2
      %v1296 = vsel %vm1246, %v1293, %v1295
      %v1297 = vrot.slane %v578, 2
      %v1298 = vrot.slane %v579, 2
      %v1299 = vsel %vm1246, %v1297, %v1298
      %v1300 = vrot.slane %v580, 2
      %v1301 = vsel %vm1246, %v1298, %v1300
      %v1302 = vrot.slane %v581, 2
      %v1303 = vrot.slane %v582, 2
      %v1304 = vsel %vm1246, %v1302, %v1303
      %v1305 = vrot.slane %v583, 2
      %v1306 = vsel %vm1246, %v1303, %v1305
      %v1307 = vrot.slane %v584, 2
      %v1308 = vrot.slane %v585, 2
      %v1309 = vsel %vm1246, %v1307, %v1308
      %v1310 = vrot.slane %v586, 2
      %v1311 = vsel %vm1246, %v1308, %v1310
      %v1312 = vrot.slane %v587, 2
      %v1313 = vrot.slane %v588, 2
      %v1314 = vsel %vm1246, %v1312, %v1313
      %v1315 = vrot.slane %v589, 2
      %v1316 = vsel %vm1246, %v1313, %v1315
      %v1317 = vrot.slane %v590, 2
      %v1318 = vrot.slane %v591, 2
      %v1319 = vsel %vm1246, %v1317, %v1318
      %v1320 = vrot.slane %v592, 2
      %v1321 = vsel %vm1246, %v1318, %v1320
      %v1322 = vrot.slane %v593, 2
      %v1323 = vrot.slane %v594, 2
      %v1324 = vsel %vm1246, %v1322, %v1323
      %v1325 = vrot.slane %v595, 2
      %v1326 = vsel %vm1246, %v1323, %v1325
      %v1359 = vpack.c.bf16 %v1251, %v1249
      %v1360 = vpack.c.bf16 %v1256, %v1254
      %v1361 = vpack.c.bf16 %v1261, %v1259
      %v1362 = vpack.c.bf16 %v1266, %v1264
      %v1363 = vpack.c.bf16 %v1271, %v1269
      %v1364 = vpack.c.bf16 %v1276, %v1274
      %v1365 = vpack.c.bf16 %v1281, %v1279
      %v1366 = vpack.c.bf16 %v1286, %v1284
      %v1367 = vpack.c.bf16 %v1291, %v1289
      %v1368 = vpack.c.bf16 %v1296, %v1294
      %v1369 = vpack.c.bf16 %v1301, %v1299
      %v1370 = vpack.c.bf16 %v1306, %v1304
      %v1371 = vpack.c.bf16 %v1311, %v1309
      %v1372 = vpack.c.bf16 %v1316, %v1314
      %v1373 = vpack.c.bf16 %v1321, %v1319
      %v1374 = vpack.c.bf16 %v1326, %v1324
      %s1375 = scalar_lea.vmem %s265, 128
      %v1376 = vld [vmem:[%s1375] sm:$0xf]
      %v1377 = vld [vmem:[%s1375 + $0x4] sm:$0xf]
      %v1378 = vld [vmem:[%s1375 + $0x8] sm:$0xf]
      %v1379 = vld [vmem:[%s1375 + $0xc] sm:$0xf]
      %v1380 = vld [vmem:[%s1375 + $0x10] sm:$0xf]
      %v1381 = vld [vmem:[%s1375 + $0x14] sm:$0xf]
      %v1382 = vld [vmem:[%s1375 + $0x18] sm:$0xf]
      %v1383 = vld [vmem:[%s1375 + $0x1c] sm:$0xf]
      %v1384 = vld [vmem:[%s1375 + $0x20] sm:$0xf]
      %v1385 = vld [vmem:[%s1375 + $0x24] sm:$0xf]
      %v1386 = vld [vmem:[%s1375 + $0x28] sm:$0xf]
      %v1387 = vld [vmem:[%s1375 + $0x2c] sm:$0xf]
      %v1388 = vld [vmem:[%s1375 + $0x30] sm:$0xf]
      %v1389 = vld [vmem:[%s1375 + $0x34] sm:$0xf]
      %v1390 = vld [vmem:[%s1375 + $0x38] sm:$0xf]
      %v1391 = vld [vmem:[%s1375 + $0x3c] sm:$0xf]
      %v1408 = vunpack.c.l.b16 %v1376
      %v1409 = vunpack.c.l.b16 %v1377
      %v1410 = vunpack.c.l.b16 %v1378
      %v1411 = vunpack.c.l.b16 %v1379
      %v1412 = vunpack.c.l.b16 %v1380
      %v1413 = vunpack.c.l.b16 %v1381
      %v1414 = vunpack.c.l.b16 %v1382
      %v1415 = vunpack.c.l.b16 %v1383
      %v1416 = vunpack.c.l.b16 %v1384
      %v1417 = vunpack.c.l.b16 %v1385
      %v1418 = vunpack.c.l.b16 %v1386
      %v1419 = vunpack.c.l.b16 %v1387
      %v1420 = vunpack.c.l.b16 %v1388
      %v1421 = vunpack.c.l.b16 %v1389
      %v1422 = vunpack.c.l.b16 %v1390
      %v1423 = vunpack.c.l.b16 %v1391
      %v1424 = vpack.c.b16 %v1409, %v1408
      %v1425 = vpack.c.b16 %v1411, %v1410
      %v1426 = vpack.c.b16 %v1413, %v1412
      %v1427 = vpack.c.b16 %v1415, %v1414
      %v1428 = vpack.c.b16 %v1417, %v1416
      %v1429 = vpack.c.b16 %v1419, %v1418
      %v1430 = vpack.c.b16 %v1421, %v1420
      %v1431 = vpack.c.b16 %v1423, %v1422
      %1440 = vmatprep.subr.bf16.mxu0 0
      %1441 = vmatpush1.bf16.msra.mxu0 %v1424
      %1442 = vmatprep.subr.bf16.mxu0 0
      %1443 = vmatpush1.bf16.msra.mxu0 %v1425
      %1444 = vmatprep.subr.bf16.mxu0 0
      %1445 = vmatpush1.bf16.msra.mxu0 %v1426
      %1446 = vmatprep.subr.bf16.mxu0 0
      %1447 = vmatpush1.bf16.msra.mxu0 %v1427
      %1448 = vmatprep.subr.bf16.mxu0 0
      %1449 = vmatpush1.bf16.msra.mxu0 %v1428
      %1450 = vmatprep.subr.bf16.mxu0 0
      %1451 = vmatpush1.bf16.msra.mxu0 %v1429
      %1452 = vmatprep.subr.bf16.mxu0 0
      %1453 = vmatpush1.bf16.msra.mxu0 %v1430
      %1454 = vmatprep.subr.bf16.mxu0 0
      %1455 = vmatpush1.bf16.msra.mxu0 %v1431
      %1456 = vmatprep.subr.bf16.mxu0 0
      %1457 = vmatpush1.bf16.msra.mxu0 0
      %1458 = vmatprep.subr.bf16.mxu0 0
      %1459 = vmatpush1.bf16.msra.mxu0 0
      %1460 = vmatprep.subr.bf16.mxu0 0
      %1461 = vmatpush1.bf16.msra.mxu0 0
      %1462 = vmatprep.subr.bf16.mxu0 0
      %1463 = vmatpush1.bf16.msra.mxu0 0
      %1464 = vmatprep.subr.bf16.mxu0 0
      %1465 = vmatpush1.bf16.msra.mxu0 0
      %1466 = vmatprep.subr.bf16.mxu0 0
      %1467 = vmatpush1.bf16.msra.mxu0 0
      %1468 = vmatprep.subr.bf16.mxu0 0
      %1469 = vmatpush1.bf16.msra.mxu0 0
      %1470 = vmatprep.subr.bf16.mxu0 0
      %1471 = vmatpush1.bf16.msra.mxu0 0
      %1472 = vmatprep.mubr.bf16.mxu0 0
      %1473 = vmatmul.mubr.bf16.gmra.mrb[0].mxu0 %v1359
      %v1474 = vpop.f32.mrb[0].mxu0
      %v1475 = vadd.f32 0.0, %v1474
      %v1476 = vpop.f32.mrb[0].mxu0
      %v1477 = vpop.f32.mrb[0].mxu0
      %v1478 = vadd.f32 0.0, %v1477
      %v1479 = vpop.f32.mrb[0].mxu0
      %1480 = vmatprep.mubr.bf16.mxu0 0
      %1481 = vmatmul.mubr.bf16.gmra.mrb[0].mxu0 %v1360
      %v1482 = vpop.f32.mrb[0].mxu0
      %v1483 = vadd.f32 0.0, %v1482
      %v1484 = vpop.f32.mrb[0].mxu0
      %v1485 = vpop.f32.mrb[0].mxu0
      %v1486 = vadd.f32 0.0, %v1485
      %v1487 = vpop.f32.mrb[0].mxu0
      %1488 = vmatprep.mubr.bf16.mxu0 0
      %1489 = vmatmul.mubr.bf16.gmra.mrb[0].mxu0 %v1361
      %v1490 = vpop.f32.mrb[0].mxu0
      %v1491 = vadd.f32 0.0, %v1490
      %v1492 = vpop.f32.mrb[0].mxu0
      %v1493 = vpop.f32.mrb[0].mxu0
      %v1494 = vadd.f32 0.0, %v1493
      %v1495 = vpop.f32.mrb[0].mxu0
      %1496 = vmatprep.mubr.bf16.mxu0 0
      %1497 = vmatmul.mubr.bf16.gmra.mrb[0].mxu0 %v1362
      %v1498 = vpop.f32.mrb[0].mxu0
      %v1499 = vadd.f32 0.0, %v1498
      %v1500 = vpop.f32.mrb[0].mxu0
      %v1501 = vpop.f32.mrb[0].mxu0
      %v1502 = vadd.f32 0.0, %v1501
      %v1503 = vpop.f32.mrb[0].mxu0
      %1504 = vmatprep.mubr.bf16.mxu0 0
      %1505 = vmatmul.mubr.bf16.gmra.mrb[0].mxu0 %v1363
      %v1506 = vpop.f32.mrb[0].mxu0
      %v1507 = vadd.f32 0.0, %v1506
      %v1508 = vpop.f32.mrb[0].mxu0
      %v1509 = vpop.f32.mrb[0].mxu0
      %v1510 = vadd.f32 0.0, %v1509
      %v1511 = vpop.f32.mrb[0].mxu0
      %1512 = vmatprep.mubr.bf16.mxu0 0
      %1513 = vmatmul.mubr.bf16.gmra.mrb[0].mxu0 %v1364
      %v1514 = vpop.f32.mrb[0].mxu0
      %v1515 = vadd.f32 0.0, %v1514
      %v1516 = vpop.f32.mrb[0].mxu0
      %v1517 = vpop.f32.mrb[0].mxu0
      %v1518 = vadd.f32 0.0, %v1517
      %v1519 = vpop.f32.mrb[0].mxu0
      %1520 = vmatprep.mubr.bf16.mxu0 0
      %1521 = vmatmul.mubr.bf16.gmra.mrb[0].mxu0 %v1365
      %v1522 = vpop.f32.mrb[0].mxu0
      %v1523 = vadd.f32 0.0, %v1522
      %v1524 = vpop.f32.mrb[0].mxu0
      %v1525 = vpop.f32.mrb[0].mxu0
      %v1526 = vadd.f32 0.0, %v1525
      %v1527 = vpop.f32.mrb[0].mxu0
      %1528 = vmatprep.mubr.bf16.mxu0 0
      %1529 = vmatmul.mubr.bf16.gmra.mrb[0].mxu0 %v1366
      %v1530 = vpop.f32.mrb[0].mxu0
      %v1531 = vadd.f32 0.0, %v1530
      %v1532 = vpop.f32.mrb[0].mxu0
      %v1533 = vpop.f32.mrb[0].mxu0
      %v1534 = vadd.f32 0.0, %v1533
      %v1535 = vpop.f32.mrb[0].mxu0
      %1536 = vmatprep.mubr.bf16.mxu0 0
      %1537 = vmatmul.mubr.bf16.gmra.mrb[0].mxu0 %v1367
      %v1538 = vpop.f32.mrb[0].mxu0
      %v1539 = vadd.f32 0.0, %v1538
      %v1540 = vpop.f32.mrb[0].mxu0
      %v1541 = vpop.f32.mrb[0].mxu0
      %v1542 = vadd.f32 0.0, %v1541
      %v1543 = vpop.f32.mrb[0].mxu0
      %1544 = vmatprep.mubr.bf16.mxu0 0
      %1545 = vmatmul.mubr.bf16.gmra.mrb[0].mxu0 %v1368
      %v1546 = vpop.f32.mrb[0].mxu0
      %v1547 = vadd.f32 0.0, %v1546
      %v1548 = vpop.f32.mrb[0].mxu0
      %v1549 = vpop.f32.mrb[0].mxu0
      %v1550 = vadd.f32 0.0, %v1549
      %v1551 = vpop.f32.mrb[0].mxu0
      %1552 = vmatprep.mubr.bf16.mxu0 0
      %1553 = vmatmul.mubr.bf16.gmra.mrb[0].mxu0 %v1369
      %v1554 = vpop.f32.mrb[0].mxu0
      %v1555 = vadd.f32 0.0, %v1554
      %v1556 = vpop.f32.mrb[0].mxu0
      %v1557 = vpop.f32.mrb[0].mxu0
      %v1558 = vadd.f32 0.0, %v1557
      %v1559 = vpop.f32.mrb[0].mxu0
      %1560 = vmatprep.mubr.bf16.mxu0 0
      %1561 = vmatmul.mubr.bf16.gmra.mrb[0].mxu0 %v1370
      %v1562 = vpop.f32.mrb[0].mxu0
      %v1563 = vadd.f32 0.0, %v1562
      %v1564 = vpop.f32.mrb[0].mxu0
      %v1565 = vpop.f32.mrb[0].mxu0
      %v1566 = vadd.f32 0.0, %v1565
      %v1567 = vpop.f32.mrb[0].mxu0
      %1568 = vmatprep.mubr.bf16.mxu0 0
      %1569 = vmatmul.mubr.bf16.gmra.mrb[0].mxu0 %v1371
      %v1570 = vpop.f32.mrb[0].mxu0
      %v1571 = vadd.f32 0.0, %v1570
      %v1572 = vpop.f32.mrb[0].mxu0
      %v1573 = vpop.f32.mrb[0].mxu0
      %v1574 = vadd.f32 0.0, %v1573
      %v1575 = vpop.f32.mrb[0].mxu0
      %1576 = vmatprep.mubr.bf16.mxu0 0
      %1577 = vmatmul.mubr.bf16.gmra.mrb[0].mxu0 %v1372
      %v1578 = vpop.f32.mrb[0].mxu0
      %v1579 = vadd.f32 0.0, %v1578
      %v1580 = vpop.f32.mrb[0].mxu0
      %v1581 = vpop.f32.mrb[0].mxu0
      %v1582 = vadd.f32 0.0, %v1581
      %v1583 = vpop.f32.mrb[0].mxu0
      %1584 = vmatprep.mubr.bf16.mxu0 0
      %1585 = vmatmul.mubr.bf16.gmra.mrb[0].mxu0 %v1373
      %v1586 = vpop.f32.mrb[0].mxu0
      %v1587 = vadd.f32 0.0, %v1586
      %v1588 = vpop.f32.mrb[0].mxu0
      %v1589 = vpop.f32.mrb[0].mxu0
      %v1590 = vadd.f32 0.0, %v1589
      %v1591 = vpop.f32.mrb[0].mxu0
      %1592 = vmatprep.mubr.bf16.mxu0 0
      %1593 = vmatmul.mubr.bf16.gmra.mrb[0].mxu0 %v1374
      %v1594 = vpop.f32.mrb[0].mxu0
      %v1595 = vadd.f32 0.0, %v1594
      %v1596 = vpop.f32.mrb[0].mxu0
      %v1597 = vpop.f32.mrb[0].mxu0
      %v1598 = vadd.f32 0.0, %v1597
      %v1599 = vpop.f32.mrb[0].mxu0
      %1600 = vdwg.mxu0
      %v1601 = vadd.f32 %v1120, %v1475
      %v1602 = vadd.f32 %v1123, %v1478
      %v1603 = vadd.f32 %v1128, %v1483
      %v1604 = vadd.f32 %v1131, %v1486
      %v1605 = vadd.f32 %v1136, %v1491
      %v1606 = vadd.f32 %v1139, %v1494
      %v1607 = vadd.f32 %v1144, %v1499
      %v1608 = vadd.f32 %v1147, %v1502
      %v1609 = vadd.f32 %v1152, %v1507
      %v1610 = vadd.f32 %v1155, %v1510
      %v1611 = vadd.f32 %v1160, %v1515
      %v1612 = vadd.f32 %v1163, %v1518
      %v1613 = vadd.f32 %v1168, %v1523
      %v1614 = vadd.f32 %v1171, %v1526
      %v1615 = vadd.f32 %v1176, %v1531
      %v1616 = vadd.f32 %v1179, %v1534
      %v1617 = vadd.f32 %v1184, %v1539
      %v1618 = vadd.f32 %v1187, %v1542
      %v1619 = vadd.f32 %v1192, %v1547
      %v1620 = vadd.f32 %v1195, %v1550
      %v1621 = vadd.f32 %v1200, %v1555
      %v1622 = vadd.f32 %v1203, %v1558
      %v1623 = vadd.f32 %v1208, %v1563
      %v1624 = vadd.f32 %v1211, %v1566
      %v1625 = vadd.f32 %v1216, %v1571
      %v1626 = vadd.f32 %v1219, %v1574
      %v1627 = vadd.f32 %v1224, %v1579
      %v1628 = vadd.f32 %v1227, %v1582
      %v1629 = vadd.f32 %v1232, %v1587
      %v1630 = vadd.f32 %v1235, %v1590
      %v1631 = vadd.f32 %v1240, %v1595
      %v1632 = vadd.f32 %v1243, %v1598
      %v1633 = vpack.c.bf16 %v597, %v596
      %s1634 = scalar_lea.vmem %s265, 192
      %v1635 = vld [vmem:[%s1634] sm:$0xf]
      %v1636 = vld [vmem:[%s1634 + $0x4] sm:$0xf]
      %v1637 = vld [vmem:[%s1634 + $0x8] sm:$0xf]
      %v1638 = vld [vmem:[%s1634 + $0xc] sm:$0xf]
      %v1639 = vld [vmem:[%s1634 + $0x10] sm:$0xf]
      %v1640 = vld [vmem:[%s1634 + $0x14] sm:$0xf]
      %v1641 = vld [vmem:[%s1634 + $0x18] sm:$0xf]
      %v1642 = vld [vmem:[%s1634 + $0x1c] sm:$0xf]
      %v1643 = vld [vmem:[%s1634 + $0x20] sm:$0xf]
      %v1644 = vld [vmem:[%s1634 + $0x24] sm:$0xf]
      %v1645 = vld [vmem:[%s1634 + $0x28] sm:$0xf]
      %v1646 = vld [vmem:[%s1634 + $0x2c] sm:$0xf]
      %v1647 = vld [vmem:[%s1634 + $0x30] sm:$0xf]
      %v1648 = vld [vmem:[%s1634 + $0x34] sm:$0xf]
      %v1649 = vld [vmem:[%s1634 + $0x38] sm:$0xf]
      %v1650 = vld [vmem:[%s1634 + $0x3c] sm:$0xf]
      %v1667 = vunpack.c.l.b16 %v1635
      %v1668 = vunpack.c.l.b16 %v1636
      %v1669 = vunpack.c.l.b16 %v1637
      %v1670 = vunpack.c.l.b16 %v1638
      %v1671 = vunpack.c.l.b16 %v1639
      %v1672 = vunpack.c.l.b16 %v1640
      %v1673 = vunpack.c.l.b16 %v1641
      %v1674 = vunpack.c.l.b16 %v1642
      %v1675 = vunpack.c.l.b16 %v1643
      %v1676 = vunpack.c.l.b16 %v1644
      %v1677 = vunpack.c.l.b16 %v1645
      %v1678 = vunpack.c.l.b16 %v1646
      %v1679 = vunpack.c.l.b16 %v1647
      %v1680 = vunpack.c.l.b16 %v1648
      %v1681 = vunpack.c.l.b16 %v1649
      %v1682 = vunpack.c.l.b16 %v1650
      %v1683 = vpack.c.b16 %v1668, %v1667
      %v1684 = vpack.c.b16 %v1670, %v1669
      %v1685 = vpack.c.b16 %v1672, %v1671
      %v1686 = vpack.c.b16 %v1674, %v1673
      %v1687 = vpack.c.b16 %v1676, %v1675
      %v1688 = vpack.c.b16 %v1678, %v1677
      %v1689 = vpack.c.b16 %v1680, %v1679
      %v1690 = vpack.c.b16 %v1682, %v1681
      %1699 = vmatprep.subr.bf16.mxu0 0
      %1700 = vmatpush1.bf16.msra.mxu0 %v1683
      %1701 = vmatprep.subr.bf16.mxu0 0
      %1702 = vmatpush1.bf16.msra.mxu0 %v1684
      %1703 = vmatprep.subr.bf16.mxu0 0
      %1704 = vmatpush1.bf16.msra.mxu0 %v1685
      %1705 = vmatprep.subr.bf16.mxu0 0
      %1706 = vmatpush1.bf16.msra.mxu0 %v1686
      %1707 = vmatprep.subr.bf16.mxu0 0
      %1708 = vmatpush1.bf16.msra.mxu0 %v1687
      %1709 = vmatprep.subr.bf16.mxu0 0
      %1710 = vmatpush1.bf16.msra.mxu0 %v1688
      %1711 = vmatprep.subr.bf16.mxu0 0
      %1712 = vmatpush1.bf16.msra.mxu0 %v1689
      %1713 = vmatprep.subr.bf16.mxu0 0
      %1714 = vmatpush1.bf16.msra.mxu0 %v1690
      %1715 = vmatprep.subr.bf16.mxu0 0
      %1716 = vmatpush1.bf16.msra.mxu0 0
      %1717 = vmatprep.subr.bf16.mxu0 0
      %1718 = vmatpush1.bf16.msra.mxu0 0
      %1719 = vmatprep.subr.bf16.mxu0 0
      %1720 = vmatpush1.bf16.msra.mxu0 0
      %1721 = vmatprep.subr.bf16.mxu0 0
      %1722 = vmatpush1.bf16.msra.mxu0 0
      %1723 = vmatprep.subr.bf16.mxu0 0
      %1724 = vmatpush1.bf16.msra.mxu0 0
      %1725 = vmatprep.subr.bf16.mxu0 0
      %1726 = vmatpush1.bf16.msra.mxu0 0
      %1727 = vmatprep.subr.bf16.mxu0 0
      %1728 = vmatpush1.bf16.msra.mxu0 0
      %1729 = vmatprep.subr.bf16.mxu0 0
      %1730 = vmatpush1.bf16.msra.mxu0 0
      %1731 = vmatprep.mubr.bf16.mxu0 0
      %1732 = vmatmul.mubr.bf16.gmra.mrb[0].mxu0 %v603
      %v1733 = vpop.f32.mrb[0].mxu0
      %v1734 = vadd.f32 0.0, %v1733
      %v1735 = vpop.f32.mrb[0].mxu0
      %v1736 = vpop.f32.mrb[0].mxu0
      %v1737 = vadd.f32 0.0, %v1736
      %v1738 = vpop.f32.mrb[0].mxu0
      %1739 = vmatprep.mubr.bf16.mxu0 0
      %1740 = vmatmul.mubr.bf16.gmra.mrb[0].mxu0 %v604
      %v1741 = vpop.f32.mrb[0].mxu0
      %v1742 = vadd.f32 0.0, %v1741
      %v1743 = vpop.f32.mrb[0].mxu0
      %v1744 = vpop.f32.mrb[0].mxu0
      %v1745 = vadd.f32 0.0, %v1744
      %v1746 = vpop.f32.mrb[0].mxu0
      %1747 = vmatprep.mubr.bf16.mxu0 0
      %1748 = vmatmul.mubr.bf16.gmra.mrb[0].mxu0 %v605
      %v1749 = vpop.f32.mrb[0].mxu0
      %v1750 = vadd.f32 0.0, %v1749
      %v1751 = vpop.f32.mrb[0].mxu0
      %v1752 = vpop.f32.mrb[0].mxu0
      %v1753 = vadd.f32 0.0, %v1752
      %v1754 = vpop.f32.mrb[0].mxu0
      %1755 = vmatprep.mubr.bf16.mxu0 0
      %1756 = vmatmul.mubr.bf16.gmra.mrb[0].mxu0 %v606
      %v1757 = vpop.f32.mrb[0].mxu0
      %v1758 = vadd.f32 0.0, %v1757
      %v1759 = vpop.f32.mrb[0].mxu0
      %v1760 = vpop.f32.mrb[0].mxu0
      %v1761 = vadd.f32 0.0, %v1760
      %v1762 = vpop.f32.mrb[0].mxu0
      %1763 = vmatprep.mubr.bf16.mxu0 0
      %1764 = vmatmul.mubr.bf16.gmra.mrb[0].mxu0 %v607
      %v1765 = vpop.f32.mrb[0].mxu0
      %v1766 = vadd.f32 0.0, %v1765
      %v1767 = vpop.f32.mrb[0].mxu0
      %v1768 = vpop.f32.mrb[0].mxu0
      %v1769 = vadd.f32 0.0, %v1768
      %v1770 = vpop.f32.mrb[0].mxu0
      %1771 = vmatprep.mubr.bf16.mxu0 0
      %1772 = vmatmul.mubr.bf16.gmra.mrb[0].mxu0 %v608
      %v1773 = vpop.f32.mrb[0].mxu0
      %v1774 = vadd.f32 0.0, %v1773
      %v1775 = vpop.f32.mrb[0].mxu0
      %v1776 = vpop.f32.mrb[0].mxu0
      %v1777 = vadd.f32 0.0, %v1776
      %v1778 = vpop.f32.mrb[0].mxu0
      %1779 = vmatprep.mubr.bf16.mxu0 0
      %1780 = vmatmul.mubr.bf16.gmra.mrb[0].mxu0 %v609
      %v1781 = vpop.f32.mrb[0].mxu0
      %v1782 = vadd.f32 0.0, %v1781
      %v1783 = vpop.f32.mrb[0].mxu0
      %v1784 = vpop.f32.mrb[0].mxu0
      %v1785 = vadd.f32 0.0, %v1784
      %v1786 = vpop.f32.mrb[0].mxu0
      %1787 = vmatprep.mubr.bf16.mxu0 0
      %1788 = vmatmul.mubr.bf16.gmra.mrb[0].mxu0 %v610
      %v1789 = vpop.f32.mrb[0].mxu0
      %v1790 = vadd.f32 0.0, %v1789
      %v1791 = vpop.f32.mrb[0].mxu0
      %v1792 = vpop.f32.mrb[0].mxu0
      %v1793 = vadd.f32 0.0, %v1792
      %v1794 = vpop.f32.mrb[0].mxu0
      %1795 = vmatprep.mubr.bf16.mxu0 0
      %1796 = vmatmul.mubr.bf16.gmra.mrb[0].mxu0 %v611
      %v1797 = vpop.f32.mrb[0].mxu0
      %v1798 = vadd.f32 0.0, %v1797
      %v1799 = vpop.f32.mrb[0].mxu0
      %v1800 = vpop.f32.mrb[0].mxu0
      %v1801 = vadd.f32 0.0, %v1800
      %v1802 = vpop.f32.mrb[0].mxu0
      %1803 = vmatprep.mubr.bf16.mxu0 0
      %1804 = vmatmul.mubr.bf16.gmra.mrb[0].mxu0 %v612
      %v1805 = vpop.f32.mrb[0].mxu0
      %v1806 = vadd.f32 0.0, %v1805
      %v1807 = vpop.f32.mrb[0].mxu0
      %v1808 = vpop.f32.mrb[0].mxu0
      %v1809 = vadd.f32 0.0, %v1808
      %v1810 = vpop.f32.mrb[0].mxu0
      %1811 = vmatprep.mubr.bf16.mxu0 0
      %1812 = vmatmul.mubr.bf16.gmra.mrb[0].mxu0 %v613
      %v1813 = vpop.f32.mrb[0].mxu0
      %v1814 = vadd.f32 0.0, %v1813
      %v1815 = vpop.f32.mrb[0].mxu0
      %v1816 = vpop.f32.mrb[0].mxu0
      %v1817 = vadd.f32 0.0, %v1816
      %v1818 = vpop.f32.mrb[0].mxu0
      %1819 = vmatprep.mubr.bf16.mxu0 0
      %1820 = vmatmul.mubr.bf16.gmra.mrb[0].mxu0 %v614
      %v1821 = vpop.f32.mrb[0].mxu0
      %v1822 = vadd.f32 0.0, %v1821
      %v1823 = vpop.f32.mrb[0].mxu0
      %v1824 = vpop.f32.mrb[0].mxu0
      %v1825 = vadd.f32 0.0, %v1824
      %v1826 = vpop.f32.mrb[0].mxu0
      %1827 = vmatprep.mubr.bf16.mxu0 0
      %1828 = vmatmul.mubr.bf16.gmra.mrb[0].mxu0 %v615
      %v1829 = vpop.f32.mrb[0].mxu0
      %v1830 = vadd.f32 0.0, %v1829
      %v1831 = vpop.f32.mrb[0].mxu0
      %v1832 = vpop.f32.mrb[0].mxu0
      %v1833 = vadd.f32 0.0, %v1832
      %v1834 = vpop.f32.mrb[0].mxu0
      %1835 = vmatprep.mubr.bf16.mxu0 0
      %1836 = vmatmul.mubr.bf16.gmra.mrb[0].mxu0 %v616
      %v1837 = vpop.f32.mrb[0].mxu0
      %v1838 = vadd.f32 0.0, %v1837
      %v1839 = vpop.f32.mrb[0].mxu0
      %v1840 = vpop.f32.mrb[0].mxu0
      %v1841 = vadd.f32 0.0, %v1840
      %v1842 = vpop.f32.mrb[0].mxu0
      %1843 = vmatprep.mubr.bf16.mxu0 0
      %1844 = vmatmul.mubr.bf16.gmra.mrb[0].mxu0 %v617
      %v1845 = vpop.f32.mrb[0].mxu0
      %v1846 = vadd.f32 0.0, %v1845
      %v1847 = vpop.f32.mrb[0].mxu0
      %v1848 = vpop.f32.mrb[0].mxu0
      %v1849 = vadd.f32 0.0, %v1848
      %v1850 = vpop.f32.mrb[0].mxu0
      %1851 = vmatprep.mubr.bf16.mxu0 0
      %1852 = vmatmul.mubr.bf16.gmra.mrb[0].mxu0 %v1633
      %v1853 = vpop.f32.mrb[0].mxu0
      %v1854 = vadd.f32 0.0, %v1853
      %v1855 = vpop.f32.mrb[0].mxu0
      %v1856 = vpop.f32.mrb[0].mxu0
      %v1857 = vadd.f32 0.0, %v1856
      %v1858 = vpop.f32.mrb[0].mxu0
      %1859 = vdwg.mxu0
      %v1860 = vadd.f32 %v1601, %v1734
      %v1861 = vadd.f32 %v1602, %v1737
      %v1862 = vadd.f32 %v1603, %v1742
      %v1863 = vadd.f32 %v1604, %v1745
      %v1864 = vadd.f32 %v1605, %v1750
      %v1865 = vadd.f32 %v1606, %v1753
      %v1866 = vadd.f32 %v1607, %v1758
      %v1867 = vadd.f32 %v1608, %v1761
      %v1868 = vadd.f32 %v1609, %v1766
      %v1869 = vadd.f32 %v1610, %v1769
      %v1870 = vadd.f32 %v1611, %v1774
      %v1871 = vadd.f32 %v1612, %v1777
      %v1872 = vadd.f32 %v1613, %v1782
      %v1873 = vadd.f32 %v1614, %v1785
      %v1874 = vadd.f32 %v1615, %v1790
      %v1875 = vadd.f32 %v1616, %v1793
      %v1876 = vadd.f32 %v1617, %v1798
      %v1877 = vadd.f32 %v1618, %v1801
      %v1878 = vadd.f32 %v1619, %v1806
      %v1879 = vadd.f32 %v1620, %v1809
      %v1880 = vadd.f32 %v1621, %v1814
      %v1881 = vadd.f32 %v1622, %v1817
      %v1882 = vadd.f32 %v1623, %v1822
      %v1883 = vadd.f32 %v1624, %v1825
      %v1884 = vadd.f32 %v1625, %v1830
      %v1885 = vadd.f32 %v1626, %v1833
      %v1886 = vadd.f32 %v1627, %v1838
      %v1887 = vadd.f32 %v1628, %v1841
      %v1888 = vadd.f32 %v1629, %v1846
      %v1889 = vadd.f32 %v1630, %v1849
      %v1890 = vadd.f32 %v1631, %v1854
      %v1891 = vadd.f32 %v1632, %v1857
      %v1895 = vrot.slane %v596, 1
      %v1896 = vrot.slane %v597, 1
      %v1897 = vsel %vm682, %v1895, %v1896
      %v1898 = vrot.slane %v598, 1
      %v1899 = vsel %vm682, %v1896, %v1898
      %v1902 = vpack.c.bf16 %v1899, %v1897
      %s1903 = scalar_lea.vmem %s265, 256
      %v1904 = vld [vmem:[%s1903] sm:$0xf]
      %v1905 = vld [vmem:[%s1903 + $0x4] sm:$0xf]
      %v1906 = vld [vmem:[%s1903 + $0x8] sm:$0xf]
      %v1907 = vld [vmem:[%s1903 + $0xc] sm:$0xf]
      %v1908 = vld [vmem:[%s1903 + $0x10] sm:$0xf]
      %v1909 = vld [vmem:[%s1903 + $0x14] sm:$0xf]
      %v1910 = vld [vmem:[%s1903 + $0x18] sm:$0xf]
      %v1911 = vld [vmem:[%s1903 + $0x1c] sm:$0xf]
      %v1912 = vld [vmem:[%s1903 + $0x20] sm:$0xf]
      %v1913 = vld [vmem:[%s1903 + $0x24] sm:$0xf]
      %v1914 = vld [vmem:[%s1903 + $0x28] sm:$0xf]
      %v1915 = vld [vmem:[%s1903 + $0x2c] sm:$0xf]
      %v1916 = vld [vmem:[%s1903 + $0x30] sm:$0xf]
      %v1917 = vld [vmem:[%s1903 + $0x34] sm:$0xf]
      %v1918 = vld [vmem:[%s1903 + $0x38] sm:$0xf]
      %v1919 = vld [vmem:[%s1903 + $0x3c] sm:$0xf]
      %v1936 = vunpack.c.l.b16 %v1904
      %v1937 = vunpack.c.l.b16 %v1905
      %v1938 = vunpack.c.l.b16 %v1906
      %v1939 = vunpack.c.l.b16 %v1907
      %v1940 = vunpack.c.l.b16 %v1908
      %v1941 = vunpack.c.l.b16 %v1909
      %v1942 = vunpack.c.l.b16 %v1910
      %v1943 = vunpack.c.l.b16 %v1911
      %v1944 = vunpack.c.l.b16 %v1912
      %v1945 = vunpack.c.l.b16 %v1913
      %v1946 = vunpack.c.l.b16 %v1914
      %v1947 = vunpack.c.l.b16 %v1915
      %v1948 = vunpack.c.l.b16 %v1916
      %v1949 = vunpack.c.l.b16 %v1917
      %v1950 = vunpack.c.l.b16 %v1918
      %v1951 = vunpack.c.l.b16 %v1919
      %v1952 = vpack.c.b16 %v1937, %v1936
      %v1953 = vpack.c.b16 %v1939, %v1938
      %v1954 = vpack.c.b16 %v1941, %v1940
      %v1955 = vpack.c.b16 %v1943, %v1942
      %v1956 = vpack.c.b16 %v1945, %v1944
      %v1957 = vpack.c.b16 %v1947, %v1946
      %v1958 = vpack.c.b16 %v1949, %v1948
      %v1959 = vpack.c.b16 %v1951, %v1950
      %1968 = vmatprep.subr.bf16.mxu0 0
      %1969 = vmatpush1.bf16.msra.mxu0 %v1952
      %1970 = vmatprep.subr.bf16.mxu0 0
      %1971 = vmatpush1.bf16.msra.mxu0 %v1953
      %1972 = vmatprep.subr.bf16.mxu0 0
      %1973 = vmatpush1.bf16.msra.mxu0 %v1954
      %1974 = vmatprep.subr.bf16.mxu0 0
      %1975 = vmatpush1.bf16.msra.mxu0 %v1955
      %1976 = vmatprep.subr.bf16.mxu0 0
      %1977 = vmatpush1.bf16.msra.mxu0 %v1956
      %1978 = vmatprep.subr.bf16.mxu0 0
      %1979 = vmatpush1.bf16.msra.mxu0 %v1957
      %1980 = vmatprep.subr.bf16.mxu0 0
      %1981 = vmatpush1.bf16.msra.mxu0 %v1958
      %1982 = vmatprep.subr.bf16.mxu0 0
      %1983 = vmatpush1.bf16.msra.mxu0 %v1959
      %1984 = vmatprep.subr.bf16.mxu0 0
      %1985 = vmatpush1.bf16.msra.mxu0 0
      %1986 = vmatprep.subr.bf16.mxu0 0
      %1987 = vmatpush1.bf16.msra.mxu0 0
      %1988 = vmatprep.subr.bf16.mxu0 0
      %1989 = vmatpush1.bf16.msra.mxu0 0
      %1990 = vmatprep.subr.bf16.mxu0 0
      %1991 = vmatpush1.bf16.msra.mxu0 0
      %1992 = vmatprep.subr.bf16.mxu0 0
      %1993 = vmatpush1.bf16.msra.mxu0 0
      %1994 = vmatprep.subr.bf16.mxu0 0
      %1995 = vmatpush1.bf16.msra.mxu0 0
      %1996 = vmatprep.subr.bf16.mxu0 0
      %1997 = vmatpush1.bf16.msra.mxu0 0
      %1998 = vmatprep.subr.bf16.mxu0 0
      %1999 = vmatpush1.bf16.msra.mxu0 0
      %2000 = vmatprep.mubr.bf16.mxu0 0
      %2001 = vmatmul.mubr.bf16.gmra.mrb[0].mxu0 %v796
      %v2002 = vpop.f32.mrb[0].mxu0
      %v2003 = vadd.f32 0.0, %v2002
      %v2004 = vpop.f32.mrb[0].mxu0
      %v2005 = vpop.f32.mrb[0].mxu0
      %v2006 = vadd.f32 0.0, %v2005
      %v2007 = vpop.f32.mrb[0].mxu0
      %2008 = vmatprep.mubr.bf16.mxu0 0
      %2009 = vmatmul.mubr.bf16.gmra.mrb[0].mxu0 %v797
      %v2010 = vpop.f32.mrb[0].mxu0
      %v2011 = vadd.f32 0.0, %v2010
      %v2012 = vpop.f32.mrb[0].mxu0
      %v2013 = vpop.f32.mrb[0].mxu0
      %v2014 = vadd.f32 0.0, %v2013
      %v2015 = vpop.f32.mrb[0].mxu0
      %2016 = vmatprep.mubr.bf16.mxu0 0
      %2017 = vmatmul.mubr.bf16.gmra.mrb[0].mxu0 %v798
      %v2018 = vpop.f32.mrb[0].mxu0
      %v2019 = vadd.f32 0.0, %v2018
      %v2020 = vpop.f32.mrb[0].mxu0
      %v2021 = vpop.f32.mrb[0].mxu0
      %v2022 = vadd.f32 0.0, %v2021
      %v2023 = vpop.f32.mrb[0].mxu0
      %2024 = vmatprep.mubr.bf16.mxu0 0
      %2025 = vmatmul.mubr.bf16.gmra.mrb[0].mxu0 %v799
      %v2026 = vpop.f32.mrb[0].mxu0
      %v2027 = vadd.f32 0.0, %v2026
      %v2028 = vpop.f32.mrb[0].mxu0
      %v2029 = vpop.f32.mrb[0].mxu0
      %v2030 = vadd.f32 0.0, %v2029
      %v2031 = vpop.f32.mrb[0].mxu0
      %2032 = vmatprep.mubr.bf16.mxu0 0
      %2033 = vmatmul.mubr.bf16.gmra.mrb[0].mxu0 %v800
      %v2034 = vpop.f32.mrb[0].mxu0
      %v2035 = vadd.f32 0.0, %v2034
      %v2036 = vpop.f32.mrb[0].mxu0
      %v2037 = vpop.f32.mrb[0].mxu0
      %v2038 = vadd.f32 0.0, %v2037
      %v2039 = vpop.f32.mrb[0].mxu0
      %2040 = vmatprep.mubr.bf16.mxu0 0
      %2041 = vmatmul.mubr.bf16.gmra.mrb[0].mxu0 %v801
      %v2042 = vpop.f32.mrb[0].mxu0
      %v2043 = vadd.f32 0.0, %v2042
      %v2044 = vpop.f32.mrb[0].mxu0
      %v2045 = vpop.f32.mrb[0].mxu0
      %v2046 = vadd.f32 0.0, %v2045
      %v2047 = vpop.f32.mrb[0].mxu0
      %2048 = vmatprep.mubr.bf16.mxu0 0
      %2049 = vmatmul.mubr.bf16.gmra.mrb[0].mxu0 %v802
      %v2050 = vpop.f32.mrb[0].mxu0
      %v2051 = vadd.f32 0.0, %v2050
      %v2052 = vpop.f32.mrb[0].mxu0
      %v2053 = vpop.f32.mrb[0].mxu0
      %v2054 = vadd.f32 0.0, %v2053
      %v2055 = vpop.f32.mrb[0].mxu0
      %2056 = vmatprep.mubr.bf16.mxu0 0
      %2057 = vmatmul.mubr.bf16.gmra.mrb[0].mxu0 %v803
      %v2058 = vpop.f32.mrb[0].mxu0
      %v2059 = vadd.f32 0.0, %v2058
      %v2060 = vpop.f32.mrb[0].mxu0
      %v2061 = vpop.f32.mrb[0].mxu0
      %v2062 = vadd.f32 0.0, %v2061
      %v2063 = vpop.f32.mrb[0].mxu0
      %2064 = vmatprep.mubr.bf16.mxu0 0
      %2065 = vmatmul.mubr.bf16.gmra.mrb[0].mxu0 %v804
      %v2066 = vpop.f32.mrb[0].mxu0
      %v2067 = vadd.f32 0.0, %v2066
      %v2068 = vpop.f32.mrb[0].mxu0
      %v2069 = vpop.f32.mrb[0].mxu0
      %v2070 = vadd.f32 0.0, %v2069
      %v2071 = vpop.f32.mrb[0].mxu0
      %2072 = vmatprep.mubr.bf16.mxu0 0
      %2073 = vmatmul.mubr.bf16.gmra.mrb[0].mxu0 %v805
      %v2074 = vpop.f32.mrb[0].mxu0
      %v2075 = vadd.f32 0.0, %v2074
      %v2076 = vpop.f32.mrb[0].mxu0
      %v2077 = vpop.f32.mrb[0].mxu0
      %v2078 = vadd.f32 0.0, %v2077
      %v2079 = vpop.f32.mrb[0].mxu0
      %2080 = vmatprep.mubr.bf16.mxu0 0
      %2081 = vmatmul.mubr.bf16.gmra.mrb[0].mxu0 %v806
      %v2082 = vpop.f32.mrb[0].mxu0
      %v2083 = vadd.f32 0.0, %v2082
      %v2084 = vpop.f32.mrb[0].mxu0
      %v2085 = vpop.f32.mrb[0].mxu0
      %v2086 = vadd.f32 0.0, %v2085
      %v2087 = vpop.f32.mrb[0].mxu0
      %2088 = vmatprep.mubr.bf16.mxu0 0
      %2089 = vmatmul.mubr.bf16.gmra.mrb[0].mxu0 %v807
      %v2090 = vpop.f32.mrb[0].mxu0
      %v2091 = vadd.f32 0.0, %v2090
      %v2092 = vpop.f32.mrb[0].mxu0
      %v2093 = vpop.f32.mrb[0].mxu0
      %v2094 = vadd.f32 0.0, %v2093
      %v2095 = vpop.f32.mrb[0].mxu0
      %2096 = vmatprep.mubr.bf16.mxu0 0
      %2097 = vmatmul.mubr.bf16.gmra.mrb[0].mxu0 %v808
      %v2098 = vpop.f32.mrb[0].mxu0
      %v2099 = vadd.f32 0.0, %v2098
      %v2100 = vpop.f32.mrb[0].mxu0
      %v2101 = vpop.f32.mrb[0].mxu0
      %v2102 = vadd.f32 0.0, %v2101
      %v2103 = vpop.f32.mrb[0].mxu0
      %2104 = vmatprep.mubr.bf16.mxu0 0
      %2105 = vmatmul.mubr.bf16.gmra.mrb[0].mxu0 %v809
      %v2106 = vpop.f32.mrb[0].mxu0
      %v2107 = vadd.f32 0.0, %v2106
      %v2108 = vpop.f32.mrb[0].mxu0
      %v2109 = vpop.f32.mrb[0].mxu0
      %v2110 = vadd.f32 0.0, %v2109
      %v2111 = vpop.f32.mrb[0].mxu0
      %2112 = vmatprep.mubr.bf16.mxu0 0
      %2113 = vmatmul.mubr.bf16.gmra.mrb[0].mxu0 %v810
      %v2114 = vpop.f32.mrb[0].mxu0
      %v2115 = vadd.f32 0.0, %v2114
      %v2116 = vpop.f32.mrb[0].mxu0
      %v2117 = vpop.f32.mrb[0].mxu0
      %v2118 = vadd.f32 0.0, %v2117
      %v2119 = vpop.f32.mrb[0].mxu0
      %2120 = vmatprep.mubr.bf16.mxu0 0
      %2121 = vmatmul.mubr.bf16.gmra.mrb[0].mxu0 %v1902
      %v2122 = vpop.f32.mrb[0].mxu0
      %v2123 = vadd.f32 0.0, %v2122
      %v2124 = vpop.f32.mrb[0].mxu0
      %v2125 = vpop.f32.mrb[0].mxu0
      %v2126 = vadd.f32 0.0, %v2125
      %v2127 = vpop.f32.mrb[0].mxu0
      %2128 = vdwg.mxu0
      %v2129 = vadd.f32 %v1860, %v2003
      %v2130 = vadd.f32 %v1861, %v2006
      %v2131 = vadd.f32 %v1862, %v2011
      %v2132 = vadd.f32 %v1863, %v2014
      %v2133 = vadd.f32 %v1864, %v2019
      %v2134 = vadd.f32 %v1865, %v2022
      %v2135 = vadd.f32 %v1866, %v2027
      %v2136 = vadd.f32 %v1867, %v2030
      %v2137 = vadd.f32 %v1868, %v2035
      %v2138 = vadd.f32 %v1869, %v2038
      %v2139 = vadd.f32 %v1870, %v2043
      %v2140 = vadd.f32 %v1871, %v2046
      %v2141 = vadd.f32 %v1872, %v2051
      %v2142 = vadd.f32 %v1873, %v2054
      %v2143 = vadd.f32 %v1874, %v2059
      %v2144 = vadd.f32 %v1875, %v2062
      %v2145 = vadd.f32 %v1876, %v2067
      %v2146 = vadd.f32 %v1877, %v2070
      %v2147 = vadd.f32 %v1878, %v2075
      %v2148 = vadd.f32 %v1879, %v2078
      %v2149 = vadd.f32 %v1880, %v2083
      %v2150 = vadd.f32 %v1881, %v2086
      %v2151 = vadd.f32 %v1882, %v2091
      %v2152 = vadd.f32 %v1883, %v2094
      %v2153 = vadd.f32 %v1884, %v2099
      %v2154 = vadd.f32 %v1885, %v2102
      %v2155 = vadd.f32 %v1886, %v2107
      %v2156 = vadd.f32 %v1887, %v2110
      %v2157 = vadd.f32 %v1888, %v2115
      %v2158 = vadd.f32 %v1889, %v2118
      %v2159 = vadd.f32 %v1890, %v2123
      %v2160 = vadd.f32 %v1891, %v2126
      %v2161 = vrot.slane %v596, 2
      %v2162 = vrot.slane %v597, 2
      %v2163 = vsel %vm1246, %v2161, %v2162
      %v2164 = vrot.slane %v598, 2
      %v2165 = vsel %vm1246, %v2162, %v2164
      %v2168 = vpack.c.bf16 %v2165, %v2163
      %s2169 = scalar_lea.vmem %s265, 320
      %v2170 = vld [vmem:[%s2169] sm:$0xf]
      %v2171 = vld [vmem:[%s2169 + $0x4] sm:$0xf]
      %v2172 = vld [vmem:[%s2169 + $0x8] sm:$0xf]
      %v2173 = vld [vmem:[%s2169 + $0xc] sm:$0xf]
      %v2174 = vld [vmem:[%s2169 + $0x10] sm:$0xf]
      %v2175 = vld [vmem:[%s2169 + $0x14] sm:$0xf]
      %v2176 = vld [vmem:[%s2169 + $0x18] sm:$0xf]
      %v2177 = vld [vmem:[%s2169 + $0x1c] sm:$0xf]
      %v2178 = vld [vmem:[%s2169 + $0x20] sm:$0xf]
      %v2179 = vld [vmem:[%s2169 + $0x24] sm:$0xf]
      %v2180 = vld [vmem:[%s2169 + $0x28] sm:$0xf]
      %v2181 = vld [vmem:[%s2169 + $0x2c] sm:$0xf]
      %v2182 = vld [vmem:[%s2169 + $0x30] sm:$0xf]
      %v2183 = vld [vmem:[%s2169 + $0x34] sm:$0xf]
      %v2184 = vld [vmem:[%s2169 + $0x38] sm:$0xf]
      %v2185 = vld [vmem:[%s2169 + $0x3c] sm:$0xf]
      %v2202 = vunpack.c.l.b16 %v2170
      %v2203 = vunpack.c.l.b16 %v2171
      %v2204 = vunpack.c.l.b16 %v2172
      %v2205 = vunpack.c.l.b16 %v2173
      %v2206 = vunpack.c.l.b16 %v2174
      %v2207 = vunpack.c.l.b16 %v2175
      %v2208 = vunpack.c.l.b16 %v2176
      %v2209 = vunpack.c.l.b16 %v2177
      %v2210 = vunpack.c.l.b16 %v2178
      %v2211 = vunpack.c.l.b16 %v2179
      %v2212 = vunpack.c.l.b16 %v2180
      %v2213 = vunpack.c.l.b16 %v2181
      %v2214 = vunpack.c.l.b16 %v2182
      %v2215 = vunpack.c.l.b16 %v2183
      %v2216 = vunpack.c.l.b16 %v2184
      %v2217 = vunpack.c.l.b16 %v2185
      %v2218 = vpack.c.b16 %v2203, %v2202
      %v2219 = vpack.c.b16 %v2205, %v2204
      %v2220 = vpack.c.b16 %v2207, %v2206
      %v2221 = vpack.c.b16 %v2209, %v2208
      %v2222 = vpack.c.b16 %v2211, %v2210
      %v2223 = vpack.c.b16 %v2213, %v2212
      %v2224 = vpack.c.b16 %v2215, %v2214
      %v2225 = vpack.c.b16 %v2217, %v2216
      %2234 = vmatprep.subr.bf16.mxu0 0
      %2235 = vmatpush1.bf16.msra.mxu0 %v2218
      %2236 = vmatprep.subr.bf16.mxu0 0
      %2237 = vmatpush1.bf16.msra.mxu0 %v2219
      %2238 = vmatprep.subr.bf16.mxu0 0
      %2239 = vmatpush1.bf16.msra.mxu0 %v2220
      %2240 = vmatprep.subr.bf16.mxu0 0
      %2241 = vmatpush1.bf16.msra.mxu0 %v2221
      %2242 = vmatprep.subr.bf16.mxu0 0
      %2243 = vmatpush1.bf16.msra.mxu0 %v2222
      %2244 = vmatprep.subr.bf16.mxu0 0
      %2245 = vmatpush1.bf16.msra.mxu0 %v2223
      %2246 = vmatprep.subr.bf16.mxu0 0
      %2247 = vmatpush1.bf16.msra.mxu0 %v2224
      %2248 = vmatprep.subr.bf16.mxu0 0
      %2249 = vmatpush1.bf16.msra.mxu0 %v2225
      %2250 = vmatprep.subr.bf16.mxu0 0
      %2251 = vmatpush1.bf16.msra.mxu0 0
      %2252 = vmatprep.subr.bf16.mxu0 0
      %2253 = vmatpush1.bf16.msra.mxu0 0
      %2254 = vmatprep.subr.bf16.mxu0 0
      %2255 = vmatpush1.bf16.msra.mxu0 0
      %2256 = vmatprep.subr.bf16.mxu0 0
      %2257 = vmatpush1.bf16.msra.mxu0 0
      %2258 = vmatprep.subr.bf16.mxu0 0
      %2259 = vmatpush1.bf16.msra.mxu0 0
      %2260 = vmatprep.subr.bf16.mxu0 0
      %2261 = vmatpush1.bf16.msra.mxu0 0
      %2262 = vmatprep.subr.bf16.mxu0 0
      %2263 = vmatpush1.bf16.msra.mxu0 0
      %2264 = vmatprep.subr.bf16.mxu0 0
      %2265 = vmatpush1.bf16.msra.mxu0 0
      %2266 = vmatprep.mubr.bf16.mxu0 0
      %2267 = vmatmul.mubr.bf16.gmra.mrb[0].mxu0 %v1360
      %v2268 = vpop.f32.mrb[0].mxu0
      %v2269 = vadd.f32 0.0, %v2268
      %v2270 = vpop.f32.mrb[0].mxu0
      %v2271 = vpop.f32.mrb[0].mxu0
      %v2272 = vadd.f32 0.0, %v2271
      %v2273 = vpop.f32.mrb[0].mxu0
      %2274 = vmatprep.mubr.bf16.mxu0 0
      %2275 = vmatmul.mubr.bf16.gmra.mrb[0].mxu0 %v1361
      %v2276 = vpop.f32.mrb[0].mxu0
      %v2277 = vadd.f32 0.0, %v2276
      %v2278 = vpop.f32.mrb[0].mxu0
      %v2279 = vpop.f32.mrb[0].mxu0
      %v2280 = vadd.f32 0.0, %v2279
      %v2281 = vpop.f32.mrb[0].mxu0
      %2282 = vmatprep.mubr.bf16.mxu0 0
      %2283 = vmatmul.mubr.bf16.gmra.mrb[0].mxu0 %v1362
      %v2284 = vpop.f32.mrb[0].mxu0
      %v2285 = vadd.f32 0.0, %v2284
      %v2286 = vpop.f32.mrb[0].mxu0
      %v2287 = vpop.f32.mrb[0].mxu0
      %v2288 = vadd.f32 0.0, %v2287
      %v2289 = vpop.f32.mrb[0].mxu0
      %2290 = vmatprep.mubr.bf16.mxu0 0
      %2291 = vmatmul.mubr.bf16.gmra.mrb[0].mxu0 %v1363
      %v2292 = vpop.f32.mrb[0].mxu0
      %v2293 = vadd.f32 0.0, %v2292
      %v2294 = vpop.f32.mrb[0].mxu0
      %v2295 = vpop.f32.mrb[0].mxu0
      %v2296 = vadd.f32 0.0, %v2295
      %v2297 = vpop.f32.mrb[0].mxu0
      %2298 = vmatprep.mubr.bf16.mxu0 0
      %2299 = vmatmul.mubr.bf16.gmra.mrb[0].mxu0 %v1364
      %v2300 = vpop.f32.mrb[0].mxu0
      %v2301 = vadd.f32 0.0, %v2300
      %v2302 = vpop.f32.mrb[0].mxu0
      %v2303 = vpop.f32.mrb[0].mxu0
      %v2304 = vadd.f32 0.0, %v2303
      %v2305 = vpop.f32.mrb[0].mxu0
      %2306 = vmatprep.mubr.bf16.mxu0 0
      %2307 = vmatmul.mubr.bf16.gmra.mrb[0].mxu0 %v1365
      %v2308 = vpop.f32.mrb[0].mxu0
      %v2309 = vadd.f32 0.0, %v2308
      %v2310 = vpop.f32.mrb[0].mxu0
      %v2311 = vpop.f32.mrb[0].mxu0
      %v2312 = vadd.f32 0.0, %v2311
      %v2313 = vpop.f32.mrb[0].mxu0
      %2314 = vmatprep.mubr.bf16.mxu0 0
      %2315 = vmatmul.mubr.bf16.gmra.mrb[0].mxu0 %v1366
      %v2316 = vpop.f32.mrb[0].mxu0
      %v2317 = vadd.f32 0.0, %v2316
      %v2318 = vpop.f32.mrb[0].mxu0
      %v2319 = vpop.f32.mrb[0].mxu0
      %v2320 = vadd.f32 0.0, %v2319
      %v2321 = vpop.f32.mrb[0].mxu0
      %2322 = vmatprep.mubr.bf16.mxu0 0
      %2323 = vmatmul.mubr.bf16.gmra.mrb[0].mxu0 %v1367
      %v2324 = vpop.f32.mrb[0].mxu0
      %v2325 = vadd.f32 0.0, %v2324
      %v2326 = vpop.f32.mrb[0].mxu0
      %v2327 = vpop.f32.mrb[0].mxu0
      %v2328 = vadd.f32 0.0, %v2327
      %v2329 = vpop.f32.mrb[0].mxu0
      %2330 = vmatprep.mubr.bf16.mxu0 0
      %2331 = vmatmul.mubr.bf16.gmra.mrb[0].mxu0 %v1368
      %v2332 = vpop.f32.mrb[0].mxu0
      %v2333 = vadd.f32 0.0, %v2332
      %v2334 = vpop.f32.mrb[0].mxu0
      %v2335 = vpop.f32.mrb[0].mxu0
      %v2336 = vadd.f32 0.0, %v2335
      %v2337 = vpop.f32.mrb[0].mxu0
      %2338 = vmatprep.mubr.bf16.mxu0 0
      %2339 = vmatmul.mubr.bf16.gmra.mrb[0].mxu0 %v1369
      %v2340 = vpop.f32.mrb[0].mxu0
      %v2341 = vadd.f32 0.0, %v2340
      %v2342 = vpop.f32.mrb[0].mxu0
      %v2343 = vpop.f32.mrb[0].mxu0
      %v2344 = vadd.f32 0.0, %v2343
      %v2345 = vpop.f32.mrb[0].mxu0
      %2346 = vmatprep.mubr.bf16.mxu0 0
      %2347 = vmatmul.mubr.bf16.gmra.mrb[0].mxu0 %v1370
      %v2348 = vpop.f32.mrb[0].mxu0
      %v2349 = vadd.f32 0.0, %v2348
      %v2350 = vpop.f32.mrb[0].mxu0
      %v2351 = vpop.f32.mrb[0].mxu0
      %v2352 = vadd.f32 0.0, %v2351
      %v2353 = vpop.f32.mrb[0].mxu0
      %2354 = vmatprep.mubr.bf16.mxu0 0
      %2355 = vmatmul.mubr.bf16.gmra.mrb[0].mxu0 %v1371
      %v2356 = vpop.f32.mrb[0].mxu0
      %v2357 = vadd.f32 0.0, %v2356
      %v2358 = vpop.f32.mrb[0].mxu0
      %v2359 = vpop.f32.mrb[0].mxu0
      %v2360 = vadd.f32 0.0, %v2359
      %v2361 = vpop.f32.mrb[0].mxu0
      %2362 = vmatprep.mubr.bf16.mxu0 0
      %2363 = vmatmul.mubr.bf16.gmra.mrb[0].mxu0 %v1372
      %v2364 = vpop.f32.mrb[0].mxu0
      %v2365 = vadd.f32 0.0, %v2364
      %v2366 = vpop.f32.mrb[0].mxu0
      %v2367 = vpop.f32.mrb[0].mxu0
      %v2368 = vadd.f32 0.0, %v2367
      %v2369 = vpop.f32.mrb[0].mxu0
      %2370 = vmatprep.mubr.bf16.mxu0 0
      %2371 = vmatmul.mubr.bf16.gmra.mrb[0].mxu0 %v1373
      %v2372 = vpop.f32.mrb[0].mxu0
      %v2373 = vadd.f32 0.0, %v2372
      %v2374 = vpop.f32.mrb[0].mxu0
      %v2375 = vpop.f32.mrb[0].mxu0
      %v2376 = vadd.f32 0.0, %v2375
      %v2377 = vpop.f32.mrb[0].mxu0
      %2378 = vmatprep.mubr.bf16.mxu0 0
      %2379 = vmatmul.mubr.bf16.gmra.mrb[0].mxu0 %v1374
      %v2380 = vpop.f32.mrb[0].mxu0
      %v2381 = vadd.f32 0.0, %v2380
      %v2382 = vpop.f32.mrb[0].mxu0
      %v2383 = vpop.f32.mrb[0].mxu0
      %v2384 = vadd.f32 0.0, %v2383
      %v2385 = vpop.f32.mrb[0].mxu0
      %2386 = vmatprep.mubr.bf16.mxu0 0
      %2387 = vmatmul.mubr.bf16.gmra.mrb[0].mxu0 %v2168
      %v2388 = vpop.f32.mrb[0].mxu0
      %v2389 = vadd.f32 0.0, %v2388
      %v2390 = vpop.f32.mrb[0].mxu0
      %v2391 = vpop.f32.mrb[0].mxu0
      %v2392 = vadd.f32 0.0, %v2391
      %v2393 = vpop.f32.mrb[0].mxu0
      %2394 = vdwg.mxu0
      %v2395 = vadd.f32 %v2129, %v2269
      %v2396 = vadd.f32 %v2130, %v2272
      %v2397 = vadd.f32 %v2131, %v2277
      %v2398 = vadd.f32 %v2132, %v2280
      %v2399 = vadd.f32 %v2133, %v2285
      %v2400 = vadd.f32 %v2134, %v2288
      %v2401 = vadd.f32 %v2135, %v2293
      %v2402 = vadd.f32 %v2136, %v2296
      %v2403 = vadd.f32 %v2137, %v2301
      %v2404 = vadd.f32 %v2138, %v2304
      %v2405 = vadd.f32 %v2139, %v2309
      %v2406 = vadd.f32 %v2140, %v2312
      %v2407 = vadd.f32 %v2141, %v2317
      %v2408 = vadd.f32 %v2142, %v2320
      %v2409 = vadd.f32 %v2143, %v2325
      %v2410 = vadd.f32 %v2144, %v2328
      %v2411 = vadd.f32 %v2145, %v2333
      %v2412 = vadd.f32 %v2146, %v2336
      %v2413 = vadd.f32 %v2147, %v2341
      %v2414 = vadd.f32 %v2148, %v2344
      %v2415 = vadd.f32 %v2149, %v2349
      %v2416 = vadd.f32 %v2150, %v2352
      %v2417 = vadd.f32 %v2151, %v2357
      %v2418 = vadd.f32 %v2152, %v2360
      %v2419 = vadd.f32 %v2153, %v2365
      %v2420 = vadd.f32 %v2154, %v2368
      %v2421 = vadd.f32 %v2155, %v2373
      %v2422 = vadd.f32 %v2156, %v2376
      %v2423 = vadd.f32 %v2157, %v2381
      %v2424 = vadd.f32 %v2158, %v2384
      %v2425 = vadd.f32 %v2159, %v2389
      %v2426 = vadd.f32 %v2160, %v2392
      %v2427 = vpack.c.bf16 %v600, %v599
      %s2428 = scalar_lea.vmem %s265, 384
      %v2429 = vld [vmem:[%s2428] sm:$0xf]
      %v2430 = vld [vmem:[%s2428 + $0x4] sm:$0xf]
      %v2431 = vld [vmem:[%s2428 + $0x8] sm:$0xf]
      %v2432 = vld [vmem:[%s2428 + $0xc] sm:$0xf]
      %v2433 = vld [vmem:[%s2428 + $0x10] sm:$0xf]
      %v2434 = vld [vmem:[%s2428 + $0x14] sm:$0xf]
      %v2435 = vld [vmem:[%s2428 + $0x18] sm:$0xf]
      %v2436 = vld [vmem:[%s2428 + $0x1c] sm:$0xf]
      %v2437 = vld [vmem:[%s2428 + $0x20] sm:$0xf]
      %v2438 = vld [vmem:[%s2428 + $0x24] sm:$0xf]
      %v2439 = vld [vmem:[%s2428 + $0x28] sm:$0xf]
      %v2440 = vld [vmem:[%s2428 + $0x2c] sm:$0xf]
      %v2441 = vld [vmem:[%s2428 + $0x30] sm:$0xf]
      %v2442 = vld [vmem:[%s2428 + $0x34] sm:$0xf]
      %v2443 = vld [vmem:[%s2428 + $0x38] sm:$0xf]
      %v2444 = vld [vmem:[%s2428 + $0x3c] sm:$0xf]
      %v2461 = vunpack.c.l.b16 %v2429
      %v2462 = vunpack.c.l.b16 %v2430
      %v2463 = vunpack.c.l.b16 %v2431
      %v2464 = vunpack.c.l.b16 %v2432
      %v2465 = vunpack.c.l.b16 %v2433
      %v2466 = vunpack.c.l.b16 %v2434
      %v2467 = vunpack.c.l.b16 %v2435
      %v2468 = vunpack.c.l.b16 %v2436
      %v2469 = vunpack.c.l.b16 %v2437
      %v2470 = vunpack.c.l.b16 %v2438
      %v2471 = vunpack.c.l.b16 %v2439
      %v2472 = vunpack.c.l.b16 %v2440
      %v2473 = vunpack.c.l.b16 %v2441
      %v2474 = vunpack.c.l.b16 %v2442
      %v2475 = vunpack.c.l.b16 %v2443
      %v2476 = vunpack.c.l.b16 %v2444
      %v2477 = vpack.c.b16 %v2462, %v2461
      %v2478 = vpack.c.b16 %v2464, %v2463
      %v2479 = vpack.c.b16 %v2466, %v2465
      %v2480 = vpack.c.b16 %v2468, %v2467
      %v2481 = vpack.c.b16 %v2470, %v2469
      %v2482 = vpack.c.b16 %v2472, %v2471
      %v2483 = vpack.c.b16 %v2474, %v2473
      %v2484 = vpack.c.b16 %v2476, %v2475
      %2493 = vmatprep.subr.bf16.mxu0 0
      %2494 = vmatpush1.bf16.msra.mxu0 %v2477
      %2495 = vmatprep.subr.bf16.mxu0 0
      %2496 = vmatpush1.bf16.msra.mxu0 %v2478
      %2497 = vmatprep.subr.bf16.mxu0 0
      %2498 = vmatpush1.bf16.msra.mxu0 %v2479
      %2499 = vmatprep.subr.bf16.mxu0 0
      %2500 = vmatpush1.bf16.msra.mxu0 %v2480
      %2501 = vmatprep.subr.bf16.mxu0 0
      %2502 = vmatpush1.bf16.msra.mxu0 %v2481
      %2503 = vmatprep.subr.bf16.mxu0 0
      %2504 = vmatpush1.bf16.msra.mxu0 %v2482
      %2505 = vmatprep.subr.bf16.mxu0 0
      %2506 = vmatpush1.bf16.msra.mxu0 %v2483
      %2507 = vmatprep.subr.bf16.mxu0 0
      %2508 = vmatpush1.bf16.msra.mxu0 %v2484
      %2509 = vmatprep.subr.bf16.mxu0 0
      %2510 = vmatpush1.bf16.msra.mxu0 0
      %2511 = vmatprep.subr.bf16.mxu0 0
      %2512 = vmatpush1.bf16.msra.mxu0 0
      %2513 = vmatprep.subr.bf16.mxu0 0
      %2514 = vmatpush1.bf16.msra.mxu0 0
      %2515 = vmatprep.subr.bf16.mxu0 0
      %2516 = vmatpush1.bf16.msra.mxu0 0
      %2517 = vmatprep.subr.bf16.mxu0 0
      %2518 = vmatpush1.bf16.msra.mxu0 0
      %2519 = vmatprep.subr.bf16.mxu0 0
      %2520 = vmatpush1.bf16.msra.mxu0 0
      %2521 = vmatprep.subr.bf16.mxu0 0
      %2522 = vmatpush1.bf16.msra.mxu0 0
      %2523 = vmatprep.subr.bf16.mxu0 0
      %2524 = vmatpush1.bf16.msra.mxu0 0
      %2525 = vmatprep.mubr.bf16.mxu0 0
      %2526 = vmatmul.mubr.bf16.gmra.mrb[0].mxu0 %v604
      %v2527 = vpop.f32.mrb[0].mxu0
      %v2528 = vadd.f32 0.0, %v2527
      %v2529 = vpop.f32.mrb[0].mxu0
      %v2530 = vpop.f32.mrb[0].mxu0
      %v2531 = vadd.f32 0.0, %v2530
      %v2532 = vpop.f32.mrb[0].mxu0
      %2533 = vmatprep.mubr.bf16.mxu0 0
      %2534 = vmatmul.mubr.bf16.gmra.mrb[0].mxu0 %v605
      %v2535 = vpop.f32.mrb[0].mxu0
      %v2536 = vadd.f32 0.0, %v2535
      %v2537 = vpop.f32.mrb[0].mxu0
      %v2538 = vpop.f32.mrb[0].mxu0
      %v2539 = vadd.f32 0.0, %v2538
      %v2540 = vpop.f32.mrb[0].mxu0
      %2541 = vmatprep.mubr.bf16.mxu0 0
      %2542 = vmatmul.mubr.bf16.gmra.mrb[0].mxu0 %v606
      %v2543 = vpop.f32.mrb[0].mxu0
      %v2544 = vadd.f32 0.0, %v2543
      %v2545 = vpop.f32.mrb[0].mxu0
      %v2546 = vpop.f32.mrb[0].mxu0
      %v2547 = vadd.f32 0.0, %v2546
      %v2548 = vpop.f32.mrb[0].mxu0
      %2549 = vmatprep.mubr.bf16.mxu0 0
      %2550 = vmatmul.mubr.bf16.gmra.mrb[0].mxu0 %v607
      %v2551 = vpop.f32.mrb[0].mxu0
      %v2552 = vadd.f32 0.0, %v2551
      %v2553 = vpop.f32.mrb[0].mxu0
      %v2554 = vpop.f32.mrb[0].mxu0
      %v2555 = vadd.f32 0.0, %v2554
      %v2556 = vpop.f32.mrb[0].mxu0
      %2557 = vmatprep.mubr.bf16.mxu0 0
      %2558 = vmatmul.mubr.bf16.gmra.mrb[0].mxu0 %v608
      %v2559 = vpop.f32.mrb[0].mxu0
      %v2560 = vadd.f32 0.0, %v2559
      %v2561 = vpop.f32.mrb[0].mxu0
      %v2562 = vpop.f32.mrb[0].mxu0
      %v2563 = vadd.f32 0.0, %v2562
      %v2564 = vpop.f32.mrb[0].mxu0
      %2565 = vmatprep.mubr.bf16.mxu0 0
      %2566 = vmatmul.mubr.bf16.gmra.mrb[0].mxu0 %v609
      %v2567 = vpop.f32.mrb[0].mxu0
      %v2568 = vadd.f32 0.0, %v2567
      %v2569 = vpop.f32.mrb[0].mxu0
      %v2570 = vpop.f32.mrb[0].mxu0
      %v2571 = vadd.f32 0.0, %v2570
      %v2572 = vpop.f32.mrb[0].mxu0
      %2573 = vmatprep.mubr.bf16.mxu0 0
      %2574 = vmatmul.mubr.bf16.gmra.mrb[0].mxu0 %v610
      %v2575 = vpop.f32.mrb[0].mxu0
      %v2576 = vadd.f32 0.0, %v2575
      %v2577 = vpop.f32.mrb[0].mxu0
      %v2578 = vpop.f32.mrb[0].mxu0
      %v2579 = vadd.f32 0.0, %v2578
      %v2580 = vpop.f32.mrb[0].mxu0
      %2581 = vmatprep.mubr.bf16.mxu0 0
      %2582 = vmatmul.mubr.bf16.gmra.mrb[0].mxu0 %v611
      %v2583 = vpop.f32.mrb[0].mxu0
      %v2584 = vadd.f32 0.0, %v2583
      %v2585 = vpop.f32.mrb[0].mxu0
      %v2586 = vpop.f32.mrb[0].mxu0
      %v2587 = vadd.f32 0.0, %v2586
      %v2588 = vpop.f32.mrb[0].mxu0
      %2589 = vmatprep.mubr.bf16.mxu0 0
      %2590 = vmatmul.mubr.bf16.gmra.mrb[0].mxu0 %v612
      %v2591 = vpop.f32.mrb[0].mxu0
      %v2592 = vadd.f32 0.0, %v2591
      %v2593 = vpop.f32.mrb[0].mxu0
      %v2594 = vpop.f32.mrb[0].mxu0
      %v2595 = vadd.f32 0.0, %v2594
      %v2596 = vpop.f32.mrb[0].mxu0
      %2597 = vmatprep.mubr.bf16.mxu0 0
      %2598 = vmatmul.mubr.bf16.gmra.mrb[0].mxu0 %v613
      %v2599 = vpop.f32.mrb[0].mxu0
      %v2600 = vadd.f32 0.0, %v2599
      %v2601 = vpop.f32.mrb[0].mxu0
      %v2602 = vpop.f32.mrb[0].mxu0
      %v2603 = vadd.f32 0.0, %v2602
      %v2604 = vpop.f32.mrb[0].mxu0
      %2605 = vmatprep.mubr.bf16.mxu0 0
      %2606 = vmatmul.mubr.bf16.gmra.mrb[0].mxu0 %v614
      %v2607 = vpop.f32.mrb[0].mxu0
      %v2608 = vadd.f32 0.0, %v2607
      %v2609 = vpop.f32.mrb[0].mxu0
      %v2610 = vpop.f32.mrb[0].mxu0
      %v2611 = vadd.f32 0.0, %v2610
      %v2612 = vpop.f32.mrb[0].mxu0
      %2613 = vmatprep.mubr.bf16.mxu0 0
      %2614 = vmatmul.mubr.bf16.gmra.mrb[0].mxu0 %v615
      %v2615 = vpop.f32.mrb[0].mxu0
      %v2616 = vadd.f32 0.0, %v2615
      %v2617 = vpop.f32.mrb[0].mxu0
      %v2618 = vpop.f32.mrb[0].mxu0
      %v2619 = vadd.f32 0.0, %v2618
      %v2620 = vpop.f32.mrb[0].mxu0
      %2621 = vmatprep.mubr.bf16.mxu0 0
      %2622 = vmatmul.mubr.bf16.gmra.mrb[0].mxu0 %v616
      %v2623 = vpop.f32.mrb[0].mxu0
      %v2624 = vadd.f32 0.0, %v2623
      %v2625 = vpop.f32.mrb[0].mxu0
      %v2626 = vpop.f32.mrb[0].mxu0
      %v2627 = vadd.f32 0.0, %v2626
      %v2628 = vpop.f32.mrb[0].mxu0
      %2629 = vmatprep.mubr.bf16.mxu0 0
      %2630 = vmatmul.mubr.bf16.gmra.mrb[0].mxu0 %v617
      %v2631 = vpop.f32.mrb[0].mxu0
      %v2632 = vadd.f32 0.0, %v2631
      %v2633 = vpop.f32.mrb[0].mxu0
      %v2634 = vpop.f32.mrb[0].mxu0
      %v2635 = vadd.f32 0.0, %v2634
      %v2636 = vpop.f32.mrb[0].mxu0
      %2637 = vmatprep.mubr.bf16.mxu0 0
      %2638 = vmatmul.mubr.bf16.gmra.mrb[0].mxu0 %v1633
      %v2639 = vpop.f32.mrb[0].mxu0
      %v2640 = vadd.f32 0.0, %v2639
      %v2641 = vpop.f32.mrb[0].mxu0
      %v2642 = vpop.f32.mrb[0].mxu0
      %v2643 = vadd.f32 0.0, %v2642
      %v2644 = vpop.f32.mrb[0].mxu0
      %2645 = vmatprep.mubr.bf16.mxu0 0
      %2646 = vmatmul.mubr.bf16.gmra.mrb[0].mxu0 %v2427
      %v2647 = vpop.f32.mrb[0].mxu0
      %v2648 = vadd.f32 0.0, %v2647
      %v2649 = vpop.f32.mrb[0].mxu0
      %v2650 = vpop.f32.mrb[0].mxu0
      %v2651 = vadd.f32 0.0, %v2650
      %v2652 = vpop.f32.mrb[0].mxu0
      %2653 = vdwg.mxu0
      %v2654 = vadd.f32 %v2395, %v2528
      %v2655 = vadd.f32 %v2396, %v2531
      %v2656 = vadd.f32 %v2397, %v2536
      %v2657 = vadd.f32 %v2398, %v2539
      %v2658 = vadd.f32 %v2399, %v2544
      %v2659 = vadd.f32 %v2400, %v2547
      %v2660 = vadd.f32 %v2401, %v2552
      %v2661 = vadd.f32 %v2402, %v2555
      %v2662 = vadd.f32 %v2403, %v2560
      %v2663 = vadd.f32 %v2404, %v2563
      %v2664 = vadd.f32 %v2405, %v2568
      %v2665 = vadd.f32 %v2406, %v2571
      %v2666 = vadd.f32 %v2407, %v2576
      %v2667 = vadd.f32 %v2408, %v2579
      %v2668 = vadd.f32 %v2409, %v2584
      %v2669 = vadd.f32 %v2410, %v2587
      %v2670 = vadd.f32 %v2411, %v2592
      %v2671 = vadd.f32 %v2412, %v2595
      %v2672 = vadd.f32 %v2413, %v2600
      %v2673 = vadd.f32 %v2414, %v2603
      %v2674 = vadd.f32 %v2415, %v2608
      %v2675 = vadd.f32 %v2416, %v2611
      %v2676 = vadd.f32 %v2417, %v2616
      %v2677 = vadd.f32 %v2418, %v2619
      %v2678 = vadd.f32 %v2419, %v2624
      %v2679 = vadd.f32 %v2420, %v2627
      %v2680 = vadd.f32 %v2421, %v2632
      %v2681 = vadd.f32 %v2422, %v2635
      %v2682 = vadd.f32 %v2423, %v2640
      %v2683 = vadd.f32 %v2424, %v2643
      %v2684 = vadd.f32 %v2425, %v2648
      %v2685 = vadd.f32 %v2426, %v2651
      %v2689 = vrot.slane %v599, 1
      %v2690 = vrot.slane %v600, 1
      %v2691 = vsel %vm682, %v2689, %v2690
      %v2692 = vrot.slane %v601, 1
      %v2693 = vsel %vm682, %v2690, %v2692
      %v2696 = vpack.c.bf16 %v2693, %v2691
      %s2697 = scalar_lea.vmem %s265, 448
      %v2698 = vld [vmem:[%s2697] sm:$0xf]
      %v2699 = vld [vmem:[%s2697 + $0x4] sm:$0xf]
      %v2700 = vld [vmem:[%s2697 + $0x8] sm:$0xf]
      %v2701 = vld [vmem:[%s2697 + $0xc] sm:$0xf]
      %v2702 = vld [vmem:[%s2697 + $0x10] sm:$0xf]
      %v2703 = vld [vmem:[%s2697 + $0x14] sm:$0xf]
      %v2704 = vld [vmem:[%s2697 + $0x18] sm:$0xf]
      %v2705 = vld [vmem:[%s2697 + $0x1c] sm:$0xf]
      %v2706 = vld [vmem:[%s2697 + $0x20] sm:$0xf]
      %v2707 = vld [vmem:[%s2697 + $0x24] sm:$0xf]
      %v2708 = vld [vmem:[%s2697 + $0x28] sm:$0xf]
      %v2709 = vld [vmem:[%s2697 + $0x2c] sm:$0xf]
      %v2710 = vld [vmem:[%s2697 + $0x30] sm:$0xf]
      %v2711 = vld [vmem:[%s2697 + $0x34] sm:$0xf]
      %v2712 = vld [vmem:[%s2697 + $0x38] sm:$0xf]
      %v2713 = vld [vmem:[%s2697 + $0x3c] sm:$0xf]
      %v2730 = vunpack.c.l.b16 %v2698
      %v2731 = vunpack.c.l.b16 %v2699
      %v2732 = vunpack.c.l.b16 %v2700
      %v2733 = vunpack.c.l.b16 %v2701
      %v2734 = vunpack.c.l.b16 %v2702
      %v2735 = vunpack.c.l.b16 %v2703
      %v2736 = vunpack.c.l.b16 %v2704
      %v2737 = vunpack.c.l.b16 %v2705
      %v2738 = vunpack.c.l.b16 %v2706
      %v2739 = vunpack.c.l.b16 %v2707
      %v2740 = vunpack.c.l.b16 %v2708
      %v2741 = vunpack.c.l.b16 %v2709
      %v2742 = vunpack.c.l.b16 %v2710
      %v2743 = vunpack.c.l.b16 %v2711
      %v2744 = vunpack.c.l.b16 %v2712
      %v2745 = vunpack.c.l.b16 %v2713
      %v2746 = vpack.c.b16 %v2731, %v2730
      %v2747 = vpack.c.b16 %v2733, %v2732
      %v2748 = vpack.c.b16 %v2735, %v2734
      %v2749 = vpack.c.b16 %v2737, %v2736
      %v2750 = vpack.c.b16 %v2739, %v2738
      %v2751 = vpack.c.b16 %v2741, %v2740
      %v2752 = vpack.c.b16 %v2743, %v2742
      %v2753 = vpack.c.b16 %v2745, %v2744
      %2762 = vmatprep.subr.bf16.mxu0 0
      %2763 = vmatpush1.bf16.msra.mxu0 %v2746
      %2764 = vmatprep.subr.bf16.mxu0 0
      %2765 = vmatpush1.bf16.msra.mxu0 %v2747
      %2766 = vmatprep.subr.bf16.mxu0 0
      %2767 = vmatpush1.bf16.msra.mxu0 %v2748
      %2768 = vmatprep.subr.bf16.mxu0 0
      %2769 = vmatpush1.bf16.msra.mxu0 %v2749
      %2770 = vmatprep.subr.bf16.mxu0 0
      %2771 = vmatpush1.bf16.msra.mxu0 %v2750
      %2772 = vmatprep.subr.bf16.mxu0 0
      %2773 = vmatpush1.bf16.msra.mxu0 %v2751
      %2774 = vmatprep.subr.bf16.mxu0 0
      %2775 = vmatpush1.bf16.msra.mxu0 %v2752
      %2776 = vmatprep.subr.bf16.mxu0 0
      %2777 = vmatpush1.bf16.msra.mxu0 %v2753
      %2778 = vmatprep.subr.bf16.mxu0 0
      %2779 = vmatpush1.bf16.msra.mxu0 0
      %2780 = vmatprep.subr.bf16.mxu0 0
      %2781 = vmatpush1.bf16.msra.mxu0 0
      %2782 = vmatprep.subr.bf16.mxu0 0
      %2783 = vmatpush1.bf16.msra.mxu0 0
      %2784 = vmatprep.subr.bf16.mxu0 0
      %2785 = vmatpush1.bf16.msra.mxu0 0
      %2786 = vmatprep.subr.bf16.mxu0 0
      %2787 = vmatpush1.bf16.msra.mxu0 0
      %2788 = vmatprep.subr.bf16.mxu0 0
      %2789 = vmatpush1.bf16.msra.mxu0 0
      %2790 = vmatprep.subr.bf16.mxu0 0
      %2791 = vmatpush1.bf16.msra.mxu0 0
      %2792 = vmatprep.subr.bf16.mxu0 0
      %2793 = vmatpush1.bf16.msra.mxu0 0
      %2794 = vmatprep.mubr.bf16.mxu0 0
      %2795 = vmatmul.mubr.bf16.gmra.mrb[0].mxu0 %v797
      %v2796 = vpop.f32.mrb[0].mxu0
      %v2797 = vadd.f32 0.0, %v2796
      %v2798 = vpop.f32.mrb[0].mxu0
      %v2799 = vpop.f32.mrb[0].mxu0
      %v2800 = vadd.f32 0.0, %v2799
      %v2801 = vpop.f32.mrb[0].mxu0
      %2802 = vmatprep.mubr.bf16.mxu0 0
      %2803 = vmatmul.mubr.bf16.gmra.mrb[0].mxu0 %v798
      %v2804 = vpop.f32.mrb[0].mxu0
      %v2805 = vadd.f32 0.0, %v2804
      %v2806 = vpop.f32.mrb[0].mxu0
      %v2807 = vpop.f32.mrb[0].mxu0
      %v2808 = vadd.f32 0.0, %v2807
      %v2809 = vpop.f32.mrb[0].mxu0
      %2810 = vmatprep.mubr.bf16.mxu0 0
      %2811 = vmatmul.mubr.bf16.gmra.mrb[0].mxu0 %v799
      %v2812 = vpop.f32.mrb[0].mxu0
      %v2813 = vadd.f32 0.0, %v2812
      %v2814 = vpop.f32.mrb[0].mxu0
      %v2815 = vpop.f32.mrb[0].mxu0
      %v2816 = vadd.f32 0.0, %v2815
      %v2817 = vpop.f32.mrb[0].mxu0
      %2818 = vmatprep.mubr.bf16.mxu0 0
      %2819 = vmatmul.mubr.bf16.gmra.mrb[0].mxu0 %v800
      %v2820 = vpop.f32.mrb[0].mxu0
      %v2821 = vadd.f32 0.0, %v2820
      %v2822 = vpop.f32.mrb[0].mxu0
      %v2823 = vpop.f32.mrb[0].mxu0
      %v2824 = vadd.f32 0.0, %v2823
      %v2825 = vpop.f32.mrb[0].mxu0
      %2826 = vmatprep.mubr.bf16.mxu0 0
      %2827 = vmatmul.mubr.bf16.gmra.mrb[0].mxu0 %v801
      %v2828 = vpop.f32.mrb[0].mxu0
      %v2829 = vadd.f32 0.0, %v2828
      %v2830 = vpop.f32.mrb[0].mxu0
      %v2831 = vpop.f32.mrb[0].mxu0
      %v2832 = vadd.f32 0.0, %v2831
      %v2833 = vpop.f32.mrb[0].mxu0
      %2834 = vmatprep.mubr.bf16.mxu0 0
      %2835 = vmatmul.mubr.bf16.gmra.mrb[0].mxu0 %v802
      %v2836 = vpop.f32.mrb[0].mxu0
      %v2837 = vadd.f32 0.0, %v2836
      %v2838 = vpop.f32.mrb[0].mxu0
      %v2839 = vpop.f32.mrb[0].mxu0
      %v2840 = vadd.f32 0.0, %v2839
      %v2841 = vpop.f32.mrb[0].mxu0
      %2842 = vmatprep.mubr.bf16.mxu0 0
      %2843 = vmatmul.mubr.bf16.gmra.mrb[0].mxu0 %v803
      %v2844 = vpop.f32.mrb[0].mxu0
      %v2845 = vadd.f32 0.0, %v2844
      %v2846 = vpop.f32.mrb[0].mxu0
      %v2847 = vpop.f32.mrb[0].mxu0
      %v2848 = vadd.f32 0.0, %v2847
      %v2849 = vpop.f32.mrb[0].mxu0
      %2850 = vmatprep.mubr.bf16.mxu0 0
      %2851 = vmatmul.mubr.bf16.gmra.mrb[0].mxu0 %v804
      %v2852 = vpop.f32.mrb[0].mxu0
      %v2853 = vadd.f32 0.0, %v2852
      %v2854 = vpop.f32.mrb[0].mxu0
      %v2855 = vpop.f32.mrb[0].mxu0
      %v2856 = vadd.f32 0.0, %v2855
      %v2857 = vpop.f32.mrb[0].mxu0
      %2858 = vmatprep.mubr.bf16.mxu0 0
      %2859 = vmatmul.mubr.bf16.gmra.mrb[0].mxu0 %v805
      %v2860 = vpop.f32.mrb[0].mxu0
      %v2861 = vadd.f32 0.0, %v2860
      %v2862 = vpop.f32.mrb[0].mxu0
      %v2863 = vpop.f32.mrb[0].mxu0
      %v2864 = vadd.f32 0.0, %v2863
      %v2865 = vpop.f32.mrb[0].mxu0
      %2866 = vmatprep.mubr.bf16.mxu0 0
      %2867 = vmatmul.mubr.bf16.gmra.mrb[0].mxu0 %v806
      %v2868 = vpop.f32.mrb[0].mxu0
      %v2869 = vadd.f32 0.0, %v2868
      %v2870 = vpop.f32.mrb[0].mxu0
      %v2871 = vpop.f32.mrb[0].mxu0
      %v2872 = vadd.f32 0.0, %v2871
      %v2873 = vpop.f32.mrb[0].mxu0
      %2874 = vmatprep.mubr.bf16.mxu0 0
      %2875 = vmatmul.mubr.bf16.gmra.mrb[0].mxu0 %v807
      %v2876 = vpop.f32.mrb[0].mxu0
      %v2877 = vadd.f32 0.0, %v2876
      %v2878 = vpop.f32.mrb[0].mxu0
      %v2879 = vpop.f32.mrb[0].mxu0
      %v2880 = vadd.f32 0.0, %v2879
      %v2881 = vpop.f32.mrb[0].mxu0
      %2882 = vmatprep.mubr.bf16.mxu0 0
      %2883 = vmatmul.mubr.bf16.gmra.mrb[0].mxu0 %v808
      %v2884 = vpop.f32.mrb[0].mxu0
      %v2885 = vadd.f32 0.0, %v2884
      %v2886 = vpop.f32.mrb[0].mxu0
      %v2887 = vpop.f32.mrb[0].mxu0
      %v2888 = vadd.f32 0.0, %v2887
      %v2889 = vpop.f32.mrb[0].mxu0
      %2890 = vmatprep.mubr.bf16.mxu0 0
      %2891 = vmatmul.mubr.bf16.gmra.mrb[0].mxu0 %v809
      %v2892 = vpop.f32.mrb[0].mxu0
      %v2893 = vadd.f32 0.0, %v2892
      %v2894 = vpop.f32.mrb[0].mxu0
      %v2895 = vpop.f32.mrb[0].mxu0
      %v2896 = vadd.f32 0.0, %v2895
      %v2897 = vpop.f32.mrb[0].mxu0
      %2898 = vmatprep.mubr.bf16.mxu0 0
      %2899 = vmatmul.mubr.bf16.gmra.mrb[0].mxu0 %v810
      %v2900 = vpop.f32.mrb[0].mxu0
      %v2901 = vadd.f32 0.0, %v2900
      %v2902 = vpop.f32.mrb[0].mxu0
      %v2903 = vpop.f32.mrb[0].mxu0
      %v2904 = vadd.f32 0.0, %v2903
      %v2905 = vpop.f32.mrb[0].mxu0
      %2906 = vmatprep.mubr.bf16.mxu0 0
      %2907 = vmatmul.mubr.bf16.gmra.mrb[0].mxu0 %v1902
      %v2908 = vpop.f32.mrb[0].mxu0
      %v2909 = vadd.f32 0.0, %v2908
      %v2910 = vpop.f32.mrb[0].mxu0
      %v2911 = vpop.f32.mrb[0].mxu0
      %v2912 = vadd.f32 0.0, %v2911
      %v2913 = vpop.f32.mrb[0].mxu0
      %2914 = vmatprep.mubr.bf16.mxu0 0
      %2915 = vmatmul.mubr.bf16.gmra.mrb[0].mxu0 %v2696
      %v2916 = vpop.f32.mrb[0].mxu0
      %v2917 = vadd.f32 0.0, %v2916
      %v2918 = vpop.f32.mrb[0].mxu0
      %v2919 = vpop.f32.mrb[0].mxu0
      %v2920 = vadd.f32 0.0, %v2919
      %v2921 = vpop.f32.mrb[0].mxu0
      %2922 = vdwg.mxu0
      %v2923 = vadd.f32 %v2654, %v2797
      %v2924 = vadd.f32 %v2655, %v2800
      %v2925 = vadd.f32 %v2656, %v2805
      %v2926 = vadd.f32 %v2657, %v2808
      %v2927 = vadd.f32 %v2658, %v2813
      %v2928 = vadd.f32 %v2659, %v2816
      %v2929 = vadd.f32 %v2660, %v2821
      %v2930 = vadd.f32 %v2661, %v2824
      %v2931 = vadd.f32 %v2662, %v2829
      %v2932 = vadd.f32 %v2663, %v2832
      %v2933 = vadd.f32 %v2664, %v2837
      %v2934 = vadd.f32 %v2665, %v2840
      %v2935 = vadd.f32 %v2666, %v2845
      %v2936 = vadd.f32 %v2667, %v2848
      %v2937 = vadd.f32 %v2668, %v2853
      %v2938 = vadd.f32 %v2669, %v2856
      %v2939 = vadd.f32 %v2670, %v2861
      %v2940 = vadd.f32 %v2671, %v2864
      %v2941 = vadd.f32 %v2672, %v2869
      %v2942 = vadd.f32 %v2673, %v2872
      %v2943 = vadd.f32 %v2674, %v2877
      %v2944 = vadd.f32 %v2675, %v2880
      %v2945 = vadd.f32 %v2676, %v2885
      %v2946 = vadd.f32 %v2677, %v2888
      %v2947 = vadd.f32 %v2678, %v2893
      %v2948 = vadd.f32 %v2679, %v2896
      %v2949 = vadd.f32 %v2680, %v2901
      %v2950 = vadd.f32 %v2681, %v2904
      %v2951 = vadd.f32 %v2682, %v2909
      %v2952 = vadd.f32 %v2683, %v2912
      %v2953 = vadd.f32 %v2684, %v2917
      %v2954 = vadd.f32 %v2685, %v2920
      %v2955 = vrot.slane %v599, 2
      %v2956 = vrot.slane %v600, 2
      %v2957 = vsel %vm1246, %v2955, %v2956
      %v2958 = vrot.slane %v601, 2
      %v2959 = vsel %vm1246, %v2956, %v2958
      %v2962 = vpack.c.bf16 %v2959, %v2957
      %s2963 = scalar_lea.vmem %s265, 512
      %v2964 = vld [vmem:[%s2963] sm:$0xf]
      %v2965 = vld [vmem:[%s2963 + $0x4] sm:$0xf]
      %v2966 = vld [vmem:[%s2963 + $0x8] sm:$0xf]
      %v2967 = vld [vmem:[%s2963 + $0xc] sm:$0xf]
      %v2968 = vld [vmem:[%s2963 + $0x10] sm:$0xf]
      %v2969 = vld [vmem:[%s2963 + $0x14] sm:$0xf]
      %v2970 = vld [vmem:[%s2963 + $0x18] sm:$0xf]
      %v2971 = vld [vmem:[%s2963 + $0x1c] sm:$0xf]
      %v2972 = vld [vmem:[%s2963 + $0x20] sm:$0xf]
      %v2973 = vld [vmem:[%s2963 + $0x24] sm:$0xf]
      %v2974 = vld [vmem:[%s2963 + $0x28] sm:$0xf]
      %v2975 = vld [vmem:[%s2963 + $0x2c] sm:$0xf]
      %v2976 = vld [vmem:[%s2963 + $0x30] sm:$0xf]
      %v2977 = vld [vmem:[%s2963 + $0x34] sm:$0xf]
      %v2978 = vld [vmem:[%s2963 + $0x38] sm:$0xf]
      %v2979 = vld [vmem:[%s2963 + $0x3c] sm:$0xf]
      %v2996 = vunpack.c.l.b16 %v2964
      %v2997 = vunpack.c.l.b16 %v2965
      %v2998 = vunpack.c.l.b16 %v2966
      %v2999 = vunpack.c.l.b16 %v2967
      %v3000 = vunpack.c.l.b16 %v2968
      %v3001 = vunpack.c.l.b16 %v2969
      %v3002 = vunpack.c.l.b16 %v2970
      %v3003 = vunpack.c.l.b16 %v2971
      %v3004 = vunpack.c.l.b16 %v2972
      %v3005 = vunpack.c.l.b16 %v2973
      %v3006 = vunpack.c.l.b16 %v2974
      %v3007 = vunpack.c.l.b16 %v2975
      %v3008 = vunpack.c.l.b16 %v2976
      %v3009 = vunpack.c.l.b16 %v2977
      %v3010 = vunpack.c.l.b16 %v2978
      %v3011 = vunpack.c.l.b16 %v2979
      %v3012 = vpack.c.b16 %v2997, %v2996
      %v3013 = vpack.c.b16 %v2999, %v2998
      %v3014 = vpack.c.b16 %v3001, %v3000
      %v3015 = vpack.c.b16 %v3003, %v3002
      %v3016 = vpack.c.b16 %v3005, %v3004
      %v3017 = vpack.c.b16 %v3007, %v3006
      %v3018 = vpack.c.b16 %v3009, %v3008
      %v3019 = vpack.c.b16 %v3011, %v3010
      %3028 = vmatprep.subr.bf16.mxu0 0
      %3029 = vmatpush1.bf16.msra.mxu0 %v3012
      %3030 = vmatprep.subr.bf16.mxu0 0
      %3031 = vmatpush1.bf16.msra.mxu0 %v3013
      %3032 = vmatprep.subr.bf16.mxu0 0
      %3033 = vmatpush1.bf16.msra.mxu0 %v3014
      %3034 = vmatprep.subr.bf16.mxu0 0
      %3035 = vmatpush1.bf16.msra.mxu0 %v3015
      %3036 = vmatprep.subr.bf16.mxu0 0
      %3037 = vmatpush1.bf16.msra.mxu0 %v3016
      %3038 = vmatprep.subr.bf16.mxu0 0
      %3039 = vmatpush1.bf16.msra.mxu0 %v3017
      %3040 = vmatprep.subr.bf16.mxu0 0
      %3041 = vmatpush1.bf16.msra.mxu0 %v3018
      %3042 = vmatprep.subr.bf16.mxu0 0
      %3043 = vmatpush1.bf16.msra.mxu0 %v3019
      %3044 = vmatprep.subr.bf16.mxu0 0
      %3045 = vmatpush1.bf16.msra.mxu0 0
      %3046 = vmatprep.subr.bf16.mxu0 0
      %3047 = vmatpush1.bf16.msra.mxu0 0
      %3048 = vmatprep.subr.bf16.mxu0 0
      %3049 = vmatpush1.bf16.msra.mxu0 0
      %3050 = vmatprep.subr.bf16.mxu0 0
      %3051 = vmatpush1.bf16.msra.mxu0 0
      %3052 = vmatprep.subr.bf16.mxu0 0
      %3053 = vmatpush1.bf16.msra.mxu0 0
      %3054 = vmatprep.subr.bf16.mxu0 0
      %3055 = vmatpush1.bf16.msra.mxu0 0
      %3056 = vmatprep.subr.bf16.mxu0 0
      %3057 = vmatpush1.bf16.msra.mxu0 0
      %3058 = vmatprep.subr.bf16.mxu0 0
      %3059 = vmatpush1.bf16.msra.mxu0 0
      %3060 = vmatprep.mubr.bf16.mxu0 0
      %3061 = vmatmul.mubr.bf16.gmra.mrb[0].mxu0 %v1361
      %v3062 = vpop.f32.mrb[0].mxu0
      %v3063 = vadd.f32 0.0, %v3062
      %v3064 = vpop.f32.mrb[0].mxu0
      %v3065 = vpop.f32.mrb[0].mxu0
      %v3066 = vadd.f32 0.0, %v3065
      %v3067 = vpop.f32.mrb[0].mxu0
      %3068 = vmatprep.mubr.bf16.mxu0 0
      %3069 = vmatmul.mubr.bf16.gmra.mrb[0].mxu0 %v1362
      %v3070 = vpop.f32.mrb[0].mxu0
      %v3071 = vadd.f32 0.0, %v3070
      %v3072 = vpop.f32.mrb[0].mxu0
      %v3073 = vpop.f32.mrb[0].mxu0
      %v3074 = vadd.f32 0.0, %v3073
      %v3075 = vpop.f32.mrb[0].mxu0
      %3076 = vmatprep.mubr.bf16.mxu0 0
      %3077 = vmatmul.mubr.bf16.gmra.mrb[0].mxu0 %v1363
      %v3078 = vpop.f32.mrb[0].mxu0
      %v3079 = vadd.f32 0.0, %v3078
      %v3080 = vpop.f32.mrb[0].mxu0
      %v3081 = vpop.f32.mrb[0].mxu0
      %v3082 = vadd.f32 0.0, %v3081
      %v3083 = vpop.f32.mrb[0].mxu0
      %3084 = vmatprep.mubr.bf16.mxu0 0
      %3085 = vmatmul.mubr.bf16.gmra.mrb[0].mxu0 %v1364
      %v3086 = vpop.f32.mrb[0].mxu0
      %v3087 = vadd.f32 0.0, %v3086
      %v3088 = vpop.f32.mrb[0].mxu0
      %v3089 = vpop.f32.mrb[0].mxu0
      %v3090 = vadd.f32 0.0, %v3089
      %v3091 = vpop.f32.mrb[0].mxu0
      %3092 = vmatprep.mubr.bf16.mxu0 0
      %3093 = vmatmul.mubr.bf16.gmra.mrb[0].mxu0 %v1365
      %v3094 = vpop.f32.mrb[0].mxu0
      %v3095 = vadd.f32 0.0, %v3094
      %v3096 = vpop.f32.mrb[0].mxu0
      %v3097 = vpop.f32.mrb[0].mxu0
      %v3098 = vadd.f32 0.0, %v3097
      %v3099 = vpop.f32.mrb[0].mxu0
      %3100 = vmatprep.mubr.bf16.mxu0 0
      %3101 = vmatmul.mubr.bf16.gmra.mrb[0].mxu0 %v1366
      %v3102 = vpop.f32.mrb[0].mxu0
      %v3103 = vadd.f32 0.0, %v3102
      %v3104 = vpop.f32.mrb[0].mxu0
      %v3105 = vpop.f32.mrb[0].mxu0
      %v3106 = vadd.f32 0.0, %v3105
      %v3107 = vpop.f32.mrb[0].mxu0
      %3108 = vmatprep.mubr.bf16.mxu0 0
      %3109 = vmatmul.mubr.bf16.gmra.mrb[0].mxu0 %v1367
      %v3110 = vpop.f32.mrb[0].mxu0
      %v3111 = vadd.f32 0.0, %v3110
      %v3112 = vpop.f32.mrb[0].mxu0
      %v3113 = vpop.f32.mrb[0].mxu0
      %v3114 = vadd.f32 0.0, %v3113
      %v3115 = vpop.f32.mrb[0].mxu0
      %3116 = vmatprep.mubr.bf16.mxu0 0
      %3117 = vmatmul.mubr.bf16.gmra.mrb[0].mxu0 %v1368
      %v3118 = vpop.f32.mrb[0].mxu0
      %v3119 = vadd.f32 0.0, %v3118
      %v3120 = vpop.f32.mrb[0].mxu0
      %v3121 = vpop.f32.mrb[0].mxu0
      %v3122 = vadd.f32 0.0, %v3121
      %v3123 = vpop.f32.mrb[0].mxu0
      %3124 = vmatprep.mubr.bf16.mxu0 0
      %3125 = vmatmul.mubr.bf16.gmra.mrb[0].mxu0 %v1369
      %v3126 = vpop.f32.mrb[0].mxu0
      %v3127 = vadd.f32 0.0, %v3126
      %v3128 = vpop.f32.mrb[0].mxu0
      %v3129 = vpop.f32.mrb[0].mxu0
      %v3130 = vadd.f32 0.0, %v3129
      %v3131 = vpop.f32.mrb[0].mxu0
      %3132 = vmatprep.mubr.bf16.mxu0 0
      %3133 = vmatmul.mubr.bf16.gmra.mrb[0].mxu0 %v1370
      %v3134 = vpop.f32.mrb[0].mxu0
      %v3135 = vadd.f32 0.0, %v3134
      %v3136 = vpop.f32.mrb[0].mxu0
      %v3137 = vpop.f32.mrb[0].mxu0
      %v3138 = vadd.f32 0.0, %v3137
      %v3139 = vpop.f32.mrb[0].mxu0
      %3140 = vmatprep.mubr.bf16.mxu0 0
      %3141 = vmatmul.mubr.bf16.gmra.mrb[0].mxu0 %v1371
      %v3142 = vpop.f32.mrb[0].mxu0
      %v3143 = vadd.f32 0.0, %v3142
      %v3144 = vpop.f32.mrb[0].mxu0
      %v3145 = vpop.f32.mrb[0].mxu0
      %v3146 = vadd.f32 0.0, %v3145
      %v3147 = vpop.f32.mrb[0].mxu0
      %3148 = vmatprep.mubr.bf16.mxu0 0
      %3149 = vmatmul.mubr.bf16.gmra.mrb[0].mxu0 %v1372
      %v3150 = vpop.f32.mrb[0].mxu0
      %v3151 = vadd.f32 0.0, %v3150
      %v3152 = vpop.f32.mrb[0].mxu0
      %v3153 = vpop.f32.mrb[0].mxu0
      %v3154 = vadd.f32 0.0, %v3153
      %v3155 = vpop.f32.mrb[0].mxu0
      %3156 = vmatprep.mubr.bf16.mxu0 0
      %3157 = vmatmul.mubr.bf16.gmra.mrb[0].mxu0 %v1373
      %v3158 = vpop.f32.mrb[0].mxu0
      %v3159 = vadd.f32 0.0, %v3158
      %v3160 = vpop.f32.mrb[0].mxu0
      %v3161 = vpop.f32.mrb[0].mxu0
      %v3162 = vadd.f32 0.0, %v3161
      %v3163 = vpop.f32.mrb[0].mxu0
      %3164 = vmatprep.mubr.bf16.mxu0 0
      %3165 = vmatmul.mubr.bf16.gmra.mrb[0].mxu0 %v1374
      %v3166 = vpop.f32.mrb[0].mxu0
      %v3167 = vadd.f32 0.0, %v3166
      %v3168 = vpop.f32.mrb[0].mxu0
      %v3169 = vpop.f32.mrb[0].mxu0
      %v3170 = vadd.f32 0.0, %v3169
      %v3171 = vpop.f32.mrb[0].mxu0
      %3172 = vmatprep.mubr.bf16.mxu0 0
      %3173 = vmatmul.mubr.bf16.gmra.mrb[0].mxu0 %v2168
      %v3174 = vpop.f32.mrb[0].mxu0
      %v3175 = vadd.f32 0.0, %v3174
      %v3176 = vpop.f32.mrb[0].mxu0
      %v3177 = vpop.f32.mrb[0].mxu0
      %v3178 = vadd.f32 0.0, %v3177
      %v3179 = vpop.f32.mrb[0].mxu0
      %3180 = vmatprep.mubr.bf16.mxu0 0
      %3181 = vmatmul.mubr.bf16.gmra.mrb[0].mxu0 %v2962
      %v3182 = vpop.f32.mrb[0].mxu0
      %v3183 = vadd.f32 0.0, %v3182
      %v3184 = vpop.f32.mrb[0].mxu0
      %v3185 = vpop.f32.mrb[0].mxu0
      %v3186 = vadd.f32 0.0, %v3185
      %v3187 = vpop.f32.mrb[0].mxu0
      %3188 = vdwg.mxu0
      %v3189 = vadd.f32 %v2923, %v3063
      %v3190 = vadd.f32 %v2924, %v3066
      %v3191 = vadd.f32 %v2925, %v3071
      %v3192 = vadd.f32 %v2926, %v3074
      %v3193 = vadd.f32 %v2927, %v3079
      %v3194 = vadd.f32 %v2928, %v3082
      %v3195 = vadd.f32 %v2929, %v3087
      %v3196 = vadd.f32 %v2930, %v3090
      %v3197 = vadd.f32 %v2931, %v3095
      %v3198 = vadd.f32 %v2932, %v3098
      %v3199 = vadd.f32 %v2933, %v3103
      %v3200 = vadd.f32 %v2934, %v3106
      %v3201 = vadd.f32 %v2935, %v3111
      %v3202 = vadd.f32 %v2936, %v3114
      %v3203 = vadd.f32 %v2937, %v3119
      %v3204 = vadd.f32 %v2938, %v3122
      %v3205 = vadd.f32 %v2939, %v3127
      %v3206 = vadd.f32 %v2940, %v3130
      %v3207 = vadd.f32 %v2941, %v3135
      %v3208 = vadd.f32 %v2942, %v3138
      %v3209 = vadd.f32 %v2943, %v3143
      %v3210 = vadd.f32 %v2944, %v3146
      %v3211 = vadd.f32 %v2945, %v3151
      %v3212 = vadd.f32 %v2946, %v3154
      %v3213 = vadd.f32 %v2947, %v3159
      %v3214 = vadd.f32 %v2948, %v3162
      %v3215 = vadd.f32 %v2949, %v3167
      %v3216 = vadd.f32 %v2950, %v3170
      %v3217 = vadd.f32 %v2951, %v3175
      %v3218 = vadd.f32 %v2952, %v3178
      %v3219 = vadd.f32 %v2953, %v3183
      %v3220 = vadd.f32 %v2954, %v3186
      %v3221 = vpack.c.bf16 %v3190, %v3189
      %v3222 = vpack.c.bf16 %v3192, %v3191
      %v3223 = vpack.c.bf16 %v3194, %v3193
      %v3224 = vpack.c.bf16 %v3196, %v3195
      %v3225 = vpack.c.bf16 %v3198, %v3197
      %v3226 = vpack.c.bf16 %v3200, %v3199
      %v3227 = vpack.c.bf16 %v3202, %v3201
      %v3228 = vpack.c.bf16 %v3204, %v3203
      %v3229 = vpack.c.bf16 %v3206, %v3205
      %v3230 = vpack.c.bf16 %v3208, %v3207
      %v3231 = vpack.c.bf16 %v3210, %v3209
      %v3232 = vpack.c.bf16 %v3212, %v3211
      %v3233 = vpack.c.bf16 %v3214, %v3213
      %v3234 = vpack.c.bf16 %v3216, %v3215
      %v3235 = vpack.c.bf16 %v3218, %v3217
      %v3236 = vpack.c.bf16 %v3220, %v3219
      %v3253 = vunpack.c.l.b16 %v3221
      %v3254 = vunpack.c.h.b16 %v3221
      %v3255 = vunpack.c.l.b16 %v3222
      %v3256 = vunpack.c.h.b16 %v3222
      %v3257 = vunpack.c.l.b16 %v3223
      %v3258 = vunpack.c.h.b16 %v3223
      %v3259 = vunpack.c.l.b16 %v3224
      %v3260 = vunpack.c.h.b16 %v3224
      %v3261 = vunpack.c.l.b16 %v3225
      %v3262 = vunpack.c.h.b16 %v3225
      %v3263 = vunpack.c.l.b16 %v3226
      %v3264 = vunpack.c.h.b16 %v3226
      %v3265 = vunpack.c.l.b16 %v3227
      %v3266 = vunpack.c.h.b16 %v3227
      %v3267 = vunpack.c.l.b16 %v3228
      %v3268 = vunpack.c.h.b16 %v3228
      %v3269 = vunpack.c.l.b16 %v3229
      %v3270 = vunpack.c.h.b16 %v3229
      %v3271 = vunpack.c.l.b16 %v3230
      %v3272 = vunpack.c.h.b16 %v3230
      %v3273 = vunpack.c.l.b16 %v3231
      %v3274 = vunpack.c.h.b16 %v3231
      %v3275 = vunpack.c.l.b16 %v3232
      %v3276 = vunpack.c.h.b16 %v3232
      %v3277 = vunpack.c.l.b16 %v3233
      %v3278 = vunpack.c.h.b16 %v3233
      %v3279 = vunpack.c.l.b16 %v3234
      %v3280 = vunpack.c.h.b16 %v3234
      %v3281 = vunpack.c.l.b16 %v3235
      %v3282 = vunpack.c.h.b16 %v3235
      %v3283 = vunpack.c.l.b16 %v3236
      %v3284 = vunpack.c.h.b16 %v3236
      %v3285 = vpack.c.b16 %v3253, %v3253
      %v3286 = vpack.c.b16 %v3254, %v3254
      %v3287 = vpack.c.b16 %v3255, %v3255
      %v3288 = vpack.c.b16 %v3256, %v3256
      %v3289 = vpack.c.b16 %v3257, %v3257
      %v3290 = vpack.c.b16 %v3258, %v3258
      %v3291 = vpack.c.b16 %v3259, %v3259
      %v3292 = vpack.c.b16 %v3260, %v3260
      %v3293 = vpack.c.b16 %v3261, %v3261
      %v3294 = vpack.c.b16 %v3262, %v3262
      %v3295 = vpack.c.b16 %v3263, %v3263
      %v3296 = vpack.c.b16 %v3264, %v3264
      %v3297 = vpack.c.b16 %v3265, %v3265
      %v3298 = vpack.c.b16 %v3266, %v3266
      %v3299 = vpack.c.b16 %v3267, %v3267
      %v3300 = vpack.c.b16 %v3268, %v3268
      %v3301 = vpack.c.b16 %v3269, %v3269
      %v3302 = vpack.c.b16 %v3270, %v3270
      %v3303 = vpack.c.b16 %v3271, %v3271
      %v3304 = vpack.c.b16 %v3272, %v3272
      %v3305 = vpack.c.b16 %v3273, %v3273
      %v3306 = vpack.c.b16 %v3274, %v3274
      %v3307 = vpack.c.b16 %v3275, %v3275
      %v3308 = vpack.c.b16 %v3276, %v3276
      %v3309 = vpack.c.b16 %v3277, %v3277
      %v3310 = vpack.c.b16 %v3278, %v3278
      %v3311 = vpack.c.b16 %v3279, %v3279
      %v3312 = vpack.c.b16 %v3280, %v3280
      %v3313 = vpack.c.b16 %v3281, %v3281
      %v3314 = vpack.c.b16 %v3282, %v3282
      %v3315 = vpack.c.b16 %v3283, %v3283
      %v3316 = vpack.c.b16 %v3284, %v3284
      %3349 = vst [vmem:[%s273] sm:$0xf] %v3285
      %3350 = vst [vmem:[%s273 + $0x4] sm:$0xf] %v3286
      %3351 = vst [vmem:[%s273 + $0x8] sm:$0xf] %v3287
      %3352 = vst [vmem:[%s273 + $0xc] sm:$0xf] %v3288
      %3353 = vst [vmem:[%s273 + $0x10] sm:$0xf] %v3289
      %3354 = vst [vmem:[%s273 + $0x14] sm:$0xf] %v3290
      %3355 = vst [vmem:[%s273 + $0x18] sm:$0xf] %v3291
      %3356 = vst [vmem:[%s273 + $0x1c] sm:$0xf] %v3292
      %3357 = vst [vmem:[%s273 + $0x20] sm:$0xf] %v3293
      %3358 = vst [vmem:[%s273 + $0x24] sm:$0xf] %v3294
      %3359 = vst [vmem:[%s273 + $0x28] sm:$0xf] %v3295
      %3360 = vst [vmem:[%s273 + $0x2c] sm:$0xf] %v3296
      %3361 = vst [vmem:[%s273 + $0x30] sm:$0xf] %v3297
      %3362 = vst [vmem:[%s273 + $0x34] sm:$0xf] %v3298
      %3363 = vst [vmem:[%s273 + $0x38] sm:$0xf] %v3299
      %3364 = vst [vmem:[%s273 + $0x3c] sm:$0xf] %v3300
      %3365 = vst [vmem:[%s273 + $0x40] sm:$0xf] %v3301
      %3366 = vst [vmem:[%s273 + $0x44] sm:$0xf] %v3302
      %3367 = vst [vmem:[%s273 + $0x48] sm:$0xf] %v3303
      %3368 = vst [vmem:[%s273 + $0x4c] sm:$0xf] %v3304
      %3369 = vst [vmem:[%s273 + $0x50] sm:$0xf] %v3305
      %3370 = vst [vmem:[%s273 + $0x54] sm:$0xf] %v3306
      %3371 = vst [vmem:[%s273 + $0x58] sm:$0xf] %v3307
      %3372 = vst [vmem:[%s273 + $0x5c] sm:$0xf] %v3308
      %3373 = vst [vmem:[%s273 + $0x60] sm:$0xf] %v3309
      %3374 = vst [vmem:[%s273 + $0x64] sm:$0xf] %v3310
      %3375 = vst [vmem:[%s273 + $0x68] sm:$0xf] %v3311
      %3376 = vst [vmem:[%s273 + $0x6c] sm:$0xf] %v3312
      %3377 = vst [vmem:[%s273 + $0x70] sm:$0xf] %v3313
      %3378 = vst [vmem:[%s273 + $0x74] sm:$0xf] %v3314
      %3379 = vst [vmem:[%s273 + $0x78] sm:$0xf] %v3315
      %3380 = vst [vmem:[%s273 + $0x7c] sm:$0xf] %v3316
      %v3381 = vadd.f32 %v3189, %v3190
      %v3382 = vadd.f32 %v3381, %v3191
      %v3383 = vadd.f32 %v3382, %v3192
      %v3384 = vadd.f32 %v3383, %v3193
      %v3385 = vadd.f32 %v3384, %v3194
      %v3386 = vadd.f32 %v3385, %v3195
      %v3387 = vadd.f32 %v3386, %v3196
      %v3388 = vadd.f32 %v3387, %v3197
      %v3389 = vadd.f32 %v3388, %v3198
      %v3390 = vadd.f32 %v3389, %v3199
      %v3391 = vadd.f32 %v3390, %v3200
      %v3392 = vadd.f32 %v3391, %v3201
      %v3393 = vadd.f32 %v3392, %v3202
      %v3394 = vadd.f32 %v3393, %v3203
      %v3395 = vadd.f32 %v3394, %v3204
      %v3396 = vadd.f32 %v3395, %v3205
      %v3397 = vadd.f32 %v3396, %v3206
      %v3398 = vadd.f32 %v3397, %v3207
      %v3399 = vadd.f32 %v3398, %v3208
      %v3400 = vadd.f32 %v3399, %v3209
      %v3401 = vadd.f32 %v3400, %v3210
      %v3402 = vadd.f32 %v3401, %v3211
      %v3403 = vadd.f32 %v3402, %v3212
      %v3404 = vadd.f32 %v3403, %v3213
      %v3405 = vadd.f32 %v3404, %v3214
      %v3406 = vadd.f32 %v3405, %v3215
      %v3407 = vadd.f32 %v3406, %v3216
      %v3408 = vadd.f32 %v3407, %v3217
      %v3409 = vadd.f32 %v3408, %v3218
      %v3410 = vadd.f32 %v3409, %v3219
      %v3411 = vadd.f32 %v3410, %v3220
      %v3412 = vrot.slane %v3411, 4
      %v3413 = vadd.f32 %v3411, %v3412
      %v3414 = vrot.slane %v3413, 2
      %v3415 = vadd.f32 %v3413, %v3414
      %v3416 = vrot.slane %v3415, 1
      %v3417 = vadd.f32 %v3415, %v3416
      %3418 = vst [vmem:[%s281] sm:$0x1] %v3417
      %v3419 = vmul.f32 %v3189, %v3189
      %v3420 = vmul.f32 %v3190, %v3190
      %v3421 = vmul.f32 %v3191, %v3191
      %v3422 = vmul.f32 %v3192, %v3192
      %v3423 = vmul.f32 %v3193, %v3193
      %v3424 = vmul.f32 %v3194, %v3194
      %v3425 = vmul.f32 %v3195, %v3195
      %v3426 = vmul.f32 %v3196, %v3196
      %v3427 = vmul.f32 %v3197, %v3197
      %v3428 = vmul.f32 %v3198, %v3198
      %v3429 = vmul.f32 %v3199, %v3199
      %v3430 = vmul.f32 %v3200, %v3200
      %v3431 = vmul.f32 %v3201, %v3201
      %v3432 = vmul.f32 %v3202, %v3202
      %v3433 = vmul.f32 %v3203, %v3203
      %v3434 = vmul.f32 %v3204, %v3204
      %v3435 = vmul.f32 %v3205, %v3205
      %v3436 = vmul.f32 %v3206, %v3206
      %v3437 = vmul.f32 %v3207, %v3207
      %v3438 = vmul.f32 %v3208, %v3208
      %v3439 = vmul.f32 %v3209, %v3209
      %v3440 = vmul.f32 %v3210, %v3210
      %v3441 = vmul.f32 %v3211, %v3211
      %v3442 = vmul.f32 %v3212, %v3212
      %v3443 = vmul.f32 %v3213, %v3213
      %v3444 = vmul.f32 %v3214, %v3214
      %v3445 = vmul.f32 %v3215, %v3215
      %v3446 = vmul.f32 %v3216, %v3216
      %v3447 = vmul.f32 %v3217, %v3217
      %v3448 = vmul.f32 %v3218, %v3218
      %v3449 = vmul.f32 %v3219, %v3219
      %v3450 = vmul.f32 %v3220, %v3220
      %v3451 = vadd.f32 %v3419, %v3420
      %v3452 = vadd.f32 %v3451, %v3421
      %v3453 = vadd.f32 %v3452, %v3422
      %v3454 = vadd.f32 %v3453, %v3423
      %v3455 = vadd.f32 %v3454, %v3424
      %v3456 = vadd.f32 %v3455, %v3425
      %v3457 = vadd.f32 %v3456, %v3426
      %v3458 = vadd.f32 %v3457, %v3427
      %v3459 = vadd.f32 %v3458, %v3428
      %v3460 = vadd.f32 %v3459, %v3429
      %v3461 = vadd.f32 %v3460, %v3430
      %v3462 = vadd.f32 %v3461, %v3431
      %v3463 = vadd.f32 %v3462, %v3432
      %v3464 = vadd.f32 %v3463, %v3433
      %v3465 = vadd.f32 %v3464, %v3434
      %v3466 = vadd.f32 %v3465, %v3435
      %v3467 = vadd.f32 %v3466, %v3436
      %v3468 = vadd.f32 %v3467, %v3437
      %v3469 = vadd.f32 %v3468, %v3438
      %v3470 = vadd.f32 %v3469, %v3439
      %v3471 = vadd.f32 %v3470, %v3440
      %v3472 = vadd.f32 %v3471, %v3441
      %v3473 = vadd.f32 %v3472, %v3442
      %v3474 = vadd.f32 %v3473, %v3443
      %v3475 = vadd.f32 %v3474, %v3444
      %v3476 = vadd.f32 %v3475, %v3445
      %v3477 = vadd.f32 %v3476, %v3446
      %v3478 = vadd.f32 %v3477, %v3447
      %v3479 = vadd.f32 %v3478, %v3448
      %v3480 = vadd.f32 %v3479, %v3449
      %v3481 = vadd.f32 %v3480, %v3450
      %v3482 = vrot.slane %v3481, 4
      %v3483 = vadd.f32 %v3481, %v3482
      %v3484 = vrot.slane %v3483, 2
      %v3485 = vadd.f32 %v3483, %v3484
      %v3486 = vrot.slane %v3485, 1
      %v3487 = vadd.f32 %v3485, %v3486
      %3488 = vst [vmem:[%s281 + $0x1] sm:$0x1] %v3487
      %s3489 = smul.u32 32, %s21
      %p3490 = scmp.lt.s32.totalorder %s3489, 63
      %s3491 = scalar_select %p3490, %s3489, 63
      %p3492 = scmp.lt.s32.totalorder %s22, 0
      %s3493 = scalar_select %p3492, %s22, 0
      %s3494 = sadd.s32 %s3493, %s3491
      %s3495 = smul.addr %s3494, 4
      %s3496 = scalar_lea.vmem %s4, %s3495
      %p3497 = scmp.lt.s32.totalorder %s21, 1
      %s3498 = scalar_select %p3497, %s21, 1
      %p3499 = scmp.lt.s32.totalorder %s22, 0
      %s3500 = scalar_select %p3499, %s22, 0
      %s3501 = sadd.s32 %s3500, %s3498
      %s3502 = smul.addr %s3501, 2
      %s3503 = scalar_lea.vmem %s5, %s3502
      // Predicated region
      $region41: #{res_bottleneck_forward.6} parent=35 // pred_check
        %p3504 = pneg %p143
      $region42: #{res_bottleneck_forward.6} parent=35 // pred_check_branch
        %3506 = sbr.rel (%p3504) target = $region44
      $region43: #{res_bottleneck_forward.6} parent=35 // pred_region
        %s3507 = smul.u32 32, %s21
      $region44: #{res_bottleneck_forward.6} parent=35 // pred_fallthru
        _
      // Predicated region
      $region45: #{res_bottleneck_forward.6} parent=35 // pred_check
        %p3508 = pneg %p171
      $region46: #{res_bottleneck_forward.6} parent=35 // pred_check_branch
        %3510 = sbr.rel (%p3508) target = $region48
      $region47: #{res_bottleneck_forward.6} parent=35 // pred_region
        _
      $region48: #{res_bottleneck_forward.6} parent=35 // pred_fallthru
        _
    $region36: #{res_bottleneck_forward.6} parent=5 // pred_fallthru
      _
    %p3511 = scmp.le.s32.totalorder 2, %s12
    // Predicated region
    $region49: #{res_bottleneck_forward.6} parent=5 // pred_check
      %p3512 = pneg %p3511
    $region50: #{res_bottleneck_forward.6} parent=5 // pred_check_branch
      %3514 = sbr.rel (%p3512) target = $region52
    $region51: #{res_bottleneck_forward.6} parent=5 // pred_region
      %s3515 = ssub.s32 %s12, 2
      // Predicated region
      $region53: #{res_bottleneck_forward.6} parent=51 // pred_check
        %p3516 = pneg %p149
      $region54: #{res_bottleneck_forward.6} parent=51 // pred_check_branch
        %3518 = sbr.rel (%p3516) target = $region56
      $region55: #{res_bottleneck_forward.6} parent=51 // pred_region
        %s3519 = smul.u32 32, %s23
        %p3520 = scmp.lt.s32.totalorder %s3519, 63
        %s3521 = scalar_select %p3520, %s3519, 63
        %p3522 = scmp.lt.s32.totalorder %s24, 0
        %s3523 = scalar_select %p3522, %s24, 0
        %s3524 = sadd.s32 %s3523, %s3521
        %s3525 = smul.addr %s3524, 4
        %s3526 = scalar_lea.vmem %s4, %s3525
      $region56: #{res_bottleneck_forward.6} parent=51 // pred_fallthru
        _
      // Predicated region
      $region57: #{res_bottleneck_forward.6} parent=51 // pred_check
        %p3527 = pneg %p177
      $region58: #{res_bottleneck_forward.6} parent=51 // pred_check_branch
        %3529 = sbr.rel (%p3527) target = $region60
      $region59: #{res_bottleneck_forward.6} parent=51 // pred_region
        %p3530 = scmp.lt.s32.totalorder %s23, 1
        %s3531 = scalar_select %p3530, %s23, 1
        %p3532 = scmp.lt.s32.totalorder %s24, 0
        %s3533 = scalar_select %p3532, %s24, 0
        %s3534 = sadd.s32 %s3533, %s3531
        %s3535 = smul.addr %s3534, 2
        %s3536 = scalar_lea.vmem %s5, %s3535
      $region60: #{res_bottleneck_forward.6} parent=51 // pred_fallthru
        _
    $region52: #{res_bottleneck_forward.6} parent=5 // pred_fallthru
      _
  $region6: #{res_bottleneck_forward.6} parent=0 // loop_footer
    %s16 = sadd.s32 1, %s12
  $region7: #{res_bottleneck_forward.6} parent=0 // loop_footer_branch
    %11 = sbr.rel target = $region3
  $region8: #{res_bottleneck_forward.6} parent=0 // loop_exit
    _

</llo_original>
